<compile_context>
chip_gen: v5e
topology: v5e:2x2
jax: 0.10.0
libtpu: 0.0.40
codegen_flags: <defaults>
</compile_context>

<pallas_src>
import functools

import numpy as np
import jax
import jax.numpy as jnp
from jax import lax
from jax.experimental import pallas as pl
from jax.experimental.pallas import tpu as pltpu

CP = 128  # classifier output lane pad (C <= 128)


def lenet_shot_kernel(l_ref, m1_ref, b1_ref, m2_ref, b2_ref, wh_ref, bh_ref, o_ref, lhs2_ref):
    """Fused LeNet base + bottleneck + BN(eval) + weight-normed classifier for one batch block.

    Shapes for a block of TB samples (TB = o_ref.shape[0], multiple of 16):
      l_ref    (6*TB, 224)    bf16  row r*TB+b holds x[b, 4r:4r+8, :] flattened (K = 8*28)
      m1_ref   (8, 224, 256)  bf16  conv1 banded weights, index [t0*2+dx]; cols (q, co) + 16 pad
      b1_ref   (1, 256)       f32   conv1 bias tiled over the 12 pooled columns (+ zero pad)
      m2_ref   (2, 1280, 200) bf16  conv2 banded weights, index [dx2]; K = (ki2, q, ci) padded
      b2_ref   (1, 200)       f32   conv2 bias tiled over the 4 pooled columns
      wh_ref   (4, 200, 128)  bf16  bottleneck*BN*classifier folded weight, rows (q2, co), index p2
      bh_ref   (1, 128)       f32   folded head bias
      o_ref    (TB, 128)      f32   logits (zero-padded to 128 classes)
      lhs2_ref (2, 4*TB, 1280) bf16 VMEM scratch: conv2 LHS, one slab per pool-row phase dy2
    """
    TB = o_ref.shape[0]

    # ---- conv1 (5x5, 1->20) + MaxPool2d(2) + ReLU -------------------------------------------
    # One K=224 MXU dot per (pool-row parity c, pool phase dy/dx); the 5 conv kernel rows are
    # folded into K by the banded weights (zeros outside the 5 active row planes).
    lhs1 = l_ref[...]                                            # (6*TB, 224) bf16
    h1 = []
    for c in range(2):
        pooled = None
        for dy in range(2):
            for dx in range(2):
                d = jnp.dot(lhs1, m1_ref[(2 * c + dy) * 2 + dx],
                            preferred_element_type=jnp.float32)  # (6*TB, 256) f32
                pooled = d if pooled is None else jnp.maximum(pooled, d)
        # Bias is per-channel-constant over the 2x2 pool window, so bias-after-max == reference.
        h1.append(jnp.maximum(pooled + b1_ref[...], 0.0).astype(jnp.bfloat16))
    # h1[c]: (6*TB, 256); row r*TB+b = pooled row p=2r+c of sample b; cols (q, co) co-fastest,
    # 240 real + 16 zero-pad lanes (keeps the conv2 K-concat lane-aligned).

    # ---- conv2 (5x5, 20->50) + Dropout2d(eval=id) + MaxPool2d(2) + ReLU ----------------------
    # Pack the 5 kernel-row windows along K (lane-aligned 256-wide pieces) into VMEM scratch,
    # then one K=1280 dot per pool phase (dy2, dx2).
    for dy2 in range(2):
        for k in range(5):
            t = dy2 + k
            lhs2_ref[dy2, :, k * 256:(k + 1) * 256] = (
                h1[t % 2][(t // 2) * TB:(t // 2 + 4) * TB, :])
    pooled2 = None
    for dy2 in range(2):
        lhs2 = lhs2_ref[dy2]                                     # (4*TB, 1280) bf16
        for dx2 in range(2):
            d = jnp.dot(lhs2, m2_ref[dx2],
                        preferred_element_type=jnp.float32)      # (4*TB, 200) f32
            pooled2 = d if pooled2 is None else jnp.maximum(pooled2, d)
    h2 = jnp.maximum(pooled2 + b2_ref[...], 0.0).astype(jnp.bfloat16)
    # h2: (4*TB, 200); row p2*TB+b; cols (q2, co), co fastest.

    # ---- bottleneck Linear + BatchNorm1d(eval) + Dropout(eval=id) + weight-norm fc -----------
    # BN and the classifier are folded into wh/bh in the glue: 4 accumulated (TB,200)@(200,128).
    out = None
    for p2 in range(4):
        d = jnp.dot(h2[p2 * TB:(p2 + 1) * TB, :], wh_ref[p2],
                    preferred_element_type=jnp.float32)
        out = d if out is None else out + d
    o_ref[...] = out + bh_ref[...]


def _conv1_phase_weights(w1):
    """(5,5,1,20) HWIO -> (8, 224, 256) banded weights folding conv rows/cols + pool phase.

    m[t0*2+dx, row*28+col, q*20+co] = w1[row-t0, col-2q-dx, 0, co] (zero outside the band);
    columns 240..255 are zero so h1 comes out 256 lanes wide.
    """
    kh, kw, cin, cout = w1.shape
    assert (kh, kw, cin) == (5, 5, 1)
    sel = np.zeros((4, 2, 8, 28, 12, kh, kw), np.float32)
    for t0 in range(4):
        for dx in range(2):
            for q in range(12):
                for ki in range(kh):
                    for kj in range(kw):
                        sel[t0, dx, t0 + ki, 2 * q + dx + kj, q, ki, kj] = 1.0
    m = jnp.einsum('tdrcqij,ijf->tdrcqf', jnp.asarray(sel), w1[:, :, 0, :])
    m = m.reshape(8, 8 * 28, 12 * cout)                          # (8, 224, 240)
    return jnp.pad(m, ((0, 0), (0, 0), (0, 256 - 12 * cout)))    # (8, 224, 256)


def _conv2_phase_weights(w2):
    """(5,5,20,50) HWIO -> (2, 1280, 200) banded weights; K = (ki2, q, ci) with 256-wide planes.

    m[dx2, ki2*256 + q*20 + ci, q2*50 + co] = w2[ki2, q-2q2-dx2, ci, co] (zero outside the band
    and in the 240..255 pad rows of every ki2 plane).
    """
    kh, kw, cin, cout = w2.shape
    assert (kh, kw, cin, cout) == (5, 5, 20, 50)
    sel = np.zeros((2, 12, 4, kw), np.float32)
    for dx2 in range(2):
        for q2 in range(4):
            for kj2 in range(kw):
                sel[dx2, 2 * q2 + dx2 + kj2, q2, kj2] = 1.0
    m = jnp.einsum('dqrj,kjcf->dkqcrf', jnp.asarray(sel), w2)    # (2, 5, 12, 20, 4, 50)
    m = m.reshape(2, kh, 12 * cin, 4 * cout)                     # (2, 5, 240, 200)
    m = jnp.pad(m, ((0, 0), (0, 0), (0, 16), (0, 0)))            # (2, 5, 256, 200)
    return m.reshape(2, kh * 256, 4 * cout)                      # (2, 1280, 200)


def _fold_head_params(p, c_pad):
    """Fold BatchNorm1d(eval) + bottleneck bias + weight_norm classifier into (wh, bh).

    wh[p2, q2*50+co, cls] = ((wb * scale) @ wfc)[co*16 + p2*4 + q2, cls]   (kernel feature order)
    bh[cls] = (beta + (bias_b - running_mean) * scale) @ wfc,   scale = gamma * rsqrt(var+eps)
    Only valid in eval mode with dropout=identity and no bottleneck-feature output.
    """
    eps = 1e-5
    hp = lax.Precision.HIGHEST
    scale = p['bn_gamma'] * lax.rsqrt(p['bn_var'] + eps)
    shift = p['bn_beta'] + (p['bb'] - p['bn_mean']) * scale
    vnorm = jnp.sqrt(jnp.sum(p['vt'] * p['vt'], axis=0, keepdims=True))
    wfc = p['vt'] * (p['g'][None, :] / vnorm)                    # (D, C)
    whead = jnp.dot(p['wb'] * scale[None, :], wfc, precision=hp)  # (800, C)
    bhead = jnp.dot(shift, wfc, precision=hp)                    # (C,)
    # Permute rows from PyTorch's NCHW flatten order (co*16 + p2*4 + q2) to (p2, q2, co).
    idx = np.zeros((4, 200), np.int32)
    for p2 in range(4):
        for q2 in range(4):
            idx[p2, q2 * 50:(q2 + 1) * 50] = np.arange(50) * 16 + p2 * 4 + q2
    wh = jnp.take(whead, jnp.asarray(idx), axis=0)               # (4, 200, C)
    C = wfc.shape[1]
    wh = jnp.pad(wh, ((0, 0), (0, 0), (0, c_pad - C)))           # (4, 200, c_pad)
    bh = jnp.pad(bhead, ((0, c_pad - C),)).reshape(1, c_pad)
    return wh, bh


def _pick_block_b(B):
    """Batch tile: multiple of 16 (bf16 row packing), capped at 128, >=2 grid steps when possible
    (v7x has 2 TensorCores; v5e/v6e just take the largest tile the batch allows)."""
    tb = min(128, max(1, (B + 1) // 2))
    return max(16, ((tb + 15) // 16) * 16)


@functools.partial(jax.jit, static_argnames=('block_b',))
def _forward_impl(x_nchw, p, block_b):
    B = x_nchw.shape[0]
    assert x_nchw.shape[1:] == (1, 28, 28), 'LeNet base expects 1x28x28 inputs'
    C = p['vt'].shape[1]
    assert C <= CP
    TB = block_b
    assert TB % 16 == 0
    Bp = ((B + TB - 1) // TB) * TB
    nb = Bp // TB

    x = x_nchw.astype(jnp.float32)[:, 0]                         # (B, 28, 28)
    if Bp != B:
        # Padded rows produce garbage logits that are sliced off below.
        x = jnp.pad(x, ((0, Bp - B), (0, 0), (0, 0)))
    # Shifted 8-row windows flattened into K=224 (NOT a 25x im2col; ~1.7x the bf16 input):
    #   L[blk*6*TB + r*TB + b, t*28 + col] = x[blk*TB + b, 4*r + t, col]
    W = jnp.stack([x[:, 4 * r:4 * r + 8, :] for r in range(6)], axis=1)   # (Bp, 6, 8, 28)
    L = (W.reshape(nb, TB, 6, 224).transpose(0, 2, 1, 3)
          .reshape(nb * 6 * TB, 224).astype(jnp.bfloat16))

    m1 = _conv1_phase_weights(p['w1']).astype(jnp.bfloat16)      # (8, 224, 256)
    m2 = _conv2_phase_weights(p['w2']).astype(jnp.bfloat16)      # (2, 1280, 200)
    b1t = jnp.pad(jnp.tile(p['b1'], 12), ((0, 16),)).reshape(1, 256)
    b2t = jnp.tile(p['b2'], 4).reshape(1, 200)
    wh, bh = _fold_head_params(p, CP)
    wh = wh.astype(jnp.bfloat16)

    logits = pl.pallas_call(
        lenet_shot_kernel,
        out_shape=jax.ShapeDtypeStruct((Bp, CP), jnp.float32),
        grid=(nb,),
        in_specs=[
            pl.BlockSpec((6 * TB, 224), lambda i: (i, 0)),       # per-block activations (pipelined)
            pl.BlockSpec((8, 224, 256), lambda i: (0, 0, 0)),    # weights: constant block index ->
            pl.BlockSpec((1, 256), lambda i: (0, 0)),            # DMA'd once, reused across steps
            pl.BlockSpec((2, 1280, 200), lambda i: (0, 0, 0)),
            pl.BlockSpec((1, 200), lambda i: (0, 0)),
            pl.BlockSpec((4, 200, CP), lambda i: (0, 0, 0)),
            pl.BlockSpec((1, CP), lambda i: (0, 0)),
        ],
        out_specs=pl.BlockSpec((TB, CP), lambda i: (i, 0)),
        scratch_shapes=[pltpu.VMEM((2, 4 * TB, 1280), jnp.bfloat16)],
        compiler_params=pltpu.CompilerParams(
            dimension_semantics=('parallel',),                   # megacore-shard over batch blocks
            vmem_limit_bytes=32 * 1024 * 1024,                   # ~9 MB needed at TB=128; headroom
        ),
    )(L, m1, b1t, m2, b2t, wh, bh)
    return logits[:B, :C]


def classifier_shot_forward(x_nchw, p, block_b=None):
    """Eval-mode forward of ClassifierShot(arch='lenet', use_shot=True). x_nchw: (B, 1, 28, 28)."""
    if block_b is None:
        block_b = _pick_block_b(x_nchw.shape[0])
    return _forward_impl(x_nchw, p, block_b)


def reference_forward(x_nchw, p):
    """Plain-JAX f32 reference of the same eval-mode forward (for a tolerance check)."""
    dn = ('NCHW', 'HWIO', 'NCHW')
    hp = lax.Precision.HIGHEST
    x = x_nchw.astype(jnp.float32)
    y = lax.conv_general_dilated(x, p['w1'], (1, 1), 'VALID', dimension_numbers=dn, precision=hp)
    y = y + p['b1'][None, :, None, None]
    y = lax.reduce_window(y, -jnp.inf, lax.max, (1, 1, 2, 2), (1, 1, 2, 2), 'VALID')
    y = jnp.maximum(y, 0.0)
    y = lax.conv_general_dilated(y, p['w2'], (1, 1), 'VALID', dimension_numbers=dn, precision=hp)
    y = y + p['b2'][None, :, None, None]
    y = lax.reduce_window(y, -jnp.inf, lax.max, (1, 1, 2, 2), (1, 1, 2, 2), 'VALID')
    y = jnp.maximum(y, 0.0)
    feat = y.reshape(y.shape[0], -1)                             # NCHW flatten, matches PyTorch
    z = jnp.dot(feat, p['wb'], precision=hp) + p['bb']
    scale = p['bn_gamma'] / jnp.sqrt(p['bn_var'] + 1e-5)
    z = (z - p['bn_mean']) * scale + p['bn_beta']
    wfc = p['vt'] * (p['g'][None, :] / jnp.sqrt(jnp.sum(p['vt'] ** 2, axis=0, keepdims=True)))
    return jnp.dot(z, wfc, precision=hp)


def init_params(key, num_classes=10, bottleneck_dim=256):
    ks = jax.random.split(key, 4)

    def kaiming_uniform(k, shape, fan_in):
        bound = (6.0 / fan_in) ** 0.5
        return jax.random.uniform(k, shape, jnp.float32, -bound, bound)

    # LeNetBase convs: kaiming_uniform weights, zero bias (init_weights); HWIO layout.
    w1 = kaiming_uniform(ks[0], (5, 5, 1, 20), 5 * 5 * 1)
    b1 = jnp.zeros((20,), jnp.float32)
    w2 = kaiming_uniform(ks[1], (5, 5, 20, 50), 5 * 5 * 20)
    b2 = jnp.zeros((50,), jnp.float32)
    F = 50 * 4 * 4
    # bottleneck Linear: xavier_normal weight (stored transposed (F, D)), zero bias
    std_b = (2.0 / (F + bottleneck_dim)) ** 0.5
    wb = std_b * jax.random.normal(ks[2], (F, bottleneck_dim), jnp.float32)
    bb = jnp.zeros((bottleneck_dim,), jnp.float32)
    # BatchNorm1d defaults: gamma=1, beta=0, running_mean=0, running_var=1
    bn_gamma = jnp.ones((bottleneck_dim,), jnp.float32)
    bn_beta = jnp.zeros((bottleneck_dim,), jnp.float32)
    bn_mean = jnp.zeros((bottleneck_dim,), jnp.float32)
    bn_var = jnp.ones((bottleneck_dim,), jnp.float32)
    # weight-normed classifier (no bias): v stored transposed (D, C), g = ||v|| per class
    std_c = (2.0 / (bottleneck_dim + num_classes)) ** 0.5
    vt = std_c * jax.random.normal(ks[3], (bottleneck_dim, num_classes), jnp.float32)
    g = jnp.sqrt(jnp.sum(vt * vt, axis=0))
    return dict(w1=w1, b1=b1, w2=w2, b2=b2, wb=wb, bb=bb,
                bn_gamma=bn_gamma, bn_beta=bn_beta, bn_mean=bn_mean, bn_var=bn_var,
                vt=vt, g=g)


if __name__ == "__main__":
    key = jax.random.PRNGKey(0)
    pkey, xkey = jax.random.split(key)
    params = init_params(pkey, num_classes=10)
    # LeNet base requires 1x28x28 inputs so that out_features = 50*4*4 = 800
    x = jax.random.normal(xkey, (2, 1, 28, 28), jnp.float32)
    logits = classifier_shot_forward(x, params)
    jax.block_until_ready(logits)
    assert logits.shape == (2, 10) and logits.dtype == jnp.float32
    ref = reference_forward(x, params)
    err = float(jnp.max(jnp.abs(logits - ref)))
    assert err < 0.3, f"kernel/reference mismatch: max abs err = {err}"
    print("KERNEL_OK")
</pallas_src>

<mosaic_0001>
module attributes {stable_mosaic.version = 11 : i64} {
  func.func @lenet_shot_kernel(%arg0: i32, %arg1: memref<96x224xbf16, #tpu.memory_space<vmem>>, %arg2: memref<8x224x256xbf16, #tpu.memory_space<vmem>>, %arg3: memref<1x256xf32, #tpu.memory_space<vmem>>, %arg4: memref<2x1280x200xbf16, #tpu.memory_space<vmem>>, %arg5: memref<1x200xf32, #tpu.memory_space<vmem>>, %arg6: memref<4x200x128xbf16, #tpu.memory_space<vmem>>, %arg7: memref<1x128xf32, #tpu.memory_space<vmem>>, %arg8: memref<16x128xf32, #tpu.memory_space<vmem>>, %arg9: memref<2x64x1280xbf16, #tpu.memory_space<vmem>>) attributes {dimension_semantics = [#tpu.dimension_semantics<parallel>], iteration_bounds = array<i64: 1>, scalar_prefetch = 0 : i64, scratch_operands = 1 : i64, tpu.core_type = #tpu.core_type<tc>, window_params = [{transform_indices = @transform_0, window_bounds = array<i64: 96, 224>}, {pipeline_mode = #tpu.pipeline_mode<synchronous>, transform_indices = @transform_1, window_bounds = array<i64: 8, 224, 256>}, {pipeline_mode = #tpu.pipeline_mode<synchronous>, transform_indices = @transform_2, window_bounds = array<i64: 1, 256>}, {pipeline_mode = #tpu.pipeline_mode<synchronous>, transform_indices = @transform_3, window_bounds = array<i64: 2, 1280, 200>}, {pipeline_mode = #tpu.pipeline_mode<synchronous>, transform_indices = @transform_4, window_bounds = array<i64: 1, 200>}, {pipeline_mode = #tpu.pipeline_mode<synchronous>, transform_indices = @transform_5, window_bounds = array<i64: 4, 200, 128>}, {pipeline_mode = #tpu.pipeline_mode<synchronous>, transform_indices = @transform_6, window_bounds = array<i64: 1, 128>}, {transform_indices = @transform_7, window_bounds = array<i64: 16, 128>}]} {
    %c0 = arith.constant 0 : index
    %c0_0 = arith.constant 0 : index
    %0 = vector.load %arg1[%c0, %c0_0] : memref<96x224xbf16, #tpu.memory_space<vmem>>, vector<96x224xbf16>
    %c0_1 = arith.constant 0 : index
    %c0_2 = arith.constant 0 : index
    %c0_3 = arith.constant 0 : index
    %1 = vector.load %arg2[%c0_1, %c0_2, %c0_3] : memref<8x224x256xbf16, #tpu.memory_space<vmem>>, vector<1x224x256xbf16>
    %2 = vector.shape_cast %1 : vector<1x224x256xbf16> to vector<224x256xbf16>
    %cst = arith.constant dense<0.000000e+00> : vector<96x256xf32>
    %3 = tpu.matmul %0, %2, %cst {dimension_numbers = #tpu.dot_dimension_numbers<[1], [0], [0], [1], [0, 0, 1, 1], [], []>} : vector<96x224xbf16>, vector<224x256xbf16>, vector<96x256xf32> -> vector<96x256xf32>
    %c1 = arith.constant 1 : index
    %c0_4 = arith.constant 0 : index
    %c0_5 = arith.constant 0 : index
    %4 = vector.load %arg2[%c1, %c0_4, %c0_5] : memref<8x224x256xbf16, #tpu.memory_space<vmem>>, vector<1x224x256xbf16>
    %5 = vector.shape_cast %4 : vector<1x224x256xbf16> to vector<224x256xbf16>
    %cst_6 = arith.constant dense<0.000000e+00> : vector<96x256xf32>
    %6 = tpu.matmul %0, %5, %cst_6 {dimension_numbers = #tpu.dot_dimension_numbers<[1], [0], [0], [1], [0, 0, 1, 1], [], []>} : vector<96x224xbf16>, vector<224x256xbf16>, vector<96x256xf32> -> vector<96x256xf32>
    %7 = arith.maximumf %3, %6 : vector<96x256xf32>
    %c2 = arith.constant 2 : index
    %c0_7 = arith.constant 0 : index
    %c0_8 = arith.constant 0 : index
    %8 = vector.load %arg2[%c2, %c0_7, %c0_8] : memref<8x224x256xbf16, #tpu.memory_space<vmem>>, vector<1x224x256xbf16>
    %9 = vector.shape_cast %8 : vector<1x224x256xbf16> to vector<224x256xbf16>
    %cst_9 = arith.constant dense<0.000000e+00> : vector<96x256xf32>
    %10 = tpu.matmul %0, %9, %cst_9 {dimension_numbers = #tpu.dot_dimension_numbers<[1], [0], [0], [1], [0, 0, 1, 1], [], []>} : vector<96x224xbf16>, vector<224x256xbf16>, vector<96x256xf32> -> vector<96x256xf32>
    %11 = arith.maximumf %7, %10 : vector<96x256xf32>
    %c3 = arith.constant 3 : index
    %c0_10 = arith.constant 0 : index
    %c0_11 = arith.constant 0 : index
    %12 = vector.load %arg2[%c3, %c0_10, %c0_11] : memref<8x224x256xbf16, #tpu.memory_space<vmem>>, vector<1x224x256xbf16>
    %13 = vector.shape_cast %12 : vector<1x224x256xbf16> to vector<224x256xbf16>
    %cst_12 = arith.constant dense<0.000000e+00> : vector<96x256xf32>
    %14 = tpu.matmul %0, %13, %cst_12 {dimension_numbers = #tpu.dot_dimension_numbers<[1], [0], [0], [1], [0, 0, 1, 1], [], []>} : vector<96x224xbf16>, vector<224x256xbf16>, vector<96x256xf32> -> vector<96x256xf32>
    %15 = arith.maximumf %11, %14 : vector<96x256xf32>
    %c0_13 = arith.constant 0 : index
    %c0_14 = arith.constant 0 : index
    %16 = vector.load %arg3[%c0_13, %c0_14] : memref<1x256xf32, #tpu.memory_space<vmem>>, vector<1x256xf32>
    %17 = vector.broadcast %16 : vector<1x256xf32> to vector<96x256xf32>
    %18 = arith.addf %15, %17 : vector<96x256xf32>
    %cst_15 = arith.constant 0.000000e+00 : f32
    %19 = vector.broadcast %cst_15 : f32 to vector<96x256xf32>
    %20 = arith.maximumf %18, %19 : vector<96x256xf32>
    %21 = arith.truncf %20 : vector<96x256xf32> to vector<96x256xbf16>
    %c4 = arith.constant 4 : index
    %c0_16 = arith.constant 0 : index
    %c0_17 = arith.constant 0 : index
    %22 = vector.load %arg2[%c4, %c0_16, %c0_17] : memref<8x224x256xbf16, #tpu.memory_space<vmem>>, vector<1x224x256xbf16>
    %23 = vector.shape_cast %22 : vector<1x224x256xbf16> to vector<224x256xbf16>
    %cst_18 = arith.constant dense<0.000000e+00> : vector<96x256xf32>
    %24 = tpu.matmul %0, %23, %cst_18 {dimension_numbers = #tpu.dot_dimension_numbers<[1], [0], [0], [1], [0, 0, 1, 1], [], []>} : vector<96x224xbf16>, vector<224x256xbf16>, vector<96x256xf32> -> vector<96x256xf32>
    %c5 = arith.constant 5 : index
    %c0_19 = arith.constant 0 : index
    %c0_20 = arith.constant 0 : index
    %25 = vector.load %arg2[%c5, %c0_19, %c0_20] : memref<8x224x256xbf16, #tpu.memory_space<vmem>>, vector<1x224x256xbf16>
    %26 = vector.shape_cast %25 : vector<1x224x256xbf16> to vector<224x256xbf16>
    %cst_21 = arith.constant dense<0.000000e+00> : vector<96x256xf32>
    %27 = tpu.matmul %0, %26, %cst_21 {dimension_numbers = #tpu.dot_dimension_numbers<[1], [0], [0], [1], [0, 0, 1, 1], [], []>} : vector<96x224xbf16>, vector<224x256xbf16>, vector<96x256xf32> -> vector<96x256xf32>
    %28 = arith.maximumf %24, %27 : vector<96x256xf32>
    %c6 = arith.constant 6 : index
    %c0_22 = arith.constant 0 : index
    %c0_23 = arith.constant 0 : index
    %29 = vector.load %arg2[%c6, %c0_22, %c0_23] : memref<8x224x256xbf16, #tpu.memory_space<vmem>>, vector<1x224x256xbf16>
    %30 = vector.shape_cast %29 : vector<1x224x256xbf16> to vector<224x256xbf16>
    %cst_24 = arith.constant dense<0.000000e+00> : vector<96x256xf32>
    %31 = tpu.matmul %0, %30, %cst_24 {dimension_numbers = #tpu.dot_dimension_numbers<[1], [0], [0], [1], [0, 0, 1, 1], [], []>} : vector<96x224xbf16>, vector<224x256xbf16>, vector<96x256xf32> -> vector<96x256xf32>
    %32 = arith.maximumf %28, %31 : vector<96x256xf32>
    %c7 = arith.constant 7 : index
    %c0_25 = arith.constant 0 : index
    %c0_26 = arith.constant 0 : index
    %33 = vector.load %arg2[%c7, %c0_25, %c0_26] : memref<8x224x256xbf16, #tpu.memory_space<vmem>>, vector<1x224x256xbf16>
    %34 = vector.shape_cast %33 : vector<1x224x256xbf16> to vector<224x256xbf16>
    %cst_27 = arith.constant dense<0.000000e+00> : vector<96x256xf32>
    %35 = tpu.matmul %0, %34, %cst_27 {dimension_numbers = #tpu.dot_dimension_numbers<[1], [0], [0], [1], [0, 0, 1, 1], [], []>} : vector<96x224xbf16>, vector<224x256xbf16>, vector<96x256xf32> -> vector<96x256xf32>
    %36 = arith.maximumf %32, %35 : vector<96x256xf32>
    %c0_28 = arith.constant 0 : index
    %c0_29 = arith.constant 0 : index
    %37 = vector.load %arg3[%c0_28, %c0_29] : memref<1x256xf32, #tpu.memory_space<vmem>>, vector<1x256xf32>
    %38 = vector.broadcast %37 : vector<1x256xf32> to vector<96x256xf32>
    %39 = arith.addf %36, %38 : vector<96x256xf32>
    %cst_30 = arith.constant 0.000000e+00 : f32
    %40 = vector.broadcast %cst_30 : f32 to vector<96x256xf32>
    %41 = arith.maximumf %39, %40 : vector<96x256xf32>
    %42 = arith.truncf %41 : vector<96x256xf32> to vector<96x256xbf16>
    %43 = vector.extract_strided_slice %21 {offsets = [0, 0], sizes = [64, 256], strides = [1, 1]} : vector<96x256xbf16> to vector<64x256xbf16>
    %c0_31 = arith.constant 0 : index
    %c0_32 = arith.constant 0 : index
    %c0_33 = arith.constant 0 : index
    %44 = vector.load %arg9[%c0_31, %c0_32, %c0_33] : memref<2x64x1280xbf16, #tpu.memory_space<vmem>>, vector<1x64x256xbf16>
    %45 = vector.shape_cast %44 : vector<1x64x256xbf16> to vector<64x256xbf16>
    %46 = vector.shape_cast %43 : vector<64x256xbf16> to vector<1x64x256xbf16>
    tpu.vector_store %arg9[%c0_31, %c0_32, %c0_33], %46 {strides = array<i32>} : memref<2x64x1280xbf16, #tpu.memory_space<vmem>>, vector<1x64x256xbf16>,
    %47 = vector.extract_strided_slice %42 {offsets = [0, 0], sizes = [64, 256], strides = [1, 1]} : vector<96x256xbf16> to vector<64x256xbf16>
    %c0_34 = arith.constant 0 : index
    %c0_35 = arith.constant 0 : index
    %c256 = arith.constant 256 : index
    %48 = vector.load %arg9[%c0_34, %c0_35, %c256] : memref<2x64x1280xbf16, #tpu.memory_space<vmem>>, vector<1x64x256xbf16>
    %49 = vector.shape_cast %48 : vector<1x64x256xbf16> to vector<64x256xbf16>
    %50 = vector.shape_cast %47 : vector<64x256xbf16> to vector<1x64x256xbf16>
    tpu.vector_store %arg9[%c0_34, %c0_35, %c256], %50 {strides = array<i32>} : memref<2x64x1280xbf16, #tpu.memory_space<vmem>>, vector<1x64x256xbf16>,
    %51 = vector.extract_strided_slice %21 {offsets = [16, 0], sizes = [64, 256], strides = [1, 1]} : vector<96x256xbf16> to vector<64x256xbf16>
    %c0_36 = arith.constant 0 : index
    %c0_37 = arith.constant 0 : index
    %c512 = arith.constant 512 : index
    %52 = vector.load %arg9[%c0_36, %c0_37, %c512] : memref<2x64x1280xbf16, #tpu.memory_space<vmem>>, vector<1x64x256xbf16>
    %53 = vector.shape_cast %52 : vector<1x64x256xbf16> to vector<64x256xbf16>
    %54 = vector.shape_cast %51 : vector<64x256xbf16> to vector<1x64x256xbf16>
    tpu.vector_store %arg9[%c0_36, %c0_37, %c512], %54 {strides = array<i32>} : memref<2x64x1280xbf16, #tpu.memory_space<vmem>>, vector<1x64x256xbf16>,
    %55 = vector.extract_strided_slice %42 {offsets = [16, 0], sizes = [64, 256], strides = [1, 1]} : vector<96x256xbf16> to vector<64x256xbf16>
    %c0_38 = arith.constant 0 : index
    %c0_39 = arith.constant 0 : index
    %c768 = arith.constant 768 : index
    %56 = vector.load %arg9[%c0_38, %c0_39, %c768] : memref<2x64x1280xbf16, #tpu.memory_space<vmem>>, vector<1x64x256xbf16>
    %57 = vector.shape_cast %56 : vector<1x64x256xbf16> to vector<64x256xbf16>
    %58 = vector.shape_cast %55 : vector<64x256xbf16> to vector<1x64x256xbf16>
    tpu.vector_store %arg9[%c0_38, %c0_39, %c768], %58 {strides = array<i32>} : memref<2x64x1280xbf16, #tpu.memory_space<vmem>>, vector<1x64x256xbf16>,
    %59 = vector.extract_strided_slice %21 {offsets = [32, 0], sizes = [64, 256], strides = [1, 1]} : vector<96x256xbf16> to vector<64x256xbf16>
    %c0_40 = arith.constant 0 : index
    %c0_41 = arith.constant 0 : index
    %c1024 = arith.constant 1024 : index
    %60 = vector.load %arg9[%c0_40, %c0_41, %c1024] : memref<2x64x1280xbf16, #tpu.memory_space<vmem>>, vector<1x64x256xbf16>
    %61 = vector.shape_cast %60 : vector<1x64x256xbf16> to vector<64x256xbf16>
    %62 = vector.shape_cast %59 : vector<64x256xbf16> to vector<1x64x256xbf16>
    tpu.vector_store %arg9[%c0_40, %c0_41, %c1024], %62 {strides = array<i32>} : memref<2x64x1280xbf16, #tpu.memory_space<vmem>>, vector<1x64x256xbf16>,
    %63 = vector.extract_strided_slice %42 {offsets = [0, 0], sizes = [64, 256], strides = [1, 1]} : vector<96x256xbf16> to vector<64x256xbf16>
    %c1_42 = arith.constant 1 : index
    %c0_43 = arith.constant 0 : index
    %c0_44 = arith.constant 0 : index
    %64 = vector.load %arg9[%c1_42, %c0_43, %c0_44] : memref<2x64x1280xbf16, #tpu.memory_space<vmem>>, vector<1x64x256xbf16>
    %65 = vector.shape_cast %64 : vector<1x64x256xbf16> to vector<64x256xbf16>
    %66 = vector.shape_cast %63 : vector<64x256xbf16> to vector<1x64x256xbf16>
    tpu.vector_store %arg9[%c1_42, %c0_43, %c0_44], %66 {strides = array<i32>} : memref<2x64x1280xbf16, #tpu.memory_space<vmem>>, vector<1x64x256xbf16>,
    %67 = vector.extract_strided_slice %21 {offsets = [16, 0], sizes = [64, 256], strides = [1, 1]} : vector<96x256xbf16> to vector<64x256xbf16>
    %c1_45 = arith.constant 1 : index
    %c0_46 = arith.constant 0 : index
    %c256_47 = arith.constant 256 : index
    %68 = vector.load %arg9[%c1_45, %c0_46, %c256_47] : memref<2x64x1280xbf16, #tpu.memory_space<vmem>>, vector<1x64x256xbf16>
    %69 = vector.shape_cast %68 : vector<1x64x256xbf16> to vector<64x256xbf16>
    %70 = vector.shape_cast %67 : vector<64x256xbf16> to vector<1x64x256xbf16>
    tpu.vector_store %arg9[%c1_45, %c0_46, %c256_47], %70 {strides = array<i32>} : memref<2x64x1280xbf16, #tpu.memory_space<vmem>>, vector<1x64x256xbf16>,
    %71 = vector.extract_strided_slice %42 {offsets = [16, 0], sizes = [64, 256], strides = [1, 1]} : vector<96x256xbf16> to vector<64x256xbf16>
    %c1_48 = arith.constant 1 : index
    %c0_49 = arith.constant 0 : index
    %c512_50 = arith.constant 512 : index
    %72 = vector.load %arg9[%c1_48, %c0_49, %c512_50] : memref<2x64x1280xbf16, #tpu.memory_space<vmem>>, vector<1x64x256xbf16>
    %73 = vector.shape_cast %72 : vector<1x64x256xbf16> to vector<64x256xbf16>
    %74 = vector.shape_cast %71 : vector<64x256xbf16> to vector<1x64x256xbf16>
    tpu.vector_store %arg9[%c1_48, %c0_49, %c512_50], %74 {strides = array<i32>} : memref<2x64x1280xbf16, #tpu.memory_space<vmem>>, vector<1x64x256xbf16>,
    %75 = vector.extract_strided_slice %21 {offsets = [32, 0], sizes = [64, 256], strides = [1, 1]} : vector<96x256xbf16> to vector<64x256xbf16>
    %c1_51 = arith.constant 1 : index
    %c0_52 = arith.constant 0 : index
    %c768_53 = arith.constant 768 : index
    %76 = vector.load %arg9[%c1_51, %c0_52, %c768_53] : memref<2x64x1280xbf16, #tpu.memory_space<vmem>>, vector<1x64x256xbf16>
    %77 = vector.shape_cast %76 : vector<1x64x256xbf16> to vector<64x256xbf16>
    %78 = vector.shape_cast %75 : vector<64x256xbf16> to vector<1x64x256xbf16>
    tpu.vector_store %arg9[%c1_51, %c0_52, %c768_53], %78 {strides = array<i32>} : memref<2x64x1280xbf16, #tpu.memory_space<vmem>>, vector<1x64x256xbf16>,
    %79 = vector.extract_strided_slice %42 {offsets = [32, 0], sizes = [64, 256], strides = [1, 1]} : vector<96x256xbf16> to vector<64x256xbf16>
    %c1_54 = arith.constant 1 : index
    %c0_55 = arith.constant 0 : index
    %c1024_56 = arith.constant 1024 : index
    %80 = vector.load %arg9[%c1_54, %c0_55, %c1024_56] : memref<2x64x1280xbf16, #tpu.memory_space<vmem>>, vector<1x64x256xbf16>
    %81 = vector.shape_cast %80 : vector<1x64x256xbf16> to vector<64x256xbf16>
    %82 = vector.shape_cast %79 : vector<64x256xbf16> to vector<1x64x256xbf16>
    tpu.vector_store %arg9[%c1_54, %c0_55, %c1024_56], %82 {strides = array<i32>} : memref<2x64x1280xbf16, #tpu.memory_space<vmem>>, vector<1x64x256xbf16>,
    %c0_57 = arith.constant 0 : index
    %c0_58 = arith.constant 0 : index
    %c0_59 = arith.constant 0 : index
    %83 = vector.load %arg9[%c0_57, %c0_58, %c0_59] : memref<2x64x1280xbf16, #tpu.memory_space<vmem>>, vector<1x64x1280xbf16>
    %84 = vector.shape_cast %83 : vector<1x64x1280xbf16> to vector<64x1280xbf16>
    %c0_60 = arith.constant 0 : index
    %c0_61 = arith.constant 0 : index
    %c0_62 = arith.constant 0 : index
    %85 = vector.load %arg4[%c0_60, %c0_61, %c0_62] : memref<2x1280x200xbf16, #tpu.memory_space<vmem>>, vector<1x1280x200xbf16>
    %86 = vector.shape_cast %85 : vector<1x1280x200xbf16> to vector<1280x200xbf16>
    %cst_63 = arith.constant dense<0.000000e+00> : vector<64x200xf32>
    %87 = tpu.matmul %84, %86, %cst_63 {dimension_numbers = #tpu.dot_dimension_numbers<[1], [0], [0], [1], [0, 0, 1, 1], [], []>} : vector<64x1280xbf16>, vector<1280x200xbf16>, vector<64x200xf32> -> vector<64x200xf32>
    %c1_64 = arith.constant 1 : index
    %c0_65 = arith.constant 0 : index
    %c0_66 = arith.constant 0 : index
    %88 = vector.load %arg4[%c1_64, %c0_65, %c0_66] : memref<2x1280x200xbf16, #tpu.memory_space<vmem>>, vector<1x1280x200xbf16>
    %89 = vector.shape_cast %88 : vector<1x1280x200xbf16> to vector<1280x200xbf16>
    %cst_67 = arith.constant dense<0.000000e+00> : vector<64x200xf32>
    %90 = tpu.matmul %84, %89, %cst_67 {dimension_numbers = #tpu.dot_dimension_numbers<[1], [0], [0], [1], [0, 0, 1, 1], [], []>} : vector<64x1280xbf16>, vector<1280x200xbf16>, vector<64x200xf32> -> vector<64x200xf32>
    %91 = arith.maximumf %87, %90 : vector<64x200xf32>
    %c1_68 = arith.constant 1 : index
    %c0_69 = arith.constant 0 : index
    %c0_70 = arith.constant 0 : index
    %92 = vector.load %arg9[%c1_68, %c0_69, %c0_70] : memref<2x64x1280xbf16, #tpu.memory_space<vmem>>, vector<1x64x1280xbf16>
    %93 = vector.shape_cast %92 : vector<1x64x1280xbf16> to vector<64x1280xbf16>
    %c0_71 = arith.constant 0 : index
    %c0_72 = arith.constant 0 : index
    %c0_73 = arith.constant 0 : index
    %94 = vector.load %arg4[%c0_71, %c0_72, %c0_73] : memref<2x1280x200xbf16, #tpu.memory_space<vmem>>, vector<1x1280x200xbf16>
    %95 = vector.shape_cast %94 : vector<1x1280x200xbf16> to vector<1280x200xbf16>
    %cst_74 = arith.constant dense<0.000000e+00> : vector<64x200xf32>
    %96 = tpu.matmul %93, %95, %cst_74 {dimension_numbers = #tpu.dot_dimension_numbers<[1], [0], [0], [1], [0, 0, 1, 1], [], []>} : vector<64x1280xbf16>, vector<1280x200xbf16>, vector<64x200xf32> -> vector<64x200xf32>
    %97 = arith.maximumf %91, %96 : vector<64x200xf32>
    %c1_75 = arith.constant 1 : index
    %c0_76 = arith.constant 0 : index
    %c0_77 = arith.constant 0 : index
    %98 = vector.load %arg4[%c1_75, %c0_76, %c0_77] : memref<2x1280x200xbf16, #tpu.memory_space<vmem>>, vector<1x1280x200xbf16>
    %99 = vector.shape_cast %98 : vector<1x1280x200xbf16> to vector<1280x200xbf16>
    %cst_78 = arith.constant dense<0.000000e+00> : vector<64x200xf32>
    %100 = tpu.matmul %93, %99, %cst_78 {dimension_numbers = #tpu.dot_dimension_numbers<[1], [0], [0], [1], [0, 0, 1, 1], [], []>} : vector<64x1280xbf16>, vector<1280x200xbf16>, vector<64x200xf32> -> vector<64x200xf32>
    %101 = arith.maximumf %97, %100 : vector<64x200xf32>
    %c0_79 = arith.constant 0 : index
    %c0_80 = arith.constant 0 : index
    %102 = vector.load %arg5[%c0_79, %c0_80] : memref<1x200xf32, #tpu.memory_space<vmem>>, vector<1x200xf32>
    %103 = vector.broadcast %102 : vector<1x200xf32> to vector<64x200xf32>
    %104 = arith.addf %101, %103 : vector<64x200xf32>
    %cst_81 = arith.constant 0.000000e+00 : f32
    %105 = vector.broadcast %cst_81 : f32 to vector<64x200xf32>
    %106 = arith.maximumf %104, %105 : vector<64x200xf32>
    %107 = arith.truncf %106 : vector<64x200xf32> to vector<64x200xbf16>
    %108 = vector.extract_strided_slice %107 {offsets = [0, 0], sizes = [16, 200], strides = [1, 1]} : vector<64x200xbf16> to vector<16x200xbf16>
    %c0_82 = arith.constant 0 : index
    %c0_83 = arith.constant 0 : index
    %c0_84 = arith.constant 0 : index
    %109 = vector.load %arg6[%c0_82, %c0_83, %c0_84] : memref<4x200x128xbf16, #tpu.memory_space<vmem>>, vector<1x200x128xbf16>
    %110 = vector.shape_cast %109 : vector<1x200x128xbf16> to vector<200x128xbf16>
    %cst_85 = arith.constant dense<0.000000e+00> : vector<16x128xf32>
    %111 = tpu.matmul %108, %110, %cst_85 {dimension_numbers = #tpu.dot_dimension_numbers<[1], [0], [0], [1], [0, 0, 1, 1], [], []>} : vector<16x200xbf16>, vector<200x128xbf16>, vector<16x128xf32> -> vector<16x128xf32>
    %112 = vector.extract_strided_slice %107 {offsets = [16, 0], sizes = [16, 200], strides = [1, 1]} : vector<64x200xbf16> to vector<16x200xbf16>
    %c1_86 = arith.constant 1 : index
    %c0_87 = arith.constant 0 : index
    %c0_88 = arith.constant 0 : index
    %113 = vector.load %arg6[%c1_86, %c0_87, %c0_88] : memref<4x200x128xbf16, #tpu.memory_space<vmem>>, vector<1x200x128xbf16>
    %114 = vector.shape_cast %113 : vector<1x200x128xbf16> to vector<200x128xbf16>
    %cst_89 = arith.constant dense<0.000000e+00> : vector<16x128xf32>
    %115 = tpu.matmul %112, %114, %cst_89 {dimension_numbers = #tpu.dot_dimension_numbers<[1], [0], [0], [1], [0, 0, 1, 1], [], []>} : vector<16x200xbf16>, vector<200x128xbf16>, vector<16x128xf32> -> vector<16x128xf32>
    %116 = arith.addf %111, %115 : vector<16x128xf32>
    %117 = vector.extract_strided_slice %107 {offsets = [32, 0], sizes = [16, 200], strides = [1, 1]} : vector<64x200xbf16> to vector<16x200xbf16>
    %c2_90 = arith.constant 2 : index
    %c0_91 = arith.constant 0 : index
    %c0_92 = arith.constant 0 : index
    %118 = vector.load %arg6[%c2_90, %c0_91, %c0_92] : memref<4x200x128xbf16, #tpu.memory_space<vmem>>, vector<1x200x128xbf16>
    %119 = vector.shape_cast %118 : vector<1x200x128xbf16> to vector<200x128xbf16>
    %cst_93 = arith.constant dense<0.000000e+00> : vector<16x128xf32>
    %120 = tpu.matmul %117, %119, %cst_93 {dimension_numbers = #tpu.dot_dimension_numbers<[1], [0], [0], [1], [0, 0, 1, 1], [], []>} : vector<16x200xbf16>, vector<200x128xbf16>, vector<16x128xf32> -> vector<16x128xf32>
    %121 = arith.addf %116, %120 : vector<16x128xf32>
    %122 = vector.extract_strided_slice %107 {offsets = [48, 0], sizes = [16, 200], strides = [1, 1]} : vector<64x200xbf16> to vector<16x200xbf16>
    %c3_94 = arith.constant 3 : index
    %c0_95 = arith.constant 0 : index
    %c0_96 = arith.constant 0 : index
    %123 = vector.load %arg6[%c3_94, %c0_95, %c0_96] : memref<4x200x128xbf16, #tpu.memory_space<vmem>>, vector<1x200x128xbf16>
    %124 = vector.shape_cast %123 : vector<1x200x128xbf16> to vector<200x128xbf16>
    %cst_97 = arith.constant dense<0.000000e+00> : vector<16x128xf32>
    %125 = tpu.matmul %122, %124, %cst_97 {dimension_numbers = #tpu.dot_dimension_numbers<[1], [0], [0], [1], [0, 0, 1, 1], [], []>} : vector<16x200xbf16>, vector<200x128xbf16>, vector<16x128xf32> -> vector<16x128xf32>
    %126 = arith.addf %121, %125 : vector<16x128xf32>
    %c0_98 = arith.constant 0 : index
    %c0_99 = arith.constant 0 : index
    %127 = vector.load %arg7[%c0_98, %c0_99] : memref<1x128xf32, #tpu.memory_space<vmem>>, vector<1x128xf32>
    %128 = vector.broadcast %127 : vector<1x128xf32> to vector<16x128xf32>
    %129 = arith.addf %126, %128 : vector<16x128xf32>
    %c0_100 = arith.constant 0 : index
    %c0_101 = arith.constant 0 : index
    %130 = vector.load %arg8[%c0_100, %c0_101] : memref<16x128xf32, #tpu.memory_space<vmem>>, vector<16x128xf32>
    tpu.vector_store %arg8[%c0_100, %c0_101], %129 {strides = array<i32>} : memref<16x128xf32, #tpu.memory_space<vmem>>, vector<16x128xf32>,
    return
  }
  func.func @transform_0(%arg0: i32) -> (i32, i32) {
    %c0_i32 = arith.constant 0 : i32
    %c0_i32_0 = arith.constant 0 : i32
    return %arg0, %c0_i32 : i32, i32
  }
  func.func @transform_1(%arg0: i32) -> (i32, i32, i32) {
    %c0_i32 = arith.constant 0 : i32
    %c0_i32_0 = arith.constant 0 : i32
    %c0_i32_1 = arith.constant 0 : i32
    %c0_i32_2 = arith.constant 0 : i32
    return %c0_i32, %c0_i32_0, %c0_i32_1 : i32, i32, i32
  }
  func.func @transform_2(%arg0: i32) -> (i32, i32) {
    %c0_i32 = arith.constant 0 : i32
    %c0_i32_0 = arith.constant 0 : i32
    %c0_i32_1 = arith.constant 0 : i32
    return %c0_i32, %c0_i32_0 : i32, i32
  }
  func.func @transform_3(%arg0: i32) -> (i32, i32, i32) {
    %c0_i32 = arith.constant 0 : i32
    %c0_i32_0 = arith.constant 0 : i32
    %c0_i32_1 = arith.constant 0 : i32
    %c0_i32_2 = arith.constant 0 : i32
    return %c0_i32, %c0_i32_0, %c0_i32_1 : i32, i32, i32
  }
  func.func @transform_4(%arg0: i32) -> (i32, i32) {
    %c0_i32 = arith.constant 0 : i32
    %c0_i32_0 = arith.constant 0 : i32
    %c0_i32_1 = arith.constant 0 : i32
    return %c0_i32, %c0_i32_0 : i32, i32
  }
  func.func @transform_5(%arg0: i32) -> (i32, i32, i32) {
    %c0_i32 = arith.constant 0 : i32
    %c0_i32_0 = arith.constant 0 : i32
    %c0_i32_1 = arith.constant 0 : i32
    %c0_i32_2 = arith.constant 0 : i32
    return %c0_i32, %c0_i32_0, %c0_i32_1 : i32, i32, i32
  }
  func.func @transform_6(%arg0: i32) -> (i32, i32) {
    %c0_i32 = arith.constant 0 : i32
    %c0_i32_0 = arith.constant 0 : i32
    %c0_i32_1 = arith.constant 0 : i32
    return %c0_i32, %c0_i32_0 : i32, i32
  }
  func.func @transform_7(%arg0: i32) -> (i32, i32) {
    %c0_i32 = arith.constant 0 : i32
    %c0_i32_0 = arith.constant 0 : i32
    return %arg0, %c0_i32 : i32, i32
  }
}

</mosaic_0001>

<llo_original>
// kernel: tile.13
$region0: #{tile.13}
  #allocation0 [shape = 's32[1]{0}', space=sflag, size = 0x4, scoped, tag = 'scoped memory for tile.13']
  %s0 = inlined_call_operand.vmem [shape: f32[20], index: 0, kind: input, shape index: {}]
  %s1 = inlined_call_operand.vmem [shape: f32[12,20], index: 1, kind: output, shape index: {}]
  // Predicated region
  $region2: #{tile.13} parent=0 // pred_check
    _
  $region3: #{tile.13} parent=0 // pred_check_branch
    %3 = sbr.rel (0) target = $region5
  $region4: #{tile.13} parent=0 // pred_region
    _
  $region5: #{tile.13} parent=0 // pred_fallthru
    _
  %v4 = vld [vmem:[%s0] ss:$0 sm:$0xff]
  %5 = vst [vmem:[%s1] sm:$0xff] %v4
  %s6 = scalar_lea.vmem %s1, 8
  %7 = vst [vmem:[%s6] sm:$0xff] %v4

// kernel: tile.14
$region0: #{tile.14}
  %s0 = inlined_call_operand.vmem [shape: f32[12,20], index: 0, kind: input, shape index: {}]
  %s1 = inlined_call_operand.vmem [shape: f32[240], index: 1, kind: output, shape index: {}]
  $region1: #{tile.14} parent=0
    #allocation0 [shape = 'u8[4096]{0}', space=vmem, size = 0x1000, scoped, tag = 'scoped mem for output reshape']
    %v2 = vld [vmem:[%s0] sm:$0x1]
    %vm3 = vcmask 162816
    %4 = vst.msk [vmem:[#allocation0] sm:$0x1] %vm3, %v2
    %s5 = scalar_lea.vmem %s0, 6
    %v6 = vld [vmem:[%s5] sm:$0x1]
    %s7 = scalar_lea.vmem %s0, 6
    %v8 = vld [vmem:[%s7] sm:$0x1]
    %vm9 = vcmask 64512
    %v10 = vsel %vm9, %v8, %v6
    %11 = vrot.lane.b32.xlu0 %v10, 120
    %v12 = vpop.permute.xlu0 %11
    %vm13 = vcmask 97280
    %s14 = scalar_lea.vmem [#allocation0], 1
    %15 = vst.msk [vmem:[%s14] sm:$0x1] %vm13, %v12
    %vm16 = vcmask 1048512
    %17 = vst.msk [vmem:[#allocation0] sm:$0x1] %vm16, %v12
    %s18 = scalar_lea.vmem %s0, 5
    %v19 = vld [vmem:[%s18] sm:$0x1]
    %20 = vrot.lane.b32.xlu0 %v19, 100
    %v21 = vpop.permute.xlu0 %20
    %vm22 = vcmask 982816
    %23 = vst.msk [vmem:[#allocation0] sm:$0x1] %vm22, %v21
    %s24 = scalar_lea.vmem %s0, 11
    %v25 = vld [vmem:[%s24] sm:$0x1]
    %26 = vrot.lane.b32.xlu0 %v25, 92
    %v27 = vpop.permute.xlu0 %26
    %vm28 = vcmask 917216
    %s29 = scalar_lea.vmem [#allocation0], 1
    %30 = vst.msk [vmem:[%s29] sm:$0x1] %vm28, %v27
    %s31 = scalar_lea.vmem %s0, 4
    %v32 = vld [vmem:[%s31] sm:$0x1]
    %33 = vrot.lane.b32.xlu0 %v32, 80
    %v34 = vpop.permute.xlu0 %33
    %vm35 = vcmask 818816
    %36 = vst.msk [vmem:[#allocation0] sm:$0x1] %vm35, %v34
    %s37 = scalar_lea.vmem %s0, 10
    %v38 = vld [vmem:[%s37] sm:$0x1]
    %39 = vrot.lane.b32.xlu0 %v38, 72
    %v40 = vpop.permute.xlu0 %39
    %vm41 = vcmask 753216
    %s42 = scalar_lea.vmem [#allocation0], 1
    %43 = vst.msk [vmem:[%s42] sm:$0x1] %vm41, %v40
    %s44 = scalar_lea.vmem %s0, 3
    %v45 = vld [vmem:[%s44] sm:$0x1]
    %46 = vrot.lane.b32.xlu0 %v45, 60
    %v47 = vpop.permute.xlu0 %46
    %vm48 = vcmask 654816
    %49 = vst.msk [vmem:[#allocation0] sm:$0x1] %vm48, %v47
    %s50 = scalar_lea.vmem %s0, 9
    %v51 = vld [vmem:[%s50] sm:$0x1]
    %52 = vrot.lane.b32.xlu0 %v51, 52
    %v53 = vpop.permute.xlu0 %52
    %vm54 = vcmask 589216
    %s55 = scalar_lea.vmem [#allocation0], 1
    %56 = vst.msk [vmem:[%s55] sm:$0x1] %vm54, %v53
    %s57 = scalar_lea.vmem %s0, 2
    %v58 = vld [vmem:[%s57] sm:$0x1]
    %59 = vrot.lane.b32.xlu0 %v58, 40
    %v60 = vpop.permute.xlu0 %59
    %vm61 = vcmask 490816
    %62 = vst.msk [vmem:[#allocation0] sm:$0x1] %vm61, %v60
    %s63 = scalar_lea.vmem %s0, 8
    %v64 = vld [vmem:[%s63] sm:$0x1]
    %65 = vrot.lane.b32.xlu0 %v64, 32
    %v66 = vpop.permute.xlu0 %65
    %vm67 = vcmask 425216
    %s68 = scalar_lea.vmem [#allocation0], 1
    %69 = vst.msk [vmem:[%s68] sm:$0x1] %vm67, %v66
    %s70 = scalar_lea.vmem %s0, 1
    %v71 = vld [vmem:[%s70] sm:$0x1]
    %72 = vrot.lane.b32.xlu0 %v71, 20
    %v73 = vpop.permute.xlu0 %72
    %vm74 = vcmask 326816
    %75 = vst.msk [vmem:[#allocation0] sm:$0x1] %vm74, %v73
    %s76 = scalar_lea.vmem %s0, 7
    %v77 = vld [vmem:[%s76] sm:$0x1]
    %78 = vrot.lane.b32.xlu0 %v77, 12
    %v79 = vpop.permute.xlu0 %78
    %vm80 = vcmask 261216
    %s81 = scalar_lea.vmem [#allocation0], 1
    %82 = vst.msk [vmem:[%s81] sm:$0x1] %vm80, %v79
    %s84 = ssub.s32 4, 1
    %v85 = vld [vmem:[#allocation0] sm:%s84]
    %s87 = ssub.s32 4, 1
    %88 = vst [vmem:[%s1] sm:%s87] %v85

// kernel: tile.18
$region0: #{tile.18}
  #allocation0 [shape = 's32[1]{0}', space=sflag, size = 0x4, scoped, tag = 'scoped memory for tile.18']
  %s0 = inlined_call_operand.vmem [shape: f32[50], index: 0, kind: input, shape index: {}]
  %s1 = inlined_call_operand.vmem [shape: f32[4,50], index: 1, kind: output, shape index: {}]
  // Predicated region
  $region2: #{tile.18} parent=0 // pred_check
    _
  $region3: #{tile.18} parent=0 // pred_check_branch
    %3 = sbr.rel (0) target = $region5
  $region4: #{tile.18} parent=0 // pred_region
    _
  $region5: #{tile.18} parent=0 // pred_fallthru
    _
  %v4 = vld [vmem:[%s0] ss:$0 sm:$0xff]
  %5 = vst [vmem:[%s1] sm:$0xf] %v4

// kernel: tile.19
$region0: #{tile.19}
  %s0 = inlined_call_operand.vmem [shape: f32[4,50], index: 0, kind: input, shape index: {}]
  %s1 = inlined_call_operand.vmem [shape: f32[1,200], index: 1, kind: output, shape index: {}]
  $region1: #{tile.19} parent=0
    #allocation0 [shape = 'u8[8192]{0}', space=vmem, size = 0x2000, scoped, tag = 'scoped mem for output reshape']
    #allocation1 [shape = 'u8[4096]{0}', space=vmem, size = 0x1000, scoped, tag = 'scoped mem for input reshape']
    %s3 = ssub.s32 16, 1
    %v4 = vld [vmem:[%s0] sm:%s3]
    %5 = vst [vmem:[#allocation1] sm:%s3] %v4
    %v6 = vld [vmem:[#allocation1] sm:$0x1]
    %vm7 = vcmask 408576
    %8 = vst.msk [vmem:[#allocation0] sm:$0x1] %vm7, %v6
    %s9 = scalar_lea.vmem [#allocation1], 2
    %v10 = vld [vmem:[%s9] sm:$0x1]
    %s11 = scalar_lea.vmem [#allocation1], 2
    %v12 = vld [vmem:[%s11] sm:$0x1]
    %vm13 = vcmask 228352
    %v14 = vsel %vm13, %v12, %v10
    %15 = vrot.lane.b32.xlu0 %v14, 100
    %v16 = vpop.permute.xlu0 %15
    %vm17 = vcmask 179200
    %s18 = scalar_lea.vmem [#allocation0], 8
    %19 = vst.msk [vmem:[%s18] sm:$0x1] %vm17, %v16
    %vm20 = vcmask 1048352
    %21 = vst.msk [vmem:[#allocation0] sm:$0x1] %vm20, %v16
    %s22 = scalar_lea.vmem [#allocation1], 1
    %v23 = vld [vmem:[%s22] sm:$0x1]
    %24 = vrot.lane.b32.xlu0 %v23, 50
    %v25 = vpop.permute.xlu0 %24
    %vm26 = vcmask 818576
    %27 = vst.msk [vmem:[#allocation0] sm:$0x1] %vm26, %v25
    %s28 = scalar_lea.vmem [#allocation1], 3
    %v29 = vld [vmem:[%s28] sm:$0x1]
    %30 = vrot.lane.b32.xlu0 %v29, 22
    %v31 = vpop.permute.xlu0 %30
    %vm32 = vcmask 588976
    %s33 = scalar_lea.vmem [#allocation0], 8
    %34 = vst.msk [vmem:[%s33] sm:$0x1] %vm32, %v31
    %s36 = ssub.s32 2, 1
    %v37 = vld [vmem:[#allocation0] sm:%s36]
    %s39 = ssub.s32 2, 1
    %40 = vst [vmem:[%s1] sm:%s39] %v37
    %s41 = scalar_lea.vmem [#allocation0], 8
    %v42 = vld [vmem:[%s41] sm:%s36]
    %s44 = ssub.s32 2, 1
    %s45 = scalar_lea.vmem %s1, 1
    %46 = vst [vmem:[%s45] sm:%s44] %v42

// kernel: _forward_impl.1
$region0: #{_forward_impl.1}
  #allocation0 [shape = 'u32[]', space=smem, size = 0x4, offset = 0x4, fixed_abs, tag = 'smem constant byte address 0x4 - core index']
  #allocation1 [shape = 'u32[72,128]{1,0:T(1,128)}', space=vmem, size = 0x9000, scoped, tag = 'internal scratch']
  #allocation2 [shape = 'bf16[2,64,1280]{2,1,0:T(8,128)(2,1)}', space=vmem, size = 0x50000, scoped, tag = 'scratch operand']
  %s0 = inlined_call_operand.vmem [shape: bf16[96,224], index: 0, kind: input, shape index: {}]
  %s1 = inlined_call_operand.vmem [shape: bf16[8,224,256], index: 1, kind: input, shape index: {}]
  %s2 = inlined_call_operand.vmem [shape: f32[1,256], index: 2, kind: input, shape index: {}]
  %s3 = inlined_call_operand.vmem [shape: bf16[2,1280,200], index: 3, kind: input, shape index: {}]
  %s4 = inlined_call_operand.vmem [shape: f32[1,200], index: 4, kind: input, shape index: {}]
  %s5 = inlined_call_operand.vmem [shape: bf16[4,200,128], index: 5, kind: input, shape index: {}]
  %s6 = inlined_call_operand.vmem [shape: f32[1,128], index: 6, kind: input, shape index: {}]
  %s7 = inlined_call_operand.vmem [shape: f32[16,128], index: 7, kind: output, shape index: {}]
  %s8 = sld [smem:[#allocation0]]
  $region38: #{_forward_impl.1} parent=0
    _
  %s10 = ssub.s32 1, %s8
  %s11 = scalar_select 0, %s10, %s8
  // Predicated region
  $region2: #{_forward_impl.1} parent=0 // pred_check
    _
  $region3: #{_forward_impl.1} parent=0 // pred_check_branch
    %13 = sbr.rel (0) target = $region5
  $region4: #{_forward_impl.1} parent=0 // pred_region
    _
  $region5: #{_forward_impl.1} parent=0 // pred_fallthru
    _
  // Predicated region
  $region6: #{_forward_impl.1} parent=0 // pred_check
    _
  $region7: #{_forward_impl.1} parent=0 // pred_check_branch
    %15 = sbr.rel (0) target = $region9
  $region8: #{_forward_impl.1} parent=0 // pred_region
    _
  $region9: #{_forward_impl.1} parent=0 // pred_fallthru
    _
  // Predicated region
  $region10: #{_forward_impl.1} parent=0 // pred_check
    _
  $region11: #{_forward_impl.1} parent=0 // pred_check_branch
    %17 = sbr.rel (0) target = $region13
  $region12: #{_forward_impl.1} parent=0 // pred_region
    _
  $region13: #{_forward_impl.1} parent=0 // pred_fallthru
    _
  // Predicated region
  $region14: #{_forward_impl.1} parent=0 // pred_check
    _
  $region15: #{_forward_impl.1} parent=0 // pred_check_branch
    %19 = sbr.rel (0) target = $region17
  $region16: #{_forward_impl.1} parent=0 // pred_region
    _
  $region17: #{_forward_impl.1} parent=0 // pred_fallthru
    _
  // Predicated region
  $region18: #{_forward_impl.1} parent=0 // pred_check
    _
  $region19: #{_forward_impl.1} parent=0 // pred_check_branch
    %21 = sbr.rel (0) target = $region21
  $region20: #{_forward_impl.1} parent=0 // pred_region
    _
  $region21: #{_forward_impl.1} parent=0 // pred_fallthru
    _
  // Predicated region
  $region22: #{_forward_impl.1} parent=0 // pred_check
    _
  $region23: #{_forward_impl.1} parent=0 // pred_check_branch
    %23 = sbr.rel (0) target = $region25
  $region24: #{_forward_impl.1} parent=0 // pred_region
    _
  $region25: #{_forward_impl.1} parent=0 // pred_fallthru
    _
  // Predicated region
  $region26: #{_forward_impl.1} parent=0 // pred_check
    _
  $region27: #{_forward_impl.1} parent=0 // pred_check_branch
    %25 = sbr.rel (0) target = $region29
  $region28: #{_forward_impl.1} parent=0 // pred_region
    _
  $region29: #{_forward_impl.1} parent=0 // pred_fallthru
    _
  %v27 = vld [vmem:[%s0] sm:$0xff]
  %v28 = vld [vmem:[%s0 + $0x8] sm:$0xff]
  %v29 = vld [vmem:[%s0 + $0x10] sm:$0xff]
  %v30 = vld [vmem:[%s0 + $0x18] sm:$0xff]
  %v31 = vld [vmem:[%s0 + $0x20] sm:$0xff]
  %v32 = vld [vmem:[%s0 + $0x28] sm:$0xff]
  %v33 = vld [vmem:[%s0 + $0x30] sm:$0xff]
  %v34 = vld [vmem:[%s0 + $0x38] sm:$0xff]
  %v35 = vld [vmem:[%s0 + $0x40] sm:$0xff]
  %v36 = vld [vmem:[%s0 + $0x48] sm:$0xff]
  %v37 = vld [vmem:[%s0 + $0x50] sm:$0xff]
  %v38 = vld [vmem:[%s0 + $0x58] sm:$0xff]
  %v39 = vld [vmem:[%s1] sm:$0xff]
  %v40 = vld [vmem:[%s1 + $0x8] sm:$0xff]
  %v41 = vld [vmem:[%s1 + $0x10] sm:$0xff]
  %v42 = vld [vmem:[%s1 + $0x18] sm:$0xff]
  %v43 = vld [vmem:[%s1 + $0x20] sm:$0xff]
  %v44 = vld [vmem:[%s1 + $0x28] sm:$0xff]
  %v45 = vld [vmem:[%s1 + $0x30] sm:$0xff]
  %v46 = vld [vmem:[%s1 + $0x38] sm:$0xff]
  %v47 = vld [vmem:[%s1 + $0x40] sm:$0xff]
  %v48 = vld [vmem:[%s1 + $0x48] sm:$0xff]
  %v49 = vld [vmem:[%s1 + $0x50] sm:$0xff]
  %v50 = vld [vmem:[%s1 + $0x58] sm:$0xff]
  %v51 = vld [vmem:[%s1 + $0x60] sm:$0xff]
  %v52 = vld [vmem:[%s1 + $0x68] sm:$0xff]
  %v53 = vld [vmem:[%s1 + $0x70] sm:$0xff]
  %v54 = vld [vmem:[%s1 + $0x78] sm:$0xff]
  %v55 = vld [vmem:[%s1 + $0x80] sm:$0xff]
  %v56 = vld [vmem:[%s1 + $0x88] sm:$0xff]
  %v57 = vld [vmem:[%s1 + $0x90] sm:$0xff]
  %v58 = vld [vmem:[%s1 + $0x98] sm:$0xff]
  %v59 = vld [vmem:[%s1 + $0xa0] sm:$0xff]
  %v60 = vld [vmem:[%s1 + $0xa8] sm:$0xff]
  %v61 = vld [vmem:[%s1 + $0xb0] sm:$0xff]
  %v62 = vld [vmem:[%s1 + $0xb8] sm:$0xff]
  %v63 = vld [vmem:[%s1 + $0xc0] sm:$0xff]
  %v64 = vld [vmem:[%s1 + $0xc8] sm:$0xff]
  %v65 = vld [vmem:[%s1 + $0xd0] sm:$0xff]
  %v66 = vld [vmem:[%s1 + $0xd8] sm:$0xff]
  %v79 = vunpack.c.l.b16 %v27
  %v80 = vunpack.c.h.b16 %v27
  %v81 = vunpack.c.l.b16 %v28
  %v82 = vunpack.c.h.b16 %v28
  %v83 = vunpack.c.l.b16 %v29
  %v84 = vunpack.c.h.b16 %v29
  %v85 = vunpack.c.l.b16 %v30
  %v86 = vunpack.c.h.b16 %v30
  %v87 = vunpack.c.l.b16 %v31
  %v88 = vunpack.c.h.b16 %v31
  %v89 = vunpack.c.l.b16 %v32
  %v90 = vunpack.c.h.b16 %v32
  %v91 = vunpack.c.l.b16 %v33
  %v92 = vunpack.c.h.b16 %v33
  %v93 = vunpack.c.l.b16 %v34
  %v94 = vunpack.c.h.b16 %v34
  %v95 = vunpack.c.l.b16 %v35
  %v96 = vunpack.c.h.b16 %v35
  %v97 = vunpack.c.l.b16 %v36
  %v98 = vunpack.c.h.b16 %v36
  %v99 = vunpack.c.l.b16 %v37
  %v100 = vunpack.c.h.b16 %v37
  %v101 = vunpack.c.l.b16 %v38
  %v102 = vunpack.c.h.b16 %v38
  %v103 = vpack.c.b16 %v81, %v79
  %v104 = vpack.c.b16 %v82, %v80
  %v105 = vpack.c.b16 %v85, %v83
  %v106 = vpack.c.b16 %v86, %v84
  %v107 = vpack.c.b16 %v89, %v87
  %v108 = vpack.c.b16 %v90, %v88
  %v109 = vpack.c.b16 %v93, %v91
  %v110 = vpack.c.b16 %v94, %v92
  %v111 = vpack.c.b16 %v97, %v95
  %v112 = vpack.c.b16 %v98, %v96
  %v113 = vpack.c.b16 %v101, %v99
  %v114 = vpack.c.b16 %v102, %v100
  %v149 = vunpack.c.l.b16 %v39
  %v150 = vunpack.c.h.b16 %v39
  %v151 = vunpack.c.l.b16 %v40
  %v152 = vunpack.c.h.b16 %v40
  %v153 = vunpack.c.l.b16 %v41
  %v154 = vunpack.c.h.b16 %v41
  %v155 = vunpack.c.l.b16 %v42
  %v156 = vunpack.c.h.b16 %v42
  %v157 = vunpack.c.l.b16 %v43
  %v158 = vunpack.c.h.b16 %v43
  %v159 = vunpack.c.l.b16 %v44
  %v160 = vunpack.c.h.b16 %v44
  %v161 = vunpack.c.l.b16 %v45
  %v162 = vunpack.c.h.b16 %v45
  %v163 = vunpack.c.l.b16 %v46
  %v164 = vunpack.c.h.b16 %v46
  %v165 = vunpack.c.l.b16 %v47
  %v166 = vunpack.c.h.b16 %v47
  %v167 = vunpack.c.l.b16 %v48
  %v168 = vunpack.c.h.b16 %v48
  %v169 = vunpack.c.l.b16 %v49
  %v170 = vunpack.c.h.b16 %v49
  %v171 = vunpack.c.l.b16 %v50
  %v172 = vunpack.c.h.b16 %v50
  %v173 = vunpack.c.l.b16 %v51
  %v174 = vunpack.c.h.b16 %v51
  %v175 = vunpack.c.l.b16 %v52
  %v176 = vunpack.c.h.b16 %v52
  %v177 = vunpack.c.l.b16 %v53
  %v178 = vunpack.c.h.b16 %v53
  %v179 = vunpack.c.l.b16 %v54
  %v180 = vunpack.c.h.b16 %v54
  %v181 = vunpack.c.l.b16 %v55
  %v182 = vunpack.c.h.b16 %v55
  %v183 = vunpack.c.l.b16 %v56
  %v184 = vunpack.c.h.b16 %v56
  %v185 = vunpack.c.l.b16 %v57
  %v186 = vunpack.c.h.b16 %v57
  %v187 = vunpack.c.l.b16 %v58
  %v188 = vunpack.c.h.b16 %v58
  %v189 = vunpack.c.l.b16 %v59
  %v190 = vunpack.c.h.b16 %v59
  %v191 = vunpack.c.l.b16 %v60
  %v192 = vunpack.c.h.b16 %v60
  %v193 = vunpack.c.l.b16 %v61
  %v194 = vunpack.c.h.b16 %v61
  %v195 = vunpack.c.l.b16 %v62
  %v196 = vunpack.c.h.b16 %v62
  %v197 = vunpack.c.l.b16 %v63
  %v198 = vunpack.c.h.b16 %v63
  %v199 = vunpack.c.l.b16 %v64
  %v200 = vunpack.c.h.b16 %v64
  %v201 = vunpack.c.l.b16 %v65
  %v202 = vunpack.c.h.b16 %v65
  %v203 = vunpack.c.l.b16 %v66
  %v204 = vunpack.c.h.b16 %v66
  %v205 = vpack.c.b16 %v151, %v149
  %v206 = vpack.c.b16 %v152, %v150
  %v207 = vpack.c.b16 %v155, %v153
  %v208 = vpack.c.b16 %v156, %v154
  %v209 = vpack.c.b16 %v159, %v157
  %v210 = vpack.c.b16 %v160, %v158
  %v211 = vpack.c.b16 %v163, %v161
  %v212 = vpack.c.b16 %v164, %v162
  %v213 = vpack.c.b16 %v167, %v165
  %v214 = vpack.c.b16 %v168, %v166
  %v215 = vpack.c.b16 %v171, %v169
  %v216 = vpack.c.b16 %v172, %v170
  %v217 = vpack.c.b16 %v175, %v173
  %v218 = vpack.c.b16 %v176, %v174
  %v219 = vpack.c.b16 %v179, %v177
  %v220 = vpack.c.b16 %v180, %v178
  %v221 = vpack.c.b16 %v183, %v181
  %v222 = vpack.c.b16 %v184, %v182
  %v223 = vpack.c.b16 %v187, %v185
  %v224 = vpack.c.b16 %v188, %v186
  %v225 = vpack.c.b16 %v191, %v189
  %v226 = vpack.c.b16 %v192, %v190
  %v227 = vpack.c.b16 %v195, %v193
  %v228 = vpack.c.b16 %v196, %v194
  %v229 = vpack.c.b16 %v199, %v197
  %v230 = vpack.c.b16 %v200, %v198
  %v231 = vpack.c.b16 %v203, %v201
  %v232 = vpack.c.b16 %v204, %v202
  %vm261 = vcmask 785408
  %v263 = vsel %vm261, %v104, 0
  %v266 = vsel %vm261, %v106, 0
  %v269 = vsel %vm261, %v108, 0
  %v272 = vsel %vm261, %v110, 0
  %v275 = vsel %vm261, %v112, 0
  %v278 = vsel %vm261, %v114, 0
  %280 = vmatpush.bf16.msra.mxu0 %v219
  %281 = vmatpush.bf16.msra.mxu0 %v217
  %282 = vmatpush.bf16.msra.mxu0 %v215
  %283 = vmatpush.bf16.msra.mxu0 %v213
  %284 = vmatpush.bf16.msra.mxu0 %v211
  %285 = vmatpush.bf16.msra.mxu0 %v209
  %286 = vmatpush.bf16.msra.mxu0 %v207
  %287 = vmatpush.bf16.msra.mxu0 %v205
  %288 = vmatmul.bf16.gmra.mxu0 %v103
  %v289 = vpop.f32.mrf.mxu0
  %v290 = vadd.f32 0.0, %v289
  %v291 = vpop.f32.mrf.mxu0
  %v292 = vadd.f32 0.0, %v291
  %293 = vmatmul.bf16.gmra.mxu0 %v105
  %v294 = vpop.f32.mrf.mxu0
  %v295 = vadd.f32 0.0, %v294
  %v296 = vpop.f32.mrf.mxu0
  %v297 = vadd.f32 0.0, %v296
  %298 = vmatmul.bf16.gmra.mxu0 %v107
  %v299 = vpop.f32.mrf.mxu0
  %v300 = vadd.f32 0.0, %v299
  %v301 = vpop.f32.mrf.mxu0
  %v302 = vadd.f32 0.0, %v301
  %303 = vmatmul.bf16.gmra.mxu0 %v109
  %v304 = vpop.f32.mrf.mxu0
  %v305 = vadd.f32 0.0, %v304
  %v306 = vpop.f32.mrf.mxu0
  %v307 = vadd.f32 0.0, %v306
  %308 = vmatmul.bf16.gmra.mxu0 %v111
  %v309 = vpop.f32.mrf.mxu0
  %v310 = vadd.f32 0.0, %v309
  %v311 = vpop.f32.mrf.mxu0
  %v312 = vadd.f32 0.0, %v311
  %313 = vmatmul.bf16.gmra.mxu0 %v113
  %v314 = vpop.f32.mrf.mxu0
  %v315 = vadd.f32 0.0, %v314
  %v316 = vpop.f32.mrf.mxu0
  %v317 = vadd.f32 0.0, %v316
  %318 = vdwg.mxu0
  %319 = vmatpush.bf16.msra.mxu0 0
  %320 = vmatpush.bf16.msra.mxu0 0
  %321 = vmatpush.bf16.msra.mxu0 %v231
  %322 = vmatpush.bf16.msra.mxu0 %v229
  %323 = vmatpush.bf16.msra.mxu0 %v227
  %324 = vmatpush.bf16.msra.mxu0 %v225
  %325 = vmatpush.bf16.msra.mxu0 %v223
  %326 = vmatpush.bf16.msra.mxu0 %v221
  %327 = vmatmul.bf16.gmra.mxu0 %v263
  %v328 = vpop.f32.mrf.mxu0
  %v329 = vadd.f32 %v290, %v328
  %v330 = vpop.f32.mrf.mxu0
  %v331 = vadd.f32 %v292, %v330
  %332 = vmatmul.bf16.gmra.mxu0 %v266
  %v333 = vpop.f32.mrf.mxu0
  %v334 = vadd.f32 %v295, %v333
  %v335 = vpop.f32.mrf.mxu0
  %v336 = vadd.f32 %v297, %v335
  %337 = vmatmul.bf16.gmra.mxu0 %v269
  %v338 = vpop.f32.mrf.mxu0
  %v339 = vadd.f32 %v300, %v338
  %v340 = vpop.f32.mrf.mxu0
  %v341 = vadd.f32 %v302, %v340
  %342 = vmatmul.bf16.gmra.mxu0 %v272
  %v343 = vpop.f32.mrf.mxu0
  %v344 = vadd.f32 %v305, %v343
  %v345 = vpop.f32.mrf.mxu0
  %v346 = vadd.f32 %v307, %v345
  %347 = vmatmul.bf16.gmra.mxu0 %v275
  %v348 = vpop.f32.mrf.mxu0
  %v349 = vadd.f32 %v310, %v348
  %v350 = vpop.f32.mrf.mxu0
  %v351 = vadd.f32 %v312, %v350
  %352 = vmatmul.bf16.gmra.mxu0 %v278
  %v353 = vpop.f32.mrf.mxu0
  %v354 = vadd.f32 %v315, %v353
  %v355 = vpop.f32.mrf.mxu0
  %v356 = vadd.f32 %v317, %v355
  %357 = vdwg.mxu0
  %358 = vmatpush.bf16.msra.mxu0 %v220
  %359 = vmatpush.bf16.msra.mxu0 %v218
  %360 = vmatpush.bf16.msra.mxu0 %v216
  %361 = vmatpush.bf16.msra.mxu0 %v214
  %362 = vmatpush.bf16.msra.mxu0 %v212
  %363 = vmatpush.bf16.msra.mxu0 %v210
  %364 = vmatpush.bf16.msra.mxu0 %v208
  %365 = vmatpush.bf16.msra.mxu0 %v206
  %366 = vmatmul.bf16.gmra.mxu0 %v103
  %v367 = vpop.f32.mrf.mxu0
  %v368 = vadd.f32 0.0, %v367
  %v369 = vpop.f32.mrf.mxu0
  %v370 = vadd.f32 0.0, %v369
  %371 = vmatmul.bf16.gmra.mxu0 %v105
  %v372 = vpop.f32.mrf.mxu0
  %v373 = vadd.f32 0.0, %v372
  %v374 = vpop.f32.mrf.mxu0
  %v375 = vadd.f32 0.0, %v374
  %376 = vmatmul.bf16.gmra.mxu0 %v107
  %v377 = vpop.f32.mrf.mxu0
  %v378 = vadd.f32 0.0, %v377
  %v379 = vpop.f32.mrf.mxu0
  %v380 = vadd.f32 0.0, %v379
  %381 = vmatmul.bf16.gmra.mxu0 %v109
  %v382 = vpop.f32.mrf.mxu0
  %v383 = vadd.f32 0.0, %v382
  %v384 = vpop.f32.mrf.mxu0
  %v385 = vadd.f32 0.0, %v384
  %386 = vmatmul.bf16.gmra.mxu0 %v111
  %v387 = vpop.f32.mrf.mxu0
  %v388 = vadd.f32 0.0, %v387
  %v389 = vpop.f32.mrf.mxu0
  %v390 = vadd.f32 0.0, %v389
  %391 = vmatmul.bf16.gmra.mxu0 %v113
  %v392 = vpop.f32.mrf.mxu0
  %v393 = vadd.f32 0.0, %v392
  %v394 = vpop.f32.mrf.mxu0
  %v395 = vadd.f32 0.0, %v394
  %396 = vdwg.mxu0
  %397 = vmatpush.bf16.msra.mxu0 0
  %398 = vmatpush.bf16.msra.mxu0 0
  %399 = vmatpush.bf16.msra.mxu0 %v232
  %400 = vmatpush.bf16.msra.mxu0 %v230
  %401 = vmatpush.bf16.msra.mxu0 %v228
  %402 = vmatpush.bf16.msra.mxu0 %v226
  %403 = vmatpush.bf16.msra.mxu0 %v224
  %404 = vmatpush.bf16.msra.mxu0 %v222
  %405 = vmatmul.bf16.gmra.mxu0 %v263
  %v406 = vpop.f32.mrf.mxu0
  %v407 = vadd.f32 %v368, %v406
  %v408 = vpop.f32.mrf.mxu0
  %v409 = vadd.f32 %v370, %v408
  %410 = vmatmul.bf16.gmra.mxu0 %v266
  %v411 = vpop.f32.mrf.mxu0
  %v412 = vadd.f32 %v373, %v411
  %v413 = vpop.f32.mrf.mxu0
  %v414 = vadd.f32 %v375, %v413
  %415 = vmatmul.bf16.gmra.mxu0 %v269
  %v416 = vpop.f32.mrf.mxu0
  %v417 = vadd.f32 %v378, %v416
  %v418 = vpop.f32.mrf.mxu0
  %v419 = vadd.f32 %v380, %v418
  %420 = vmatmul.bf16.gmra.mxu0 %v272
  %v421 = vpop.f32.mrf.mxu0
  %v422 = vadd.f32 %v383, %v421
  %v423 = vpop.f32.mrf.mxu0
  %v424 = vadd.f32 %v385, %v423
  %425 = vmatmul.bf16.gmra.mxu0 %v275
  %v426 = vpop.f32.mrf.mxu0
  %v427 = vadd.f32 %v388, %v426
  %v428 = vpop.f32.mrf.mxu0
  %v429 = vadd.f32 %v390, %v428
  %430 = vmatmul.bf16.gmra.mxu0 %v278
  %v431 = vpop.f32.mrf.mxu0
  %v432 = vadd.f32 %v393, %v431
  %v433 = vpop.f32.mrf.mxu0
  %v434 = vadd.f32 %v395, %v433
  %435 = vdwg.mxu0
  %s436 = scalar_lea.vmem %s1, 224
  %v437 = vld [vmem:[%s436] sm:$0xff]
  %v438 = vld [vmem:[%s436 + $0x8] sm:$0xff]
  %v439 = vld [vmem:[%s436 + $0x10] sm:$0xff]
  %v440 = vld [vmem:[%s436 + $0x18] sm:$0xff]
  %v441 = vld [vmem:[%s436 + $0x20] sm:$0xff]
  %v442 = vld [vmem:[%s436 + $0x28] sm:$0xff]
  %v443 = vld [vmem:[%s436 + $0x30] sm:$0xff]
  %v444 = vld [vmem:[%s436 + $0x38] sm:$0xff]
  %v445 = vld [vmem:[%s436 + $0x40] sm:$0xff]
  %v446 = vld [vmem:[%s436 + $0x48] sm:$0xff]
  %v447 = vld [vmem:[%s436 + $0x50] sm:$0xff]
  %v448 = vld [vmem:[%s436 + $0x58] sm:$0xff]
  %v449 = vld [vmem:[%s436 + $0x60] sm:$0xff]
  %v450 = vld [vmem:[%s436 + $0x68] sm:$0xff]
  %v451 = vld [vmem:[%s436 + $0x70] sm:$0xff]
  %v452 = vld [vmem:[%s436 + $0x78] sm:$0xff]
  %v453 = vld [vmem:[%s436 + $0x80] sm:$0xff]
  %v454 = vld [vmem:[%s436 + $0x88] sm:$0xff]
  %v455 = vld [vmem:[%s436 + $0x90] sm:$0xff]
  %v456 = vld [vmem:[%s436 + $0x98] sm:$0xff]
  %v457 = vld [vmem:[%s436 + $0xa0] sm:$0xff]
  %v458 = vld [vmem:[%s436 + $0xa8] sm:$0xff]
  %v459 = vld [vmem:[%s436 + $0xb0] sm:$0xff]
  %v460 = vld [vmem:[%s436 + $0xb8] sm:$0xff]
  %v461 = vld [vmem:[%s436 + $0xc0] sm:$0xff]
  %v462 = vld [vmem:[%s436 + $0xc8] sm:$0xff]
  %v463 = vld [vmem:[%s436 + $0xd0] sm:$0xff]
  %v464 = vld [vmem:[%s436 + $0xd8] sm:$0xff]
  %v493 = vunpack.c.l.b16 %v437
  %v494 = vunpack.c.h.b16 %v437
  %v495 = vunpack.c.l.b16 %v438
  %v496 = vunpack.c.h.b16 %v438
  %v497 = vunpack.c.l.b16 %v439
  %v498 = vunpack.c.h.b16 %v439
  %v499 = vunpack.c.l.b16 %v440
  %v500 = vunpack.c.h.b16 %v440
  %v501 = vunpack.c.l.b16 %v441
  %v502 = vunpack.c.h.b16 %v441
  %v503 = vunpack.c.l.b16 %v442
  %v504 = vunpack.c.h.b16 %v442
  %v505 = vunpack.c.l.b16 %v443
  %v506 = vunpack.c.h.b16 %v443
  %v507 = vunpack.c.l.b16 %v444
  %v508 = vunpack.c.h.b16 %v444
  %v509 = vunpack.c.l.b16 %v445
  %v510 = vunpack.c.h.b16 %v445
  %v511 = vunpack.c.l.b16 %v446
  %v512 = vunpack.c.h.b16 %v446
  %v513 = vunpack.c.l.b16 %v447
  %v514 = vunpack.c.h.b16 %v447
  %v515 = vunpack.c.l.b16 %v448
  %v516 = vunpack.c.h.b16 %v448
  %v517 = vunpack.c.l.b16 %v449
  %v518 = vunpack.c.h.b16 %v449
  %v519 = vunpack.c.l.b16 %v450
  %v520 = vunpack.c.h.b16 %v450
  %v521 = vunpack.c.l.b16 %v451
  %v522 = vunpack.c.h.b16 %v451
  %v523 = vunpack.c.l.b16 %v452
  %v524 = vunpack.c.h.b16 %v452
  %v525 = vunpack.c.l.b16 %v453
  %v526 = vunpack.c.h.b16 %v453
  %v527 = vunpack.c.l.b16 %v454
  %v528 = vunpack.c.h.b16 %v454
  %v529 = vunpack.c.l.b16 %v455
  %v530 = vunpack.c.h.b16 %v455
  %v531 = vunpack.c.l.b16 %v456
  %v532 = vunpack.c.h.b16 %v456
  %v533 = vunpack.c.l.b16 %v457
  %v534 = vunpack.c.h.b16 %v457
  %v535 = vunpack.c.l.b16 %v458
  %v536 = vunpack.c.h.b16 %v458
  %v537 = vunpack.c.l.b16 %v459
  %v538 = vunpack.c.h.b16 %v459
  %v539 = vunpack.c.l.b16 %v460
  %v540 = vunpack.c.h.b16 %v460
  %v541 = vunpack.c.l.b16 %v461
  %v542 = vunpack.c.h.b16 %v461
  %v543 = vunpack.c.l.b16 %v462
  %v544 = vunpack.c.h.b16 %v462
  %v545 = vunpack.c.l.b16 %v463
  %v546 = vunpack.c.h.b16 %v463
  %v547 = vunpack.c.l.b16 %v464
  %v548 = vunpack.c.h.b16 %v464
  %v549 = vpack.c.b16 %v495, %v493
  %v550 = vpack.c.b16 %v496, %v494
  %v551 = vpack.c.b16 %v499, %v497
  %v552 = vpack.c.b16 %v500, %v498
  %v553 = vpack.c.b16 %v503, %v501
  %v554 = vpack.c.b16 %v504, %v502
  %v555 = vpack.c.b16 %v507, %v505
  %v556 = vpack.c.b16 %v508, %v506
  %v557 = vpack.c.b16 %v511, %v509
  %v558 = vpack.c.b16 %v512, %v510
  %v559 = vpack.c.b16 %v515, %v513
  %v560 = vpack.c.b16 %v516, %v514
  %v561 = vpack.c.b16 %v519, %v517
  %v562 = vpack.c.b16 %v520, %v518
  %v563 = vpack.c.b16 %v523, %v521
  %v564 = vpack.c.b16 %v524, %v522
  %v565 = vpack.c.b16 %v527, %v525
  %v566 = vpack.c.b16 %v528, %v526
  %v567 = vpack.c.b16 %v531, %v529
  %v568 = vpack.c.b16 %v532, %v530
  %v569 = vpack.c.b16 %v535, %v533
  %v570 = vpack.c.b16 %v536, %v534
  %v571 = vpack.c.b16 %v539, %v537
  %v572 = vpack.c.b16 %v540, %v538
  %v573 = vpack.c.b16 %v543, %v541
  %v574 = vpack.c.b16 %v544, %v542
  %v575 = vpack.c.b16 %v547, %v545
  %v576 = vpack.c.b16 %v548, %v546
  %605 = vmatpush.bf16.msra.mxu0 %v563
  %606 = vmatpush.bf16.msra.mxu0 %v561
  %607 = vmatpush.bf16.msra.mxu0 %v559
  %608 = vmatpush.bf16.msra.mxu0 %v557
  %609 = vmatpush.bf16.msra.mxu0 %v555
  %610 = vmatpush.bf16.msra.mxu0 %v553
  %611 = vmatpush.bf16.msra.mxu0 %v551
  %612 = vmatpush.bf16.msra.mxu0 %v549
  %613 = vmatmul.bf16.gmra.mxu0 %v103
  %v614 = vpop.f32.mrf.mxu0
  %v615 = vadd.f32 0.0, %v614
  %v616 = vpop.f32.mrf.mxu0
  %v617 = vadd.f32 0.0, %v616
  %618 = vmatmul.bf16.gmra.mxu0 %v105
  %v619 = vpop.f32.mrf.mxu0
  %v620 = vadd.f32 0.0, %v619
  %v621 = vpop.f32.mrf.mxu0
  %v622 = vadd.f32 0.0, %v621
  %623 = vmatmul.bf16.gmra.mxu0 %v107
  %v624 = vpop.f32.mrf.mxu0
  %v625 = vadd.f32 0.0, %v624
  %v626 = vpop.f32.mrf.mxu0
  %v627 = vadd.f32 0.0, %v626
  %628 = vmatmul.bf16.gmra.mxu0 %v109
  %v629 = vpop.f32.mrf.mxu0
  %v630 = vadd.f32 0.0, %v629
  %v631 = vpop.f32.mrf.mxu0
  %v632 = vadd.f32 0.0, %v631
  %633 = vmatmul.bf16.gmra.mxu0 %v111
  %v634 = vpop.f32.mrf.mxu0
  %v635 = vadd.f32 0.0, %v634
  %v636 = vpop.f32.mrf.mxu0
  %v637 = vadd.f32 0.0, %v636
  %638 = vmatmul.bf16.gmra.mxu0 %v113
  %v639 = vpop.f32.mrf.mxu0
  %v640 = vadd.f32 0.0, %v639
  %v641 = vpop.f32.mrf.mxu0
  %v642 = vadd.f32 0.0, %v641
  %643 = vdwg.mxu0
  %644 = vmatpush.bf16.msra.mxu0 0
  %645 = vmatpush.bf16.msra.mxu0 0
  %646 = vmatpush.bf16.msra.mxu0 %v575
  %647 = vmatpush.bf16.msra.mxu0 %v573
  %648 = vmatpush.bf16.msra.mxu0 %v571
  %649 = vmatpush.bf16.msra.mxu0 %v569
  %650 = vmatpush.bf16.msra.mxu0 %v567
  %651 = vmatpush.bf16.msra.mxu0 %v565
  %652 = vmatmul.bf16.gmra.mxu0 %v263
  %v653 = vpop.f32.mrf.mxu0
  %v654 = vadd.f32 %v615, %v653
  %v655 = vpop.f32.mrf.mxu0
  %v656 = vadd.f32 %v617, %v655
  %657 = vmatmul.bf16.gmra.mxu0 %v266
  %v658 = vpop.f32.mrf.mxu0
  %v659 = vadd.f32 %v620, %v658
  %v660 = vpop.f32.mrf.mxu0
  %v661 = vadd.f32 %v622, %v660
  %662 = vmatmul.bf16.gmra.mxu0 %v269
  %v663 = vpop.f32.mrf.mxu0
  %v664 = vadd.f32 %v625, %v663
  %v665 = vpop.f32.mrf.mxu0
  %v666 = vadd.f32 %v627, %v665
  %667 = vmatmul.bf16.gmra.mxu0 %v272
  %v668 = vpop.f32.mrf.mxu0
  %v669 = vadd.f32 %v630, %v668
  %v670 = vpop.f32.mrf.mxu0
  %v671 = vadd.f32 %v632, %v670
  %672 = vmatmul.bf16.gmra.mxu0 %v275
  %v673 = vpop.f32.mrf.mxu0
  %v674 = vadd.f32 %v635, %v673
  %v675 = vpop.f32.mrf.mxu0
  %v676 = vadd.f32 %v637, %v675
  %677 = vmatmul.bf16.gmra.mxu0 %v278
  %v678 = vpop.f32.mrf.mxu0
  %v679 = vadd.f32 %v640, %v678
  %v680 = vpop.f32.mrf.mxu0
  %v681 = vadd.f32 %v642, %v680
  %682 = vdwg.mxu0
  %683 = vmatpush.bf16.msra.mxu0 %v564
  %684 = vmatpush.bf16.msra.mxu0 %v562
  %685 = vmatpush.bf16.msra.mxu0 %v560
  %686 = vmatpush.bf16.msra.mxu0 %v558
  %687 = vmatpush.bf16.msra.mxu0 %v556
  %688 = vmatpush.bf16.msra.mxu0 %v554
  %689 = vmatpush.bf16.msra.mxu0 %v552
  %690 = vmatpush.bf16.msra.mxu0 %v550
  %691 = vmatmul.bf16.gmra.mxu0 %v103
  %v692 = vpop.f32.mrf.mxu0
  %v693 = vadd.f32 0.0, %v692
  %v694 = vpop.f32.mrf.mxu0
  %v695 = vadd.f32 0.0, %v694
  %696 = vmatmul.bf16.gmra.mxu0 %v105
  %v697 = vpop.f32.mrf.mxu0
  %v698 = vadd.f32 0.0, %v697
  %v699 = vpop.f32.mrf.mxu0
  %v700 = vadd.f32 0.0, %v699
  %701 = vmatmul.bf16.gmra.mxu0 %v107
  %v702 = vpop.f32.mrf.mxu0
  %v703 = vadd.f32 0.0, %v702
  %v704 = vpop.f32.mrf.mxu0
  %v705 = vadd.f32 0.0, %v704
  %706 = vmatmul.bf16.gmra.mxu0 %v109
  %v707 = vpop.f32.mrf.mxu0
  %v708 = vadd.f32 0.0, %v707
  %v709 = vpop.f32.mrf.mxu0
  %v710 = vadd.f32 0.0, %v709
  %711 = vmatmul.bf16.gmra.mxu0 %v111
  %v712 = vpop.f32.mrf.mxu0
  %v713 = vadd.f32 0.0, %v712
  %v714 = vpop.f32.mrf.mxu0
  %v715 = vadd.f32 0.0, %v714
  %716 = vmatmul.bf16.gmra.mxu0 %v113
  %v717 = vpop.f32.mrf.mxu0
  %v718 = vadd.f32 0.0, %v717
  %v719 = vpop.f32.mrf.mxu0
  %v720 = vadd.f32 0.0, %v719
  %721 = vdwg.mxu0
  %722 = vmatpush.bf16.msra.mxu0 0
  %723 = vmatpush.bf16.msra.mxu0 0
  %724 = vmatpush.bf16.msra.mxu0 %v576
  %725 = vmatpush.bf16.msra.mxu0 %v574
  %726 = vmatpush.bf16.msra.mxu0 %v572
  %727 = vmatpush.bf16.msra.mxu0 %v570
  %728 = vmatpush.bf16.msra.mxu0 %v568
  %729 = vmatpush.bf16.msra.mxu0 %v566
  %730 = vmatmul.bf16.gmra.mxu0 %v263
  %v731 = vpop.f32.mrf.mxu0
  %v732 = vadd.f32 %v693, %v731
  %v733 = vpop.f32.mrf.mxu0
  %v734 = vadd.f32 %v695, %v733
  %735 = vmatmul.bf16.gmra.mxu0 %v266
  %v736 = vpop.f32.mrf.mxu0
  %v737 = vadd.f32 %v698, %v736
  %v738 = vpop.f32.mrf.mxu0
  %v739 = vadd.f32 %v700, %v738
  %740 = vmatmul.bf16.gmra.mxu0 %v269
  %v741 = vpop.f32.mrf.mxu0
  %v742 = vadd.f32 %v703, %v741
  %v743 = vpop.f32.mrf.mxu0
  %v744 = vadd.f32 %v705, %v743
  %745 = vmatmul.bf16.gmra.mxu0 %v272
  %v746 = vpop.f32.mrf.mxu0
  %v747 = vadd.f32 %v708, %v746
  %v748 = vpop.f32.mrf.mxu0
  %v749 = vadd.f32 %v710, %v748
  %750 = vmatmul.bf16.gmra.mxu0 %v275
  %v751 = vpop.f32.mrf.mxu0
  %v752 = vadd.f32 %v713, %v751
  %v753 = vpop.f32.mrf.mxu0
  %v754 = vadd.f32 %v715, %v753
  %755 = vmatmul.bf16.gmra.mxu0 %v278
  %v756 = vpop.f32.mrf.mxu0
  %v757 = vadd.f32 %v718, %v756
  %v758 = vpop.f32.mrf.mxu0
  %v759 = vadd.f32 %v720, %v758
  %760 = vdwg.mxu0
  %v761 = vmax.f32 %v329, %v654
  %v762 = vmax.f32 %v407, %v732
  %v763 = vmax.f32 %v331, %v656
  %v764 = vmax.f32 %v409, %v734
  %v765 = vmax.f32 %v334, %v659
  %v766 = vmax.f32 %v412, %v737
  %v767 = vmax.f32 %v336, %v661
  %v768 = vmax.f32 %v414, %v739
  %v769 = vmax.f32 %v339, %v664
  %v770 = vmax.f32 %v417, %v742
  %v771 = vmax.f32 %v341, %v666
  %v772 = vmax.f32 %v419, %v744
  %v773 = vmax.f32 %v344, %v669
  %v774 = vmax.f32 %v422, %v747
  %v775 = vmax.f32 %v346, %v671
  %v776 = vmax.f32 %v424, %v749
  %v777 = vmax.f32 %v349, %v674
  %v778 = vmax.f32 %v427, %v752
  %v779 = vmax.f32 %v351, %v676
  %v780 = vmax.f32 %v429, %v754
  %v781 = vmax.f32 %v354, %v679
  %v782 = vmax.f32 %v432, %v757
  %v783 = vmax.f32 %v356, %v681
  %v784 = vmax.f32 %v434, %v759
  %s785 = scalar_lea.vmem %s1, 448
  %v786 = vld [vmem:[%s785] sm:$0xff]
  %v787 = vld [vmem:[%s785 + $0x8] sm:$0xff]
  %v788 = vld [vmem:[%s785 + $0x10] sm:$0xff]
  %v789 = vld [vmem:[%s785 + $0x18] sm:$0xff]
  %v790 = vld [vmem:[%s785 + $0x20] sm:$0xff]
  %v791 = vld [vmem:[%s785 + $0x28] sm:$0xff]
  %v792 = vld [vmem:[%s785 + $0x30] sm:$0xff]
  %v793 = vld [vmem:[%s785 + $0x38] sm:$0xff]
  %v794 = vld [vmem:[%s785 + $0x40] sm:$0xff]
  %v795 = vld [vmem:[%s785 + $0x48] sm:$0xff]
  %v796 = vld [vmem:[%s785 + $0x50] sm:$0xff]
  %v797 = vld [vmem:[%s785 + $0x58] sm:$0xff]
  %v798 = vld [vmem:[%s785 + $0x60] sm:$0xff]
  %v799 = vld [vmem:[%s785 + $0x68] sm:$0xff]
  %v800 = vld [vmem:[%s785 + $0x70] sm:$0xff]
  %v801 = vld [vmem:[%s785 + $0x78] sm:$0xff]
  %v802 = vld [vmem:[%s785 + $0x80] sm:$0xff]
  %v803 = vld [vmem:[%s785 + $0x88] sm:$0xff]
  %v804 = vld [vmem:[%s785 + $0x90] sm:$0xff]
  %v805 = vld [vmem:[%s785 + $0x98] sm:$0xff]
  %v806 = vld [vmem:[%s785 + $0xa0] sm:$0xff]
  %v807 = vld [vmem:[%s785 + $0xa8] sm:$0xff]
  %v808 = vld [vmem:[%s785 + $0xb0] sm:$0xff]
  %v809 = vld [vmem:[%s785 + $0xb8] sm:$0xff]
  %v810 = vld [vmem:[%s785 + $0xc0] sm:$0xff]
  %v811 = vld [vmem:[%s785 + $0xc8] sm:$0xff]
  %v812 = vld [vmem:[%s785 + $0xd0] sm:$0xff]
  %v813 = vld [vmem:[%s785 + $0xd8] sm:$0xff]
  %v842 = vunpack.c.l.b16 %v786
  %v843 = vunpack.c.h.b16 %v786
  %v844 = vunpack.c.l.b16 %v787
  %v845 = vunpack.c.h.b16 %v787
  %v846 = vunpack.c.l.b16 %v788
  %v847 = vunpack.c.h.b16 %v788
  %v848 = vunpack.c.l.b16 %v789
  %v849 = vunpack.c.h.b16 %v789
  %v850 = vunpack.c.l.b16 %v790
  %v851 = vunpack.c.h.b16 %v790
  %v852 = vunpack.c.l.b16 %v791
  %v853 = vunpack.c.h.b16 %v791
  %v854 = vunpack.c.l.b16 %v792
  %v855 = vunpack.c.h.b16 %v792
  %v856 = vunpack.c.l.b16 %v793
  %v857 = vunpack.c.h.b16 %v793
  %v858 = vunpack.c.l.b16 %v794
  %v859 = vunpack.c.h.b16 %v794
  %v860 = vunpack.c.l.b16 %v795
  %v861 = vunpack.c.h.b16 %v795
  %v862 = vunpack.c.l.b16 %v796
  %v863 = vunpack.c.h.b16 %v796
  %v864 = vunpack.c.l.b16 %v797
  %v865 = vunpack.c.h.b16 %v797
  %v866 = vunpack.c.l.b16 %v798
  %v867 = vunpack.c.h.b16 %v798
  %v868 = vunpack.c.l.b16 %v799
  %v869 = vunpack.c.h.b16 %v799
  %v870 = vunpack.c.l.b16 %v800
  %v871 = vunpack.c.h.b16 %v800
  %v872 = vunpack.c.l.b16 %v801
  %v873 = vunpack.c.h.b16 %v801
  %v874 = vunpack.c.l.b16 %v802
  %v875 = vunpack.c.h.b16 %v802
  %v876 = vunpack.c.l.b16 %v803
  %v877 = vunpack.c.h.b16 %v803
  %v878 = vunpack.c.l.b16 %v804
  %v879 = vunpack.c.h.b16 %v804
  %v880 = vunpack.c.l.b16 %v805
  %v881 = vunpack.c.h.b16 %v805
  %v882 = vunpack.c.l.b16 %v806
  %v883 = vunpack.c.h.b16 %v806
  %v884 = vunpack.c.l.b16 %v807
  %v885 = vunpack.c.h.b16 %v807
  %v886 = vunpack.c.l.b16 %v808
  %v887 = vunpack.c.h.b16 %v808
  %v888 = vunpack.c.l.b16 %v809
  %v889 = vunpack.c.h.b16 %v809
  %v890 = vunpack.c.l.b16 %v810
  %v891 = vunpack.c.h.b16 %v810
  %v892 = vunpack.c.l.b16 %v811
  %v893 = vunpack.c.h.b16 %v811
  %v894 = vunpack.c.l.b16 %v812
  %v895 = vunpack.c.h.b16 %v812
  %v896 = vunpack.c.l.b16 %v813
  %v897 = vunpack.c.h.b16 %v813
  %v898 = vpack.c.b16 %v844, %v842
  %v899 = vpack.c.b16 %v845, %v843
  %v900 = vpack.c.b16 %v848, %v846
  %v901 = vpack.c.b16 %v849, %v847
  %v902 = vpack.c.b16 %v852, %v850
  %v903 = vpack.c.b16 %v853, %v851
  %v904 = vpack.c.b16 %v856, %v854
  %v905 = vpack.c.b16 %v857, %v855
  %v906 = vpack.c.b16 %v860, %v858
  %v907 = vpack.c.b16 %v861, %v859
  %v908 = vpack.c.b16 %v864, %v862
  %v909 = vpack.c.b16 %v865, %v863
  %v910 = vpack.c.b16 %v868, %v866
  %v911 = vpack.c.b16 %v869, %v867
  %v912 = vpack.c.b16 %v872, %v870
  %v913 = vpack.c.b16 %v873, %v871
  %v914 = vpack.c.b16 %v876, %v874
  %v915 = vpack.c.b16 %v877, %v875
  %v916 = vpack.c.b16 %v880, %v878
  %v917 = vpack.c.b16 %v881, %v879
  %v918 = vpack.c.b16 %v884, %v882
  %v919 = vpack.c.b16 %v885, %v883
  %v920 = vpack.c.b16 %v888, %v886
  %v921 = vpack.c.b16 %v889, %v887
  %v922 = vpack.c.b16 %v892, %v890
  %v923 = vpack.c.b16 %v893, %v891
  %v924 = vpack.c.b16 %v896, %v894
  %v925 = vpack.c.b16 %v897, %v895
  %954 = vmatpush.bf16.msra.mxu0 %v912
  %955 = vmatpush.bf16.msra.mxu0 %v910
  %956 = vmatpush.bf16.msra.mxu0 %v908
  %957 = vmatpush.bf16.msra.mxu0 %v906
  %958 = vmatpush.bf16.msra.mxu0 %v904
  %959 = vmatpush.bf16.msra.mxu0 %v902
  %960 = vmatpush.bf16.msra.mxu0 %v900
  %961 = vmatpush.bf16.msra.mxu0 %v898
  %962 = vmatmul.bf16.gmra.mxu0 %v103
  %v963 = vpop.f32.mrf.mxu0
  %v964 = vadd.f32 0.0, %v963
  %v965 = vpop.f32.mrf.mxu0
  %v966 = vadd.f32 0.0, %v965
  %967 = vmatmul.bf16.gmra.mxu0 %v105
  %v968 = vpop.f32.mrf.mxu0
  %v969 = vadd.f32 0.0, %v968
  %v970 = vpop.f32.mrf.mxu0
  %v971 = vadd.f32 0.0, %v970
  %972 = vmatmul.bf16.gmra.mxu0 %v107
  %v973 = vpop.f32.mrf.mxu0
  %v974 = vadd.f32 0.0, %v973
  %v975 = vpop.f32.mrf.mxu0
  %v976 = vadd.f32 0.0, %v975
  %977 = vmatmul.bf16.gmra.mxu0 %v109
  %v978 = vpop.f32.mrf.mxu0
  %v979 = vadd.f32 0.0, %v978
  %v980 = vpop.f32.mrf.mxu0
  %v981 = vadd.f32 0.0, %v980
  %982 = vmatmul.bf16.gmra.mxu0 %v111
  %v983 = vpop.f32.mrf.mxu0
  %v984 = vadd.f32 0.0, %v983
  %v985 = vpop.f32.mrf.mxu0
  %v986 = vadd.f32 0.0, %v985
  %987 = vmatmul.bf16.gmra.mxu0 %v113
  %v988 = vpop.f32.mrf.mxu0
  %v989 = vadd.f32 0.0, %v988
  %v990 = vpop.f32.mrf.mxu0
  %v991 = vadd.f32 0.0, %v990
  %992 = vdwg.mxu0
  %993 = vmatpush.bf16.msra.mxu0 0
  %994 = vmatpush.bf16.msra.mxu0 0
  %995 = vmatpush.bf16.msra.mxu0 %v924
  %996 = vmatpush.bf16.msra.mxu0 %v922
  %997 = vmatpush.bf16.msra.mxu0 %v920
  %998 = vmatpush.bf16.msra.mxu0 %v918
  %999 = vmatpush.bf16.msra.mxu0 %v916
  %1000 = vmatpush.bf16.msra.mxu0 %v914
  %1001 = vmatmul.bf16.gmra.mxu0 %v263
  %v1002 = vpop.f32.mrf.mxu0
  %v1003 = vadd.f32 %v964, %v1002
  %v1004 = vpop.f32.mrf.mxu0
  %v1005 = vadd.f32 %v966, %v1004
  %1006 = vmatmul.bf16.gmra.mxu0 %v266
  %v1007 = vpop.f32.mrf.mxu0
  %v1008 = vadd.f32 %v969, %v1007
  %v1009 = vpop.f32.mrf.mxu0
  %v1010 = vadd.f32 %v971, %v1009
  %1011 = vmatmul.bf16.gmra.mxu0 %v269
  %v1012 = vpop.f32.mrf.mxu0
  %v1013 = vadd.f32 %v974, %v1012
  %v1014 = vpop.f32.mrf.mxu0
  %v1015 = vadd.f32 %v976, %v1014
  %1016 = vmatmul.bf16.gmra.mxu0 %v272
  %v1017 = vpop.f32.mrf.mxu0
  %v1018 = vadd.f32 %v979, %v1017
  %v1019 = vpop.f32.mrf.mxu0
  %v1020 = vadd.f32 %v981, %v1019
  %1021 = vmatmul.bf16.gmra.mxu0 %v275
  %v1022 = vpop.f32.mrf.mxu0
  %v1023 = vadd.f32 %v984, %v1022
  %v1024 = vpop.f32.mrf.mxu0
  %v1025 = vadd.f32 %v986, %v1024
  %1026 = vmatmul.bf16.gmra.mxu0 %v278
  %v1027 = vpop.f32.mrf.mxu0
  %v1028 = vadd.f32 %v989, %v1027
  %v1029 = vpop.f32.mrf.mxu0
  %v1030 = vadd.f32 %v991, %v1029
  %1031 = vdwg.mxu0
  %1032 = vmatpush.bf16.msra.mxu0 %v913
  %1033 = vmatpush.bf16.msra.mxu0 %v911
  %1034 = vmatpush.bf16.msra.mxu0 %v909
  %1035 = vmatpush.bf16.msra.mxu0 %v907
  %1036 = vmatpush.bf16.msra.mxu0 %v905
  %1037 = vmatpush.bf16.msra.mxu0 %v903
  %1038 = vmatpush.bf16.msra.mxu0 %v901
  %1039 = vmatpush.bf16.msra.mxu0 %v899
  %1040 = vmatmul.bf16.gmra.mxu0 %v103
  %v1041 = vpop.f32.mrf.mxu0
  %v1042 = vadd.f32 0.0, %v1041
  %v1043 = vpop.f32.mrf.mxu0
  %v1044 = vadd.f32 0.0, %v1043
  %1045 = vmatmul.bf16.gmra.mxu0 %v105
  %v1046 = vpop.f32.mrf.mxu0
  %v1047 = vadd.f32 0.0, %v1046
  %v1048 = vpop.f32.mrf.mxu0
  %v1049 = vadd.f32 0.0, %v1048
  %1050 = vmatmul.bf16.gmra.mxu0 %v107
  %v1051 = vpop.f32.mrf.mxu0
  %v1052 = vadd.f32 0.0, %v1051
  %v1053 = vpop.f32.mrf.mxu0
  %v1054 = vadd.f32 0.0, %v1053
  %1055 = vmatmul.bf16.gmra.mxu0 %v109
  %v1056 = vpop.f32.mrf.mxu0
  %v1057 = vadd.f32 0.0, %v1056
  %v1058 = vpop.f32.mrf.mxu0
  %v1059 = vadd.f32 0.0, %v1058
  %1060 = vmatmul.bf16.gmra.mxu0 %v111
  %v1061 = vpop.f32.mrf.mxu0
  %v1062 = vadd.f32 0.0, %v1061
  %v1063 = vpop.f32.mrf.mxu0
  %v1064 = vadd.f32 0.0, %v1063
  %1065 = vmatmul.bf16.gmra.mxu0 %v113
  %v1066 = vpop.f32.mrf.mxu0
  %v1067 = vadd.f32 0.0, %v1066
  %v1068 = vpop.f32.mrf.mxu0
  %v1069 = vadd.f32 0.0, %v1068
  %1070 = vdwg.mxu0
  %1071 = vmatpush.bf16.msra.mxu0 0
  %1072 = vmatpush.bf16.msra.mxu0 0
  %1073 = vmatpush.bf16.msra.mxu0 %v925
  %1074 = vmatpush.bf16.msra.mxu0 %v923
  %1075 = vmatpush.bf16.msra.mxu0 %v921
  %1076 = vmatpush.bf16.msra.mxu0 %v919
  %1077 = vmatpush.bf16.msra.mxu0 %v917
  %1078 = vmatpush.bf16.msra.mxu0 %v915
  %1079 = vmatmul.bf16.gmra.mxu0 %v263
  %v1080 = vpop.f32.mrf.mxu0
  %v1081 = vadd.f32 %v1042, %v1080
  %v1082 = vpop.f32.mrf.mxu0
  %v1083 = vadd.f32 %v1044, %v1082
  %1084 = vmatmul.bf16.gmra.mxu0 %v266
  %v1085 = vpop.f32.mrf.mxu0
  %v1086 = vadd.f32 %v1047, %v1085
  %v1087 = vpop.f32.mrf.mxu0
  %v1088 = vadd.f32 %v1049, %v1087
  %1089 = vmatmul.bf16.gmra.mxu0 %v269
  %v1090 = vpop.f32.mrf.mxu0
  %v1091 = vadd.f32 %v1052, %v1090
  %v1092 = vpop.f32.mrf.mxu0
  %v1093 = vadd.f32 %v1054, %v1092
  %1094 = vmatmul.bf16.gmra.mxu0 %v272
  %v1095 = vpop.f32.mrf.mxu0
  %v1096 = vadd.f32 %v1057, %v1095
  %v1097 = vpop.f32.mrf.mxu0
  %v1098 = vadd.f32 %v1059, %v1097
  %1099 = vmatmul.bf16.gmra.mxu0 %v275
  %v1100 = vpop.f32.mrf.mxu0
  %v1101 = vadd.f32 %v1062, %v1100
  %v1102 = vpop.f32.mrf.mxu0
  %v1103 = vadd.f32 %v1064, %v1102
  %1104 = vmatmul.bf16.gmra.mxu0 %v278
  %v1105 = vpop.f32.mrf.mxu0
  %v1106 = vadd.f32 %v1067, %v1105
  %v1107 = vpop.f32.mrf.mxu0
  %v1108 = vadd.f32 %v1069, %v1107
  %1109 = vdwg.mxu0
  %v1110 = vmax.f32 %v761, %v1003
  %v1111 = vmax.f32 %v762, %v1081
  %v1112 = vmax.f32 %v763, %v1005
  %v1113 = vmax.f32 %v764, %v1083
  %v1114 = vmax.f32 %v765, %v1008
  %v1115 = vmax.f32 %v766, %v1086
  %v1116 = vmax.f32 %v767, %v1010
  %v1117 = vmax.f32 %v768, %v1088
  %v1118 = vmax.f32 %v769, %v1013
  %v1119 = vmax.f32 %v770, %v1091
  %v1120 = vmax.f32 %v771, %v1015
  %v1121 = vmax.f32 %v772, %v1093
  %v1122 = vmax.f32 %v773, %v1018
  %v1123 = vmax.f32 %v774, %v1096
  %v1124 = vmax.f32 %v775, %v1020
  %v1125 = vmax.f32 %v776, %v1098
  %v1126 = vmax.f32 %v777, %v1023
  %v1127 = vmax.f32 %v778, %v1101
  %v1128 = vmax.f32 %v779, %v1025
  %v1129 = vmax.f32 %v780, %v1103
  %v1130 = vmax.f32 %v781, %v1028
  %v1131 = vmax.f32 %v782, %v1106
  %v1132 = vmax.f32 %v783, %v1030
  %v1133 = vmax.f32 %v784, %v1108
  %s1134 = scalar_lea.vmem %s1, 672
  %v1135 = vld [vmem:[%s1134] sm:$0xff]
  %v1136 = vld [vmem:[%s1134 + $0x8] sm:$0xff]
  %v1137 = vld [vmem:[%s1134 + $0x10] sm:$0xff]
  %v1138 = vld [vmem:[%s1134 + $0x18] sm:$0xff]
  %v1139 = vld [vmem:[%s1134 + $0x20] sm:$0xff]
  %v1140 = vld [vmem:[%s1134 + $0x28] sm:$0xff]
  %v1141 = vld [vmem:[%s1134 + $0x30] sm:$0xff]
  %v1142 = vld [vmem:[%s1134 + $0x38] sm:$0xff]
  %v1143 = vld [vmem:[%s1134 + $0x40] sm:$0xff]
  %v1144 = vld [vmem:[%s1134 + $0x48] sm:$0xff]
  %v1145 = vld [vmem:[%s1134 + $0x50] sm:$0xff]
  %v1146 = vld [vmem:[%s1134 + $0x58] sm:$0xff]
  %v1147 = vld [vmem:[%s1134 + $0x60] sm:$0xff]
  %v1148 = vld [vmem:[%s1134 + $0x68] sm:$0xff]
  %v1149 = vld [vmem:[%s1134 + $0x70] sm:$0xff]
  %v1150 = vld [vmem:[%s1134 + $0x78] sm:$0xff]
  %v1151 = vld [vmem:[%s1134 + $0x80] sm:$0xff]
  %v1152 = vld [vmem:[%s1134 + $0x88] sm:$0xff]
  %v1153 = vld [vmem:[%s1134 + $0x90] sm:$0xff]
  %v1154 = vld [vmem:[%s1134 + $0x98] sm:$0xff]
  %v1155 = vld [vmem:[%s1134 + $0xa0] sm:$0xff]
  %v1156 = vld [vmem:[%s1134 + $0xa8] sm:$0xff]
  %v1157 = vld [vmem:[%s1134 + $0xb0] sm:$0xff]
  %v1158 = vld [vmem:[%s1134 + $0xb8] sm:$0xff]
  %v1159 = vld [vmem:[%s1134 + $0xc0] sm:$0xff]
  %v1160 = vld [vmem:[%s1134 + $0xc8] sm:$0xff]
  %v1161 = vld [vmem:[%s1134 + $0xd0] sm:$0xff]
  %v1162 = vld [vmem:[%s1134 + $0xd8] sm:$0xff]
  %v1191 = vunpack.c.l.b16 %v1135
  %v1192 = vunpack.c.h.b16 %v1135
  %v1193 = vunpack.c.l.b16 %v1136
  %v1194 = vunpack.c.h.b16 %v1136
  %v1195 = vunpack.c.l.b16 %v1137
  %v1196 = vunpack.c.h.b16 %v1137
  %v1197 = vunpack.c.l.b16 %v1138
  %v1198 = vunpack.c.h.b16 %v1138
  %v1199 = vunpack.c.l.b16 %v1139
  %v1200 = vunpack.c.h.b16 %v1139
  %v1201 = vunpack.c.l.b16 %v1140
  %v1202 = vunpack.c.h.b16 %v1140
  %v1203 = vunpack.c.l.b16 %v1141
  %v1204 = vunpack.c.h.b16 %v1141
  %v1205 = vunpack.c.l.b16 %v1142
  %v1206 = vunpack.c.h.b16 %v1142
  %v1207 = vunpack.c.l.b16 %v1143
  %v1208 = vunpack.c.h.b16 %v1143
  %v1209 = vunpack.c.l.b16 %v1144
  %v1210 = vunpack.c.h.b16 %v1144
  %v1211 = vunpack.c.l.b16 %v1145
  %v1212 = vunpack.c.h.b16 %v1145
  %v1213 = vunpack.c.l.b16 %v1146
  %v1214 = vunpack.c.h.b16 %v1146
  %v1215 = vunpack.c.l.b16 %v1147
  %v1216 = vunpack.c.h.b16 %v1147
  %v1217 = vunpack.c.l.b16 %v1148
  %v1218 = vunpack.c.h.b16 %v1148
  %v1219 = vunpack.c.l.b16 %v1149
  %v1220 = vunpack.c.h.b16 %v1149
  %v1221 = vunpack.c.l.b16 %v1150
  %v1222 = vunpack.c.h.b16 %v1150
  %v1223 = vunpack.c.l.b16 %v1151
  %v1224 = vunpack.c.h.b16 %v1151
  %v1225 = vunpack.c.l.b16 %v1152
  %v1226 = vunpack.c.h.b16 %v1152
  %v1227 = vunpack.c.l.b16 %v1153
  %v1228 = vunpack.c.h.b16 %v1153
  %v1229 = vunpack.c.l.b16 %v1154
  %v1230 = vunpack.c.h.b16 %v1154
  %v1231 = vunpack.c.l.b16 %v1155
  %v1232 = vunpack.c.h.b16 %v1155
  %v1233 = vunpack.c.l.b16 %v1156
  %v1234 = vunpack.c.h.b16 %v1156
  %v1235 = vunpack.c.l.b16 %v1157
  %v1236 = vunpack.c.h.b16 %v1157
  %v1237 = vunpack.c.l.b16 %v1158
  %v1238 = vunpack.c.h.b16 %v1158
  %v1239 = vunpack.c.l.b16 %v1159
  %v1240 = vunpack.c.h.b16 %v1159
  %v1241 = vunpack.c.l.b16 %v1160
  %v1242 = vunpack.c.h.b16 %v1160
  %v1243 = vunpack.c.l.b16 %v1161
  %v1244 = vunpack.c.h.b16 %v1161
  %v1245 = vunpack.c.l.b16 %v1162
  %v1246 = vunpack.c.h.b16 %v1162
  %v1247 = vpack.c.b16 %v1193, %v1191
  %v1248 = vpack.c.b16 %v1194, %v1192
  %v1249 = vpack.c.b16 %v1197, %v1195
  %v1250 = vpack.c.b16 %v1198, %v1196
  %v1251 = vpack.c.b16 %v1201, %v1199
  %v1252 = vpack.c.b16 %v1202, %v1200
  %v1253 = vpack.c.b16 %v1205, %v1203
  %v1254 = vpack.c.b16 %v1206, %v1204
  %v1255 = vpack.c.b16 %v1209, %v1207
  %v1256 = vpack.c.b16 %v1210, %v1208
  %v1257 = vpack.c.b16 %v1213, %v1211
  %v1258 = vpack.c.b16 %v1214, %v1212
  %v1259 = vpack.c.b16 %v1217, %v1215
  %v1260 = vpack.c.b16 %v1218, %v1216
  %v1261 = vpack.c.b16 %v1221, %v1219
  %v1262 = vpack.c.b16 %v1222, %v1220
  %v1263 = vpack.c.b16 %v1225, %v1223
  %v1264 = vpack.c.b16 %v1226, %v1224
  %v1265 = vpack.c.b16 %v1229, %v1227
  %v1266 = vpack.c.b16 %v1230, %v1228
  %v1267 = vpack.c.b16 %v1233, %v1231
  %v1268 = vpack.c.b16 %v1234, %v1232
  %v1269 = vpack.c.b16 %v1237, %v1235
  %v1270 = vpack.c.b16 %v1238, %v1236
  %v1271 = vpack.c.b16 %v1241, %v1239
  %v1272 = vpack.c.b16 %v1242, %v1240
  %v1273 = vpack.c.b16 %v1245, %v1243
  %v1274 = vpack.c.b16 %v1246, %v1244
  %1303 = vmatpush.bf16.msra.mxu0 %v1261
  %1304 = vmatpush.bf16.msra.mxu0 %v1259
  %1305 = vmatpush.bf16.msra.mxu0 %v1257
  %1306 = vmatpush.bf16.msra.mxu0 %v1255
  %1307 = vmatpush.bf16.msra.mxu0 %v1253
  %1308 = vmatpush.bf16.msra.mxu0 %v1251
  %1309 = vmatpush.bf16.msra.mxu0 %v1249
  %1310 = vmatpush.bf16.msra.mxu0 %v1247
  %1311 = vmatmul.bf16.gmra.mxu0 %v103
  %v1312 = vpop.f32.mrf.mxu0
  %v1313 = vadd.f32 0.0, %v1312
  %v1314 = vpop.f32.mrf.mxu0
  %v1315 = vadd.f32 0.0, %v1314
  %1316 = vmatmul.bf16.gmra.mxu0 %v105
  %v1317 = vpop.f32.mrf.mxu0
  %v1318 = vadd.f32 0.0, %v1317
  %v1319 = vpop.f32.mrf.mxu0
  %v1320 = vadd.f32 0.0, %v1319
  %1321 = vmatmul.bf16.gmra.mxu0 %v107
  %v1322 = vpop.f32.mrf.mxu0
  %v1323 = vadd.f32 0.0, %v1322
  %v1324 = vpop.f32.mrf.mxu0
  %v1325 = vadd.f32 0.0, %v1324
  %1326 = vmatmul.bf16.gmra.mxu0 %v109
  %v1327 = vpop.f32.mrf.mxu0
  %v1328 = vadd.f32 0.0, %v1327
  %v1329 = vpop.f32.mrf.mxu0
  %v1330 = vadd.f32 0.0, %v1329
  %1331 = vmatmul.bf16.gmra.mxu0 %v111
  %v1332 = vpop.f32.mrf.mxu0
  %v1333 = vadd.f32 0.0, %v1332
  %v1334 = vpop.f32.mrf.mxu0
  %v1335 = vadd.f32 0.0, %v1334
  %1336 = vmatmul.bf16.gmra.mxu0 %v113
  %v1337 = vpop.f32.mrf.mxu0
  %v1338 = vadd.f32 0.0, %v1337
  %v1339 = vpop.f32.mrf.mxu0
  %v1340 = vadd.f32 0.0, %v1339
  %1341 = vdwg.mxu0
  %1342 = vmatpush.bf16.msra.mxu0 0
  %1343 = vmatpush.bf16.msra.mxu0 0
  %1344 = vmatpush.bf16.msra.mxu0 %v1273
  %1345 = vmatpush.bf16.msra.mxu0 %v1271
  %1346 = vmatpush.bf16.msra.mxu0 %v1269
  %1347 = vmatpush.bf16.msra.mxu0 %v1267
  %1348 = vmatpush.bf16.msra.mxu0 %v1265
  %1349 = vmatpush.bf16.msra.mxu0 %v1263
  %1350 = vmatmul.bf16.gmra.mxu0 %v263
  %v1351 = vpop.f32.mrf.mxu0
  %v1352 = vadd.f32 %v1313, %v1351
  %v1353 = vpop.f32.mrf.mxu0
  %v1354 = vadd.f32 %v1315, %v1353
  %1355 = vmatmul.bf16.gmra.mxu0 %v266
  %v1356 = vpop.f32.mrf.mxu0
  %v1357 = vadd.f32 %v1318, %v1356
  %v1358 = vpop.f32.mrf.mxu0
  %v1359 = vadd.f32 %v1320, %v1358
  %1360 = vmatmul.bf16.gmra.mxu0 %v269
  %v1361 = vpop.f32.mrf.mxu0
  %v1362 = vadd.f32 %v1323, %v1361
  %v1363 = vpop.f32.mrf.mxu0
  %v1364 = vadd.f32 %v1325, %v1363
  %1365 = vmatmul.bf16.gmra.mxu0 %v272
  %v1366 = vpop.f32.mrf.mxu0
  %v1367 = vadd.f32 %v1328, %v1366
  %v1368 = vpop.f32.mrf.mxu0
  %v1369 = vadd.f32 %v1330, %v1368
  %1370 = vmatmul.bf16.gmra.mxu0 %v275
  %v1371 = vpop.f32.mrf.mxu0
  %v1372 = vadd.f32 %v1333, %v1371
  %v1373 = vpop.f32.mrf.mxu0
  %v1374 = vadd.f32 %v1335, %v1373
  %1375 = vmatmul.bf16.gmra.mxu0 %v278
  %v1376 = vpop.f32.mrf.mxu0
  %v1377 = vadd.f32 %v1338, %v1376
  %v1378 = vpop.f32.mrf.mxu0
  %v1379 = vadd.f32 %v1340, %v1378
  %1380 = vdwg.mxu0
  %1381 = vmatpush.bf16.msra.mxu0 %v1262
  %1382 = vmatpush.bf16.msra.mxu0 %v1260
  %1383 = vmatpush.bf16.msra.mxu0 %v1258
  %1384 = vmatpush.bf16.msra.mxu0 %v1256
  %1385 = vmatpush.bf16.msra.mxu0 %v1254
  %1386 = vmatpush.bf16.msra.mxu0 %v1252
  %1387 = vmatpush.bf16.msra.mxu0 %v1250
  %1388 = vmatpush.bf16.msra.mxu0 %v1248
  %1389 = vmatmul.bf16.gmra.mxu0 %v103
  %v1390 = vpop.f32.mrf.mxu0
  %v1391 = vadd.f32 0.0, %v1390
  %v1392 = vpop.f32.mrf.mxu0
  %v1393 = vadd.f32 0.0, %v1392
  %1394 = vmatmul.bf16.gmra.mxu0 %v105
  %v1395 = vpop.f32.mrf.mxu0
  %v1396 = vadd.f32 0.0, %v1395
  %v1397 = vpop.f32.mrf.mxu0
  %v1398 = vadd.f32 0.0, %v1397
  %1399 = vmatmul.bf16.gmra.mxu0 %v107
  %v1400 = vpop.f32.mrf.mxu0
  %v1401 = vadd.f32 0.0, %v1400
  %v1402 = vpop.f32.mrf.mxu0
  %v1403 = vadd.f32 0.0, %v1402
  %1404 = vmatmul.bf16.gmra.mxu0 %v109
  %v1405 = vpop.f32.mrf.mxu0
  %v1406 = vadd.f32 0.0, %v1405
  %v1407 = vpop.f32.mrf.mxu0
  %v1408 = vadd.f32 0.0, %v1407
  %1409 = vmatmul.bf16.gmra.mxu0 %v111
  %v1410 = vpop.f32.mrf.mxu0
  %v1411 = vadd.f32 0.0, %v1410
  %v1412 = vpop.f32.mrf.mxu0
  %v1413 = vadd.f32 0.0, %v1412
  %1414 = vmatmul.bf16.gmra.mxu0 %v113
  %v1415 = vpop.f32.mrf.mxu0
  %v1416 = vadd.f32 0.0, %v1415
  %v1417 = vpop.f32.mrf.mxu0
  %v1418 = vadd.f32 0.0, %v1417
  %1419 = vdwg.mxu0
  %1420 = vmatpush.bf16.msra.mxu0 0
  %1421 = vmatpush.bf16.msra.mxu0 0
  %1422 = vmatpush.bf16.msra.mxu0 %v1274
  %1423 = vmatpush.bf16.msra.mxu0 %v1272
  %1424 = vmatpush.bf16.msra.mxu0 %v1270
  %1425 = vmatpush.bf16.msra.mxu0 %v1268
  %1426 = vmatpush.bf16.msra.mxu0 %v1266
  %1427 = vmatpush.bf16.msra.mxu0 %v1264
  %1428 = vmatmul.bf16.gmra.mxu0 %v263
  %v1429 = vpop.f32.mrf.mxu0
  %v1430 = vadd.f32 %v1391, %v1429
  %v1431 = vpop.f32.mrf.mxu0
  %v1432 = vadd.f32 %v1393, %v1431
  %1433 = vmatmul.bf16.gmra.mxu0 %v266
  %v1434 = vpop.f32.mrf.mxu0
  %v1435 = vadd.f32 %v1396, %v1434
  %v1436 = vpop.f32.mrf.mxu0
  %v1437 = vadd.f32 %v1398, %v1436
  %1438 = vmatmul.bf16.gmra.mxu0 %v269
  %v1439 = vpop.f32.mrf.mxu0
  %v1440 = vadd.f32 %v1401, %v1439
  %v1441 = vpop.f32.mrf.mxu0
  %v1442 = vadd.f32 %v1403, %v1441
  %1443 = vmatmul.bf16.gmra.mxu0 %v272
  %v1444 = vpop.f32.mrf.mxu0
  %v1445 = vadd.f32 %v1406, %v1444
  %v1446 = vpop.f32.mrf.mxu0
  %v1447 = vadd.f32 %v1408, %v1446
  %1448 = vmatmul.bf16.gmra.mxu0 %v275
  %v1449 = vpop.f32.mrf.mxu0
  %v1450 = vadd.f32 %v1411, %v1449
  %v1451 = vpop.f32.mrf.mxu0
  %v1452 = vadd.f32 %v1413, %v1451
  %1453 = vmatmul.bf16.gmra.mxu0 %v278
  %v1454 = vpop.f32.mrf.mxu0
  %v1455 = vadd.f32 %v1416, %v1454
  %v1456 = vpop.f32.mrf.mxu0
  %v1457 = vadd.f32 %v1418, %v1456
  %1458 = vdwg.mxu0
  %v1459 = vmax.f32 %v1110, %v1352
  %v1460 = vmax.f32 %v1111, %v1430
  %v1461 = vmax.f32 %v1112, %v1354
  %v1462 = vmax.f32 %v1113, %v1432
  %v1463 = vmax.f32 %v1114, %v1357
  %v1464 = vmax.f32 %v1115, %v1435
  %v1465 = vmax.f32 %v1116, %v1359
  %v1466 = vmax.f32 %v1117, %v1437
  %v1467 = vmax.f32 %v1118, %v1362
  %v1468 = vmax.f32 %v1119, %v1440
  %v1469 = vmax.f32 %v1120, %v1364
  %v1470 = vmax.f32 %v1121, %v1442
  %v1471 = vmax.f32 %v1122, %v1367
  %v1472 = vmax.f32 %v1123, %v1445
  %v1473 = vmax.f32 %v1124, %v1369
  %v1474 = vmax.f32 %v1125, %v1447
  %v1475 = vmax.f32 %v1126, %v1372
  %v1476 = vmax.f32 %v1127, %v1450
  %v1477 = vmax.f32 %v1128, %v1374
  %v1478 = vmax.f32 %v1129, %v1452
  %v1479 = vmax.f32 %v1130, %v1377
  %v1480 = vmax.f32 %v1131, %v1455
  %v1481 = vmax.f32 %v1132, %v1379
  %v1482 = vmax.f32 %v1133, %v1457
  %v1483 = vld [vmem:[%s2] sm:$0x3]
  %v1485 = vperm.slane %v1483, 0
  %v1486 = vperm.slane %v1483, 1
  %v1489 = vadd.f32 %v1459, %v1485
  %v1490 = vadd.f32 %v1460, %v1486
  %v1491 = vadd.f32 %v1461, %v1485
  %v1492 = vadd.f32 %v1462, %v1486
  %v1493 = vadd.f32 %v1463, %v1485
  %v1494 = vadd.f32 %v1464, %v1486
  %v1495 = vadd.f32 %v1465, %v1485
  %v1496 = vadd.f32 %v1466, %v1486
  %v1497 = vadd.f32 %v1467, %v1485
  %v1498 = vadd.f32 %v1468, %v1486
  %v1499 = vadd.f32 %v1469, %v1485
  %v1500 = vadd.f32 %v1470, %v1486
  %v1501 = vadd.f32 %v1471, %v1485
  %v1502 = vadd.f32 %v1472, %v1486
  %v1503 = vadd.f32 %v1473, %v1485
  %v1504 = vadd.f32 %v1474, %v1486
  %v1505 = vadd.f32 %v1475, %v1485
  %v1506 = vadd.f32 %v1476, %v1486
  %v1507 = vadd.f32 %v1477, %v1485
  %v1508 = vadd.f32 %v1478, %v1486
  %v1509 = vadd.f32 %v1479, %v1485
  %v1510 = vadd.f32 %v1480, %v1486
  %v1511 = vadd.f32 %v1481, %v1485
  %v1512 = vadd.f32 %v1482, %v1486
  %v1513 = vmax.f32 %v1489, 0.0
  %v1514 = vmax.f32 %v1490, 0.0
  %v1515 = vmax.f32 %v1491, 0.0
  %v1516 = vmax.f32 %v1492, 0.0
  %v1517 = vmax.f32 %v1493, 0.0
  %v1518 = vmax.f32 %v1494, 0.0
  %v1519 = vmax.f32 %v1495, 0.0
  %v1520 = vmax.f32 %v1496, 0.0
  %v1521 = vmax.f32 %v1497, 0.0
  %v1522 = vmax.f32 %v1498, 0.0
  %v1523 = vmax.f32 %v1499, 0.0
  %v1524 = vmax.f32 %v1500, 0.0
  %v1525 = vmax.f32 %v1501, 0.0
  %v1526 = vmax.f32 %v1502, 0.0
  %v1527 = vmax.f32 %v1503, 0.0
  %v1528 = vmax.f32 %v1504, 0.0
  %v1529 = vmax.f32 %v1505, 0.0
  %v1530 = vmax.f32 %v1506, 0.0
  %v1531 = vmax.f32 %v1507, 0.0
  %v1532 = vmax.f32 %v1508, 0.0
  %v1533 = vmax.f32 %v1509, 0.0
  %v1534 = vmax.f32 %v1510, 0.0
  %v1535 = vmax.f32 %v1511, 0.0
  %v1536 = vmax.f32 %v1512, 0.0
  %v1537 = vpack.c.bf16 %v1514, %v1513
  %v1538 = vpack.c.bf16 %v1516, %v1515
  %v1539 = vpack.c.bf16 %v1518, %v1517
  %v1540 = vpack.c.bf16 %v1520, %v1519
  %v1541 = vpack.c.bf16 %v1522, %v1521
  %v1542 = vpack.c.bf16 %v1524, %v1523
  %v1543 = vpack.c.bf16 %v1526, %v1525
  %v1544 = vpack.c.bf16 %v1528, %v1527
  %v1545 = vpack.c.bf16 %v1530, %v1529
  %v1546 = vpack.c.bf16 %v1532, %v1531
  %v1547 = vpack.c.bf16 %v1534, %v1533
  %v1548 = vpack.c.bf16 %v1536, %v1535
  %s1549 = scalar_lea.vmem %s1, 896
  %v1550 = vld [vmem:[%s1549] sm:$0xff]
  %v1551 = vld [vmem:[%s1549 + $0x8] sm:$0xff]
  %v1552 = vld [vmem:[%s1549 + $0x10] sm:$0xff]
  %v1553 = vld [vmem:[%s1549 + $0x18] sm:$0xff]
  %v1554 = vld [vmem:[%s1549 + $0x20] sm:$0xff]
  %v1555 = vld [vmem:[%s1549 + $0x28] sm:$0xff]
  %v1556 = vld [vmem:[%s1549 + $0x30] sm:$0xff]
  %v1557 = vld [vmem:[%s1549 + $0x38] sm:$0xff]
  %v1558 = vld [vmem:[%s1549 + $0x40] sm:$0xff]
  %v1559 = vld [vmem:[%s1549 + $0x48] sm:$0xff]
  %v1560 = vld [vmem:[%s1549 + $0x50] sm:$0xff]
  %v1561 = vld [vmem:[%s1549 + $0x58] sm:$0xff]
  %v1562 = vld [vmem:[%s1549 + $0x60] sm:$0xff]
  %v1563 = vld [vmem:[%s1549 + $0x68] sm:$0xff]
  %v1564 = vld [vmem:[%s1549 + $0x70] sm:$0xff]
  %v1565 = vld [vmem:[%s1549 + $0x78] sm:$0xff]
  %v1566 = vld [vmem:[%s1549 + $0x80] sm:$0xff]
  %v1567 = vld [vmem:[%s1549 + $0x88] sm:$0xff]
  %v1568 = vld [vmem:[%s1549 + $0x90] sm:$0xff]
  %v1569 = vld [vmem:[%s1549 + $0x98] sm:$0xff]
  %v1570 = vld [vmem:[%s1549 + $0xa0] sm:$0xff]
  %v1571 = vld [vmem:[%s1549 + $0xa8] sm:$0xff]
  %v1572 = vld [vmem:[%s1549 + $0xb0] sm:$0xff]
  %v1573 = vld [vmem:[%s1549 + $0xb8] sm:$0xff]
  %v1574 = vld [vmem:[%s1549 + $0xc0] sm:$0xff]
  %v1575 = vld [vmem:[%s1549 + $0xc8] sm:$0xff]
  %v1576 = vld [vmem:[%s1549 + $0xd0] sm:$0xff]
  %v1577 = vld [vmem:[%s1549 + $0xd8] sm:$0xff]
  %v1606 = vunpack.c.l.b16 %v1550
  %v1607 = vunpack.c.h.b16 %v1550
  %v1608 = vunpack.c.l.b16 %v1551
  %v1609 = vunpack.c.h.b16 %v1551
  %v1610 = vunpack.c.l.b16 %v1552
  %v1611 = vunpack.c.h.b16 %v1552
  %v1612 = vunpack.c.l.b16 %v1553
  %v1613 = vunpack.c.h.b16 %v1553
  %v1614 = vunpack.c.l.b16 %v1554
  %v1615 = vunpack.c.h.b16 %v1554
  %v1616 = vunpack.c.l.b16 %v1555
  %v1617 = vunpack.c.h.b16 %v1555
  %v1618 = vunpack.c.l.b16 %v1556
  %v1619 = vunpack.c.h.b16 %v1556
  %v1620 = vunpack.c.l.b16 %v1557
  %v1621 = vunpack.c.h.b16 %v1557
  %v1622 = vunpack.c.l.b16 %v1558
  %v1623 = vunpack.c.h.b16 %v1558
  %v1624 = vunpack.c.l.b16 %v1559
  %v1625 = vunpack.c.h.b16 %v1559
  %v1626 = vunpack.c.l.b16 %v1560
  %v1627 = vunpack.c.h.b16 %v1560
  %v1628 = vunpack.c.l.b16 %v1561
  %v1629 = vunpack.c.h.b16 %v1561
  %v1630 = vunpack.c.l.b16 %v1562
  %v1631 = vunpack.c.h.b16 %v1562
  %v1632 = vunpack.c.l.b16 %v1563
  %v1633 = vunpack.c.h.b16 %v1563
  %v1634 = vunpack.c.l.b16 %v1564
  %v1635 = vunpack.c.h.b16 %v1564
  %v1636 = vunpack.c.l.b16 %v1565
  %v1637 = vunpack.c.h.b16 %v1565
  %v1638 = vunpack.c.l.b16 %v1566
  %v1639 = vunpack.c.h.b16 %v1566
  %v1640 = vunpack.c.l.b16 %v1567
  %v1641 = vunpack.c.h.b16 %v1567
  %v1642 = vunpack.c.l.b16 %v1568
  %v1643 = vunpack.c.h.b16 %v1568
  %v1644 = vunpack.c.l.b16 %v1569
  %v1645 = vunpack.c.h.b16 %v1569
  %v1646 = vunpack.c.l.b16 %v1570
  %v1647 = vunpack.c.h.b16 %v1570
  %v1648 = vunpack.c.l.b16 %v1571
  %v1649 = vunpack.c.h.b16 %v1571
  %v1650 = vunpack.c.l.b16 %v1572
  %v1651 = vunpack.c.h.b16 %v1572
  %v1652 = vunpack.c.l.b16 %v1573
  %v1653 = vunpack.c.h.b16 %v1573
  %v1654 = vunpack.c.l.b16 %v1574
  %v1655 = vunpack.c.h.b16 %v1574
  %v1656 = vunpack.c.l.b16 %v1575
  %v1657 = vunpack.c.h.b16 %v1575
  %v1658 = vunpack.c.l.b16 %v1576
  %v1659 = vunpack.c.h.b16 %v1576
  %v1660 = vunpack.c.l.b16 %v1577
  %v1661 = vunpack.c.h.b16 %v1577
  %v1662 = vpack.c.b16 %v1608, %v1606
  %v1663 = vpack.c.b16 %v1609, %v1607
  %v1664 = vpack.c.b16 %v1612, %v1610
  %v1665 = vpack.c.b16 %v1613, %v1611
  %v1666 = vpack.c.b16 %v1616, %v1614
  %v1667 = vpack.c.b16 %v1617, %v1615
  %v1668 = vpack.c.b16 %v1620, %v1618
  %v1669 = vpack.c.b16 %v1621, %v1619
  %v1670 = vpack.c.b16 %v1624, %v1622
  %v1671 = vpack.c.b16 %v1625, %v1623
  %v1672 = vpack.c.b16 %v1628, %v1626
  %v1673 = vpack.c.b16 %v1629, %v1627
  %v1674 = vpack.c.b16 %v1632, %v1630
  %v1675 = vpack.c.b16 %v1633, %v1631
  %v1676 = vpack.c.b16 %v1636, %v1634
  %v1677 = vpack.c.b16 %v1637, %v1635
  %v1678 = vpack.c.b16 %v1640, %v1638
  %v1679 = vpack.c.b16 %v1641, %v1639
  %v1680 = vpack.c.b16 %v1644, %v1642
  %v1681 = vpack.c.b16 %v1645, %v1643
  %v1682 = vpack.c.b16 %v1648, %v1646
  %v1683 = vpack.c.b16 %v1649, %v1647
  %v1684 = vpack.c.b16 %v1652, %v1650
  %v1685 = vpack.c.b16 %v1653, %v1651
  %v1686 = vpack.c.b16 %v1656, %v1654
  %v1687 = vpack.c.b16 %v1657, %v1655
  %v1688 = vpack.c.b16 %v1660, %v1658
  %v1689 = vpack.c.b16 %v1661, %v1659
  %1718 = vmatpush.bf16.msra.mxu0 %v1676
  %1719 = vmatpush.bf16.msra.mxu0 %v1674
  %1720 = vmatpush.bf16.msra.mxu0 %v1672
  %1721 = vmatpush.bf16.msra.mxu0 %v1670
  %1722 = vmatpush.bf16.msra.mxu0 %v1668
  %1723 = vmatpush.bf16.msra.mxu0 %v1666
  %1724 = vmatpush.bf16.msra.mxu0 %v1664
  %1725 = vmatpush.bf16.msra.mxu0 %v1662
  %1726 = vmatmul.bf16.gmra.mxu0 %v103
  %v1727 = vpop.f32.mrf.mxu0
  %v1728 = vadd.f32 0.0, %v1727
  %v1729 = vpop.f32.mrf.mxu0
  %v1730 = vadd.f32 0.0, %v1729
  %1731 = vmatmul.bf16.gmra.mxu0 %v105
  %v1732 = vpop.f32.mrf.mxu0
  %v1733 = vadd.f32 0.0, %v1732
  %v1734 = vpop.f32.mrf.mxu0
  %v1735 = vadd.f32 0.0, %v1734
  %1736 = vmatmul.bf16.gmra.mxu0 %v107
  %v1737 = vpop.f32.mrf.mxu0
  %v1738 = vadd.f32 0.0, %v1737
  %v1739 = vpop.f32.mrf.mxu0
  %v1740 = vadd.f32 0.0, %v1739
  %1741 = vmatmul.bf16.gmra.mxu0 %v109
  %v1742 = vpop.f32.mrf.mxu0
  %v1743 = vadd.f32 0.0, %v1742
  %v1744 = vpop.f32.mrf.mxu0
  %v1745 = vadd.f32 0.0, %v1744
  %1746 = vmatmul.bf16.gmra.mxu0 %v111
  %v1747 = vpop.f32.mrf.mxu0
  %v1748 = vadd.f32 0.0, %v1747
  %v1749 = vpop.f32.mrf.mxu0
  %v1750 = vadd.f32 0.0, %v1749
  %1751 = vmatmul.bf16.gmra.mxu0 %v113
  %v1752 = vpop.f32.mrf.mxu0
  %v1753 = vadd.f32 0.0, %v1752
  %v1754 = vpop.f32.mrf.mxu0
  %v1755 = vadd.f32 0.0, %v1754
  %1756 = vdwg.mxu0
  %1757 = vmatpush.bf16.msra.mxu0 0
  %1758 = vmatpush.bf16.msra.mxu0 0
  %1759 = vmatpush.bf16.msra.mxu0 %v1688
  %1760 = vmatpush.bf16.msra.mxu0 %v1686
  %1761 = vmatpush.bf16.msra.mxu0 %v1684
  %1762 = vmatpush.bf16.msra.mxu0 %v1682
  %1763 = vmatpush.bf16.msra.mxu0 %v1680
  %1764 = vmatpush.bf16.msra.mxu0 %v1678
  %1765 = vmatmul.bf16.gmra.mxu0 %v263
  %v1766 = vpop.f32.mrf.mxu0
  %v1767 = vadd.f32 %v1728, %v1766
  %v1768 = vpop.f32.mrf.mxu0
  %v1769 = vadd.f32 %v1730, %v1768
  %1770 = vmatmul.bf16.gmra.mxu0 %v266
  %v1771 = vpop.f32.mrf.mxu0
  %v1772 = vadd.f32 %v1733, %v1771
  %v1773 = vpop.f32.mrf.mxu0
  %v1774 = vadd.f32 %v1735, %v1773
  %1775 = vmatmul.bf16.gmra.mxu0 %v269
  %v1776 = vpop.f32.mrf.mxu0
  %v1777 = vadd.f32 %v1738, %v1776
  %v1778 = vpop.f32.mrf.mxu0
  %v1779 = vadd.f32 %v1740, %v1778
  %1780 = vmatmul.bf16.gmra.mxu0 %v272
  %v1781 = vpop.f32.mrf.mxu0
  %v1782 = vadd.f32 %v1743, %v1781
  %v1783 = vpop.f32.mrf.mxu0
  %v1784 = vadd.f32 %v1745, %v1783
  %1785 = vmatmul.bf16.gmra.mxu0 %v275
  %v1786 = vpop.f32.mrf.mxu0
  %v1787 = vadd.f32 %v1748, %v1786
  %v1788 = vpop.f32.mrf.mxu0
  %v1789 = vadd.f32 %v1750, %v1788
  %1790 = vmatmul.bf16.gmra.mxu0 %v278
  %v1791 = vpop.f32.mrf.mxu0
  %v1792 = vadd.f32 %v1753, %v1791
  %v1793 = vpop.f32.mrf.mxu0
  %v1794 = vadd.f32 %v1755, %v1793
  %1795 = vdwg.mxu0
  %1796 = vmatpush.bf16.msra.mxu0 %v1677
  %1797 = vmatpush.bf16.msra.mxu0 %v1675
  %1798 = vmatpush.bf16.msra.mxu0 %v1673
  %1799 = vmatpush.bf16.msra.mxu0 %v1671
  %1800 = vmatpush.bf16.msra.mxu0 %v1669
  %1801 = vmatpush.bf16.msra.mxu0 %v1667
  %1802 = vmatpush.bf16.msra.mxu0 %v1665
  %1803 = vmatpush.bf16.msra.mxu0 %v1663
  %1804 = vmatmul.bf16.gmra.mxu0 %v103
  %v1805 = vpop.f32.mrf.mxu0
  %v1806 = vadd.f32 0.0, %v1805
  %v1807 = vpop.f32.mrf.mxu0
  %v1808 = vadd.f32 0.0, %v1807
  %1809 = vmatmul.bf16.gmra.mxu0 %v105
  %v1810 = vpop.f32.mrf.mxu0
  %v1811 = vadd.f32 0.0, %v1810
  %v1812 = vpop.f32.mrf.mxu0
  %v1813 = vadd.f32 0.0, %v1812
  %1814 = vmatmul.bf16.gmra.mxu0 %v107
  %v1815 = vpop.f32.mrf.mxu0
  %v1816 = vadd.f32 0.0, %v1815
  %v1817 = vpop.f32.mrf.mxu0
  %v1818 = vadd.f32 0.0, %v1817
  %1819 = vmatmul.bf16.gmra.mxu0 %v109
  %v1820 = vpop.f32.mrf.mxu0
  %v1821 = vadd.f32 0.0, %v1820
  %v1822 = vpop.f32.mrf.mxu0
  %v1823 = vadd.f32 0.0, %v1822
  %1824 = vmatmul.bf16.gmra.mxu0 %v111
  %v1825 = vpop.f32.mrf.mxu0
  %v1826 = vadd.f32 0.0, %v1825
  %v1827 = vpop.f32.mrf.mxu0
  %v1828 = vadd.f32 0.0, %v1827
  %1829 = vmatmul.bf16.gmra.mxu0 %v113
  %v1830 = vpop.f32.mrf.mxu0
  %v1831 = vadd.f32 0.0, %v1830
  %v1832 = vpop.f32.mrf.mxu0
  %v1833 = vadd.f32 0.0, %v1832
  %1834 = vdwg.mxu0
  %1835 = vmatpush.bf16.msra.mxu0 0
  %1836 = vmatpush.bf16.msra.mxu0 0
  %1837 = vmatpush.bf16.msra.mxu0 %v1689
  %1838 = vmatpush.bf16.msra.mxu0 %v1687
  %1839 = vmatpush.bf16.msra.mxu0 %v1685
  %1840 = vmatpush.bf16.msra.mxu0 %v1683
  %1841 = vmatpush.bf16.msra.mxu0 %v1681
  %1842 = vmatpush.bf16.msra.mxu0 %v1679
  %1843 = vmatmul.bf16.gmra.mxu0 %v263
  %v1844 = vpop.f32.mrf.mxu0
  %v1845 = vadd.f32 %v1806, %v1844
  %v1846 = vpop.f32.mrf.mxu0
  %v1847 = vadd.f32 %v1808, %v1846
  %1848 = vmatmul.bf16.gmra.mxu0 %v266
  %v1849 = vpop.f32.mrf.mxu0
  %v1850 = vadd.f32 %v1811, %v1849
  %v1851 = vpop.f32.mrf.mxu0
  %v1852 = vadd.f32 %v1813, %v1851
  %1853 = vmatmul.bf16.gmra.mxu0 %v269
  %v1854 = vpop.f32.mrf.mxu0
  %v1855 = vadd.f32 %v1816, %v1854
  %v1856 = vpop.f32.mrf.mxu0
  %v1857 = vadd.f32 %v1818, %v1856
  %1858 = vmatmul.bf16.gmra.mxu0 %v272
  %v1859 = vpop.f32.mrf.mxu0
  %v1860 = vadd.f32 %v1821, %v1859
  %v1861 = vpop.f32.mrf.mxu0
  %v1862 = vadd.f32 %v1823, %v1861
  %1863 = vmatmul.bf16.gmra.mxu0 %v275
  %v1864 = vpop.f32.mrf.mxu0
  %v1865 = vadd.f32 %v1826, %v1864
  %v1866 = vpop.f32.mrf.mxu0
  %v1867 = vadd.f32 %v1828, %v1866
  %1868 = vmatmul.bf16.gmra.mxu0 %v278
  %v1869 = vpop.f32.mrf.mxu0
  %v1870 = vadd.f32 %v1831, %v1869
  %v1871 = vpop.f32.mrf.mxu0
  %v1872 = vadd.f32 %v1833, %v1871
  %1873 = vdwg.mxu0
  %s1874 = scalar_lea.vmem %s1, 1120
  %v1875 = vld [vmem:[%s1874] sm:$0xff]
  %v1876 = vld [vmem:[%s1874 + $0x8] sm:$0xff]
  %v1877 = vld [vmem:[%s1874 + $0x10] sm:$0xff]
  %v1878 = vld [vmem:[%s1874 + $0x18] sm:$0xff]
  %v1879 = vld [vmem:[%s1874 + $0x20] sm:$0xff]
  %v1880 = vld [vmem:[%s1874 + $0x28] sm:$0xff]
  %v1881 = vld [vmem:[%s1874 + $0x30] sm:$0xff]
  %v1882 = vld [vmem:[%s1874 + $0x38] sm:$0xff]
  %v1883 = vld [vmem:[%s1874 + $0x40] sm:$0xff]
  %v1884 = vld [vmem:[%s1874 + $0x48] sm:$0xff]
  %v1885 = vld [vmem:[%s1874 + $0x50] sm:$0xff]
  %v1886 = vld [vmem:[%s1874 + $0x58] sm:$0xff]
  %v1887 = vld [vmem:[%s1874 + $0x60] sm:$0xff]
  %v1888 = vld [vmem:[%s1874 + $0x68] sm:$0xff]
  %v1889 = vld [vmem:[%s1874 + $0x70] sm:$0xff]
  %v1890 = vld [vmem:[%s1874 + $0x78] sm:$0xff]
  %v1891 = vld [vmem:[%s1874 + $0x80] sm:$0xff]
  %v1892 = vld [vmem:[%s1874 + $0x88] sm:$0xff]
  %v1893 = vld [vmem:[%s1874 + $0x90] sm:$0xff]
  %v1894 = vld [vmem:[%s1874 + $0x98] sm:$0xff]
  %v1895 = vld [vmem:[%s1874 + $0xa0] sm:$0xff]
  %v1896 = vld [vmem:[%s1874 + $0xa8] sm:$0xff]
  %v1897 = vld [vmem:[%s1874 + $0xb0] sm:$0xff]
  %v1898 = vld [vmem:[%s1874 + $0xb8] sm:$0xff]
  %v1899 = vld [vmem:[%s1874 + $0xc0] sm:$0xff]
  %v1900 = vld [vmem:[%s1874 + $0xc8] sm:$0xff]
  %v1901 = vld [vmem:[%s1874 + $0xd0] sm:$0xff]
  %v1902 = vld [vmem:[%s1874 + $0xd8] sm:$0xff]
  %v1931 = vunpack.c.l.b16 %v1875
  %v1932 = vunpack.c.h.b16 %v1875
  %v1933 = vunpack.c.l.b16 %v1876
  %v1934 = vunpack.c.h.b16 %v1876
  %v1935 = vunpack.c.l.b16 %v1877
  %v1936 = vunpack.c.h.b16 %v1877
  %v1937 = vunpack.c.l.b16 %v1878
  %v1938 = vunpack.c.h.b16 %v1878
  %v1939 = vunpack.c.l.b16 %v1879
  %v1940 = vunpack.c.h.b16 %v1879
  %v1941 = vunpack.c.l.b16 %v1880
  %v1942 = vunpack.c.h.b16 %v1880
  %v1943 = vunpack.c.l.b16 %v1881
  %v1944 = vunpack.c.h.b16 %v1881
  %v1945 = vunpack.c.l.b16 %v1882
  %v1946 = vunpack.c.h.b16 %v1882
  %v1947 = vunpack.c.l.b16 %v1883
  %v1948 = vunpack.c.h.b16 %v1883
  %v1949 = vunpack.c.l.b16 %v1884
  %v1950 = vunpack.c.h.b16 %v1884
  %v1951 = vunpack.c.l.b16 %v1885
  %v1952 = vunpack.c.h.b16 %v1885
  %v1953 = vunpack.c.l.b16 %v1886
  %v1954 = vunpack.c.h.b16 %v1886
  %v1955 = vunpack.c.l.b16 %v1887
  %v1956 = vunpack.c.h.b16 %v1887
  %v1957 = vunpack.c.l.b16 %v1888
  %v1958 = vunpack.c.h.b16 %v1888
  %v1959 = vunpack.c.l.b16 %v1889
  %v1960 = vunpack.c.h.b16 %v1889
  %v1961 = vunpack.c.l.b16 %v1890
  %v1962 = vunpack.c.h.b16 %v1890
  %v1963 = vunpack.c.l.b16 %v1891
  %v1964 = vunpack.c.h.b16 %v1891
  %v1965 = vunpack.c.l.b16 %v1892
  %v1966 = vunpack.c.h.b16 %v1892
  %v1967 = vunpack.c.l.b16 %v1893
  %v1968 = vunpack.c.h.b16 %v1893
  %v1969 = vunpack.c.l.b16 %v1894
  %v1970 = vunpack.c.h.b16 %v1894
  %v1971 = vunpack.c.l.b16 %v1895
  %v1972 = vunpack.c.h.b16 %v1895
  %v1973 = vunpack.c.l.b16 %v1896
  %v1974 = vunpack.c.h.b16 %v1896
  %v1975 = vunpack.c.l.b16 %v1897
  %v1976 = vunpack.c.h.b16 %v1897
  %v1977 = vunpack.c.l.b16 %v1898
  %v1978 = vunpack.c.h.b16 %v1898
  %v1979 = vunpack.c.l.b16 %v1899
  %v1980 = vunpack.c.h.b16 %v1899
  %v1981 = vunpack.c.l.b16 %v1900
  %v1982 = vunpack.c.h.b16 %v1900
  %v1983 = vunpack.c.l.b16 %v1901
  %v1984 = vunpack.c.h.b16 %v1901
  %v1985 = vunpack.c.l.b16 %v1902
  %v1986 = vunpack.c.h.b16 %v1902
  %v1987 = vpack.c.b16 %v1933, %v1931
  %v1988 = vpack.c.b16 %v1934, %v1932
  %v1989 = vpack.c.b16 %v1937, %v1935
  %v1990 = vpack.c.b16 %v1938, %v1936
  %v1991 = vpack.c.b16 %v1941, %v1939
  %v1992 = vpack.c.b16 %v1942, %v1940
  %v1993 = vpack.c.b16 %v1945, %v1943
  %v1994 = vpack.c.b16 %v1946, %v1944
  %v1995 = vpack.c.b16 %v1949, %v1947
  %v1996 = vpack.c.b16 %v1950, %v1948
  %v1997 = vpack.c.b16 %v1953, %v1951
  %v1998 = vpack.c.b16 %v1954, %v1952
  %v1999 = vpack.c.b16 %v1957, %v1955
  %v2000 = vpack.c.b16 %v1958, %v1956
  %v2001 = vpack.c.b16 %v1961, %v1959
  %v2002 = vpack.c.b16 %v1962, %v1960
  %v2003 = vpack.c.b16 %v1965, %v1963
  %v2004 = vpack.c.b16 %v1966, %v1964
  %v2005 = vpack.c.b16 %v1969, %v1967
  %v2006 = vpack.c.b16 %v1970, %v1968
  %v2007 = vpack.c.b16 %v1973, %v1971
  %v2008 = vpack.c.b16 %v1974, %v1972
  %v2009 = vpack.c.b16 %v1977, %v1975
  %v2010 = vpack.c.b16 %v1978, %v1976
  %v2011 = vpack.c.b16 %v1981, %v1979
  %v2012 = vpack.c.b16 %v1982, %v1980
  %v2013 = vpack.c.b16 %v1985, %v1983
  %v2014 = vpack.c.b16 %v1986, %v1984
  %2043 = vmatpush.bf16.msra.mxu0 %v2001
  %2044 = vmatpush.bf16.msra.mxu0 %v1999
  %2045 = vmatpush.bf16.msra.mxu0 %v1997
  %2046 = vmatpush.bf16.msra.mxu0 %v1995
  %2047 = vmatpush.bf16.msra.mxu0 %v1993
  %2048 = vmatpush.bf16.msra.mxu0 %v1991
  %2049 = vmatpush.bf16.msra.mxu0 %v1989
  %2050 = vmatpush.bf16.msra.mxu0 %v1987
  %2051 = vmatmul.bf16.gmra.mxu0 %v103
  %v2052 = vpop.f32.mrf.mxu0
  %v2053 = vadd.f32 0.0, %v2052
  %v2054 = vpop.f32.mrf.mxu0
  %v2055 = vadd.f32 0.0, %v2054
  %2056 = vmatmul.bf16.gmra.mxu0 %v105
  %v2057 = vpop.f32.mrf.mxu0
  %v2058 = vadd.f32 0.0, %v2057
  %v2059 = vpop.f32.mrf.mxu0
  %v2060 = vadd.f32 0.0, %v2059
  %2061 = vmatmul.bf16.gmra.mxu0 %v107
  %v2062 = vpop.f32.mrf.mxu0
  %v2063 = vadd.f32 0.0, %v2062
  %v2064 = vpop.f32.mrf.mxu0
  %v2065 = vadd.f32 0.0, %v2064
  %2066 = vmatmul.bf16.gmra.mxu0 %v109
  %v2067 = vpop.f32.mrf.mxu0
  %v2068 = vadd.f32 0.0, %v2067
  %v2069 = vpop.f32.mrf.mxu0
  %v2070 = vadd.f32 0.0, %v2069
  %2071 = vmatmul.bf16.gmra.mxu0 %v111
  %v2072 = vpop.f32.mrf.mxu0
  %v2073 = vadd.f32 0.0, %v2072
  %v2074 = vpop.f32.mrf.mxu0
  %v2075 = vadd.f32 0.0, %v2074
  %2076 = vmatmul.bf16.gmra.mxu0 %v113
  %v2077 = vpop.f32.mrf.mxu0
  %v2078 = vadd.f32 0.0, %v2077
  %v2079 = vpop.f32.mrf.mxu0
  %v2080 = vadd.f32 0.0, %v2079
  %2081 = vdwg.mxu0
  %2082 = vmatpush.bf16.msra.mxu0 0
  %2083 = vmatpush.bf16.msra.mxu0 0
  %2084 = vmatpush.bf16.msra.mxu0 %v2013
  %2085 = vmatpush.bf16.msra.mxu0 %v2011
  %2086 = vmatpush.bf16.msra.mxu0 %v2009
  %2087 = vmatpush.bf16.msra.mxu0 %v2007
  %2088 = vmatpush.bf16.msra.mxu0 %v2005
  %2089 = vmatpush.bf16.msra.mxu0 %v2003
  %2090 = vmatmul.bf16.gmra.mxu0 %v263
  %v2091 = vpop.f32.mrf.mxu0
  %v2092 = vadd.f32 %v2053, %v2091
  %v2093 = vpop.f32.mrf.mxu0
  %v2094 = vadd.f32 %v2055, %v2093
  %2095 = vmatmul.bf16.gmra.mxu0 %v266
  %v2096 = vpop.f32.mrf.mxu0
  %v2097 = vadd.f32 %v2058, %v2096
  %v2098 = vpop.f32.mrf.mxu0
  %v2099 = vadd.f32 %v2060, %v2098
  %2100 = vmatmul.bf16.gmra.mxu0 %v269
  %v2101 = vpop.f32.mrf.mxu0
  %v2102 = vadd.f32 %v2063, %v2101
  %v2103 = vpop.f32.mrf.mxu0
  %v2104 = vadd.f32 %v2065, %v2103
  %2105 = vmatmul.bf16.gmra.mxu0 %v272
  %v2106 = vpop.f32.mrf.mxu0
  %v2107 = vadd.f32 %v2068, %v2106
  %v2108 = vpop.f32.mrf.mxu0
  %v2109 = vadd.f32 %v2070, %v2108
  %2110 = vmatmul.bf16.gmra.mxu0 %v275
  %v2111 = vpop.f32.mrf.mxu0
  %v2112 = vadd.f32 %v2073, %v2111
  %v2113 = vpop.f32.mrf.mxu0
  %v2114 = vadd.f32 %v2075, %v2113
  %2115 = vmatmul.bf16.gmra.mxu0 %v278
  %v2116 = vpop.f32.mrf.mxu0
  %v2117 = vadd.f32 %v2078, %v2116
  %v2118 = vpop.f32.mrf.mxu0
  %v2119 = vadd.f32 %v2080, %v2118
  %2120 = vdwg.mxu0
  %2121 = vmatpush.bf16.msra.mxu0 %v2002
  %2122 = vmatpush.bf16.msra.mxu0 %v2000
  %2123 = vmatpush.bf16.msra.mxu0 %v1998
  %2124 = vmatpush.bf16.msra.mxu0 %v1996
  %2125 = vmatpush.bf16.msra.mxu0 %v1994
  %2126 = vmatpush.bf16.msra.mxu0 %v1992
  %2127 = vmatpush.bf16.msra.mxu0 %v1990
  %2128 = vmatpush.bf16.msra.mxu0 %v1988
  %2129 = vmatmul.bf16.gmra.mxu0 %v103
  %v2130 = vpop.f32.mrf.mxu0
  %v2131 = vadd.f32 0.0, %v2130
  %v2132 = vpop.f32.mrf.mxu0
  %v2133 = vadd.f32 0.0, %v2132
  %2134 = vmatmul.bf16.gmra.mxu0 %v105
  %v2135 = vpop.f32.mrf.mxu0
  %v2136 = vadd.f32 0.0, %v2135
  %v2137 = vpop.f32.mrf.mxu0
  %v2138 = vadd.f32 0.0, %v2137
  %2139 = vmatmul.bf16.gmra.mxu0 %v107
  %v2140 = vpop.f32.mrf.mxu0
  %v2141 = vadd.f32 0.0, %v2140
  %v2142 = vpop.f32.mrf.mxu0
  %v2143 = vadd.f32 0.0, %v2142
  %2144 = vmatmul.bf16.gmra.mxu0 %v109
  %v2145 = vpop.f32.mrf.mxu0
  %v2146 = vadd.f32 0.0, %v2145
  %v2147 = vpop.f32.mrf.mxu0
  %v2148 = vadd.f32 0.0, %v2147
  %2149 = vmatmul.bf16.gmra.mxu0 %v111
  %v2150 = vpop.f32.mrf.mxu0
  %v2151 = vadd.f32 0.0, %v2150
  %v2152 = vpop.f32.mrf.mxu0
  %v2153 = vadd.f32 0.0, %v2152
  %2154 = vmatmul.bf16.gmra.mxu0 %v113
  %v2155 = vpop.f32.mrf.mxu0
  %v2156 = vadd.f32 0.0, %v2155
  %v2157 = vpop.f32.mrf.mxu0
  %v2158 = vadd.f32 0.0, %v2157
  %2159 = vdwg.mxu0
  %2160 = vmatpush.bf16.msra.mxu0 0
  %2161 = vmatpush.bf16.msra.mxu0 0
  %2162 = vmatpush.bf16.msra.mxu0 %v2014
  %2163 = vmatpush.bf16.msra.mxu0 %v2012
  %2164 = vmatpush.bf16.msra.mxu0 %v2010
  %2165 = vmatpush.bf16.msra.mxu0 %v2008
  %2166 = vmatpush.bf16.msra.mxu0 %v2006
  %2167 = vmatpush.bf16.msra.mxu0 %v2004
  %2168 = vmatmul.bf16.gmra.mxu0 %v263
  %v2169 = vpop.f32.mrf.mxu0
  %v2170 = vadd.f32 %v2131, %v2169
  %v2171 = vpop.f32.mrf.mxu0
  %v2172 = vadd.f32 %v2133, %v2171
  %2173 = vmatmul.bf16.gmra.mxu0 %v266
  %v2174 = vpop.f32.mrf.mxu0
  %v2175 = vadd.f32 %v2136, %v2174
  %v2176 = vpop.f32.mrf.mxu0
  %v2177 = vadd.f32 %v2138, %v2176
  %2178 = vmatmul.bf16.gmra.mxu0 %v269
  %v2179 = vpop.f32.mrf.mxu0
  %v2180 = vadd.f32 %v2141, %v2179
  %v2181 = vpop.f32.mrf.mxu0
  %v2182 = vadd.f32 %v2143, %v2181
  %2183 = vmatmul.bf16.gmra.mxu0 %v272
  %v2184 = vpop.f32.mrf.mxu0
  %v2185 = vadd.f32 %v2146, %v2184
  %v2186 = vpop.f32.mrf.mxu0
  %v2187 = vadd.f32 %v2148, %v2186
  %2188 = vmatmul.bf16.gmra.mxu0 %v275
  %v2189 = vpop.f32.mrf.mxu0
  %v2190 = vadd.f32 %v2151, %v2189
  %v2191 = vpop.f32.mrf.mxu0
  %v2192 = vadd.f32 %v2153, %v2191
  %2193 = vmatmul.bf16.gmra.mxu0 %v278
  %v2194 = vpop.f32.mrf.mxu0
  %v2195 = vadd.f32 %v2156, %v2194
  %v2196 = vpop.f32.mrf.mxu0
  %v2197 = vadd.f32 %v2158, %v2196
  %2198 = vdwg.mxu0
  %v2199 = vmax.f32 %v1767, %v2092
  %v2200 = vmax.f32 %v1845, %v2170
  %v2201 = vmax.f32 %v1769, %v2094
  %v2202 = vmax.f32 %v1847, %v2172
  %v2203 = vmax.f32 %v1772, %v2097
  %v2204 = vmax.f32 %v1850, %v2175
  %v2205 = vmax.f32 %v1774, %v2099
  %v2206 = vmax.f32 %v1852, %v2177
  %v2207 = vmax.f32 %v1777, %v2102
  %v2208 = vmax.f32 %v1855, %v2180
  %v2209 = vmax.f32 %v1779, %v2104
  %v2210 = vmax.f32 %v1857, %v2182
  %v2211 = vmax.f32 %v1782, %v2107
  %v2212 = vmax.f32 %v1860, %v2185
  %v2213 = vmax.f32 %v1784, %v2109
  %v2214 = vmax.f32 %v1862, %v2187
  %v2215 = vmax.f32 %v1787, %v2112
  %v2216 = vmax.f32 %v1865, %v2190
  %v2217 = vmax.f32 %v1789, %v2114
  %v2218 = vmax.f32 %v1867, %v2192
  %v2219 = vmax.f32 %v1792, %v2117
  %v2220 = vmax.f32 %v1870, %v2195
  %v2221 = vmax.f32 %v1794, %v2119
  %v2222 = vmax.f32 %v1872, %v2197
  %s2223 = scalar_lea.vmem %s1, 1344
  %v2224 = vld [vmem:[%s2223] sm:$0xff]
  %v2225 = vld [vmem:[%s2223 + $0x8] sm:$0xff]
  %v2226 = vld [vmem:[%s2223 + $0x10] sm:$0xff]
  %v2227 = vld [vmem:[%s2223 + $0x18] sm:$0xff]
  %v2228 = vld [vmem:[%s2223 + $0x20] sm:$0xff]
  %v2229 = vld [vmem:[%s2223 + $0x28] sm:$0xff]
  %v2230 = vld [vmem:[%s2223 + $0x30] sm:$0xff]
  %v2231 = vld [vmem:[%s2223 + $0x38] sm:$0xff]
  %v2232 = vld [vmem:[%s2223 + $0x40] sm:$0xff]
  %v2233 = vld [vmem:[%s2223 + $0x48] sm:$0xff]
  %v2234 = vld [vmem:[%s2223 + $0x50] sm:$0xff]
  %v2235 = vld [vmem:[%s2223 + $0x58] sm:$0xff]
  %v2236 = vld [vmem:[%s2223 + $0x60] sm:$0xff]
  %v2237 = vld [vmem:[%s2223 + $0x68] sm:$0xff]
  %v2238 = vld [vmem:[%s2223 + $0x70] sm:$0xff]
  %v2239 = vld [vmem:[%s2223 + $0x78] sm:$0xff]
  %v2240 = vld [vmem:[%s2223 + $0x80] sm:$0xff]
  %v2241 = vld [vmem:[%s2223 + $0x88] sm:$0xff]
  %v2242 = vld [vmem:[%s2223 + $0x90] sm:$0xff]
  %v2243 = vld [vmem:[%s2223 + $0x98] sm:$0xff]
  %v2244 = vld [vmem:[%s2223 + $0xa0] sm:$0xff]
  %v2245 = vld [vmem:[%s2223 + $0xa8] sm:$0xff]
  %v2246 = vld [vmem:[%s2223 + $0xb0] sm:$0xff]
  %v2247 = vld [vmem:[%s2223 + $0xb8] sm:$0xff]
  %v2248 = vld [vmem:[%s2223 + $0xc0] sm:$0xff]
  %v2249 = vld [vmem:[%s2223 + $0xc8] sm:$0xff]
  %v2250 = vld [vmem:[%s2223 + $0xd0] sm:$0xff]
  %v2251 = vld [vmem:[%s2223 + $0xd8] sm:$0xff]
  %v2280 = vunpack.c.l.b16 %v2224
  %v2281 = vunpack.c.h.b16 %v2224
  %v2282 = vunpack.c.l.b16 %v2225
  %v2283 = vunpack.c.h.b16 %v2225
  %v2284 = vunpack.c.l.b16 %v2226
  %v2285 = vunpack.c.h.b16 %v2226
  %v2286 = vunpack.c.l.b16 %v2227
  %v2287 = vunpack.c.h.b16 %v2227
  %v2288 = vunpack.c.l.b16 %v2228
  %v2289 = vunpack.c.h.b16 %v2228
  %v2290 = vunpack.c.l.b16 %v2229
  %v2291 = vunpack.c.h.b16 %v2229
  %v2292 = vunpack.c.l.b16 %v2230
  %v2293 = vunpack.c.h.b16 %v2230
  %v2294 = vunpack.c.l.b16 %v2231
  %v2295 = vunpack.c.h.b16 %v2231
  %v2296 = vunpack.c.l.b16 %v2232
  %v2297 = vunpack.c.h.b16 %v2232
  %v2298 = vunpack.c.l.b16 %v2233
  %v2299 = vunpack.c.h.b16 %v2233
  %v2300 = vunpack.c.l.b16 %v2234
  %v2301 = vunpack.c.h.b16 %v2234
  %v2302 = vunpack.c.l.b16 %v2235
  %v2303 = vunpack.c.h.b16 %v2235
  %v2304 = vunpack.c.l.b16 %v2236
  %v2305 = vunpack.c.h.b16 %v2236
  %v2306 = vunpack.c.l.b16 %v2237
  %v2307 = vunpack.c.h.b16 %v2237
  %v2308 = vunpack.c.l.b16 %v2238
  %v2309 = vunpack.c.h.b16 %v2238
  %v2310 = vunpack.c.l.b16 %v2239
  %v2311 = vunpack.c.h.b16 %v2239
  %v2312 = vunpack.c.l.b16 %v2240
  %v2313 = vunpack.c.h.b16 %v2240
  %v2314 = vunpack.c.l.b16 %v2241
  %v2315 = vunpack.c.h.b16 %v2241
  %v2316 = vunpack.c.l.b16 %v2242
  %v2317 = vunpack.c.h.b16 %v2242
  %v2318 = vunpack.c.l.b16 %v2243
  %v2319 = vunpack.c.h.b16 %v2243
  %v2320 = vunpack.c.l.b16 %v2244
  %v2321 = vunpack.c.h.b16 %v2244
  %v2322 = vunpack.c.l.b16 %v2245
  %v2323 = vunpack.c.h.b16 %v2245
  %v2324 = vunpack.c.l.b16 %v2246
  %v2325 = vunpack.c.h.b16 %v2246
  %v2326 = vunpack.c.l.b16 %v2247
  %v2327 = vunpack.c.h.b16 %v2247
  %v2328 = vunpack.c.l.b16 %v2248
  %v2329 = vunpack.c.h.b16 %v2248
  %v2330 = vunpack.c.l.b16 %v2249
  %v2331 = vunpack.c.h.b16 %v2249
  %v2332 = vunpack.c.l.b16 %v2250
  %v2333 = vunpack.c.h.b16 %v2250
  %v2334 = vunpack.c.l.b16 %v2251
  %v2335 = vunpack.c.h.b16 %v2251
  %v2336 = vpack.c.b16 %v2282, %v2280
  %v2337 = vpack.c.b16 %v2283, %v2281
  %v2338 = vpack.c.b16 %v2286, %v2284
  %v2339 = vpack.c.b16 %v2287, %v2285
  %v2340 = vpack.c.b16 %v2290, %v2288
  %v2341 = vpack.c.b16 %v2291, %v2289
  %v2342 = vpack.c.b16 %v2294, %v2292
  %v2343 = vpack.c.b16 %v2295, %v2293
  %v2344 = vpack.c.b16 %v2298, %v2296
  %v2345 = vpack.c.b16 %v2299, %v2297
  %v2346 = vpack.c.b16 %v2302, %v2300
  %v2347 = vpack.c.b16 %v2303, %v2301
  %v2348 = vpack.c.b16 %v2306, %v2304
  %v2349 = vpack.c.b16 %v2307, %v2305
  %v2350 = vpack.c.b16 %v2310, %v2308
  %v2351 = vpack.c.b16 %v2311, %v2309
  %v2352 = vpack.c.b16 %v2314, %v2312
  %v2353 = vpack.c.b16 %v2315, %v2313
  %v2354 = vpack.c.b16 %v2318, %v2316
  %v2355 = vpack.c.b16 %v2319, %v2317
  %v2356 = vpack.c.b16 %v2322, %v2320
  %v2357 = vpack.c.b16 %v2323, %v2321
  %v2358 = vpack.c.b16 %v2326, %v2324
  %v2359 = vpack.c.b16 %v2327, %v2325
  %v2360 = vpack.c.b16 %v2330, %v2328
  %v2361 = vpack.c.b16 %v2331, %v2329
  %v2362 = vpack.c.b16 %v2334, %v2332
  %v2363 = vpack.c.b16 %v2335, %v2333
  %2392 = vmatpush.bf16.msra.mxu0 %v2350
  %2393 = vmatpush.bf16.msra.mxu0 %v2348
  %2394 = vmatpush.bf16.msra.mxu0 %v2346
  %2395 = vmatpush.bf16.msra.mxu0 %v2344
  %2396 = vmatpush.bf16.msra.mxu0 %v2342
  %2397 = vmatpush.bf16.msra.mxu0 %v2340
  %2398 = vmatpush.bf16.msra.mxu0 %v2338
  %2399 = vmatpush.bf16.msra.mxu0 %v2336
  %2400 = vmatmul.bf16.gmra.mxu0 %v103
  %v2401 = vpop.f32.mrf.mxu0
  %v2402 = vadd.f32 0.0, %v2401
  %v2403 = vpop.f32.mrf.mxu0
  %v2404 = vadd.f32 0.0, %v2403
  %2405 = vmatmul.bf16.gmra.mxu0 %v105
  %v2406 = vpop.f32.mrf.mxu0
  %v2407 = vadd.f32 0.0, %v2406
  %v2408 = vpop.f32.mrf.mxu0
  %v2409 = vadd.f32 0.0, %v2408
  %2410 = vmatmul.bf16.gmra.mxu0 %v107
  %v2411 = vpop.f32.mrf.mxu0
  %v2412 = vadd.f32 0.0, %v2411
  %v2413 = vpop.f32.mrf.mxu0
  %v2414 = vadd.f32 0.0, %v2413
  %2415 = vmatmul.bf16.gmra.mxu0 %v109
  %v2416 = vpop.f32.mrf.mxu0
  %v2417 = vadd.f32 0.0, %v2416
  %v2418 = vpop.f32.mrf.mxu0
  %v2419 = vadd.f32 0.0, %v2418
  %2420 = vmatmul.bf16.gmra.mxu0 %v111
  %v2421 = vpop.f32.mrf.mxu0
  %v2422 = vadd.f32 0.0, %v2421
  %v2423 = vpop.f32.mrf.mxu0
  %v2424 = vadd.f32 0.0, %v2423
  %2425 = vmatmul.bf16.gmra.mxu0 %v113
  %v2426 = vpop.f32.mrf.mxu0
  %v2427 = vadd.f32 0.0, %v2426
  %v2428 = vpop.f32.mrf.mxu0
  %v2429 = vadd.f32 0.0, %v2428
  %2430 = vdwg.mxu0
  %2431 = vmatpush.bf16.msra.mxu0 0
  %2432 = vmatpush.bf16.msra.mxu0 0
  %2433 = vmatpush.bf16.msra.mxu0 %v2362
  %2434 = vmatpush.bf16.msra.mxu0 %v2360
  %2435 = vmatpush.bf16.msra.mxu0 %v2358
  %2436 = vmatpush.bf16.msra.mxu0 %v2356
  %2437 = vmatpush.bf16.msra.mxu0 %v2354
  %2438 = vmatpush.bf16.msra.mxu0 %v2352
  %2439 = vmatmul.bf16.gmra.mxu0 %v263
  %v2440 = vpop.f32.mrf.mxu0
  %v2441 = vadd.f32 %v2402, %v2440
  %v2442 = vpop.f32.mrf.mxu0
  %v2443 = vadd.f32 %v2404, %v2442
  %2444 = vmatmul.bf16.gmra.mxu0 %v266
  %v2445 = vpop.f32.mrf.mxu0
  %v2446 = vadd.f32 %v2407, %v2445
  %v2447 = vpop.f32.mrf.mxu0
  %v2448 = vadd.f32 %v2409, %v2447
  %2449 = vmatmul.bf16.gmra.mxu0 %v269
  %v2450 = vpop.f32.mrf.mxu0
  %v2451 = vadd.f32 %v2412, %v2450
  %v2452 = vpop.f32.mrf.mxu0
  %v2453 = vadd.f32 %v2414, %v2452
  %2454 = vmatmul.bf16.gmra.mxu0 %v272
  %v2455 = vpop.f32.mrf.mxu0
  %v2456 = vadd.f32 %v2417, %v2455
  %v2457 = vpop.f32.mrf.mxu0
  %v2458 = vadd.f32 %v2419, %v2457
  %2459 = vmatmul.bf16.gmra.mxu0 %v275
  %v2460 = vpop.f32.mrf.mxu0
  %v2461 = vadd.f32 %v2422, %v2460
  %v2462 = vpop.f32.mrf.mxu0
  %v2463 = vadd.f32 %v2424, %v2462
  %2464 = vmatmul.bf16.gmra.mxu0 %v278
  %v2465 = vpop.f32.mrf.mxu0
  %v2466 = vadd.f32 %v2427, %v2465
  %v2467 = vpop.f32.mrf.mxu0
  %v2468 = vadd.f32 %v2429, %v2467
  %2469 = vdwg.mxu0
  %2470 = vmatpush.bf16.msra.mxu0 %v2351
  %2471 = vmatpush.bf16.msra.mxu0 %v2349
  %2472 = vmatpush.bf16.msra.mxu0 %v2347
  %2473 = vmatpush.bf16.msra.mxu0 %v2345
  %2474 = vmatpush.bf16.msra.mxu0 %v2343
  %2475 = vmatpush.bf16.msra.mxu0 %v2341
  %2476 = vmatpush.bf16.msra.mxu0 %v2339
  %2477 = vmatpush.bf16.msra.mxu0 %v2337
  %2478 = vmatmul.bf16.gmra.mxu0 %v103
  %v2479 = vpop.f32.mrf.mxu0
  %v2480 = vadd.f32 0.0, %v2479
  %v2481 = vpop.f32.mrf.mxu0
  %v2482 = vadd.f32 0.0, %v2481
  %2483 = vmatmul.bf16.gmra.mxu0 %v105
  %v2484 = vpop.f32.mrf.mxu0
  %v2485 = vadd.f32 0.0, %v2484
  %v2486 = vpop.f32.mrf.mxu0
  %v2487 = vadd.f32 0.0, %v2486
  %2488 = vmatmul.bf16.gmra.mxu0 %v107
  %v2489 = vpop.f32.mrf.mxu0
  %v2490 = vadd.f32 0.0, %v2489
  %v2491 = vpop.f32.mrf.mxu0
  %v2492 = vadd.f32 0.0, %v2491
  %2493 = vmatmul.bf16.gmra.mxu0 %v109
  %v2494 = vpop.f32.mrf.mxu0
  %v2495 = vadd.f32 0.0, %v2494
  %v2496 = vpop.f32.mrf.mxu0
  %v2497 = vadd.f32 0.0, %v2496
  %2498 = vmatmul.bf16.gmra.mxu0 %v111
  %v2499 = vpop.f32.mrf.mxu0
  %v2500 = vadd.f32 0.0, %v2499
  %v2501 = vpop.f32.mrf.mxu0
  %v2502 = vadd.f32 0.0, %v2501
  %2503 = vmatmul.bf16.gmra.mxu0 %v113
  %v2504 = vpop.f32.mrf.mxu0
  %v2505 = vadd.f32 0.0, %v2504
  %v2506 = vpop.f32.mrf.mxu0
  %v2507 = vadd.f32 0.0, %v2506
  %2508 = vdwg.mxu0
  %2509 = vmatpush.bf16.msra.mxu0 0
  %2510 = vmatpush.bf16.msra.mxu0 0
  %2511 = vmatpush.bf16.msra.mxu0 %v2363
  %2512 = vmatpush.bf16.msra.mxu0 %v2361
  %2513 = vmatpush.bf16.msra.mxu0 %v2359
  %2514 = vmatpush.bf16.msra.mxu0 %v2357
  %2515 = vmatpush.bf16.msra.mxu0 %v2355
  %2516 = vmatpush.bf16.msra.mxu0 %v2353
  %2517 = vmatmul.bf16.gmra.mxu0 %v263
  %v2518 = vpop.f32.mrf.mxu0
  %v2519 = vadd.f32 %v2480, %v2518
  %v2520 = vpop.f32.mrf.mxu0
  %v2521 = vadd.f32 %v2482, %v2520
  %2522 = vmatmul.bf16.gmra.mxu0 %v266
  %v2523 = vpop.f32.mrf.mxu0
  %v2524 = vadd.f32 %v2485, %v2523
  %v2525 = vpop.f32.mrf.mxu0
  %v2526 = vadd.f32 %v2487, %v2525
  %2527 = vmatmul.bf16.gmra.mxu0 %v269
  %v2528 = vpop.f32.mrf.mxu0
  %v2529 = vadd.f32 %v2490, %v2528
  %v2530 = vpop.f32.mrf.mxu0
  %v2531 = vadd.f32 %v2492, %v2530
  %2532 = vmatmul.bf16.gmra.mxu0 %v272
  %v2533 = vpop.f32.mrf.mxu0
  %v2534 = vadd.f32 %v2495, %v2533
  %v2535 = vpop.f32.mrf.mxu0
  %v2536 = vadd.f32 %v2497, %v2535
  %2537 = vmatmul.bf16.gmra.mxu0 %v275
  %v2538 = vpop.f32.mrf.mxu0
  %v2539 = vadd.f32 %v2500, %v2538
  %v2540 = vpop.f32.mrf.mxu0
  %v2541 = vadd.f32 %v2502, %v2540
  %2542 = vmatmul.bf16.gmra.mxu0 %v278
  %v2543 = vpop.f32.mrf.mxu0
  %v2544 = vadd.f32 %v2505, %v2543
  %v2545 = vpop.f32.mrf.mxu0
  %v2546 = vadd.f32 %v2507, %v2545
  %2547 = vdwg.mxu0
  %v2548 = vmax.f32 %v2199, %v2441
  %v2549 = vmax.f32 %v2200, %v2519
  %v2550 = vmax.f32 %v2201, %v2443
  %v2551 = vmax.f32 %v2202, %v2521
  %v2552 = vmax.f32 %v2203, %v2446
  %v2553 = vmax.f32 %v2204, %v2524
  %v2554 = vmax.f32 %v2205, %v2448
  %v2555 = vmax.f32 %v2206, %v2526
  %v2556 = vmax.f32 %v2207, %v2451
  %v2557 = vmax.f32 %v2208, %v2529
  %v2558 = vmax.f32 %v2209, %v2453
  %v2559 = vmax.f32 %v2210, %v2531
  %v2560 = vmax.f32 %v2211, %v2456
  %v2561 = vmax.f32 %v2212, %v2534
  %v2562 = vmax.f32 %v2213, %v2458
  %v2563 = vmax.f32 %v2214, %v2536
  %v2564 = vmax.f32 %v2215, %v2461
  %v2565 = vmax.f32 %v2216, %v2539
  %v2566 = vmax.f32 %v2217, %v2463
  %v2567 = vmax.f32 %v2218, %v2541
  %v2568 = vmax.f32 %v2219, %v2466
  %v2569 = vmax.f32 %v2220, %v2544
  %v2570 = vmax.f32 %v2221, %v2468
  %v2571 = vmax.f32 %v2222, %v2546
  %s2572 = scalar_lea.vmem %s1, 1568
  %v2573 = vld [vmem:[%s2572] sm:$0xff]
  %v2574 = vld [vmem:[%s2572 + $0x8] sm:$0xff]
  %v2575 = vld [vmem:[%s2572 + $0x10] sm:$0xff]
  %v2576 = vld [vmem:[%s2572 + $0x18] sm:$0xff]
  %v2577 = vld [vmem:[%s2572 + $0x20] sm:$0xff]
  %v2578 = vld [vmem:[%s2572 + $0x28] sm:$0xff]
  %v2579 = vld [vmem:[%s2572 + $0x30] sm:$0xff]
  %v2580 = vld [vmem:[%s2572 + $0x38] sm:$0xff]
  %v2581 = vld [vmem:[%s2572 + $0x40] sm:$0xff]
  %v2582 = vld [vmem:[%s2572 + $0x48] sm:$0xff]
  %v2583 = vld [vmem:[%s2572 + $0x50] sm:$0xff]
  %v2584 = vld [vmem:[%s2572 + $0x58] sm:$0xff]
  %v2585 = vld [vmem:[%s2572 + $0x60] sm:$0xff]
  %v2586 = vld [vmem:[%s2572 + $0x68] sm:$0xff]
  %v2587 = vld [vmem:[%s2572 + $0x70] sm:$0xff]
  %v2588 = vld [vmem:[%s2572 + $0x78] sm:$0xff]
  %v2589 = vld [vmem:[%s2572 + $0x80] sm:$0xff]
  %v2590 = vld [vmem:[%s2572 + $0x88] sm:$0xff]
  %v2591 = vld [vmem:[%s2572 + $0x90] sm:$0xff]
  %v2592 = vld [vmem:[%s2572 + $0x98] sm:$0xff]
  %v2593 = vld [vmem:[%s2572 + $0xa0] sm:$0xff]
  %v2594 = vld [vmem:[%s2572 + $0xa8] sm:$0xff]
  %v2595 = vld [vmem:[%s2572 + $0xb0] sm:$0xff]
  %v2596 = vld [vmem:[%s2572 + $0xb8] sm:$0xff]
  %v2597 = vld [vmem:[%s2572 + $0xc0] sm:$0xff]
  %v2598 = vld [vmem:[%s2572 + $0xc8] sm:$0xff]
  %v2599 = vld [vmem:[%s2572 + $0xd0] sm:$0xff]
  %v2600 = vld [vmem:[%s2572 + $0xd8] sm:$0xff]
  %v2629 = vunpack.c.l.b16 %v2573
  %v2630 = vunpack.c.h.b16 %v2573
  %v2631 = vunpack.c.l.b16 %v2574
  %v2632 = vunpack.c.h.b16 %v2574
  %v2633 = vunpack.c.l.b16 %v2575
  %v2634 = vunpack.c.h.b16 %v2575
  %v2635 = vunpack.c.l.b16 %v2576
  %v2636 = vunpack.c.h.b16 %v2576
  %v2637 = vunpack.c.l.b16 %v2577
  %v2638 = vunpack.c.h.b16 %v2577
  %v2639 = vunpack.c.l.b16 %v2578
  %v2640 = vunpack.c.h.b16 %v2578
  %v2641 = vunpack.c.l.b16 %v2579
  %v2642 = vunpack.c.h.b16 %v2579
  %v2643 = vunpack.c.l.b16 %v2580
  %v2644 = vunpack.c.h.b16 %v2580
  %v2645 = vunpack.c.l.b16 %v2581
  %v2646 = vunpack.c.h.b16 %v2581
  %v2647 = vunpack.c.l.b16 %v2582
  %v2648 = vunpack.c.h.b16 %v2582
  %v2649 = vunpack.c.l.b16 %v2583
  %v2650 = vunpack.c.h.b16 %v2583
  %v2651 = vunpack.c.l.b16 %v2584
  %v2652 = vunpack.c.h.b16 %v2584
  %v2653 = vunpack.c.l.b16 %v2585
  %v2654 = vunpack.c.h.b16 %v2585
  %v2655 = vunpack.c.l.b16 %v2586
  %v2656 = vunpack.c.h.b16 %v2586
  %v2657 = vunpack.c.l.b16 %v2587
  %v2658 = vunpack.c.h.b16 %v2587
  %v2659 = vunpack.c.l.b16 %v2588
  %v2660 = vunpack.c.h.b16 %v2588
  %v2661 = vunpack.c.l.b16 %v2589
  %v2662 = vunpack.c.h.b16 %v2589
  %v2663 = vunpack.c.l.b16 %v2590
  %v2664 = vunpack.c.h.b16 %v2590
  %v2665 = vunpack.c.l.b16 %v2591
  %v2666 = vunpack.c.h.b16 %v2591
  %v2667 = vunpack.c.l.b16 %v2592
  %v2668 = vunpack.c.h.b16 %v2592
  %v2669 = vunpack.c.l.b16 %v2593
  %v2670 = vunpack.c.h.b16 %v2593
  %v2671 = vunpack.c.l.b16 %v2594
  %v2672 = vunpack.c.h.b16 %v2594
  %v2673 = vunpack.c.l.b16 %v2595
  %v2674 = vunpack.c.h.b16 %v2595
  %v2675 = vunpack.c.l.b16 %v2596
  %v2676 = vunpack.c.h.b16 %v2596
  %v2677 = vunpack.c.l.b16 %v2597
  %v2678 = vunpack.c.h.b16 %v2597
  %v2679 = vunpack.c.l.b16 %v2598
  %v2680 = vunpack.c.h.b16 %v2598
  %v2681 = vunpack.c.l.b16 %v2599
  %v2682 = vunpack.c.h.b16 %v2599
  %v2683 = vunpack.c.l.b16 %v2600
  %v2684 = vunpack.c.h.b16 %v2600
  %v2685 = vpack.c.b16 %v2631, %v2629
  %v2686 = vpack.c.b16 %v2632, %v2630
  %v2687 = vpack.c.b16 %v2635, %v2633
  %v2688 = vpack.c.b16 %v2636, %v2634
  %v2689 = vpack.c.b16 %v2639, %v2637
  %v2690 = vpack.c.b16 %v2640, %v2638
  %v2691 = vpack.c.b16 %v2643, %v2641
  %v2692 = vpack.c.b16 %v2644, %v2642
  %v2693 = vpack.c.b16 %v2647, %v2645
  %v2694 = vpack.c.b16 %v2648, %v2646
  %v2695 = vpack.c.b16 %v2651, %v2649
  %v2696 = vpack.c.b16 %v2652, %v2650
  %v2697 = vpack.c.b16 %v2655, %v2653
  %v2698 = vpack.c.b16 %v2656, %v2654
  %v2699 = vpack.c.b16 %v2659, %v2657
  %v2700 = vpack.c.b16 %v2660, %v2658
  %v2701 = vpack.c.b16 %v2663, %v2661
  %v2702 = vpack.c.b16 %v2664, %v2662
  %v2703 = vpack.c.b16 %v2667, %v2665
  %v2704 = vpack.c.b16 %v2668, %v2666
  %v2705 = vpack.c.b16 %v2671, %v2669
  %v2706 = vpack.c.b16 %v2672, %v2670
  %v2707 = vpack.c.b16 %v2675, %v2673
  %v2708 = vpack.c.b16 %v2676, %v2674
  %v2709 = vpack.c.b16 %v2679, %v2677
  %v2710 = vpack.c.b16 %v2680, %v2678
  %v2711 = vpack.c.b16 %v2683, %v2681
  %v2712 = vpack.c.b16 %v2684, %v2682
  %2741 = vmatpush.bf16.msra.mxu0 %v2699
  %2742 = vmatpush.bf16.msra.mxu0 %v2697
  %2743 = vmatpush.bf16.msra.mxu0 %v2695
  %2744 = vmatpush.bf16.msra.mxu0 %v2693
  %2745 = vmatpush.bf16.msra.mxu0 %v2691
  %2746 = vmatpush.bf16.msra.mxu0 %v2689
  %2747 = vmatpush.bf16.msra.mxu0 %v2687
  %2748 = vmatpush.bf16.msra.mxu0 %v2685
  %2749 = vmatmul.bf16.gmra.mxu0 %v103
  %v2750 = vpop.f32.mrf.mxu0
  %v2751 = vadd.f32 0.0, %v2750
  %v2752 = vpop.f32.mrf.mxu0
  %v2753 = vadd.f32 0.0, %v2752
  %2754 = vmatmul.bf16.gmra.mxu0 %v105
  %v2755 = vpop.f32.mrf.mxu0
  %v2756 = vadd.f32 0.0, %v2755
  %v2757 = vpop.f32.mrf.mxu0
  %v2758 = vadd.f32 0.0, %v2757
  %2759 = vmatmul.bf16.gmra.mxu0 %v107
  %v2760 = vpop.f32.mrf.mxu0
  %v2761 = vadd.f32 0.0, %v2760
  %v2762 = vpop.f32.mrf.mxu0
  %v2763 = vadd.f32 0.0, %v2762
  %2764 = vmatmul.bf16.gmra.mxu0 %v109
  %v2765 = vpop.f32.mrf.mxu0
  %v2766 = vadd.f32 0.0, %v2765
  %v2767 = vpop.f32.mrf.mxu0
  %v2768 = vadd.f32 0.0, %v2767
  %2769 = vmatmul.bf16.gmra.mxu0 %v111
  %v2770 = vpop.f32.mrf.mxu0
  %v2771 = vadd.f32 0.0, %v2770
  %v2772 = vpop.f32.mrf.mxu0
  %v2773 = vadd.f32 0.0, %v2772
  %2774 = vmatmul.bf16.gmra.mxu0 %v113
  %v2775 = vpop.f32.mrf.mxu0
  %v2776 = vadd.f32 0.0, %v2775
  %v2777 = vpop.f32.mrf.mxu0
  %v2778 = vadd.f32 0.0, %v2777
  %2779 = vdwg.mxu0
  %2780 = vmatpush.bf16.msra.mxu0 0
  %2781 = vmatpush.bf16.msra.mxu0 0
  %2782 = vmatpush.bf16.msra.mxu0 %v2711
  %2783 = vmatpush.bf16.msra.mxu0 %v2709
  %2784 = vmatpush.bf16.msra.mxu0 %v2707
  %2785 = vmatpush.bf16.msra.mxu0 %v2705
  %2786 = vmatpush.bf16.msra.mxu0 %v2703
  %2787 = vmatpush.bf16.msra.mxu0 %v2701
  %2788 = vmatmul.bf16.gmra.mxu0 %v263
  %v2789 = vpop.f32.mrf.mxu0
  %v2790 = vadd.f32 %v2751, %v2789
  %v2791 = vpop.f32.mrf.mxu0
  %v2792 = vadd.f32 %v2753, %v2791
  %2793 = vmatmul.bf16.gmra.mxu0 %v266
  %v2794 = vpop.f32.mrf.mxu0
  %v2795 = vadd.f32 %v2756, %v2794
  %v2796 = vpop.f32.mrf.mxu0
  %v2797 = vadd.f32 %v2758, %v2796
  %2798 = vmatmul.bf16.gmra.mxu0 %v269
  %v2799 = vpop.f32.mrf.mxu0
  %v2800 = vadd.f32 %v2761, %v2799
  %v2801 = vpop.f32.mrf.mxu0
  %v2802 = vadd.f32 %v2763, %v2801
  %2803 = vmatmul.bf16.gmra.mxu0 %v272
  %v2804 = vpop.f32.mrf.mxu0
  %v2805 = vadd.f32 %v2766, %v2804
  %v2806 = vpop.f32.mrf.mxu0
  %v2807 = vadd.f32 %v2768, %v2806
  %2808 = vmatmul.bf16.gmra.mxu0 %v275
  %v2809 = vpop.f32.mrf.mxu0
  %v2810 = vadd.f32 %v2771, %v2809
  %v2811 = vpop.f32.mrf.mxu0
  %v2812 = vadd.f32 %v2773, %v2811
  %2813 = vmatmul.bf16.gmra.mxu0 %v278
  %v2814 = vpop.f32.mrf.mxu0
  %v2815 = vadd.f32 %v2776, %v2814
  %v2816 = vpop.f32.mrf.mxu0
  %v2817 = vadd.f32 %v2778, %v2816
  %2818 = vdwg.mxu0
  %2819 = vmatpush.bf16.msra.mxu0 %v2700
  %2820 = vmatpush.bf16.msra.mxu0 %v2698
  %2821 = vmatpush.bf16.msra.mxu0 %v2696
  %2822 = vmatpush.bf16.msra.mxu0 %v2694
  %2823 = vmatpush.bf16.msra.mxu0 %v2692
  %2824 = vmatpush.bf16.msra.mxu0 %v2690
  %2825 = vmatpush.bf16.msra.mxu0 %v2688
  %2826 = vmatpush.bf16.msra.mxu0 %v2686
  %2827 = vmatmul.bf16.gmra.mxu0 %v103
  %v2828 = vpop.f32.mrf.mxu0
  %v2829 = vadd.f32 0.0, %v2828
  %v2830 = vpop.f32.mrf.mxu0
  %v2831 = vadd.f32 0.0, %v2830
  %2832 = vmatmul.bf16.gmra.mxu0 %v105
  %v2833 = vpop.f32.mrf.mxu0
  %v2834 = vadd.f32 0.0, %v2833
  %v2835 = vpop.f32.mrf.mxu0
  %v2836 = vadd.f32 0.0, %v2835
  %2837 = vmatmul.bf16.gmra.mxu0 %v107
  %v2838 = vpop.f32.mrf.mxu0
  %v2839 = vadd.f32 0.0, %v2838
  %v2840 = vpop.f32.mrf.mxu0
  %v2841 = vadd.f32 0.0, %v2840
  %2842 = vmatmul.bf16.gmra.mxu0 %v109
  %v2843 = vpop.f32.mrf.mxu0
  %v2844 = vadd.f32 0.0, %v2843
  %v2845 = vpop.f32.mrf.mxu0
  %v2846 = vadd.f32 0.0, %v2845
  %2847 = vmatmul.bf16.gmra.mxu0 %v111
  %v2848 = vpop.f32.mrf.mxu0
  %v2849 = vadd.f32 0.0, %v2848
  %v2850 = vpop.f32.mrf.mxu0
  %v2851 = vadd.f32 0.0, %v2850
  %2852 = vmatmul.bf16.gmra.mxu0 %v113
  %v2853 = vpop.f32.mrf.mxu0
  %v2854 = vadd.f32 0.0, %v2853
  %v2855 = vpop.f32.mrf.mxu0
  %v2856 = vadd.f32 0.0, %v2855
  %2857 = vdwg.mxu0
  %2858 = vmatpush.bf16.msra.mxu0 0
  %2859 = vmatpush.bf16.msra.mxu0 0
  %2860 = vmatpush.bf16.msra.mxu0 %v2712
  %2861 = vmatpush.bf16.msra.mxu0 %v2710
  %2862 = vmatpush.bf16.msra.mxu0 %v2708
  %2863 = vmatpush.bf16.msra.mxu0 %v2706
  %2864 = vmatpush.bf16.msra.mxu0 %v2704
  %2865 = vmatpush.bf16.msra.mxu0 %v2702
  %2866 = vmatmul.bf16.gmra.mxu0 %v263
  %v2867 = vpop.f32.mrf.mxu0
  %v2868 = vadd.f32 %v2829, %v2867
  %v2869 = vpop.f32.mrf.mxu0
  %v2870 = vadd.f32 %v2831, %v2869
  %2871 = vmatmul.bf16.gmra.mxu0 %v266
  %v2872 = vpop.f32.mrf.mxu0
  %v2873 = vadd.f32 %v2834, %v2872
  %v2874 = vpop.f32.mrf.mxu0
  %v2875 = vadd.f32 %v2836, %v2874
  %2876 = vmatmul.bf16.gmra.mxu0 %v269
  %v2877 = vpop.f32.mrf.mxu0
  %v2878 = vadd.f32 %v2839, %v2877
  %v2879 = vpop.f32.mrf.mxu0
  %v2880 = vadd.f32 %v2841, %v2879
  %2881 = vmatmul.bf16.gmra.mxu0 %v272
  %v2882 = vpop.f32.mrf.mxu0
  %v2883 = vadd.f32 %v2844, %v2882
  %v2884 = vpop.f32.mrf.mxu0
  %v2885 = vadd.f32 %v2846, %v2884
  %2886 = vmatmul.bf16.gmra.mxu0 %v275
  %v2887 = vpop.f32.mrf.mxu0
  %v2888 = vadd.f32 %v2849, %v2887
  %v2889 = vpop.f32.mrf.mxu0
  %v2890 = vadd.f32 %v2851, %v2889
  %2891 = vmatmul.bf16.gmra.mxu0 %v278
  %v2892 = vpop.f32.mrf.mxu0
  %v2893 = vadd.f32 %v2854, %v2892
  %v2894 = vpop.f32.mrf.mxu0
  %v2895 = vadd.f32 %v2856, %v2894
  %2896 = vdwg.mxu0
  %v2897 = vmax.f32 %v2548, %v2790
  %v2898 = vmax.f32 %v2549, %v2868
  %v2899 = vmax.f32 %v2550, %v2792
  %v2900 = vmax.f32 %v2551, %v2870
  %v2901 = vmax.f32 %v2552, %v2795
  %v2902 = vmax.f32 %v2553, %v2873
  %v2903 = vmax.f32 %v2554, %v2797
  %v2904 = vmax.f32 %v2555, %v2875
  %v2905 = vmax.f32 %v2556, %v2800
  %v2906 = vmax.f32 %v2557, %v2878
  %v2907 = vmax.f32 %v2558, %v2802
  %v2908 = vmax.f32 %v2559, %v2880
  %v2909 = vmax.f32 %v2560, %v2805
  %v2910 = vmax.f32 %v2561, %v2883
  %v2911 = vmax.f32 %v2562, %v2807
  %v2912 = vmax.f32 %v2563, %v2885
  %v2913 = vmax.f32 %v2564, %v2810
  %v2914 = vmax.f32 %v2565, %v2888
  %v2915 = vmax.f32 %v2566, %v2812
  %v2916 = vmax.f32 %v2567, %v2890
  %v2917 = vmax.f32 %v2568, %v2815
  %v2918 = vmax.f32 %v2569, %v2893
  %v2919 = vmax.f32 %v2570, %v2817
  %v2920 = vmax.f32 %v2571, %v2895
  %v2921 = vadd.f32 %v2897, %v1485
  %v2922 = vadd.f32 %v2898, %v1486
  %v2923 = vadd.f32 %v2899, %v1485
  %v2924 = vadd.f32 %v2900, %v1486
  %v2925 = vadd.f32 %v2901, %v1485
  %v2926 = vadd.f32 %v2902, %v1486
  %v2927 = vadd.f32 %v2903, %v1485
  %v2928 = vadd.f32 %v2904, %v1486
  %v2929 = vadd.f32 %v2905, %v1485
  %v2930 = vadd.f32 %v2906, %v1486
  %v2931 = vadd.f32 %v2907, %v1485
  %v2932 = vadd.f32 %v2908, %v1486
  %v2933 = vadd.f32 %v2909, %v1485
  %v2934 = vadd.f32 %v2910, %v1486
  %v2935 = vadd.f32 %v2911, %v1485
  %v2936 = vadd.f32 %v2912, %v1486
  %v2937 = vadd.f32 %v2913, %v1485
  %v2938 = vadd.f32 %v2914, %v1486
  %v2939 = vadd.f32 %v2915, %v1485
  %v2940 = vadd.f32 %v2916, %v1486
  %v2941 = vadd.f32 %v2917, %v1485
  %v2942 = vadd.f32 %v2918, %v1486
  %v2943 = vadd.f32 %v2919, %v1485
  %v2944 = vadd.f32 %v2920, %v1486
  %v2945 = vmax.f32 %v2921, 0.0
  %v2946 = vmax.f32 %v2922, 0.0
  %v2947 = vmax.f32 %v2923, 0.0
  %v2948 = vmax.f32 %v2924, 0.0
  %v2949 = vmax.f32 %v2925, 0.0
  %v2950 = vmax.f32 %v2926, 0.0
  %v2951 = vmax.f32 %v2927, 0.0
  %v2952 = vmax.f32 %v2928, 0.0
  %v2953 = vmax.f32 %v2929, 0.0
  %v2954 = vmax.f32 %v2930, 0.0
  %v2955 = vmax.f32 %v2931, 0.0
  %v2956 = vmax.f32 %v2932, 0.0
  %v2957 = vmax.f32 %v2933, 0.0
  %v2958 = vmax.f32 %v2934, 0.0
  %v2959 = vmax.f32 %v2935, 0.0
  %v2960 = vmax.f32 %v2936, 0.0
  %v2961 = vmax.f32 %v2937, 0.0
  %v2962 = vmax.f32 %v2938, 0.0
  %v2963 = vmax.f32 %v2939, 0.0
  %v2964 = vmax.f32 %v2940, 0.0
  %v2965 = vmax.f32 %v2941, 0.0
  %v2966 = vmax.f32 %v2942, 0.0
  %v2967 = vmax.f32 %v2943, 0.0
  %v2968 = vmax.f32 %v2944, 0.0
  %v2969 = vpack.c.bf16 %v2946, %v2945
  %v2970 = vpack.c.bf16 %v2948, %v2947
  %v2971 = vpack.c.bf16 %v2950, %v2949
  %v2972 = vpack.c.bf16 %v2952, %v2951
  %v2973 = vpack.c.bf16 %v2954, %v2953
  %v2974 = vpack.c.bf16 %v2956, %v2955
  %v2975 = vpack.c.bf16 %v2958, %v2957
  %v2976 = vpack.c.bf16 %v2960, %v2959
  %v2977 = vpack.c.bf16 %v2962, %v2961
  %v2978 = vpack.c.bf16 %v2964, %v2963
  %v2979 = vpack.c.bf16 %v2966, %v2965
  %v2980 = vpack.c.bf16 %v2968, %v2967
  %2981 = vst [vmem:[#allocation2] sm:$0xff] %v1537
  %2982 = vst [vmem:[#allocation2 + $0x28] sm:$0xff] %v1538
  %2983 = vst [vmem:[#allocation2 + $0x50] sm:$0xff] %v1539
  %2984 = vst [vmem:[#allocation2 + $0x78] sm:$0xff] %v1540
  %2985 = vst [vmem:[#allocation2 + $0xa0] sm:$0xff] %v1541
  %2986 = vst [vmem:[#allocation2 + $0xc8] sm:$0xff] %v1542
  %2987 = vst [vmem:[#allocation2 + $0xf0] sm:$0xff] %v1543
  %2988 = vst [vmem:[#allocation2 + $0x118] sm:$0xff] %v1544
  %2989 = vst [vmem:[#allocation2 + $0x8] sm:$0xff] %v2969
  %2990 = vst [vmem:[#allocation2 + $0x30] sm:$0xff] %v2970
  %2991 = vst [vmem:[#allocation2 + $0x58] sm:$0xff] %v2971
  %2992 = vst [vmem:[#allocation2 + $0x80] sm:$0xff] %v2972
  %2993 = vst [vmem:[#allocation2 + $0xa8] sm:$0xff] %v2973
  %2994 = vst [vmem:[#allocation2 + $0xd0] sm:$0xff] %v2974
  %2995 = vst [vmem:[#allocation2 + $0xf8] sm:$0xff] %v2975
  %2996 = vst [vmem:[#allocation2 + $0x120] sm:$0xff] %v2976
  %2997 = vst [vmem:[#allocation2 + $0x10] sm:$0xff] %v1539
  %2998 = vst [vmem:[#allocation2 + $0x38] sm:$0xff] %v1540
  %2999 = vst [vmem:[#allocation2 + $0x60] sm:$0xff] %v1541
  %3000 = vst [vmem:[#allocation2 + $0x88] sm:$0xff] %v1542
  %3001 = vst [vmem:[#allocation2 + $0xb0] sm:$0xff] %v1543
  %3002 = vst [vmem:[#allocation2 + $0xd8] sm:$0xff] %v1544
  %3003 = vst [vmem:[#allocation2 + $0x100] sm:$0xff] %v1545
  %3004 = vst [vmem:[#allocation2 + $0x128] sm:$0xff] %v1546
  %3005 = vst [vmem:[#allocation2 + $0x18] sm:$0xff] %v2971
  %3006 = vst [vmem:[#allocation2 + $0x40] sm:$0xff] %v2972
  %3007 = vst [vmem:[#allocation2 + $0x68] sm:$0xff] %v2973
  %3008 = vst [vmem:[#allocation2 + $0x90] sm:$0xff] %v2974
  %3009 = vst [vmem:[#allocation2 + $0xb8] sm:$0xff] %v2975
  %3010 = vst [vmem:[#allocation2 + $0xe0] sm:$0xff] %v2976
  %3011 = vst [vmem:[#allocation2 + $0x108] sm:$0xff] %v2977
  %3012 = vst [vmem:[#allocation2 + $0x130] sm:$0xff] %v2978
  %3013 = vst [vmem:[#allocation2 + $0x20] sm:$0xff] %v1541
  %3014 = vst [vmem:[#allocation2 + $0x48] sm:$0xff] %v1542
  %3015 = vst [vmem:[#allocation2 + $0x70] sm:$0xff] %v1543
  %3016 = vst [vmem:[#allocation2 + $0x98] sm:$0xff] %v1544
  %3017 = vst [vmem:[#allocation2 + $0xc0] sm:$0xff] %v1545
  %3018 = vst [vmem:[#allocation2 + $0xe8] sm:$0xff] %v1546
  %3019 = vst [vmem:[#allocation2 + $0x110] sm:$0xff] %v1547
  %3020 = vst [vmem:[#allocation2 + $0x138] sm:$0xff] %v1548
  %s3021 = scalar_lea.vmem [#allocation2], 320
  %3022 = vst [vmem:[%s3021] sm:$0xff] %v2969
  %3023 = vst [vmem:[%s3021 + $0x28] sm:$0xff] %v2970
  %3024 = vst [vmem:[%s3021 + $0x50] sm:$0xff] %v2971
  %3025 = vst [vmem:[%s3021 + $0x78] sm:$0xff] %v2972
  %3026 = vst [vmem:[%s3021 + $0xa0] sm:$0xff] %v2973
  %3027 = vst [vmem:[%s3021 + $0xc8] sm:$0xff] %v2974
  %3028 = vst [vmem:[%s3021 + $0xf0] sm:$0xff] %v2975
  %3029 = vst [vmem:[%s3021 + $0x118] sm:$0xff] %v2976
  %3030 = vst [vmem:[%s3021 + $0x8] sm:$0xff] %v1539
  %3031 = vst [vmem:[%s3021 + $0x30] sm:$0xff] %v1540
  %3032 = vst [vmem:[%s3021 + $0x58] sm:$0xff] %v1541
  %3033 = vst [vmem:[%s3021 + $0x80] sm:$0xff] %v1542
  %3034 = vst [vmem:[%s3021 + $0xa8] sm:$0xff] %v1543
  %3035 = vst [vmem:[%s3021 + $0xd0] sm:$0xff] %v1544
  %3036 = vst [vmem:[%s3021 + $0xf8] sm:$0xff] %v1545
  %3037 = vst [vmem:[%s3021 + $0x120] sm:$0xff] %v1546
  %3038 = vst [vmem:[%s3021 + $0x10] sm:$0xff] %v2971
  %3039 = vst [vmem:[%s3021 + $0x38] sm:$0xff] %v2972
  %3040 = vst [vmem:[%s3021 + $0x60] sm:$0xff] %v2973
  %3041 = vst [vmem:[%s3021 + $0x88] sm:$0xff] %v2974
  %3042 = vst [vmem:[%s3021 + $0xb0] sm:$0xff] %v2975
  %3043 = vst [vmem:[%s3021 + $0xd8] sm:$0xff] %v2976
  %3044 = vst [vmem:[%s3021 + $0x100] sm:$0xff] %v2977
  %3045 = vst [vmem:[%s3021 + $0x128] sm:$0xff] %v2978
  %3046 = vst [vmem:[%s3021 + $0x18] sm:$0xff] %v1541
  %3047 = vst [vmem:[%s3021 + $0x40] sm:$0xff] %v1542
  %3048 = vst [vmem:[%s3021 + $0x68] sm:$0xff] %v1543
  %3049 = vst [vmem:[%s3021 + $0x90] sm:$0xff] %v1544
  %3050 = vst [vmem:[%s3021 + $0xb8] sm:$0xff] %v1545
  %3051 = vst [vmem:[%s3021 + $0xe0] sm:$0xff] %v1546
  %3052 = vst [vmem:[%s3021 + $0x108] sm:$0xff] %v1547
  %3053 = vst [vmem:[%s3021 + $0x130] sm:$0xff] %v1548
  %3054 = vst [vmem:[%s3021 + $0x20] sm:$0xff] %v2973
  %3055 = vst [vmem:[%s3021 + $0x48] sm:$0xff] %v2974
  %3056 = vst [vmem:[%s3021 + $0x70] sm:$0xff] %v2975
  %3057 = vst [vmem:[%s3021 + $0x98] sm:$0xff] %v2976
  %3058 = vst [vmem:[%s3021 + $0xc0] sm:$0xff] %v2977
  %3059 = vst [vmem:[%s3021 + $0xe8] sm:$0xff] %v2978
  %3060 = vst [vmem:[%s3021 + $0x110] sm:$0xff] %v2979
  %3061 = vst [vmem:[%s3021 + $0x138] sm:$0xff] %v2980
  %v3062 = vld [vmem:[#allocation2] sm:$0xff]
  %v3063 = vld [vmem:[#allocation2 + $0x8] sm:$0xff]
  %v3064 = vld [vmem:[#allocation2 + $0x10] sm:$0xff]
  %v3065 = vld [vmem:[#allocation2 + $0x18] sm:$0xff]
  %v3066 = vld [vmem:[#allocation2 + $0x20] sm:$0xff]
  %v3067 = vld [vmem:[#allocation2 + $0x28] sm:$0xff]
  %v3068 = vld [vmem:[#allocation2 + $0x30] sm:$0xff]
  %v3069 = vld [vmem:[#allocation2 + $0x38] sm:$0xff]
  %v3070 = vld [vmem:[#allocation2 + $0x40] sm:$0xff]
  %v3071 = vld [vmem:[#allocation2 + $0x48] sm:$0xff]
  %v3072 = vld [vmem:[#allocation2 + $0x50] sm:$0xff]
  %v3073 = vld [vmem:[#allocation2 + $0x58] sm:$0xff]
  %v3074 = vld [vmem:[#allocation2 + $0x60] sm:$0xff]
  %v3075 = vld [vmem:[#allocation2 + $0x68] sm:$0xff]
  %v3076 = vld [vmem:[#allocation2 + $0x70] sm:$0xff]
  %v3077 = vld [vmem:[#allocation2 + $0x78] sm:$0xff]
  %v3078 = vld [vmem:[#allocation2 + $0x80] sm:$0xff]
  %v3079 = vld [vmem:[#allocation2 + $0x88] sm:$0xff]
  %v3080 = vld [vmem:[#allocation2 + $0x90] sm:$0xff]
  %v3081 = vld [vmem:[#allocation2 + $0x98] sm:$0xff]
  %v3082 = vld [vmem:[#allocation2 + $0xa0] sm:$0xff]
  %v3083 = vld [vmem:[#allocation2 + $0xa8] sm:$0xff]
  %v3084 = vld [vmem:[#allocation2 + $0xb0] sm:$0xff]
  %v3085 = vld [vmem:[#allocation2 + $0xb8] sm:$0xff]
  %v3086 = vld [vmem:[#allocation2 + $0xc0] sm:$0xff]
  %v3087 = vld [vmem:[#allocation2 + $0xc8] sm:$0xff]
  %v3088 = vld [vmem:[#allocation2 + $0xd0] sm:$0xff]
  %v3089 = vld [vmem:[#allocation2 + $0xd8] sm:$0xff]
  %v3090 = vld [vmem:[#allocation2 + $0xe0] sm:$0xff]
  %v3091 = vld [vmem:[#allocation2 + $0xe8] sm:$0xff]
  %v3092 = vld [vmem:[#allocation2 + $0xf0] sm:$0xff]
  %v3093 = vld [vmem:[#allocation2 + $0xf8] sm:$0xff]
  %v3094 = vld [vmem:[#allocation2 + $0x100] sm:$0xff]
  %v3095 = vld [vmem:[#allocation2 + $0x108] sm:$0xff]
  %v3096 = vld [vmem:[#allocation2 + $0x110] sm:$0xff]
  %v3097 = vld [vmem:[#allocation2 + $0x118] sm:$0xff]
  %v3098 = vld [vmem:[#allocation2 + $0x120] sm:$0xff]
  %v3099 = vld [vmem:[#allocation2 + $0x128] sm:$0xff]
  %v3100 = vld [vmem:[#allocation2 + $0x130] sm:$0xff]
  %v3101 = vld [vmem:[#allocation2 + $0x138] sm:$0xff]
  %v3102 = vld [vmem:[%s3] sm:$0xff]
  %v3103 = vld [vmem:[%s3 + $0x8] sm:$0xff]
  %v3104 = vld [vmem:[%s3 + $0x10] sm:$0xff]
  %v3105 = vld [vmem:[%s3 + $0x18] sm:$0xff]
  %v3106 = vld [vmem:[%s3 + $0x20] sm:$0xff]
  %v3107 = vld [vmem:[%s3 + $0x28] sm:$0xff]
  %v3108 = vld [vmem:[%s3 + $0x30] sm:$0xff]
  %v3109 = vld [vmem:[%s3 + $0x38] sm:$0xff]
  %v3110 = vld [vmem:[%s3 + $0x40] sm:$0xff]
  %v3111 = vld [vmem:[%s3 + $0x48] sm:$0xff]
  %v3112 = vld [vmem:[%s3 + $0x50] sm:$0xff]
  %v3113 = vld [vmem:[%s3 + $0x58] sm:$0xff]
  %v3114 = vld [vmem:[%s3 + $0x60] sm:$0xff]
  %v3115 = vld [vmem:[%s3 + $0x68] sm:$0xff]
  %v3116 = vld [vmem:[%s3 + $0x70] sm:$0xff]
  %v3117 = vld [vmem:[%s3 + $0x78] sm:$0xff]
  %v3118 = vld [vmem:[%s3 + $0x80] sm:$0xff]
  %v3119 = vld [vmem:[%s3 + $0x88] sm:$0xff]
  %v3120 = vld [vmem:[%s3 + $0x90] sm:$0xff]
  %v3121 = vld [vmem:[%s3 + $0x98] sm:$0xff]
  %v3122 = vld [vmem:[%s3 + $0xa0] sm:$0xff]
  %v3123 = vld [vmem:[%s3 + $0xa8] sm:$0xff]
  %v3124 = vld [vmem:[%s3 + $0xb0] sm:$0xff]
  %v3125 = vld [vmem:[%s3 + $0xb8] sm:$0xff]
  %v3126 = vld [vmem:[%s3 + $0xc0] sm:$0xff]
  %v3127 = vld [vmem:[%s3 + $0xc8] sm:$0xff]
  %v3128 = vld [vmem:[%s3 + $0xd0] sm:$0xff]
  %v3129 = vld [vmem:[%s3 + $0xd8] sm:$0xff]
  %v3130 = vld [vmem:[%s3 + $0xe0] sm:$0xff]
  %v3131 = vld [vmem:[%s3 + $0xe8] sm:$0xff]
  %v3132 = vld [vmem:[%s3 + $0xf0] sm:$0xff]
  %v3133 = vld [vmem:[%s3 + $0xf8] sm:$0xff]
  %v3134 = vld [vmem:[%s3 + $0x100] sm:$0xff]
  %v3135 = vld [vmem:[%s3 + $0x108] sm:$0xff]
  %v3136 = vld [vmem:[%s3 + $0x110] sm:$0xff]
  %v3137 = vld [vmem:[%s3 + $0x118] sm:$0xff]
  %v3138 = vld [vmem:[%s3 + $0x120] sm:$0xff]
  %v3139 = vld [vmem:[%s3 + $0x128] sm:$0xff]
  %v3140 = vld [vmem:[%s3 + $0x130] sm:$0xff]
  %v3141 = vld [vmem:[%s3 + $0x138] sm:$0xff]
  %v3142 = vld [vmem:[%s3 + $0x140] sm:$0xff]
  %v3143 = vld [vmem:[%s3 + $0x148] sm:$0xff]
  %v3144 = vld [vmem:[%s3 + $0x150] sm:$0xff]
  %v3145 = vld [vmem:[%s3 + $0x158] sm:$0xff]
  %v3146 = vld [vmem:[%s3 + $0x160] sm:$0xff]
  %v3147 = vld [vmem:[%s3 + $0x168] sm:$0xff]
  %v3148 = vld [vmem:[%s3 + $0x170] sm:$0xff]
  %v3149 = vld [vmem:[%s3 + $0x178] sm:$0xff]
  %v3150 = vld [vmem:[%s3 + $0x180] sm:$0xff]
  %v3151 = vld [vmem:[%s3 + $0x188] sm:$0xff]
  %v3152 = vld [vmem:[%s3 + $0x190] sm:$0xff]
  %v3153 = vld [vmem:[%s3 + $0x198] sm:$0xff]
  %v3154 = vld [vmem:[%s3 + $0x1a0] sm:$0xff]
  %v3155 = vld [vmem:[%s3 + $0x1a8] sm:$0xff]
  %v3156 = vld [vmem:[%s3 + $0x1b0] sm:$0xff]
  %v3157 = vld [vmem:[%s3 + $0x1b8] sm:$0xff]
  %v3158 = vld [vmem:[%s3 + $0x1c0] sm:$0xff]
  %v3159 = vld [vmem:[%s3 + $0x1c8] sm:$0xff]
  %v3160 = vld [vmem:[%s3 + $0x1d0] sm:$0xff]
  %v3161 = vld [vmem:[%s3 + $0x1d8] sm:$0xff]
  %v3162 = vld [vmem:[%s3 + $0x1e0] sm:$0xff]
  %v3163 = vld [vmem:[%s3 + $0x1e8] sm:$0xff]
  %v3164 = vld [vmem:[%s3 + $0x1f0] sm:$0xff]
  %v3165 = vld [vmem:[%s3 + $0x1f8] sm:$0xff]
  %v3166 = vld [vmem:[%s3 + $0x200] sm:$0xff]
  %v3167 = vld [vmem:[%s3 + $0x208] sm:$0xff]
  %v3168 = vld [vmem:[%s3 + $0x210] sm:$0xff]
  %v3169 = vld [vmem:[%s3 + $0x218] sm:$0xff]
  %v3170 = vld [vmem:[%s3 + $0x220] sm:$0xff]
  %v3171 = vld [vmem:[%s3 + $0x228] sm:$0xff]
  %v3172 = vld [vmem:[%s3 + $0x230] sm:$0xff]
  %v3173 = vld [vmem:[%s3 + $0x238] sm:$0xff]
  %v3174 = vld [vmem:[%s3 + $0x240] sm:$0xff]
  %v3175 = vld [vmem:[%s3 + $0x248] sm:$0xff]
  %v3176 = vld [vmem:[%s3 + $0x250] sm:$0xff]
  %v3177 = vld [vmem:[%s3 + $0x258] sm:$0xff]
  %v3178 = vld [vmem:[%s3 + $0x260] sm:$0xff]
  %v3179 = vld [vmem:[%s3 + $0x268] sm:$0xff]
  %v3180 = vld [vmem:[%s3 + $0x270] sm:$0xff]
  %v3181 = vld [vmem:[%s3 + $0x278] sm:$0xff]
  %v3182 = vld [vmem:[%s3 + $0x280] sm:$0xff]
  %v3183 = vld [vmem:[%s3 + $0x288] sm:$0xff]
  %v3184 = vld [vmem:[%s3 + $0x290] sm:$0xff]
  %v3185 = vld [vmem:[%s3 + $0x298] sm:$0xff]
  %v3186 = vld [vmem:[%s3 + $0x2a0] sm:$0xff]
  %v3187 = vld [vmem:[%s3 + $0x2a8] sm:$0xff]
  %v3188 = vld [vmem:[%s3 + $0x2b0] sm:$0xff]
  %v3189 = vld [vmem:[%s3 + $0x2b8] sm:$0xff]
  %v3190 = vld [vmem:[%s3 + $0x2c0] sm:$0xff]
  %v3191 = vld [vmem:[%s3 + $0x2c8] sm:$0xff]
  %v3192 = vld [vmem:[%s3 + $0x2d0] sm:$0xff]
  %v3193 = vld [vmem:[%s3 + $0x2d8] sm:$0xff]
  %v3194 = vld [vmem:[%s3 + $0x2e0] sm:$0xff]
  %v3195 = vld [vmem:[%s3 + $0x2e8] sm:$0xff]
  %v3196 = vld [vmem:[%s3 + $0x2f0] sm:$0xff]
  %v3197 = vld [vmem:[%s3 + $0x2f8] sm:$0xff]
  %v3198 = vld [vmem:[%s3 + $0x300] sm:$0xff]
  %v3199 = vld [vmem:[%s3 + $0x308] sm:$0xff]
  %v3200 = vld [vmem:[%s3 + $0x310] sm:$0xff]
  %v3201 = vld [vmem:[%s3 + $0x318] sm:$0xff]
  %v3202 = vld [vmem:[%s3 + $0x320] sm:$0xff]
  %v3203 = vld [vmem:[%s3 + $0x328] sm:$0xff]
  %v3204 = vld [vmem:[%s3 + $0x330] sm:$0xff]
  %v3205 = vld [vmem:[%s3 + $0x338] sm:$0xff]
  %v3206 = vld [vmem:[%s3 + $0x340] sm:$0xff]
  %v3207 = vld [vmem:[%s3 + $0x348] sm:$0xff]
  %v3208 = vld [vmem:[%s3 + $0x350] sm:$0xff]
  %v3209 = vld [vmem:[%s3 + $0x358] sm:$0xff]
  %v3210 = vld [vmem:[%s3 + $0x360] sm:$0xff]
  %v3211 = vld [vmem:[%s3 + $0x368] sm:$0xff]
  %v3212 = vld [vmem:[%s3 + $0x370] sm:$0xff]
  %v3213 = vld [vmem:[%s3 + $0x378] sm:$0xff]
  %v3214 = vld [vmem:[%s3 + $0x380] sm:$0xff]
  %v3215 = vld [vmem:[%s3 + $0x388] sm:$0xff]
  %v3216 = vld [vmem:[%s3 + $0x390] sm:$0xff]
  %v3217 = vld [vmem:[%s3 + $0x398] sm:$0xff]
  %v3218 = vld [vmem:[%s3 + $0x3a0] sm:$0xff]
  %v3219 = vld [vmem:[%s3 + $0x3a8] sm:$0xff]
  %v3220 = vld [vmem:[%s3 + $0x3b0] sm:$0xff]
  %v3221 = vld [vmem:[%s3 + $0x3b8] sm:$0xff]
  %v3222 = vld [vmem:[%s3 + $0x3c0] sm:$0xff]
  %v3223 = vld [vmem:[%s3 + $0x3c8] sm:$0xff]
  %v3224 = vld [vmem:[%s3 + $0x3d0] sm:$0xff]
  %v3225 = vld [vmem:[%s3 + $0x3d8] sm:$0xff]
  %v3226 = vld [vmem:[%s3 + $0x3e0] sm:$0xff]
  %v3227 = vld [vmem:[%s3 + $0x3e8] sm:$0xff]
  %v3228 = vld [vmem:[%s3 + $0x3f0] sm:$0xff]
  %v3229 = vld [vmem:[%s3 + $0x3f8] sm:$0xff]
  %v3230 = vld [vmem:[%s3 + $0x400] sm:$0xff]
  %v3231 = vld [vmem:[%s3 + $0x408] sm:$0xff]
  %v3232 = vld [vmem:[%s3 + $0x410] sm:$0xff]
  %v3233 = vld [vmem:[%s3 + $0x418] sm:$0xff]
  %v3234 = vld [vmem:[%s3 + $0x420] sm:$0xff]
  %v3235 = vld [vmem:[%s3 + $0x428] sm:$0xff]
  %v3236 = vld [vmem:[%s3 + $0x430] sm:$0xff]
  %v3237 = vld [vmem:[%s3 + $0x438] sm:$0xff]
  %v3238 = vld [vmem:[%s3 + $0x440] sm:$0xff]
  %v3239 = vld [vmem:[%s3 + $0x448] sm:$0xff]
  %v3240 = vld [vmem:[%s3 + $0x450] sm:$0xff]
  %v3241 = vld [vmem:[%s3 + $0x458] sm:$0xff]
  %v3242 = vld [vmem:[%s3 + $0x460] sm:$0xff]
  %v3243 = vld [vmem:[%s3 + $0x468] sm:$0xff]
  %v3244 = vld [vmem:[%s3 + $0x470] sm:$0xff]
  %v3245 = vld [vmem:[%s3 + $0x478] sm:$0xff]
  %v3246 = vld [vmem:[%s3 + $0x480] sm:$0xff]
  %v3247 = vld [vmem:[%s3 + $0x488] sm:$0xff]
  %v3248 = vld [vmem:[%s3 + $0x490] sm:$0xff]
  %v3249 = vld [vmem:[%s3 + $0x498] sm:$0xff]
  %v3250 = vld [vmem:[%s3 + $0x4a0] sm:$0xff]
  %v3251 = vld [vmem:[%s3 + $0x4a8] sm:$0xff]
  %v3252 = vld [vmem:[%s3 + $0x4b0] sm:$0xff]
  %v3253 = vld [vmem:[%s3 + $0x4b8] sm:$0xff]
  %v3254 = vld [vmem:[%s3 + $0x4c0] sm:$0xff]
  %v3255 = vld [vmem:[%s3 + $0x4c8] sm:$0xff]
  %v3256 = vld [vmem:[%s3 + $0x4d0] sm:$0xff]
  %v3257 = vld [vmem:[%s3 + $0x4d8] sm:$0xff]
  %v3258 = vld [vmem:[%s3 + $0x4e0] sm:$0xff]
  %v3259 = vld [vmem:[%s3 + $0x4e8] sm:$0xff]
  %v3260 = vld [vmem:[%s3 + $0x4f0] sm:$0xff]
  %v3261 = vld [vmem:[%s3 + $0x4f8] sm:$0xff]
  %v3302 = vunpack.c.l.b16 %v3062
  %v3303 = vunpack.c.h.b16 %v3062
  %v3304 = vunpack.c.l.b16 %v3063
  %v3305 = vunpack.c.h.b16 %v3063
  %v3306 = vunpack.c.l.b16 %v3064
  %v3307 = vunpack.c.h.b16 %v3064
  %v3308 = vunpack.c.l.b16 %v3065
  %v3309 = vunpack.c.h.b16 %v3065
  %v3310 = vunpack.c.l.b16 %v3066
  %v3311 = vunpack.c.h.b16 %v3066
  %v3312 = vunpack.c.l.b16 %v3067
  %v3313 = vunpack.c.h.b16 %v3067
  %v3314 = vunpack.c.l.b16 %v3068
  %v3315 = vunpack.c.h.b16 %v3068
  %v3316 = vunpack.c.l.b16 %v3069
  %v3317 = vunpack.c.h.b16 %v3069
  %v3318 = vunpack.c.l.b16 %v3070
  %v3319 = vunpack.c.h.b16 %v3070
  %v3320 = vunpack.c.l.b16 %v3071
  %v3321 = vunpack.c.h.b16 %v3071
  %v3322 = vunpack.c.l.b16 %v3072
  %v3323 = vunpack.c.h.b16 %v3072
  %v3324 = vunpack.c.l.b16 %v3073
  %v3325 = vunpack.c.h.b16 %v3073
  %v3326 = vunpack.c.l.b16 %v3074
  %v3327 = vunpack.c.h.b16 %v3074
  %v3328 = vunpack.c.l.b16 %v3075
  %v3329 = vunpack.c.h.b16 %v3075
  %v3330 = vunpack.c.l.b16 %v3076
  %v3331 = vunpack.c.h.b16 %v3076
  %v3332 = vunpack.c.l.b16 %v3077
  %v3333 = vunpack.c.h.b16 %v3077
  %v3334 = vunpack.c.l.b16 %v3078
  %v3335 = vunpack.c.h.b16 %v3078
  %v3336 = vunpack.c.l.b16 %v3079
  %v3337 = vunpack.c.h.b16 %v3079
  %v3338 = vunpack.c.l.b16 %v3080
  %v3339 = vunpack.c.h.b16 %v3080
  %v3340 = vunpack.c.l.b16 %v3081
  %v3341 = vunpack.c.h.b16 %v3081
  %v3342 = vunpack.c.l.b16 %v3082
  %v3343 = vunpack.c.h.b16 %v3082
  %v3344 = vunpack.c.l.b16 %v3083
  %v3345 = vunpack.c.h.b16 %v3083
  %v3346 = vunpack.c.l.b16 %v3084
  %v3347 = vunpack.c.h.b16 %v3084
  %v3348 = vunpack.c.l.b16 %v3085
  %v3349 = vunpack.c.h.b16 %v3085
  %v3350 = vunpack.c.l.b16 %v3086
  %v3351 = vunpack.c.h.b16 %v3086
  %v3352 = vunpack.c.l.b16 %v3087
  %v3353 = vunpack.c.h.b16 %v3087
  %v3354 = vunpack.c.l.b16 %v3088
  %v3355 = vunpack.c.h.b16 %v3088
  %v3356 = vunpack.c.l.b16 %v3089
  %v3357 = vunpack.c.h.b16 %v3089
  %v3358 = vunpack.c.l.b16 %v3090
  %v3359 = vunpack.c.h.b16 %v3090
  %v3360 = vunpack.c.l.b16 %v3091
  %v3361 = vunpack.c.h.b16 %v3091
  %v3362 = vunpack.c.l.b16 %v3092
  %v3363 = vunpack.c.h.b16 %v3092
  %v3364 = vunpack.c.l.b16 %v3093
  %v3365 = vunpack.c.h.b16 %v3093
  %v3366 = vunpack.c.l.b16 %v3094
  %v3367 = vunpack.c.h.b16 %v3094
  %v3368 = vunpack.c.l.b16 %v3095
  %v3369 = vunpack.c.h.b16 %v3095
  %v3370 = vunpack.c.l.b16 %v3096
  %v3371 = vunpack.c.h.b16 %v3096
  %v3372 = vunpack.c.l.b16 %v3097
  %v3373 = vunpack.c.h.b16 %v3097
  %v3374 = vunpack.c.l.b16 %v3098
  %v3375 = vunpack.c.h.b16 %v3098
  %v3376 = vunpack.c.l.b16 %v3099
  %v3377 = vunpack.c.h.b16 %v3099
  %v3378 = vunpack.c.l.b16 %v3100
  %v3379 = vunpack.c.h.b16 %v3100
  %v3380 = vunpack.c.l.b16 %v3101
  %v3381 = vunpack.c.h.b16 %v3101
  %v3382 = vpack.c.b16 %v3312, %v3302
  %v3383 = vpack.c.b16 %v3313, %v3303
  %v3384 = vpack.c.b16 %v3314, %v3304
  %v3385 = vpack.c.b16 %v3315, %v3305
  %v3386 = vpack.c.b16 %v3316, %v3306
  %v3387 = vpack.c.b16 %v3317, %v3307
  %v3388 = vpack.c.b16 %v3318, %v3308
  %v3389 = vpack.c.b16 %v3319, %v3309
  %v3390 = vpack.c.b16 %v3320, %v3310
  %v3391 = vpack.c.b16 %v3321, %v3311
  %v3392 = vpack.c.b16 %v3332, %v3322
  %v3393 = vpack.c.b16 %v3333, %v3323
  %v3394 = vpack.c.b16 %v3334, %v3324
  %v3395 = vpack.c.b16 %v3335, %v3325
  %v3396 = vpack.c.b16 %v3336, %v3326
  %v3397 = vpack.c.b16 %v3337, %v3327
  %v3398 = vpack.c.b16 %v3338, %v3328
  %v3399 = vpack.c.b16 %v3339, %v3329
  %v3400 = vpack.c.b16 %v3340, %v3330
  %v3401 = vpack.c.b16 %v3341, %v3331
  %v3402 = vpack.c.b16 %v3352, %v3342
  %v3403 = vpack.c.b16 %v3353, %v3343
  %v3404 = vpack.c.b16 %v3354, %v3344
  %v3405 = vpack.c.b16 %v3355, %v3345
  %v3406 = vpack.c.b16 %v3356, %v3346
  %v3407 = vpack.c.b16 %v3357, %v3347
  %v3408 = vpack.c.b16 %v3358, %v3348
  %v3409 = vpack.c.b16 %v3359, %v3349
  %v3410 = vpack.c.b16 %v3360, %v3350
  %v3411 = vpack.c.b16 %v3361, %v3351
  %v3412 = vpack.c.b16 %v3372, %v3362
  %v3413 = vpack.c.b16 %v3373, %v3363
  %v3414 = vpack.c.b16 %v3374, %v3364
  %v3415 = vpack.c.b16 %v3375, %v3365
  %v3416 = vpack.c.b16 %v3376, %v3366
  %v3417 = vpack.c.b16 %v3377, %v3367
  %v3418 = vpack.c.b16 %v3378, %v3368
  %v3419 = vpack.c.b16 %v3379, %v3369
  %v3420 = vpack.c.b16 %v3380, %v3370
  %v3421 = vpack.c.b16 %v3381, %v3371
  %v3622 = vunpack.c.l.b16 %v3102
  %v3623 = vunpack.c.h.b16 %v3102
  %v3624 = vunpack.c.l.b16 %v3103
  %v3625 = vunpack.c.h.b16 %v3103
  %v3626 = vunpack.c.l.b16 %v3104
  %v3627 = vunpack.c.h.b16 %v3104
  %v3628 = vunpack.c.l.b16 %v3105
  %v3629 = vunpack.c.h.b16 %v3105
  %v3630 = vunpack.c.l.b16 %v3106
  %v3631 = vunpack.c.h.b16 %v3106
  %v3632 = vunpack.c.l.b16 %v3107
  %v3633 = vunpack.c.h.b16 %v3107
  %v3634 = vunpack.c.l.b16 %v3108
  %v3635 = vunpack.c.h.b16 %v3108
  %v3636 = vunpack.c.l.b16 %v3109
  %v3637 = vunpack.c.h.b16 %v3109
  %v3638 = vunpack.c.l.b16 %v3110
  %v3639 = vunpack.c.h.b16 %v3110
  %v3640 = vunpack.c.l.b16 %v3111
  %v3641 = vunpack.c.h.b16 %v3111
  %v3642 = vunpack.c.l.b16 %v3112
  %v3643 = vunpack.c.h.b16 %v3112
  %v3644 = vunpack.c.l.b16 %v3113
  %v3645 = vunpack.c.h.b16 %v3113
  %v3646 = vunpack.c.l.b16 %v3114
  %v3647 = vunpack.c.h.b16 %v3114
  %v3648 = vunpack.c.l.b16 %v3115
  %v3649 = vunpack.c.h.b16 %v3115
  %v3650 = vunpack.c.l.b16 %v3116
  %v3651 = vunpack.c.h.b16 %v3116
  %v3652 = vunpack.c.l.b16 %v3117
  %v3653 = vunpack.c.h.b16 %v3117
  %v3654 = vunpack.c.l.b16 %v3118
  %v3655 = vunpack.c.h.b16 %v3118
  %v3656 = vunpack.c.l.b16 %v3119
  %v3657 = vunpack.c.h.b16 %v3119
  %v3658 = vunpack.c.l.b16 %v3120
  %v3659 = vunpack.c.h.b16 %v3120
  %v3660 = vunpack.c.l.b16 %v3121
  %v3661 = vunpack.c.h.b16 %v3121
  %v3662 = vunpack.c.l.b16 %v3122
  %v3663 = vunpack.c.h.b16 %v3122
  %v3664 = vunpack.c.l.b16 %v3123
  %v3665 = vunpack.c.h.b16 %v3123
  %v3666 = vunpack.c.l.b16 %v3124
  %v3667 = vunpack.c.h.b16 %v3124
  %v3668 = vunpack.c.l.b16 %v3125
  %v3669 = vunpack.c.h.b16 %v3125
  %v3670 = vunpack.c.l.b16 %v3126
  %v3671 = vunpack.c.h.b16 %v3126
  %v3672 = vunpack.c.l.b16 %v3127
  %v3673 = vunpack.c.h.b16 %v3127
  %v3674 = vunpack.c.l.b16 %v3128
  %v3675 = vunpack.c.h.b16 %v3128
  %v3676 = vunpack.c.l.b16 %v3129
  %v3677 = vunpack.c.h.b16 %v3129
  %v3678 = vunpack.c.l.b16 %v3130
  %v3679 = vunpack.c.h.b16 %v3130
  %v3680 = vunpack.c.l.b16 %v3131
  %v3681 = vunpack.c.h.b16 %v3131
  %v3682 = vunpack.c.l.b16 %v3132
  %v3683 = vunpack.c.h.b16 %v3132
  %v3684 = vunpack.c.l.b16 %v3133
  %v3685 = vunpack.c.h.b16 %v3133
  %v3686 = vunpack.c.l.b16 %v3134
  %v3687 = vunpack.c.h.b16 %v3134
  %v3688 = vunpack.c.l.b16 %v3135
  %v3689 = vunpack.c.h.b16 %v3135
  %v3690 = vunpack.c.l.b16 %v3136
  %v3691 = vunpack.c.h.b16 %v3136
  %v3692 = vunpack.c.l.b16 %v3137
  %v3693 = vunpack.c.h.b16 %v3137
  %v3694 = vunpack.c.l.b16 %v3138
  %v3695 = vunpack.c.h.b16 %v3138
  %v3696 = vunpack.c.l.b16 %v3139
  %v3697 = vunpack.c.h.b16 %v3139
  %v3698 = vunpack.c.l.b16 %v3140
  %v3699 = vunpack.c.h.b16 %v3140
  %v3700 = vunpack.c.l.b16 %v3141
  %v3701 = vunpack.c.h.b16 %v3141
  %v3702 = vunpack.c.l.b16 %v3142
  %v3703 = vunpack.c.h.b16 %v3142
  %v3704 = vunpack.c.l.b16 %v3143
  %v3705 = vunpack.c.h.b16 %v3143
  %v3706 = vunpack.c.l.b16 %v3144
  %v3707 = vunpack.c.h.b16 %v3144
  %v3708 = vunpack.c.l.b16 %v3145
  %v3709 = vunpack.c.h.b16 %v3145
  %v3710 = vunpack.c.l.b16 %v3146
  %v3711 = vunpack.c.h.b16 %v3146
  %v3712 = vunpack.c.l.b16 %v3147
  %v3713 = vunpack.c.h.b16 %v3147
  %v3714 = vunpack.c.l.b16 %v3148
  %v3715 = vunpack.c.h.b16 %v3148
  %v3716 = vunpack.c.l.b16 %v3149
  %v3717 = vunpack.c.h.b16 %v3149
  %v3718 = vunpack.c.l.b16 %v3150
  %v3719 = vunpack.c.h.b16 %v3150
  %v3720 = vunpack.c.l.b16 %v3151
  %v3721 = vunpack.c.h.b16 %v3151
  %v3722 = vunpack.c.l.b16 %v3152
  %v3723 = vunpack.c.h.b16 %v3152
  %v3724 = vunpack.c.l.b16 %v3153
  %v3725 = vunpack.c.h.b16 %v3153
  %v3726 = vunpack.c.l.b16 %v3154
  %v3727 = vunpack.c.h.b16 %v3154
  %v3728 = vunpack.c.l.b16 %v3155
  %v3729 = vunpack.c.h.b16 %v3155
  %v3730 = vunpack.c.l.b16 %v3156
  %v3731 = vunpack.c.h.b16 %v3156
  %v3732 = vunpack.c.l.b16 %v3157
  %v3733 = vunpack.c.h.b16 %v3157
  %v3734 = vunpack.c.l.b16 %v3158
  %v3735 = vunpack.c.h.b16 %v3158
  %v3736 = vunpack.c.l.b16 %v3159
  %v3737 = vunpack.c.h.b16 %v3159
  %v3738 = vunpack.c.l.b16 %v3160
  %v3739 = vunpack.c.h.b16 %v3160
  %v3740 = vunpack.c.l.b16 %v3161
  %v3741 = vunpack.c.h.b16 %v3161
  %v3742 = vunpack.c.l.b16 %v3162
  %v3743 = vunpack.c.h.b16 %v3162
  %v3744 = vunpack.c.l.b16 %v3163
  %v3745 = vunpack.c.h.b16 %v3163
  %v3746 = vunpack.c.l.b16 %v3164
  %v3747 = vunpack.c.h.b16 %v3164
  %v3748 = vunpack.c.l.b16 %v3165
  %v3749 = vunpack.c.h.b16 %v3165
  %v3750 = vunpack.c.l.b16 %v3166
  %v3751 = vunpack.c.h.b16 %v3166
  %v3752 = vunpack.c.l.b16 %v3167
  %v3753 = vunpack.c.h.b16 %v3167
  %v3754 = vunpack.c.l.b16 %v3168
  %v3755 = vunpack.c.h.b16 %v3168
  %v3756 = vunpack.c.l.b16 %v3169
  %v3757 = vunpack.c.h.b16 %v3169
  %v3758 = vunpack.c.l.b16 %v3170
  %v3759 = vunpack.c.h.b16 %v3170
  %v3760 = vunpack.c.l.b16 %v3171
  %v3761 = vunpack.c.h.b16 %v3171
  %v3762 = vunpack.c.l.b16 %v3172
  %v3763 = vunpack.c.h.b16 %v3172
  %v3764 = vunpack.c.l.b16 %v3173
  %v3765 = vunpack.c.h.b16 %v3173
  %v3766 = vunpack.c.l.b16 %v3174
  %v3767 = vunpack.c.h.b16 %v3174
  %v3768 = vunpack.c.l.b16 %v3175
  %v3769 = vunpack.c.h.b16 %v3175
  %v3770 = vunpack.c.l.b16 %v3176
  %v3771 = vunpack.c.h.b16 %v3176
  %v3772 = vunpack.c.l.b16 %v3177
  %v3773 = vunpack.c.h.b16 %v3177
  %v3774 = vunpack.c.l.b16 %v3178
  %v3775 = vunpack.c.h.b16 %v3178
  %v3776 = vunpack.c.l.b16 %v3179
  %v3777 = vunpack.c.h.b16 %v3179
  %v3778 = vunpack.c.l.b16 %v3180
  %v3779 = vunpack.c.h.b16 %v3180
  %v3780 = vunpack.c.l.b16 %v3181
  %v3781 = vunpack.c.h.b16 %v3181
  %v3782 = vunpack.c.l.b16 %v3182
  %v3783 = vunpack.c.h.b16 %v3182
  %v3784 = vunpack.c.l.b16 %v3183
  %v3785 = vunpack.c.h.b16 %v3183
  %v3786 = vunpack.c.l.b16 %v3184
  %v3787 = vunpack.c.h.b16 %v3184
  %v3788 = vunpack.c.l.b16 %v3185
  %v3789 = vunpack.c.h.b16 %v3185
  %v3790 = vunpack.c.l.b16 %v3186
  %v3791 = vunpack.c.h.b16 %v3186
  %v3792 = vunpack.c.l.b16 %v3187
  %v3793 = vunpack.c.h.b16 %v3187
  %v3794 = vunpack.c.l.b16 %v3188
  %v3795 = vunpack.c.h.b16 %v3188
  %v3796 = vunpack.c.l.b16 %v3189
  %v3797 = vunpack.c.h.b16 %v3189
  %v3798 = vunpack.c.l.b16 %v3190
  %v3799 = vunpack.c.h.b16 %v3190
  %v3800 = vunpack.c.l.b16 %v3191
  %v3801 = vunpack.c.h.b16 %v3191
  %v3802 = vunpack.c.l.b16 %v3192
  %v3803 = vunpack.c.h.b16 %v3192
  %v3804 = vunpack.c.l.b16 %v3193
  %v3805 = vunpack.c.h.b16 %v3193
  %v3806 = vunpack.c.l.b16 %v3194
  %v3807 = vunpack.c.h.b16 %v3194
  %v3808 = vunpack.c.l.b16 %v3195
  %v3809 = vunpack.c.h.b16 %v3195
  %v3810 = vunpack.c.l.b16 %v3196
  %v3811 = vunpack.c.h.b16 %v3196
  %v3812 = vunpack.c.l.b16 %v3197
  %v3813 = vunpack.c.h.b16 %v3197
  %v3814 = vunpack.c.l.b16 %v3198
  %v3815 = vunpack.c.h.b16 %v3198
  %v3816 = vunpack.c.l.b16 %v3199
  %v3817 = vunpack.c.h.b16 %v3199
  %v3818 = vunpack.c.l.b16 %v3200
  %v3819 = vunpack.c.h.b16 %v3200
  %v3820 = vunpack.c.l.b16 %v3201
  %v3821 = vunpack.c.h.b16 %v3201
  %v3822 = vunpack.c.l.b16 %v3202
  %v3823 = vunpack.c.h.b16 %v3202
  %v3824 = vunpack.c.l.b16 %v3203
  %v3825 = vunpack.c.h.b16 %v3203
  %v3826 = vunpack.c.l.b16 %v3204
  %v3827 = vunpack.c.h.b16 %v3204
  %v3828 = vunpack.c.l.b16 %v3205
  %v3829 = vunpack.c.h.b16 %v3205
  %v3830 = vunpack.c.l.b16 %v3206
  %v3831 = vunpack.c.h.b16 %v3206
  %v3832 = vunpack.c.l.b16 %v3207
  %v3833 = vunpack.c.h.b16 %v3207
  %v3834 = vunpack.c.l.b16 %v3208
  %v3835 = vunpack.c.h.b16 %v3208
  %v3836 = vunpack.c.l.b16 %v3209
  %v3837 = vunpack.c.h.b16 %v3209
  %v3838 = vunpack.c.l.b16 %v3210
  %v3839 = vunpack.c.h.b16 %v3210
  %v3840 = vunpack.c.l.b16 %v3211
  %v3841 = vunpack.c.h.b16 %v3211
  %v3842 = vunpack.c.l.b16 %v3212
  %v3843 = vunpack.c.h.b16 %v3212
  %v3844 = vunpack.c.l.b16 %v3213
  %v3845 = vunpack.c.h.b16 %v3213
  %v3846 = vunpack.c.l.b16 %v3214
  %v3847 = vunpack.c.h.b16 %v3214
  %v3848 = vunpack.c.l.b16 %v3215
  %v3849 = vunpack.c.h.b16 %v3215
  %v3850 = vunpack.c.l.b16 %v3216
  %v3851 = vunpack.c.h.b16 %v3216
  %v3852 = vunpack.c.l.b16 %v3217
  %v3853 = vunpack.c.h.b16 %v3217
  %v3854 = vunpack.c.l.b16 %v3218
  %v3855 = vunpack.c.h.b16 %v3218
  %v3856 = vunpack.c.l.b16 %v3219
  %v3857 = vunpack.c.h.b16 %v3219
  %v3858 = vunpack.c.l.b16 %v3220
  %v3859 = vunpack.c.h.b16 %v3220
  %v3860 = vunpack.c.l.b16 %v3221
  %v3861 = vunpack.c.h.b16 %v3221
  %v3862 = vunpack.c.l.b16 %v3222
  %v3863 = vunpack.c.h.b16 %v3222
  %v3864 = vunpack.c.l.b16 %v3223
  %v3865 = vunpack.c.h.b16 %v3223
  %v3866 = vunpack.c.l.b16 %v3224
  %v3867 = vunpack.c.h.b16 %v3224
  %v3868 = vunpack.c.l.b16 %v3225
  %v3869 = vunpack.c.h.b16 %v3225
  %v3870 = vunpack.c.l.b16 %v3226
  %v3871 = vunpack.c.h.b16 %v3226
  %v3872 = vunpack.c.l.b16 %v3227
  %v3873 = vunpack.c.h.b16 %v3227
  %v3874 = vunpack.c.l.b16 %v3228
  %v3875 = vunpack.c.h.b16 %v3228
  %v3876 = vunpack.c.l.b16 %v3229
  %v3877 = vunpack.c.h.b16 %v3229
  %v3878 = vunpack.c.l.b16 %v3230
  %v3879 = vunpack.c.h.b16 %v3230
  %v3880 = vunpack.c.l.b16 %v3231
  %v3881 = vunpack.c.h.b16 %v3231
  %v3882 = vunpack.c.l.b16 %v3232
  %v3883 = vunpack.c.h.b16 %v3232
  %v3884 = vunpack.c.l.b16 %v3233
  %v3885 = vunpack.c.h.b16 %v3233
  %v3886 = vunpack.c.l.b16 %v3234
  %v3887 = vunpack.c.h.b16 %v3234
  %v3888 = vunpack.c.l.b16 %v3235
  %v3889 = vunpack.c.h.b16 %v3235
  %v3890 = vunpack.c.l.b16 %v3236
  %v3891 = vunpack.c.h.b16 %v3236
  %v3892 = vunpack.c.l.b16 %v3237
  %v3893 = vunpack.c.h.b16 %v3237
  %v3894 = vunpack.c.l.b16 %v3238
  %v3895 = vunpack.c.h.b16 %v3238
  %v3896 = vunpack.c.l.b16 %v3239
  %v3897 = vunpack.c.h.b16 %v3239
  %v3898 = vunpack.c.l.b16 %v3240
  %v3899 = vunpack.c.h.b16 %v3240
  %v3900 = vunpack.c.l.b16 %v3241
  %v3901 = vunpack.c.h.b16 %v3241
  %v3902 = vunpack.c.l.b16 %v3242
  %v3903 = vunpack.c.h.b16 %v3242
  %v3904 = vunpack.c.l.b16 %v3243
  %v3905 = vunpack.c.h.b16 %v3243
  %v3906 = vunpack.c.l.b16 %v3244
  %v3907 = vunpack.c.h.b16 %v3244
  %v3908 = vunpack.c.l.b16 %v3245
  %v3909 = vunpack.c.h.b16 %v3245
  %v3910 = vunpack.c.l.b16 %v3246
  %v3911 = vunpack.c.h.b16 %v3246
  %v3912 = vunpack.c.l.b16 %v3247
  %v3913 = vunpack.c.h.b16 %v3247
  %v3914 = vunpack.c.l.b16 %v3248
  %v3915 = vunpack.c.h.b16 %v3248
  %v3916 = vunpack.c.l.b16 %v3249
  %v3917 = vunpack.c.h.b16 %v3249
  %v3918 = vunpack.c.l.b16 %v3250
  %v3919 = vunpack.c.h.b16 %v3250
  %v3920 = vunpack.c.l.b16 %v3251
  %v3921 = vunpack.c.h.b16 %v3251
  %v3922 = vunpack.c.l.b16 %v3252
  %v3923 = vunpack.c.h.b16 %v3252
  %v3924 = vunpack.c.l.b16 %v3253
  %v3925 = vunpack.c.h.b16 %v3253
  %v3926 = vunpack.c.l.b16 %v3254
  %v3927 = vunpack.c.h.b16 %v3254
  %v3928 = vunpack.c.l.b16 %v3255
  %v3929 = vunpack.c.h.b16 %v3255
  %v3930 = vunpack.c.l.b16 %v3256
  %v3931 = vunpack.c.h.b16 %v3256
  %v3932 = vunpack.c.l.b16 %v3257
  %v3933 = vunpack.c.h.b16 %v3257
  %v3934 = vunpack.c.l.b16 %v3258
  %v3935 = vunpack.c.h.b16 %v3258
  %v3936 = vunpack.c.l.b16 %v3259
  %v3937 = vunpack.c.h.b16 %v3259
  %v3938 = vunpack.c.l.b16 %v3260
  %v3939 = vunpack.c.h.b16 %v3260
  %v3940 = vunpack.c.l.b16 %v3261
  %v3941 = vunpack.c.h.b16 %v3261
  %v3942 = vpack.c.b16 %v3624, %v3622
  %v3943 = vpack.c.b16 %v3625, %v3623
  %v3944 = vpack.c.b16 %v3628, %v3626
  %v3945 = vpack.c.b16 %v3629, %v3627
  %v3946 = vpack.c.b16 %v3632, %v3630
  %v3947 = vpack.c.b16 %v3633, %v3631
  %v3948 = vpack.c.b16 %v3636, %v3634
  %v3949 = vpack.c.b16 %v3637, %v3635
  %v3950 = vpack.c.b16 %v3640, %v3638
  %v3951 = vpack.c.b16 %v3641, %v3639
  %v3952 = vpack.c.b16 %v3644, %v3642
  %v3953 = vpack.c.b16 %v3645, %v3643
  %v3954 = vpack.c.b16 %v3648, %v3646
  %v3955 = vpack.c.b16 %v3649, %v3647
  %v3956 = vpack.c.b16 %v3652, %v3650
  %v3957 = vpack.c.b16 %v3653, %v3651
  %v3958 = vpack.c.b16 %v3656, %v3654
  %v3959 = vpack.c.b16 %v3657, %v3655
  %v3960 = vpack.c.b16 %v3660, %v3658
  %v3961 = vpack.c.b16 %v3661, %v3659
  %v3962 = vpack.c.b16 %v3664, %v3662
  %v3963 = vpack.c.b16 %v3665, %v3663
  %v3964 = vpack.c.b16 %v3668, %v3666
  %v3965 = vpack.c.b16 %v3669, %v3667
  %v3966 = vpack.c.b16 %v3672, %v3670
  %v3967 = vpack.c.b16 %v3673, %v3671
  %v3968 = vpack.c.b16 %v3676, %v3674
  %v3969 = vpack.c.b16 %v3677, %v3675
  %v3970 = vpack.c.b16 %v3680, %v3678
  %v3971 = vpack.c.b16 %v3681, %v3679
  %v3972 = vpack.c.b16 %v3684, %v3682
  %v3973 = vpack.c.b16 %v3685, %v3683
  %v3974 = vpack.c.b16 %v3688, %v3686
  %v3975 = vpack.c.b16 %v3689, %v3687
  %v3976 = vpack.c.b16 %v3692, %v3690
  %v3977 = vpack.c.b16 %v3693, %v3691
  %v3978 = vpack.c.b16 %v3696, %v3694
  %v3979 = vpack.c.b16 %v3697, %v3695
  %v3980 = vpack.c.b16 %v3700, %v3698
  %v3981 = vpack.c.b16 %v3701, %v3699
  %v3982 = vpack.c.b16 %v3704, %v3702
  %v3983 = vpack.c.b16 %v3705, %v3703
  %v3984 = vpack.c.b16 %v3708, %v3706
  %v3985 = vpack.c.b16 %v3709, %v3707
  %v3986 = vpack.c.b16 %v3712, %v3710
  %v3987 = vpack.c.b16 %v3713, %v3711
  %v3988 = vpack.c.b16 %v3716, %v3714
  %v3989 = vpack.c.b16 %v3717, %v3715
  %v3990 = vpack.c.b16 %v3720, %v3718
  %v3991 = vpack.c.b16 %v3721, %v3719
  %v3992 = vpack.c.b16 %v3724, %v3722
  %v3993 = vpack.c.b16 %v3725, %v3723
  %v3994 = vpack.c.b16 %v3728, %v3726
  %v3995 = vpack.c.b16 %v3729, %v3727
  %v3996 = vpack.c.b16 %v3732, %v3730
  %v3997 = vpack.c.b16 %v3733, %v3731
  %v3998 = vpack.c.b16 %v3736, %v3734
  %v3999 = vpack.c.b16 %v3737, %v3735
  %v4000 = vpack.c.b16 %v3740, %v3738
  %v4001 = vpack.c.b16 %v3741, %v3739
  %v4002 = vpack.c.b16 %v3744, %v3742
  %v4003 = vpack.c.b16 %v3745, %v3743
  %v4004 = vpack.c.b16 %v3748, %v3746
  %v4005 = vpack.c.b16 %v3749, %v3747
  %v4006 = vpack.c.b16 %v3752, %v3750
  %v4007 = vpack.c.b16 %v3753, %v3751
  %v4008 = vpack.c.b16 %v3756, %v3754
  %v4009 = vpack.c.b16 %v3757, %v3755
  %v4010 = vpack.c.b16 %v3760, %v3758
  %v4011 = vpack.c.b16 %v3761, %v3759
  %v4012 = vpack.c.b16 %v3764, %v3762
  %v4013 = vpack.c.b16 %v3765, %v3763
  %v4014 = vpack.c.b16 %v3768, %v3766
  %v4015 = vpack.c.b16 %v3769, %v3767
  %v4016 = vpack.c.b16 %v3772, %v3770
  %v4017 = vpack.c.b16 %v3773, %v3771
  %v4018 = vpack.c.b16 %v3776, %v3774
  %v4019 = vpack.c.b16 %v3777, %v3775
  %v4020 = vpack.c.b16 %v3780, %v3778
  %v4021 = vpack.c.b16 %v3781, %v3779
  %v4022 = vpack.c.b16 %v3784, %v3782
  %v4023 = vpack.c.b16 %v3785, %v3783
  %v4024 = vpack.c.b16 %v3788, %v3786
  %v4025 = vpack.c.b16 %v3789, %v3787
  %v4026 = vpack.c.b16 %v3792, %v3790
  %v4027 = vpack.c.b16 %v3793, %v3791
  %v4028 = vpack.c.b16 %v3796, %v3794
  %v4029 = vpack.c.b16 %v3797, %v3795
  %v4030 = vpack.c.b16 %v3800, %v3798
  %v4031 = vpack.c.b16 %v3801, %v3799
  %v4032 = vpack.c.b16 %v3804, %v3802
  %v4033 = vpack.c.b16 %v3805, %v3803
  %v4034 = vpack.c.b16 %v3808, %v3806
  %v4035 = vpack.c.b16 %v3809, %v3807
  %v4036 = vpack.c.b16 %v3812, %v3810
  %v4037 = vpack.c.b16 %v3813, %v3811
  %v4038 = vpack.c.b16 %v3816, %v3814
  %v4039 = vpack.c.b16 %v3817, %v3815
  %v4040 = vpack.c.b16 %v3820, %v3818
  %v4041 = vpack.c.b16 %v3821, %v3819
  %v4042 = vpack.c.b16 %v3824, %v3822
  %v4043 = vpack.c.b16 %v3825, %v3823
  %v4044 = vpack.c.b16 %v3828, %v3826
  %v4045 = vpack.c.b16 %v3829, %v3827
  %v4046 = vpack.c.b16 %v3832, %v3830
  %v4047 = vpack.c.b16 %v3833, %v3831
  %v4048 = vpack.c.b16 %v3836, %v3834
  %v4049 = vpack.c.b16 %v3837, %v3835
  %v4050 = vpack.c.b16 %v3840, %v3838
  %v4051 = vpack.c.b16 %v3841, %v3839
  %v4052 = vpack.c.b16 %v3844, %v3842
  %v4053 = vpack.c.b16 %v3845, %v3843
  %v4054 = vpack.c.b16 %v3848, %v3846
  %v4055 = vpack.c.b16 %v3849, %v3847
  %v4056 = vpack.c.b16 %v3852, %v3850
  %v4057 = vpack.c.b16 %v3853, %v3851
  %v4058 = vpack.c.b16 %v3856, %v3854
  %v4059 = vpack.c.b16 %v3857, %v3855
  %v4060 = vpack.c.b16 %v3860, %v3858
  %v4061 = vpack.c.b16 %v3861, %v3859
  %v4062 = vpack.c.b16 %v3864, %v3862
  %v4063 = vpack.c.b16 %v3865, %v3863
  %v4064 = vpack.c.b16 %v3868, %v3866
  %v4065 = vpack.c.b16 %v3869, %v3867
  %v4066 = vpack.c.b16 %v3872, %v3870
  %v4067 = vpack.c.b16 %v3873, %v3871
  %v4068 = vpack.c.b16 %v3876, %v3874
  %v4069 = vpack.c.b16 %v3877, %v3875
  %v4070 = vpack.c.b16 %v3880, %v3878
  %v4071 = vpack.c.b16 %v3881, %v3879
  %v4072 = vpack.c.b16 %v3884, %v3882
  %v4073 = vpack.c.b16 %v3885, %v3883
  %v4074 = vpack.c.b16 %v3888, %v3886
  %v4075 = vpack.c.b16 %v3889, %v3887
  %v4076 = vpack.c.b16 %v3892, %v3890
  %v4077 = vpack.c.b16 %v3893, %v3891
  %v4078 = vpack.c.b16 %v3896, %v3894
  %v4079 = vpack.c.b16 %v3897, %v3895
  %v4080 = vpack.c.b16 %v3900, %v3898
  %v4081 = vpack.c.b16 %v3901, %v3899
  %v4082 = vpack.c.b16 %v3904, %v3902
  %v4083 = vpack.c.b16 %v3905, %v3903
  %v4084 = vpack.c.b16 %v3908, %v3906
  %v4085 = vpack.c.b16 %v3909, %v3907
  %v4086 = vpack.c.b16 %v3912, %v3910
  %v4087 = vpack.c.b16 %v3913, %v3911
  %v4088 = vpack.c.b16 %v3916, %v3914
  %v4089 = vpack.c.b16 %v3917, %v3915
  %v4090 = vpack.c.b16 %v3920, %v3918
  %v4091 = vpack.c.b16 %v3921, %v3919
  %v4092 = vpack.c.b16 %v3924, %v3922
  %v4093 = vpack.c.b16 %v3925, %v3923
  %v4094 = vpack.c.b16 %v3928, %v3926
  %v4095 = vpack.c.b16 %v3929, %v3927
  %v4096 = vpack.c.b16 %v3932, %v3930
  %v4097 = vpack.c.b16 %v3933, %v3931
  %v4098 = vpack.c.b16 %v3936, %v3934
  %v4099 = vpack.c.b16 %v3937, %v3935
  %v4100 = vpack.c.b16 %v3940, %v3938
  %v4101 = vpack.c.b16 %v3941, %v3939
  %4262 = vmatpush.bf16.msra.mxu0 %v3956
  %4263 = vmatpush.bf16.msra.mxu0 %v3954
  %4264 = vmatpush.bf16.msra.mxu0 %v3952
  %4265 = vmatpush.bf16.msra.mxu0 %v3950
  %4266 = vmatpush.bf16.msra.mxu0 %v3948
  %4267 = vmatpush.bf16.msra.mxu0 %v3946
  %4268 = vmatpush.bf16.msra.mxu0 %v3944
  %4269 = vmatpush.bf16.msra.mxu0 %v3942
  %4270 = vmatmul.bf16.gmra.mxu0 %v3382
  %v4271 = vpop.f32.mrf.mxu0
  %v4272 = vadd.f32 0.0, %v4271
  %v4273 = vpop.f32.mrf.mxu0
  %v4274 = vadd.f32 0.0, %v4273
  %4275 = vmatmul.bf16.gmra.mxu0 %v3392
  %v4276 = vpop.f32.mrf.mxu0
  %v4277 = vadd.f32 0.0, %v4276
  %v4278 = vpop.f32.mrf.mxu0
  %v4279 = vadd.f32 0.0, %v4278
  %4280 = vmatmul.bf16.gmra.mxu0 %v3402
  %v4281 = vpop.f32.mrf.mxu0
  %v4282 = vadd.f32 0.0, %v4281
  %v4283 = vpop.f32.mrf.mxu0
  %v4284 = vadd.f32 0.0, %v4283
  %4285 = vmatmul.bf16.gmra.mxu0 %v3412
  %v4286 = vpop.f32.mrf.mxu0
  %v4287 = vadd.f32 0.0, %v4286
  %v4288 = vpop.f32.mrf.mxu0
  %v4289 = vadd.f32 0.0, %v4288
  %4290 = vdwg.mxu0
  %4291 = vmatpush.bf16.msra.mxu0 %v3972
  %4292 = vmatpush.bf16.msra.mxu0 %v3970
  %4293 = vmatpush.bf16.msra.mxu0 %v3968
  %4294 = vmatpush.bf16.msra.mxu0 %v3966
  %4295 = vmatpush.bf16.msra.mxu0 %v3964
  %4296 = vmatpush.bf16.msra.mxu0 %v3962
  %4297 = vmatpush.bf16.msra.mxu0 %v3960
  %4298 = vmatpush.bf16.msra.mxu0 %v3958
  %4299 = vmatmul.bf16.gmra.mxu0 %v3383
  %v4300 = vpop.f32.mrf.mxu0
  %v4301 = vadd.f32 %v4272, %v4300
  %v4302 = vpop.f32.mrf.mxu0
  %v4303 = vadd.f32 %v4274, %v4302
  %4304 = vmatmul.bf16.gmra.mxu0 %v3393
  %v4305 = vpop.f32.mrf.mxu0
  %v4306 = vadd.f32 %v4277, %v4305
  %v4307 = vpop.f32.mrf.mxu0
  %v4308 = vadd.f32 %v4279, %v4307
  %4309 = vmatmul.bf16.gmra.mxu0 %v3403
  %v4310 = vpop.f32.mrf.mxu0
  %v4311 = vadd.f32 %v4282, %v4310
  %v4312 = vpop.f32.mrf.mxu0
  %v4313 = vadd.f32 %v4284, %v4312
  %4314 = vmatmul.bf16.gmra.mxu0 %v3413
  %v4315 = vpop.f32.mrf.mxu0
  %v4316 = vadd.f32 %v4287, %v4315
  %v4317 = vpop.f32.mrf.mxu0
  %v4318 = vadd.f32 %v4289, %v4317
  %4319 = vdwg.mxu0
  %4320 = vmatpush.bf16.msra.mxu0 %v3988
  %4321 = vmatpush.bf16.msra.mxu0 %v3986
  %4322 = vmatpush.bf16.msra.mxu0 %v3984
  %4323 = vmatpush.bf16.msra.mxu0 %v3982
  %4324 = vmatpush.bf16.msra.mxu0 %v3980
  %4325 = vmatpush.bf16.msra.mxu0 %v3978
  %4326 = vmatpush.bf16.msra.mxu0 %v3976
  %4327 = vmatpush.bf16.msra.mxu0 %v3974
  %4328 = vmatmul.bf16.gmra.mxu0 %v3384
  %v4329 = vpop.f32.mrf.mxu0
  %v4330 = vadd.f32 %v4301, %v4329
  %v4331 = vpop.f32.mrf.mxu0
  %v4332 = vadd.f32 %v4303, %v4331
  %4333 = vmatmul.bf16.gmra.mxu0 %v3394
  %v4334 = vpop.f32.mrf.mxu0
  %v4335 = vadd.f32 %v4306, %v4334
  %v4336 = vpop.f32.mrf.mxu0
  %v4337 = vadd.f32 %v4308, %v4336
  %4338 = vmatmul.bf16.gmra.mxu0 %v3404
  %v4339 = vpop.f32.mrf.mxu0
  %v4340 = vadd.f32 %v4311, %v4339
  %v4341 = vpop.f32.mrf.mxu0
  %v4342 = vadd.f32 %v4313, %v4341
  %4343 = vmatmul.bf16.gmra.mxu0 %v3414
  %v4344 = vpop.f32.mrf.mxu0
  %v4345 = vadd.f32 %v4316, %v4344
  %v4346 = vpop.f32.mrf.mxu0
  %v4347 = vadd.f32 %v4318, %v4346
  %4348 = vdwg.mxu0
  %4349 = vmatpush.bf16.msra.mxu0 %v4004
  %4350 = vmatpush.bf16.msra.mxu0 %v4002
  %4351 = vmatpush.bf16.msra.mxu0 %v4000
  %4352 = vmatpush.bf16.msra.mxu0 %v3998
  %4353 = vmatpush.bf16.msra.mxu0 %v3996
  %4354 = vmatpush.bf16.msra.mxu0 %v3994
  %4355 = vmatpush.bf16.msra.mxu0 %v3992
  %4356 = vmatpush.bf16.msra.mxu0 %v3990
  %4357 = vmatmul.bf16.gmra.mxu0 %v3385
  %v4358 = vpop.f32.mrf.mxu0
  %v4359 = vadd.f32 %v4330, %v4358
  %v4360 = vpop.f32.mrf.mxu0
  %v4361 = vadd.f32 %v4332, %v4360
  %4362 = vmatmul.bf16.gmra.mxu0 %v3395
  %v4363 = vpop.f32.mrf.mxu0
  %v4364 = vadd.f32 %v4335, %v4363
  %v4365 = vpop.f32.mrf.mxu0
  %v4366 = vadd.f32 %v4337, %v4365
  %4367 = vmatmul.bf16.gmra.mxu0 %v3405
  %v4368 = vpop.f32.mrf.mxu0
  %v4369 = vadd.f32 %v4340, %v4368
  %v4370 = vpop.f32.mrf.mxu0
  %v4371 = vadd.f32 %v4342, %v4370
  %4372 = vmatmul.bf16.gmra.mxu0 %v3415
  %v4373 = vpop.f32.mrf.mxu0
  %v4374 = vadd.f32 %v4345, %v4373
  %v4375 = vpop.f32.mrf.mxu0
  %v4376 = vadd.f32 %v4347, %v4375
  %4377 = vdwg.mxu0
  %4378 = vmatpush.bf16.msra.mxu0 %v4020
  %4379 = vmatpush.bf16.msra.mxu0 %v4018
  %4380 = vmatpush.bf16.msra.mxu0 %v4016
  %4381 = vmatpush.bf16.msra.mxu0 %v4014
  %4382 = vmatpush.bf16.msra.mxu0 %v4012
  %4383 = vmatpush.bf16.msra.mxu0 %v4010
  %4384 = vmatpush.bf16.msra.mxu0 %v4008
  %4385 = vmatpush.bf16.msra.mxu0 %v4006
  %4386 = vmatmul.bf16.gmra.mxu0 %v3386
  %v4387 = vpop.f32.mrf.mxu0
  %v4388 = vadd.f32 %v4359, %v4387
  %v4389 = vpop.f32.mrf.mxu0
  %v4390 = vadd.f32 %v4361, %v4389
  %4391 = vmatmul.bf16.gmra.mxu0 %v3396
  %v4392 = vpop.f32.mrf.mxu0
  %v4393 = vadd.f32 %v4364, %v4392
  %v4394 = vpop.f32.mrf.mxu0
  %v4395 = vadd.f32 %v4366, %v4394
  %4396 = vmatmul.bf16.gmra.mxu0 %v3406
  %v4397 = vpop.f32.mrf.mxu0
  %v4398 = vadd.f32 %v4369, %v4397
  %v4399 = vpop.f32.mrf.mxu0
  %v4400 = vadd.f32 %v4371, %v4399
  %4401 = vmatmul.bf16.gmra.mxu0 %v3416
  %v4402 = vpop.f32.mrf.mxu0
  %v4403 = vadd.f32 %v4374, %v4402
  %v4404 = vpop.f32.mrf.mxu0
  %v4405 = vadd.f32 %v4376, %v4404
  %4406 = vdwg.mxu0
  %4407 = vmatpush.bf16.msra.mxu0 %v4036
  %4408 = vmatpush.bf16.msra.mxu0 %v4034
  %4409 = vmatpush.bf16.msra.mxu0 %v4032
  %4410 = vmatpush.bf16.msra.mxu0 %v4030
  %4411 = vmatpush.bf16.msra.mxu0 %v4028
  %4412 = vmatpush.bf16.msra.mxu0 %v4026
  %4413 = vmatpush.bf16.msra.mxu0 %v4024
  %4414 = vmatpush.bf16.msra.mxu0 %v4022
  %4415 = vmatmul.bf16.gmra.mxu0 %v3387
  %v4416 = vpop.f32.mrf.mxu0
  %v4417 = vadd.f32 %v4388, %v4416
  %v4418 = vpop.f32.mrf.mxu0
  %v4419 = vadd.f32 %v4390, %v4418
  %4420 = vmatmul.bf16.gmra.mxu0 %v3397
  %v4421 = vpop.f32.mrf.mxu0
  %v4422 = vadd.f32 %v4393, %v4421
  %v4423 = vpop.f32.mrf.mxu0
  %v4424 = vadd.f32 %v4395, %v4423
  %4425 = vmatmul.bf16.gmra.mxu0 %v3407
  %v4426 = vpop.f32.mrf.mxu0
  %v4427 = vadd.f32 %v4398, %v4426
  %v4428 = vpop.f32.mrf.mxu0
  %v4429 = vadd.f32 %v4400, %v4428
  %4430 = vmatmul.bf16.gmra.mxu0 %v3417
  %v4431 = vpop.f32.mrf.mxu0
  %v4432 = vadd.f32 %v4403, %v4431
  %v4433 = vpop.f32.mrf.mxu0
  %v4434 = vadd.f32 %v4405, %v4433
  %4435 = vdwg.mxu0
  %4436 = vmatpush.bf16.msra.mxu0 %v4052
  %4437 = vmatpush.bf16.msra.mxu0 %v4050
  %4438 = vmatpush.bf16.msra.mxu0 %v4048
  %4439 = vmatpush.bf16.msra.mxu0 %v4046
  %4440 = vmatpush.bf16.msra.mxu0 %v4044
  %4441 = vmatpush.bf16.msra.mxu0 %v4042
  %4442 = vmatpush.bf16.msra.mxu0 %v4040
  %4443 = vmatpush.bf16.msra.mxu0 %v4038
  %4444 = vmatmul.bf16.gmra.mxu0 %v3388
  %v4445 = vpop.f32.mrf.mxu0
  %v4446 = vadd.f32 %v4417, %v4445
  %v4447 = vpop.f32.mrf.mxu0
  %v4448 = vadd.f32 %v4419, %v4447
  %4449 = vmatmul.bf16.gmra.mxu0 %v3398
  %v4450 = vpop.f32.mrf.mxu0
  %v4451 = vadd.f32 %v4422, %v4450
  %v4452 = vpop.f32.mrf.mxu0
  %v4453 = vadd.f32 %v4424, %v4452
  %4454 = vmatmul.bf16.gmra.mxu0 %v3408
  %v4455 = vpop.f32.mrf.mxu0
  %v4456 = vadd.f32 %v4427, %v4455
  %v4457 = vpop.f32.mrf.mxu0
  %v4458 = vadd.f32 %v4429, %v4457
  %4459 = vmatmul.bf16.gmra.mxu0 %v3418
  %v4460 = vpop.f32.mrf.mxu0
  %v4461 = vadd.f32 %v4432, %v4460
  %v4462 = vpop.f32.mrf.mxu0
  %v4463 = vadd.f32 %v4434, %v4462
  %4464 = vdwg.mxu0
  %4465 = vmatpush.bf16.msra.mxu0 %v4068
  %4466 = vmatpush.bf16.msra.mxu0 %v4066
  %4467 = vmatpush.bf16.msra.mxu0 %v4064
  %4468 = vmatpush.bf16.msra.mxu0 %v4062
  %4469 = vmatpush.bf16.msra.mxu0 %v4060
  %4470 = vmatpush.bf16.msra.mxu0 %v4058
  %4471 = vmatpush.bf16.msra.mxu0 %v4056
  %4472 = vmatpush.bf16.msra.mxu0 %v4054
  %4473 = vmatmul.bf16.gmra.mxu0 %v3389
  %v4474 = vpop.f32.mrf.mxu0
  %v4475 = vadd.f32 %v4446, %v4474
  %v4476 = vpop.f32.mrf.mxu0
  %v4477 = vadd.f32 %v4448, %v4476
  %4478 = vmatmul.bf16.gmra.mxu0 %v3399
  %v4479 = vpop.f32.mrf.mxu0
  %v4480 = vadd.f32 %v4451, %v4479
  %v4481 = vpop.f32.mrf.mxu0
  %v4482 = vadd.f32 %v4453, %v4481
  %4483 = vmatmul.bf16.gmra.mxu0 %v3409
  %v4484 = vpop.f32.mrf.mxu0
  %v4485 = vadd.f32 %v4456, %v4484
  %v4486 = vpop.f32.mrf.mxu0
  %v4487 = vadd.f32 %v4458, %v4486
  %4488 = vmatmul.bf16.gmra.mxu0 %v3419
  %v4489 = vpop.f32.mrf.mxu0
  %v4490 = vadd.f32 %v4461, %v4489
  %v4491 = vpop.f32.mrf.mxu0
  %v4492 = vadd.f32 %v4463, %v4491
  %4493 = vdwg.mxu0
  %4494 = vmatpush.bf16.msra.mxu0 %v4084
  %4495 = vmatpush.bf16.msra.mxu0 %v4082
  %4496 = vmatpush.bf16.msra.mxu0 %v4080
  %4497 = vmatpush.bf16.msra.mxu0 %v4078
  %4498 = vmatpush.bf16.msra.mxu0 %v4076
  %4499 = vmatpush.bf16.msra.mxu0 %v4074
  %4500 = vmatpush.bf16.msra.mxu0 %v4072
  %4501 = vmatpush.bf16.msra.mxu0 %v4070
  %4502 = vmatmul.bf16.gmra.mxu0 %v3390
  %v4503 = vpop.f32.mrf.mxu0
  %v4504 = vadd.f32 %v4475, %v4503
  %v4505 = vpop.f32.mrf.mxu0
  %v4506 = vadd.f32 %v4477, %v4505
  %4507 = vmatmul.bf16.gmra.mxu0 %v3400
  %v4508 = vpop.f32.mrf.mxu0
  %v4509 = vadd.f32 %v4480, %v4508
  %v4510 = vpop.f32.mrf.mxu0
  %v4511 = vadd.f32 %v4482, %v4510
  %4512 = vmatmul.bf16.gmra.mxu0 %v3410
  %v4513 = vpop.f32.mrf.mxu0
  %v4514 = vadd.f32 %v4485, %v4513
  %v4515 = vpop.f32.mrf.mxu0
  %v4516 = vadd.f32 %v4487, %v4515
  %4517 = vmatmul.bf16.gmra.mxu0 %v3420
  %v4518 = vpop.f32.mrf.mxu0
  %v4519 = vadd.f32 %v4490, %v4518
  %v4520 = vpop.f32.mrf.mxu0
  %v4521 = vadd.f32 %v4492, %v4520
  %4522 = vdwg.mxu0
  %4523 = vmatpush.bf16.msra.mxu0 %v4100
  %4524 = vmatpush.bf16.msra.mxu0 %v4098
  %4525 = vmatpush.bf16.msra.mxu0 %v4096
  %4526 = vmatpush.bf16.msra.mxu0 %v4094
  %4527 = vmatpush.bf16.msra.mxu0 %v4092
  %4528 = vmatpush.bf16.msra.mxu0 %v4090
  %4529 = vmatpush.bf16.msra.mxu0 %v4088
  %4530 = vmatpush.bf16.msra.mxu0 %v4086
  %4531 = vmatmul.bf16.gmra.mxu0 %v3391
  %v4532 = vpop.f32.mrf.mxu0
  %v4533 = vadd.f32 %v4504, %v4532
  %v4534 = vpop.f32.mrf.mxu0
  %v4535 = vadd.f32 %v4506, %v4534
  %4536 = vmatmul.bf16.gmra.mxu0 %v3401
  %v4537 = vpop.f32.mrf.mxu0
  %v4538 = vadd.f32 %v4509, %v4537
  %v4539 = vpop.f32.mrf.mxu0
  %v4540 = vadd.f32 %v4511, %v4539
  %4541 = vmatmul.bf16.gmra.mxu0 %v3411
  %v4542 = vpop.f32.mrf.mxu0
  %v4543 = vadd.f32 %v4514, %v4542
  %v4544 = vpop.f32.mrf.mxu0
  %v4545 = vadd.f32 %v4516, %v4544
  %4546 = vmatmul.bf16.gmra.mxu0 %v3421
  %v4547 = vpop.f32.mrf.mxu0
  %v4548 = vadd.f32 %v4519, %v4547
  %v4549 = vpop.f32.mrf.mxu0
  %v4550 = vadd.f32 %v4521, %v4549
  %4551 = vdwg.mxu0
  %4552 = vmatpush.bf16.msra.mxu0 %v3957
  %4553 = vmatpush.bf16.msra.mxu0 %v3955
  %4554 = vmatpush.bf16.msra.mxu0 %v3953
  %4555 = vmatpush.bf16.msra.mxu0 %v3951
  %4556 = vmatpush.bf16.msra.mxu0 %v3949
  %4557 = vmatpush.bf16.msra.mxu0 %v3947
  %4558 = vmatpush.bf16.msra.mxu0 %v3945
  %4559 = vmatpush.bf16.msra.mxu0 %v3943
  %4560 = vmatmul.bf16.gmra.mxu0 %v3382
  %v4561 = vpop.f32.mrf.mxu0
  %v4562 = vadd.f32 0.0, %v4561
  %v4563 = vpop.f32.mrf.mxu0
  %v4564 = vadd.f32 0.0, %v4563
  %4565 = vmatmul.bf16.gmra.mxu0 %v3392
  %v4566 = vpop.f32.mrf.mxu0
  %v4567 = vadd.f32 0.0, %v4566
  %v4568 = vpop.f32.mrf.mxu0
  %v4569 = vadd.f32 0.0, %v4568
  %4570 = vmatmul.bf16.gmra.mxu0 %v3402
  %v4571 = vpop.f32.mrf.mxu0
  %v4572 = vadd.f32 0.0, %v4571
  %v4573 = vpop.f32.mrf.mxu0
  %v4574 = vadd.f32 0.0, %v4573
  %4575 = vmatmul.bf16.gmra.mxu0 %v3412
  %v4576 = vpop.f32.mrf.mxu0
  %v4577 = vadd.f32 0.0, %v4576
  %v4578 = vpop.f32.mrf.mxu0
  %v4579 = vadd.f32 0.0, %v4578
  %4580 = vdwg.mxu0
  %4581 = vmatpush.bf16.msra.mxu0 %v3973
  %4582 = vmatpush.bf16.msra.mxu0 %v3971
  %4583 = vmatpush.bf16.msra.mxu0 %v3969
  %4584 = vmatpush.bf16.msra.mxu0 %v3967
  %4585 = vmatpush.bf16.msra.mxu0 %v3965
  %4586 = vmatpush.bf16.msra.mxu0 %v3963
  %4587 = vmatpush.bf16.msra.mxu0 %v3961
  %4588 = vmatpush.bf16.msra.mxu0 %v3959
  %4589 = vmatmul.bf16.gmra.mxu0 %v3383
  %v4590 = vpop.f32.mrf.mxu0
  %v4591 = vadd.f32 %v4562, %v4590
  %v4592 = vpop.f32.mrf.mxu0
  %v4593 = vadd.f32 %v4564, %v4592
  %4594 = vmatmul.bf16.gmra.mxu0 %v3393
  %v4595 = vpop.f32.mrf.mxu0
  %v4596 = vadd.f32 %v4567, %v4595
  %v4597 = vpop.f32.mrf.mxu0
  %v4598 = vadd.f32 %v4569, %v4597
  %4599 = vmatmul.bf16.gmra.mxu0 %v3403
  %v4600 = vpop.f32.mrf.mxu0
  %v4601 = vadd.f32 %v4572, %v4600
  %v4602 = vpop.f32.mrf.mxu0
  %v4603 = vadd.f32 %v4574, %v4602
  %4604 = vmatmul.bf16.gmra.mxu0 %v3413
  %v4605 = vpop.f32.mrf.mxu0
  %v4606 = vadd.f32 %v4577, %v4605
  %v4607 = vpop.f32.mrf.mxu0
  %v4608 = vadd.f32 %v4579, %v4607
  %4609 = vdwg.mxu0
  %4610 = vmatpush.bf16.msra.mxu0 %v3989
  %4611 = vmatpush.bf16.msra.mxu0 %v3987
  %4612 = vmatpush.bf16.msra.mxu0 %v3985
  %4613 = vmatpush.bf16.msra.mxu0 %v3983
  %4614 = vmatpush.bf16.msra.mxu0 %v3981
  %4615 = vmatpush.bf16.msra.mxu0 %v3979
  %4616 = vmatpush.bf16.msra.mxu0 %v3977
  %4617 = vmatpush.bf16.msra.mxu0 %v3975
  %4618 = vmatmul.bf16.gmra.mxu0 %v3384
  %v4619 = vpop.f32.mrf.mxu0
  %v4620 = vadd.f32 %v4591, %v4619
  %v4621 = vpop.f32.mrf.mxu0
  %v4622 = vadd.f32 %v4593, %v4621
  %4623 = vmatmul.bf16.gmra.mxu0 %v3394
  %v4624 = vpop.f32.mrf.mxu0
  %v4625 = vadd.f32 %v4596, %v4624
  %v4626 = vpop.f32.mrf.mxu0
  %v4627 = vadd.f32 %v4598, %v4626
  %4628 = vmatmul.bf16.gmra.mxu0 %v3404
  %v4629 = vpop.f32.mrf.mxu0
  %v4630 = vadd.f32 %v4601, %v4629
  %v4631 = vpop.f32.mrf.mxu0
  %v4632 = vadd.f32 %v4603, %v4631
  %4633 = vmatmul.bf16.gmra.mxu0 %v3414
  %v4634 = vpop.f32.mrf.mxu0
  %v4635 = vadd.f32 %v4606, %v4634
  %v4636 = vpop.f32.mrf.mxu0
  %v4637 = vadd.f32 %v4608, %v4636
  %4638 = vdwg.mxu0
  %4639 = vmatpush.bf16.msra.mxu0 %v4005
  %4640 = vmatpush.bf16.msra.mxu0 %v4003
  %4641 = vmatpush.bf16.msra.mxu0 %v4001
  %4642 = vmatpush.bf16.msra.mxu0 %v3999
  %4643 = vmatpush.bf16.msra.mxu0 %v3997
  %4644 = vmatpush.bf16.msra.mxu0 %v3995
  %4645 = vmatpush.bf16.msra.mxu0 %v3993
  %4646 = vmatpush.bf16.msra.mxu0 %v3991
  %4647 = vmatmul.bf16.gmra.mxu0 %v3385
  %v4648 = vpop.f32.mrf.mxu0
  %v4649 = vadd.f32 %v4620, %v4648
  %v4650 = vpop.f32.mrf.mxu0
  %v4651 = vadd.f32 %v4622, %v4650
  %4652 = vmatmul.bf16.gmra.mxu0 %v3395
  %v4653 = vpop.f32.mrf.mxu0
  %v4654 = vadd.f32 %v4625, %v4653
  %v4655 = vpop.f32.mrf.mxu0
  %v4656 = vadd.f32 %v4627, %v4655
  %4657 = vmatmul.bf16.gmra.mxu0 %v3405
  %v4658 = vpop.f32.mrf.mxu0
  %v4659 = vadd.f32 %v4630, %v4658
  %v4660 = vpop.f32.mrf.mxu0
  %v4661 = vadd.f32 %v4632, %v4660
  %4662 = vmatmul.bf16.gmra.mxu0 %v3415
  %v4663 = vpop.f32.mrf.mxu0
  %v4664 = vadd.f32 %v4635, %v4663
  %v4665 = vpop.f32.mrf.mxu0
  %v4666 = vadd.f32 %v4637, %v4665
  %4667 = vdwg.mxu0
  %4668 = vmatpush.bf16.msra.mxu0 %v4021
  %4669 = vmatpush.bf16.msra.mxu0 %v4019
  %4670 = vmatpush.bf16.msra.mxu0 %v4017
  %4671 = vmatpush.bf16.msra.mxu0 %v4015
  %4672 = vmatpush.bf16.msra.mxu0 %v4013
  %4673 = vmatpush.bf16.msra.mxu0 %v4011
  %4674 = vmatpush.bf16.msra.mxu0 %v4009
  %4675 = vmatpush.bf16.msra.mxu0 %v4007
  %4676 = vmatmul.bf16.gmra.mxu0 %v3386
  %v4677 = vpop.f32.mrf.mxu0
  %v4678 = vadd.f32 %v4649, %v4677
  %v4679 = vpop.f32.mrf.mxu0
  %v4680 = vadd.f32 %v4651, %v4679
  %4681 = vmatmul.bf16.gmra.mxu0 %v3396
  %v4682 = vpop.f32.mrf.mxu0
  %v4683 = vadd.f32 %v4654, %v4682
  %v4684 = vpop.f32.mrf.mxu0
  %v4685 = vadd.f32 %v4656, %v4684
  %4686 = vmatmul.bf16.gmra.mxu0 %v3406
  %v4687 = vpop.f32.mrf.mxu0
  %v4688 = vadd.f32 %v4659, %v4687
  %v4689 = vpop.f32.mrf.mxu0
  %v4690 = vadd.f32 %v4661, %v4689
  %4691 = vmatmul.bf16.gmra.mxu0 %v3416
  %v4692 = vpop.f32.mrf.mxu0
  %v4693 = vadd.f32 %v4664, %v4692
  %v4694 = vpop.f32.mrf.mxu0
  %v4695 = vadd.f32 %v4666, %v4694
  %4696 = vdwg.mxu0
  %4697 = vmatpush.bf16.msra.mxu0 %v4037
  %4698 = vmatpush.bf16.msra.mxu0 %v4035
  %4699 = vmatpush.bf16.msra.mxu0 %v4033
  %4700 = vmatpush.bf16.msra.mxu0 %v4031
  %4701 = vmatpush.bf16.msra.mxu0 %v4029
  %4702 = vmatpush.bf16.msra.mxu0 %v4027
  %4703 = vmatpush.bf16.msra.mxu0 %v4025
  %4704 = vmatpush.bf16.msra.mxu0 %v4023
  %4705 = vmatmul.bf16.gmra.mxu0 %v3387
  %v4706 = vpop.f32.mrf.mxu0
  %v4707 = vadd.f32 %v4678, %v4706
  %v4708 = vpop.f32.mrf.mxu0
  %v4709 = vadd.f32 %v4680, %v4708
  %4710 = vmatmul.bf16.gmra.mxu0 %v3397
  %v4711 = vpop.f32.mrf.mxu0
  %v4712 = vadd.f32 %v4683, %v4711
  %v4713 = vpop.f32.mrf.mxu0
  %v4714 = vadd.f32 %v4685, %v4713
  %4715 = vmatmul.bf16.gmra.mxu0 %v3407
  %v4716 = vpop.f32.mrf.mxu0
  %v4717 = vadd.f32 %v4688, %v4716
  %v4718 = vpop.f32.mrf.mxu0
  %v4719 = vadd.f32 %v4690, %v4718
  %4720 = vmatmul.bf16.gmra.mxu0 %v3417
  %v4721 = vpop.f32.mrf.mxu0
  %v4722 = vadd.f32 %v4693, %v4721
  %v4723 = vpop.f32.mrf.mxu0
  %v4724 = vadd.f32 %v4695, %v4723
  %4725 = vdwg.mxu0
  %4726 = vmatpush.bf16.msra.mxu0 %v4053
  %4727 = vmatpush.bf16.msra.mxu0 %v4051
  %4728 = vmatpush.bf16.msra.mxu0 %v4049
  %4729 = vmatpush.bf16.msra.mxu0 %v4047
  %4730 = vmatpush.bf16.msra.mxu0 %v4045
  %4731 = vmatpush.bf16.msra.mxu0 %v4043
  %4732 = vmatpush.bf16.msra.mxu0 %v4041
  %4733 = vmatpush.bf16.msra.mxu0 %v4039
  %4734 = vmatmul.bf16.gmra.mxu0 %v3388
  %v4735 = vpop.f32.mrf.mxu0
  %v4736 = vadd.f32 %v4707, %v4735
  %v4737 = vpop.f32.mrf.mxu0
  %v4738 = vadd.f32 %v4709, %v4737
  %4739 = vmatmul.bf16.gmra.mxu0 %v3398
  %v4740 = vpop.f32.mrf.mxu0
  %v4741 = vadd.f32 %v4712, %v4740
  %v4742 = vpop.f32.mrf.mxu0
  %v4743 = vadd.f32 %v4714, %v4742
  %4744 = vmatmul.bf16.gmra.mxu0 %v3408
  %v4745 = vpop.f32.mrf.mxu0
  %v4746 = vadd.f32 %v4717, %v4745
  %v4747 = vpop.f32.mrf.mxu0
  %v4748 = vadd.f32 %v4719, %v4747
  %4749 = vmatmul.bf16.gmra.mxu0 %v3418
  %v4750 = vpop.f32.mrf.mxu0
  %v4751 = vadd.f32 %v4722, %v4750
  %v4752 = vpop.f32.mrf.mxu0
  %v4753 = vadd.f32 %v4724, %v4752
  %4754 = vdwg.mxu0
  %4755 = vmatpush.bf16.msra.mxu0 %v4069
  %4756 = vmatpush.bf16.msra.mxu0 %v4067
  %4757 = vmatpush.bf16.msra.mxu0 %v4065
  %4758 = vmatpush.bf16.msra.mxu0 %v4063
  %4759 = vmatpush.bf16.msra.mxu0 %v4061
  %4760 = vmatpush.bf16.msra.mxu0 %v4059
  %4761 = vmatpush.bf16.msra.mxu0 %v4057
  %4762 = vmatpush.bf16.msra.mxu0 %v4055
  %4763 = vmatmul.bf16.gmra.mxu0 %v3389
  %v4764 = vpop.f32.mrf.mxu0
  %v4765 = vadd.f32 %v4736, %v4764
  %v4766 = vpop.f32.mrf.mxu0
  %v4767 = vadd.f32 %v4738, %v4766
  %4768 = vmatmul.bf16.gmra.mxu0 %v3399
  %v4769 = vpop.f32.mrf.mxu0
  %v4770 = vadd.f32 %v4741, %v4769
  %v4771 = vpop.f32.mrf.mxu0
  %v4772 = vadd.f32 %v4743, %v4771
  %4773 = vmatmul.bf16.gmra.mxu0 %v3409
  %v4774 = vpop.f32.mrf.mxu0
  %v4775 = vadd.f32 %v4746, %v4774
  %v4776 = vpop.f32.mrf.mxu0
  %v4777 = vadd.f32 %v4748, %v4776
  %4778 = vmatmul.bf16.gmra.mxu0 %v3419
  %v4779 = vpop.f32.mrf.mxu0
  %v4780 = vadd.f32 %v4751, %v4779
  %v4781 = vpop.f32.mrf.mxu0
  %v4782 = vadd.f32 %v4753, %v4781
  %4783 = vdwg.mxu0
  %4784 = vmatpush.bf16.msra.mxu0 %v4085
  %4785 = vmatpush.bf16.msra.mxu0 %v4083
  %4786 = vmatpush.bf16.msra.mxu0 %v4081
  %4787 = vmatpush.bf16.msra.mxu0 %v4079
  %4788 = vmatpush.bf16.msra.mxu0 %v4077
  %4789 = vmatpush.bf16.msra.mxu0 %v4075
  %4790 = vmatpush.bf16.msra.mxu0 %v4073
  %4791 = vmatpush.bf16.msra.mxu0 %v4071
  %4792 = vmatmul.bf16.gmra.mxu0 %v3390
  %v4793 = vpop.f32.mrf.mxu0
  %v4794 = vadd.f32 %v4765, %v4793
  %v4795 = vpop.f32.mrf.mxu0
  %v4796 = vadd.f32 %v4767, %v4795
  %4797 = vmatmul.bf16.gmra.mxu0 %v3400
  %v4798 = vpop.f32.mrf.mxu0
  %v4799 = vadd.f32 %v4770, %v4798
  %v4800 = vpop.f32.mrf.mxu0
  %v4801 = vadd.f32 %v4772, %v4800
  %4802 = vmatmul.bf16.gmra.mxu0 %v3410
  %v4803 = vpop.f32.mrf.mxu0
  %v4804 = vadd.f32 %v4775, %v4803
  %v4805 = vpop.f32.mrf.mxu0
  %v4806 = vadd.f32 %v4777, %v4805
  %4807 = vmatmul.bf16.gmra.mxu0 %v3420
  %v4808 = vpop.f32.mrf.mxu0
  %v4809 = vadd.f32 %v4780, %v4808
  %v4810 = vpop.f32.mrf.mxu0
  %v4811 = vadd.f32 %v4782, %v4810
  %4812 = vdwg.mxu0
  %4813 = vmatpush.bf16.msra.mxu0 %v4101
  %4814 = vmatpush.bf16.msra.mxu0 %v4099
  %4815 = vmatpush.bf16.msra.mxu0 %v4097
  %4816 = vmatpush.bf16.msra.mxu0 %v4095
  %4817 = vmatpush.bf16.msra.mxu0 %v4093
  %4818 = vmatpush.bf16.msra.mxu0 %v4091
  %4819 = vmatpush.bf16.msra.mxu0 %v4089
  %4820 = vmatpush.bf16.msra.mxu0 %v4087
  %4821 = vmatmul.bf16.gmra.mxu0 %v3391
  %v4822 = vpop.f32.mrf.mxu0
  %v4823 = vadd.f32 %v4794, %v4822
  %v4824 = vpop.f32.mrf.mxu0
  %v4825 = vadd.f32 %v4796, %v4824
  %4826 = vmatmul.bf16.gmra.mxu0 %v3401
  %v4827 = vpop.f32.mrf.mxu0
  %v4828 = vadd.f32 %v4799, %v4827
  %v4829 = vpop.f32.mrf.mxu0
  %v4830 = vadd.f32 %v4801, %v4829
  %4831 = vmatmul.bf16.gmra.mxu0 %v3411
  %v4832 = vpop.f32.mrf.mxu0
  %v4833 = vadd.f32 %v4804, %v4832
  %v4834 = vpop.f32.mrf.mxu0
  %v4835 = vadd.f32 %v4806, %v4834
  %4836 = vmatmul.bf16.gmra.mxu0 %v3421
  %v4837 = vpop.f32.mrf.mxu0
  %v4838 = vadd.f32 %v4809, %v4837
  %v4839 = vpop.f32.mrf.mxu0
  %v4840 = vadd.f32 %v4811, %v4839
  %4841 = vdwg.mxu0
  %s4842 = scalar_lea.vmem %s3, 1280
  %v4843 = vld [vmem:[%s4842] sm:$0xff]
  %v4844 = vld [vmem:[%s4842 + $0x8] sm:$0xff]
  %v4845 = vld [vmem:[%s4842 + $0x10] sm:$0xff]
  %v4846 = vld [vmem:[%s4842 + $0x18] sm:$0xff]
  %v4847 = vld [vmem:[%s4842 + $0x20] sm:$0xff]
  %v4848 = vld [vmem:[%s4842 + $0x28] sm:$0xff]
  %v4849 = vld [vmem:[%s4842 + $0x30] sm:$0xff]
  %v4850 = vld [vmem:[%s4842 + $0x38] sm:$0xff]
  %v4851 = vld [vmem:[%s4842 + $0x40] sm:$0xff]
  %v4852 = vld [vmem:[%s4842 + $0x48] sm:$0xff]
  %v4853 = vld [vmem:[%s4842 + $0x50] sm:$0xff]
  %v4854 = vld [vmem:[%s4842 + $0x58] sm:$0xff]
  %v4855 = vld [vmem:[%s4842 + $0x60] sm:$0xff]
  %v4856 = vld [vmem:[%s4842 + $0x68] sm:$0xff]
  %v4857 = vld [vmem:[%s4842 + $0x70] sm:$0xff]
  %v4858 = vld [vmem:[%s4842 + $0x78] sm:$0xff]
  %v4859 = vld [vmem:[%s4842 + $0x80] sm:$0xff]
  %v4860 = vld [vmem:[%s4842 + $0x88] sm:$0xff]
  %v4861 = vld [vmem:[%s4842 + $0x90] sm:$0xff]
  %v4862 = vld [vmem:[%s4842 + $0x98] sm:$0xff]
  %v4863 = vld [vmem:[%s4842 + $0xa0] sm:$0xff]
  %v4864 = vld [vmem:[%s4842 + $0xa8] sm:$0xff]
  %v4865 = vld [vmem:[%s4842 + $0xb0] sm:$0xff]
  %v4866 = vld [vmem:[%s4842 + $0xb8] sm:$0xff]
  %v4867 = vld [vmem:[%s4842 + $0xc0] sm:$0xff]
  %v4868 = vld [vmem:[%s4842 + $0xc8] sm:$0xff]
  %v4869 = vld [vmem:[%s4842 + $0xd0] sm:$0xff]
  %v4870 = vld [vmem:[%s4842 + $0xd8] sm:$0xff]
  %v4871 = vld [vmem:[%s4842 + $0xe0] sm:$0xff]
  %v4872 = vld [vmem:[%s4842 + $0xe8] sm:$0xff]
  %v4873 = vld [vmem:[%s4842 + $0xf0] sm:$0xff]
  %v4874 = vld [vmem:[%s4842 + $0xf8] sm:$0xff]
  %v4875 = vld [vmem:[%s4842 + $0x100] sm:$0xff]
  %v4876 = vld [vmem:[%s4842 + $0x108] sm:$0xff]
  %v4877 = vld [vmem:[%s4842 + $0x110] sm:$0xff]
  %v4878 = vld [vmem:[%s4842 + $0x118] sm:$0xff]
  %v4879 = vld [vmem:[%s4842 + $0x120] sm:$0xff]
  %v4880 = vld [vmem:[%s4842 + $0x128] sm:$0xff]
  %v4881 = vld [vmem:[%s4842 + $0x130] sm:$0xff]
  %v4882 = vld [vmem:[%s4842 + $0x138] sm:$0xff]
  %v4883 = vld [vmem:[%s4842 + $0x140] sm:$0xff]
  %v4884 = vld [vmem:[%s4842 + $0x148] sm:$0xff]
  %v4885 = vld [vmem:[%s4842 + $0x150] sm:$0xff]
  %v4886 = vld [vmem:[%s4842 + $0x158] sm:$0xff]
  %v4887 = vld [vmem:[%s4842 + $0x160] sm:$0xff]
  %v4888 = vld [vmem:[%s4842 + $0x168] sm:$0xff]
  %v4889 = vld [vmem:[%s4842 + $0x170] sm:$0xff]
  %v4890 = vld [vmem:[%s4842 + $0x178] sm:$0xff]
  %v4891 = vld [vmem:[%s4842 + $0x180] sm:$0xff]
  %v4892 = vld [vmem:[%s4842 + $0x188] sm:$0xff]
  %v4893 = vld [vmem:[%s4842 + $0x190] sm:$0xff]
  %v4894 = vld [vmem:[%s4842 + $0x198] sm:$0xff]
  %v4895 = vld [vmem:[%s4842 + $0x1a0] sm:$0xff]
  %v4896 = vld [vmem:[%s4842 + $0x1a8] sm:$0xff]
  %v4897 = vld [vmem:[%s4842 + $0x1b0] sm:$0xff]
  %v4898 = vld [vmem:[%s4842 + $0x1b8] sm:$0xff]
  %v4899 = vld [vmem:[%s4842 + $0x1c0] sm:$0xff]
  %v4900 = vld [vmem:[%s4842 + $0x1c8] sm:$0xff]
  %v4901 = vld [vmem:[%s4842 + $0x1d0] sm:$0xff]
  %v4902 = vld [vmem:[%s4842 + $0x1d8] sm:$0xff]
  %v4903 = vld [vmem:[%s4842 + $0x1e0] sm:$0xff]
  %v4904 = vld [vmem:[%s4842 + $0x1e8] sm:$0xff]
  %v4905 = vld [vmem:[%s4842 + $0x1f0] sm:$0xff]
  %v4906 = vld [vmem:[%s4842 + $0x1f8] sm:$0xff]
  %v4907 = vld [vmem:[%s4842 + $0x200] sm:$0xff]
  %v4908 = vld [vmem:[%s4842 + $0x208] sm:$0xff]
  %v4909 = vld [vmem:[%s4842 + $0x210] sm:$0xff]
  %v4910 = vld [vmem:[%s4842 + $0x218] sm:$0xff]
  %v4911 = vld [vmem:[%s4842 + $0x220] sm:$0xff]
  %v4912 = vld [vmem:[%s4842 + $0x228] sm:$0xff]
  %v4913 = vld [vmem:[%s4842 + $0x230] sm:$0xff]
  %v4914 = vld [vmem:[%s4842 + $0x238] sm:$0xff]
  %v4915 = vld [vmem:[%s4842 + $0x240] sm:$0xff]
  %v4916 = vld [vmem:[%s4842 + $0x248] sm:$0xff]
  %v4917 = vld [vmem:[%s4842 + $0x250] sm:$0xff]
  %v4918 = vld [vmem:[%s4842 + $0x258] sm:$0xff]
  %v4919 = vld [vmem:[%s4842 + $0x260] sm:$0xff]
  %v4920 = vld [vmem:[%s4842 + $0x268] sm:$0xff]
  %v4921 = vld [vmem:[%s4842 + $0x270] sm:$0xff]
  %v4922 = vld [vmem:[%s4842 + $0x278] sm:$0xff]
  %v4923 = vld [vmem:[%s4842 + $0x280] sm:$0xff]
  %v4924 = vld [vmem:[%s4842 + $0x288] sm:$0xff]
  %v4925 = vld [vmem:[%s4842 + $0x290] sm:$0xff]
  %v4926 = vld [vmem:[%s4842 + $0x298] sm:$0xff]
  %v4927 = vld [vmem:[%s4842 + $0x2a0] sm:$0xff]
  %v4928 = vld [vmem:[%s4842 + $0x2a8] sm:$0xff]
  %v4929 = vld [vmem:[%s4842 + $0x2b0] sm:$0xff]
  %v4930 = vld [vmem:[%s4842 + $0x2b8] sm:$0xff]
  %v4931 = vld [vmem:[%s4842 + $0x2c0] sm:$0xff]
  %v4932 = vld [vmem:[%s4842 + $0x2c8] sm:$0xff]
  %v4933 = vld [vmem:[%s4842 + $0x2d0] sm:$0xff]
  %v4934 = vld [vmem:[%s4842 + $0x2d8] sm:$0xff]
  %v4935 = vld [vmem:[%s4842 + $0x2e0] sm:$0xff]
  %v4936 = vld [vmem:[%s4842 + $0x2e8] sm:$0xff]
  %v4937 = vld [vmem:[%s4842 + $0x2f0] sm:$0xff]
  %v4938 = vld [vmem:[%s4842 + $0x2f8] sm:$0xff]
  %v4939 = vld [vmem:[%s4842 + $0x300] sm:$0xff]
  %v4940 = vld [vmem:[%s4842 + $0x308] sm:$0xff]
  %v4941 = vld [vmem:[%s4842 + $0x310] sm:$0xff]
  %v4942 = vld [vmem:[%s4842 + $0x318] sm:$0xff]
  %v4943 = vld [vmem:[%s4842 + $0x320] sm:$0xff]
  %v4944 = vld [vmem:[%s4842 + $0x328] sm:$0xff]
  %v4945 = vld [vmem:[%s4842 + $0x330] sm:$0xff]
  %v4946 = vld [vmem:[%s4842 + $0x338] sm:$0xff]
  %v4947 = vld [vmem:[%s4842 + $0x340] sm:$0xff]
  %v4948 = vld [vmem:[%s4842 + $0x348] sm:$0xff]
  %v4949 = vld [vmem:[%s4842 + $0x350] sm:$0xff]
  %v4950 = vld [vmem:[%s4842 + $0x358] sm:$0xff]
  %v4951 = vld [vmem:[%s4842 + $0x360] sm:$0xff]
  %v4952 = vld [vmem:[%s4842 + $0x368] sm:$0xff]
  %v4953 = vld [vmem:[%s4842 + $0x370] sm:$0xff]
  %v4954 = vld [vmem:[%s4842 + $0x378] sm:$0xff]
  %v4955 = vld [vmem:[%s4842 + $0x380] sm:$0xff]
  %v4956 = vld [vmem:[%s4842 + $0x388] sm:$0xff]
  %v4957 = vld [vmem:[%s4842 + $0x390] sm:$0xff]
  %v4958 = vld [vmem:[%s4842 + $0x398] sm:$0xff]
  %v4959 = vld [vmem:[%s4842 + $0x3a0] sm:$0xff]
  %v4960 = vld [vmem:[%s4842 + $0x3a8] sm:$0xff]
  %v4961 = vld [vmem:[%s4842 + $0x3b0] sm:$0xff]
  %v4962 = vld [vmem:[%s4842 + $0x3b8] sm:$0xff]
  %v4963 = vld [vmem:[%s4842 + $0x3c0] sm:$0xff]
  %v4964 = vld [vmem:[%s4842 + $0x3c8] sm:$0xff]
  %v4965 = vld [vmem:[%s4842 + $0x3d0] sm:$0xff]
  %v4966 = vld [vmem:[%s4842 + $0x3d8] sm:$0xff]
  %v4967 = vld [vmem:[%s4842 + $0x3e0] sm:$0xff]
  %v4968 = vld [vmem:[%s4842 + $0x3e8] sm:$0xff]
  %v4969 = vld [vmem:[%s4842 + $0x3f0] sm:$0xff]
  %v4970 = vld [vmem:[%s4842 + $0x3f8] sm:$0xff]
  %v4971 = vld [vmem:[%s4842 + $0x400] sm:$0xff]
  %v4972 = vld [vmem:[%s4842 + $0x408] sm:$0xff]
  %v4973 = vld [vmem:[%s4842 + $0x410] sm:$0xff]
  %v4974 = vld [vmem:[%s4842 + $0x418] sm:$0xff]
  %v4975 = vld [vmem:[%s4842 + $0x420] sm:$0xff]
  %v4976 = vld [vmem:[%s4842 + $0x428] sm:$0xff]
  %v4977 = vld [vmem:[%s4842 + $0x430] sm:$0xff]
  %v4978 = vld [vmem:[%s4842 + $0x438] sm:$0xff]
  %v4979 = vld [vmem:[%s4842 + $0x440] sm:$0xff]
  %v4980 = vld [vmem:[%s4842 + $0x448] sm:$0xff]
  %v4981 = vld [vmem:[%s4842 + $0x450] sm:$0xff]
  %v4982 = vld [vmem:[%s4842 + $0x458] sm:$0xff]
  %v4983 = vld [vmem:[%s4842 + $0x460] sm:$0xff]
  %v4984 = vld [vmem:[%s4842 + $0x468] sm:$0xff]
  %v4985 = vld [vmem:[%s4842 + $0x470] sm:$0xff]
  %v4986 = vld [vmem:[%s4842 + $0x478] sm:$0xff]
  %v4987 = vld [vmem:[%s4842 + $0x480] sm:$0xff]
  %v4988 = vld [vmem:[%s4842 + $0x488] sm:$0xff]
  %v4989 = vld [vmem:[%s4842 + $0x490] sm:$0xff]
  %v4990 = vld [vmem:[%s4842 + $0x498] sm:$0xff]
  %v4991 = vld [vmem:[%s4842 + $0x4a0] sm:$0xff]
  %v4992 = vld [vmem:[%s4842 + $0x4a8] sm:$0xff]
  %v4993 = vld [vmem:[%s4842 + $0x4b0] sm:$0xff]
  %v4994 = vld [vmem:[%s4842 + $0x4b8] sm:$0xff]
  %v4995 = vld [vmem:[%s4842 + $0x4c0] sm:$0xff]
  %v4996 = vld [vmem:[%s4842 + $0x4c8] sm:$0xff]
  %v4997 = vld [vmem:[%s4842 + $0x4d0] sm:$0xff]
  %v4998 = vld [vmem:[%s4842 + $0x4d8] sm:$0xff]
  %v4999 = vld [vmem:[%s4842 + $0x4e0] sm:$0xff]
  %v5000 = vld [vmem:[%s4842 + $0x4e8] sm:$0xff]
  %v5001 = vld [vmem:[%s4842 + $0x4f0] sm:$0xff]
  %v5002 = vld [vmem:[%s4842 + $0x4f8] sm:$0xff]
  %v5163 = vunpack.c.l.b16 %v4843
  %v5164 = vunpack.c.h.b16 %v4843
  %v5165 = vunpack.c.l.b16 %v4844
  %v5166 = vunpack.c.h.b16 %v4844
  %v5167 = vunpack.c.l.b16 %v4845
  %v5168 = vunpack.c.h.b16 %v4845
  %v5169 = vunpack.c.l.b16 %v4846
  %v5170 = vunpack.c.h.b16 %v4846
  %v5171 = vunpack.c.l.b16 %v4847
  %v5172 = vunpack.c.h.b16 %v4847
  %v5173 = vunpack.c.l.b16 %v4848
  %v5174 = vunpack.c.h.b16 %v4848
  %v5175 = vunpack.c.l.b16 %v4849
  %v5176 = vunpack.c.h.b16 %v4849
  %v5177 = vunpack.c.l.b16 %v4850
  %v5178 = vunpack.c.h.b16 %v4850
  %v5179 = vunpack.c.l.b16 %v4851
  %v5180 = vunpack.c.h.b16 %v4851
  %v5181 = vunpack.c.l.b16 %v4852
  %v5182 = vunpack.c.h.b16 %v4852
  %v5183 = vunpack.c.l.b16 %v4853
  %v5184 = vunpack.c.h.b16 %v4853
  %v5185 = vunpack.c.l.b16 %v4854
  %v5186 = vunpack.c.h.b16 %v4854
  %v5187 = vunpack.c.l.b16 %v4855
  %v5188 = vunpack.c.h.b16 %v4855
  %v5189 = vunpack.c.l.b16 %v4856
  %v5190 = vunpack.c.h.b16 %v4856
  %v5191 = vunpack.c.l.b16 %v4857
  %v5192 = vunpack.c.h.b16 %v4857
  %v5193 = vunpack.c.l.b16 %v4858
  %v5194 = vunpack.c.h.b16 %v4858
  %v5195 = vunpack.c.l.b16 %v4859
  %v5196 = vunpack.c.h.b16 %v4859
  %v5197 = vunpack.c.l.b16 %v4860
  %v5198 = vunpack.c.h.b16 %v4860
  %v5199 = vunpack.c.l.b16 %v4861
  %v5200 = vunpack.c.h.b16 %v4861
  %v5201 = vunpack.c.l.b16 %v4862
  %v5202 = vunpack.c.h.b16 %v4862
  %v5203 = vunpack.c.l.b16 %v4863
  %v5204 = vunpack.c.h.b16 %v4863
  %v5205 = vunpack.c.l.b16 %v4864
  %v5206 = vunpack.c.h.b16 %v4864
  %v5207 = vunpack.c.l.b16 %v4865
  %v5208 = vunpack.c.h.b16 %v4865
  %v5209 = vunpack.c.l.b16 %v4866
  %v5210 = vunpack.c.h.b16 %v4866
  %v5211 = vunpack.c.l.b16 %v4867
  %v5212 = vunpack.c.h.b16 %v4867
  %v5213 = vunpack.c.l.b16 %v4868
  %v5214 = vunpack.c.h.b16 %v4868
  %v5215 = vunpack.c.l.b16 %v4869
  %v5216 = vunpack.c.h.b16 %v4869
  %v5217 = vunpack.c.l.b16 %v4870
  %v5218 = vunpack.c.h.b16 %v4870
  %v5219 = vunpack.c.l.b16 %v4871
  %v5220 = vunpack.c.h.b16 %v4871
  %v5221 = vunpack.c.l.b16 %v4872
  %v5222 = vunpack.c.h.b16 %v4872
  %v5223 = vunpack.c.l.b16 %v4873
  %v5224 = vunpack.c.h.b16 %v4873
  %v5225 = vunpack.c.l.b16 %v4874
  %v5226 = vunpack.c.h.b16 %v4874
  %v5227 = vunpack.c.l.b16 %v4875
  %v5228 = vunpack.c.h.b16 %v4875
  %v5229 = vunpack.c.l.b16 %v4876
  %v5230 = vunpack.c.h.b16 %v4876
  %v5231 = vunpack.c.l.b16 %v4877
  %v5232 = vunpack.c.h.b16 %v4877
  %v5233 = vunpack.c.l.b16 %v4878
  %v5234 = vunpack.c.h.b16 %v4878
  %v5235 = vunpack.c.l.b16 %v4879
  %v5236 = vunpack.c.h.b16 %v4879
  %v5237 = vunpack.c.l.b16 %v4880
  %v5238 = vunpack.c.h.b16 %v4880
  %v5239 = vunpack.c.l.b16 %v4881
  %v5240 = vunpack.c.h.b16 %v4881
  %v5241 = vunpack.c.l.b16 %v4882
  %v5242 = vunpack.c.h.b16 %v4882
  %v5243 = vunpack.c.l.b16 %v4883
  %v5244 = vunpack.c.h.b16 %v4883
  %v5245 = vunpack.c.l.b16 %v4884
  %v5246 = vunpack.c.h.b16 %v4884
  %v5247 = vunpack.c.l.b16 %v4885
  %v5248 = vunpack.c.h.b16 %v4885
  %v5249 = vunpack.c.l.b16 %v4886
  %v5250 = vunpack.c.h.b16 %v4886
  %v5251 = vunpack.c.l.b16 %v4887
  %v5252 = vunpack.c.h.b16 %v4887
  %v5253 = vunpack.c.l.b16 %v4888
  %v5254 = vunpack.c.h.b16 %v4888
  %v5255 = vunpack.c.l.b16 %v4889
  %v5256 = vunpack.c.h.b16 %v4889
  %v5257 = vunpack.c.l.b16 %v4890
  %v5258 = vunpack.c.h.b16 %v4890
  %v5259 = vunpack.c.l.b16 %v4891
  %v5260 = vunpack.c.h.b16 %v4891
  %v5261 = vunpack.c.l.b16 %v4892
  %v5262 = vunpack.c.h.b16 %v4892
  %v5263 = vunpack.c.l.b16 %v4893
  %v5264 = vunpack.c.h.b16 %v4893
  %v5265 = vunpack.c.l.b16 %v4894
  %v5266 = vunpack.c.h.b16 %v4894
  %v5267 = vunpack.c.l.b16 %v4895
  %v5268 = vunpack.c.h.b16 %v4895
  %v5269 = vunpack.c.l.b16 %v4896
  %v5270 = vunpack.c.h.b16 %v4896
  %v5271 = vunpack.c.l.b16 %v4897
  %v5272 = vunpack.c.h.b16 %v4897
  %v5273 = vunpack.c.l.b16 %v4898
  %v5274 = vunpack.c.h.b16 %v4898
  %v5275 = vunpack.c.l.b16 %v4899
  %v5276 = vunpack.c.h.b16 %v4899
  %v5277 = vunpack.c.l.b16 %v4900
  %v5278 = vunpack.c.h.b16 %v4900
  %v5279 = vunpack.c.l.b16 %v4901
  %v5280 = vunpack.c.h.b16 %v4901
  %v5281 = vunpack.c.l.b16 %v4902
  %v5282 = vunpack.c.h.b16 %v4902
  %v5283 = vunpack.c.l.b16 %v4903
  %v5284 = vunpack.c.h.b16 %v4903
  %v5285 = vunpack.c.l.b16 %v4904
  %v5286 = vunpack.c.h.b16 %v4904
  %v5287 = vunpack.c.l.b16 %v4905
  %v5288 = vunpack.c.h.b16 %v4905
  %v5289 = vunpack.c.l.b16 %v4906
  %v5290 = vunpack.c.h.b16 %v4906
  %v5291 = vunpack.c.l.b16 %v4907
  %v5292 = vunpack.c.h.b16 %v4907
  %v5293 = vunpack.c.l.b16 %v4908
  %v5294 = vunpack.c.h.b16 %v4908
  %v5295 = vunpack.c.l.b16 %v4909
  %v5296 = vunpack.c.h.b16 %v4909
  %v5297 = vunpack.c.l.b16 %v4910
  %v5298 = vunpack.c.h.b16 %v4910
  %v5299 = vunpack.c.l.b16 %v4911
  %v5300 = vunpack.c.h.b16 %v4911
  %v5301 = vunpack.c.l.b16 %v4912
  %v5302 = vunpack.c.h.b16 %v4912
  %v5303 = vunpack.c.l.b16 %v4913
  %v5304 = vunpack.c.h.b16 %v4913
  %v5305 = vunpack.c.l.b16 %v4914
  %v5306 = vunpack.c.h.b16 %v4914
  %v5307 = vunpack.c.l.b16 %v4915
  %v5308 = vunpack.c.h.b16 %v4915
  %v5309 = vunpack.c.l.b16 %v4916
  %v5310 = vunpack.c.h.b16 %v4916
  %v5311 = vunpack.c.l.b16 %v4917
  %v5312 = vunpack.c.h.b16 %v4917
  %v5313 = vunpack.c.l.b16 %v4918
  %v5314 = vunpack.c.h.b16 %v4918
  %v5315 = vunpack.c.l.b16 %v4919
  %v5316 = vunpack.c.h.b16 %v4919
  %v5317 = vunpack.c.l.b16 %v4920
  %v5318 = vunpack.c.h.b16 %v4920
  %v5319 = vunpack.c.l.b16 %v4921
  %v5320 = vunpack.c.h.b16 %v4921
  %v5321 = vunpack.c.l.b16 %v4922
  %v5322 = vunpack.c.h.b16 %v4922
  %v5323 = vunpack.c.l.b16 %v4923
  %v5324 = vunpack.c.h.b16 %v4923
  %v5325 = vunpack.c.l.b16 %v4924
  %v5326 = vunpack.c.h.b16 %v4924
  %v5327 = vunpack.c.l.b16 %v4925
  %v5328 = vunpack.c.h.b16 %v4925
  %v5329 = vunpack.c.l.b16 %v4926
  %v5330 = vunpack.c.h.b16 %v4926
  %v5331 = vunpack.c.l.b16 %v4927
  %v5332 = vunpack.c.h.b16 %v4927
  %v5333 = vunpack.c.l.b16 %v4928
  %v5334 = vunpack.c.h.b16 %v4928
  %v5335 = vunpack.c.l.b16 %v4929
  %v5336 = vunpack.c.h.b16 %v4929
  %v5337 = vunpack.c.l.b16 %v4930
  %v5338 = vunpack.c.h.b16 %v4930
  %v5339 = vunpack.c.l.b16 %v4931
  %v5340 = vunpack.c.h.b16 %v4931
  %v5341 = vunpack.c.l.b16 %v4932
  %v5342 = vunpack.c.h.b16 %v4932
  %v5343 = vunpack.c.l.b16 %v4933
  %v5344 = vunpack.c.h.b16 %v4933
  %v5345 = vunpack.c.l.b16 %v4934
  %v5346 = vunpack.c.h.b16 %v4934
  %v5347 = vunpack.c.l.b16 %v4935
  %v5348 = vunpack.c.h.b16 %v4935
  %v5349 = vunpack.c.l.b16 %v4936
  %v5350 = vunpack.c.h.b16 %v4936
  %v5351 = vunpack.c.l.b16 %v4937
  %v5352 = vunpack.c.h.b16 %v4937
  %v5353 = vunpack.c.l.b16 %v4938
  %v5354 = vunpack.c.h.b16 %v4938
  %v5355 = vunpack.c.l.b16 %v4939
  %v5356 = vunpack.c.h.b16 %v4939
  %v5357 = vunpack.c.l.b16 %v4940
  %v5358 = vunpack.c.h.b16 %v4940
  %v5359 = vunpack.c.l.b16 %v4941
  %v5360 = vunpack.c.h.b16 %v4941
  %v5361 = vunpack.c.l.b16 %v4942
  %v5362 = vunpack.c.h.b16 %v4942
  %v5363 = vunpack.c.l.b16 %v4943
  %v5364 = vunpack.c.h.b16 %v4943
  %v5365 = vunpack.c.l.b16 %v4944
  %v5366 = vunpack.c.h.b16 %v4944
  %v5367 = vunpack.c.l.b16 %v4945
  %v5368 = vunpack.c.h.b16 %v4945
  %v5369 = vunpack.c.l.b16 %v4946
  %v5370 = vunpack.c.h.b16 %v4946
  %v5371 = vunpack.c.l.b16 %v4947
  %v5372 = vunpack.c.h.b16 %v4947
  %v5373 = vunpack.c.l.b16 %v4948
  %v5374 = vunpack.c.h.b16 %v4948
  %v5375 = vunpack.c.l.b16 %v4949
  %v5376 = vunpack.c.h.b16 %v4949
  %v5377 = vunpack.c.l.b16 %v4950
  %v5378 = vunpack.c.h.b16 %v4950
  %v5379 = vunpack.c.l.b16 %v4951
  %v5380 = vunpack.c.h.b16 %v4951
  %v5381 = vunpack.c.l.b16 %v4952
  %v5382 = vunpack.c.h.b16 %v4952
  %v5383 = vunpack.c.l.b16 %v4953
  %v5384 = vunpack.c.h.b16 %v4953
  %v5385 = vunpack.c.l.b16 %v4954
  %v5386 = vunpack.c.h.b16 %v4954
  %v5387 = vunpack.c.l.b16 %v4955
  %v5388 = vunpack.c.h.b16 %v4955
  %v5389 = vunpack.c.l.b16 %v4956
  %v5390 = vunpack.c.h.b16 %v4956
  %v5391 = vunpack.c.l.b16 %v4957
  %v5392 = vunpack.c.h.b16 %v4957
  %v5393 = vunpack.c.l.b16 %v4958
  %v5394 = vunpack.c.h.b16 %v4958
  %v5395 = vunpack.c.l.b16 %v4959
  %v5396 = vunpack.c.h.b16 %v4959
  %v5397 = vunpack.c.l.b16 %v4960
  %v5398 = vunpack.c.h.b16 %v4960
  %v5399 = vunpack.c.l.b16 %v4961
  %v5400 = vunpack.c.h.b16 %v4961
  %v5401 = vunpack.c.l.b16 %v4962
  %v5402 = vunpack.c.h.b16 %v4962
  %v5403 = vunpack.c.l.b16 %v4963
  %v5404 = vunpack.c.h.b16 %v4963
  %v5405 = vunpack.c.l.b16 %v4964
  %v5406 = vunpack.c.h.b16 %v4964
  %v5407 = vunpack.c.l.b16 %v4965
  %v5408 = vunpack.c.h.b16 %v4965
  %v5409 = vunpack.c.l.b16 %v4966
  %v5410 = vunpack.c.h.b16 %v4966
  %v5411 = vunpack.c.l.b16 %v4967
  %v5412 = vunpack.c.h.b16 %v4967
  %v5413 = vunpack.c.l.b16 %v4968
  %v5414 = vunpack.c.h.b16 %v4968
  %v5415 = vunpack.c.l.b16 %v4969
  %v5416 = vunpack.c.h.b16 %v4969
  %v5417 = vunpack.c.l.b16 %v4970
  %v5418 = vunpack.c.h.b16 %v4970
  %v5419 = vunpack.c.l.b16 %v4971
  %v5420 = vunpack.c.h.b16 %v4971
  %v5421 = vunpack.c.l.b16 %v4972
  %v5422 = vunpack.c.h.b16 %v4972
  %v5423 = vunpack.c.l.b16 %v4973
  %v5424 = vunpack.c.h.b16 %v4973
  %v5425 = vunpack.c.l.b16 %v4974
  %v5426 = vunpack.c.h.b16 %v4974
  %v5427 = vunpack.c.l.b16 %v4975
  %v5428 = vunpack.c.h.b16 %v4975
  %v5429 = vunpack.c.l.b16 %v4976
  %v5430 = vunpack.c.h.b16 %v4976
  %v5431 = vunpack.c.l.b16 %v4977
  %v5432 = vunpack.c.h.b16 %v4977
  %v5433 = vunpack.c.l.b16 %v4978
  %v5434 = vunpack.c.h.b16 %v4978
  %v5435 = vunpack.c.l.b16 %v4979
  %v5436 = vunpack.c.h.b16 %v4979
  %v5437 = vunpack.c.l.b16 %v4980
  %v5438 = vunpack.c.h.b16 %v4980
  %v5439 = vunpack.c.l.b16 %v4981
  %v5440 = vunpack.c.h.b16 %v4981
  %v5441 = vunpack.c.l.b16 %v4982
  %v5442 = vunpack.c.h.b16 %v4982
  %v5443 = vunpack.c.l.b16 %v4983
  %v5444 = vunpack.c.h.b16 %v4983
  %v5445 = vunpack.c.l.b16 %v4984
  %v5446 = vunpack.c.h.b16 %v4984
  %v5447 = vunpack.c.l.b16 %v4985
  %v5448 = vunpack.c.h.b16 %v4985
  %v5449 = vunpack.c.l.b16 %v4986
  %v5450 = vunpack.c.h.b16 %v4986
  %v5451 = vunpack.c.l.b16 %v4987
  %v5452 = vunpack.c.h.b16 %v4987
  %v5453 = vunpack.c.l.b16 %v4988
  %v5454 = vunpack.c.h.b16 %v4988
  %v5455 = vunpack.c.l.b16 %v4989
  %v5456 = vunpack.c.h.b16 %v4989
  %v5457 = vunpack.c.l.b16 %v4990
  %v5458 = vunpack.c.h.b16 %v4990
  %v5459 = vunpack.c.l.b16 %v4991
  %v5460 = vunpack.c.h.b16 %v4991
  %v5461 = vunpack.c.l.b16 %v4992
  %v5462 = vunpack.c.h.b16 %v4992
  %v5463 = vunpack.c.l.b16 %v4993
  %v5464 = vunpack.c.h.b16 %v4993
  %v5465 = vunpack.c.l.b16 %v4994
  %v5466 = vunpack.c.h.b16 %v4994
  %v5467 = vunpack.c.l.b16 %v4995
  %v5468 = vunpack.c.h.b16 %v4995
  %v5469 = vunpack.c.l.b16 %v4996
  %v5470 = vunpack.c.h.b16 %v4996
  %v5471 = vunpack.c.l.b16 %v4997
  %v5472 = vunpack.c.h.b16 %v4997
  %v5473 = vunpack.c.l.b16 %v4998
  %v5474 = vunpack.c.h.b16 %v4998
  %v5475 = vunpack.c.l.b16 %v4999
  %v5476 = vunpack.c.h.b16 %v4999
  %v5477 = vunpack.c.l.b16 %v5000
  %v5478 = vunpack.c.h.b16 %v5000
  %v5479 = vunpack.c.l.b16 %v5001
  %v5480 = vunpack.c.h.b16 %v5001
  %v5481 = vunpack.c.l.b16 %v5002
  %v5482 = vunpack.c.h.b16 %v5002
  %v5483 = vpack.c.b16 %v5165, %v5163
  %v5484 = vpack.c.b16 %v5166, %v5164
  %v5485 = vpack.c.b16 %v5169, %v5167
  %v5486 = vpack.c.b16 %v5170, %v5168
  %v5487 = vpack.c.b16 %v5173, %v5171
  %v5488 = vpack.c.b16 %v5174, %v5172
  %v5489 = vpack.c.b16 %v5177, %v5175
  %v5490 = vpack.c.b16 %v5178, %v5176
  %v5491 = vpack.c.b16 %v5181, %v5179
  %v5492 = vpack.c.b16 %v5182, %v5180
  %v5493 = vpack.c.b16 %v5185, %v5183
  %v5494 = vpack.c.b16 %v5186, %v5184
  %v5495 = vpack.c.b16 %v5189, %v5187
  %v5496 = vpack.c.b16 %v5190, %v5188
  %v5497 = vpack.c.b16 %v5193, %v5191
  %v5498 = vpack.c.b16 %v5194, %v5192
  %v5499 = vpack.c.b16 %v5197, %v5195
  %v5500 = vpack.c.b16 %v5198, %v5196
  %v5501 = vpack.c.b16 %v5201, %v5199
  %v5502 = vpack.c.b16 %v5202, %v5200
  %v5503 = vpack.c.b16 %v5205, %v5203
  %v5504 = vpack.c.b16 %v5206, %v5204
  %v5505 = vpack.c.b16 %v5209, %v5207
  %v5506 = vpack.c.b16 %v5210, %v5208
  %v5507 = vpack.c.b16 %v5213, %v5211
  %v5508 = vpack.c.b16 %v5214, %v5212
  %v5509 = vpack.c.b16 %v5217, %v5215
  %v5510 = vpack.c.b16 %v5218, %v5216
  %v5511 = vpack.c.b16 %v5221, %v5219
  %v5512 = vpack.c.b16 %v5222, %v5220
  %v5513 = vpack.c.b16 %v5225, %v5223
  %v5514 = vpack.c.b16 %v5226, %v5224
  %v5515 = vpack.c.b16 %v5229, %v5227
  %v5516 = vpack.c.b16 %v5230, %v5228
  %v5517 = vpack.c.b16 %v5233, %v5231
  %v5518 = vpack.c.b16 %v5234, %v5232
  %v5519 = vpack.c.b16 %v5237, %v5235
  %v5520 = vpack.c.b16 %v5238, %v5236
  %v5521 = vpack.c.b16 %v5241, %v5239
  %v5522 = vpack.c.b16 %v5242, %v5240
  %v5523 = vpack.c.b16 %v5245, %v5243
  %v5524 = vpack.c.b16 %v5246, %v5244
  %v5525 = vpack.c.b16 %v5249, %v5247
  %v5526 = vpack.c.b16 %v5250, %v5248
  %v5527 = vpack.c.b16 %v5253, %v5251
  %v5528 = vpack.c.b16 %v5254, %v5252
  %v5529 = vpack.c.b16 %v5257, %v5255
  %v5530 = vpack.c.b16 %v5258, %v5256
  %v5531 = vpack.c.b16 %v5261, %v5259
  %v5532 = vpack.c.b16 %v5262, %v5260
  %v5533 = vpack.c.b16 %v5265, %v5263
  %v5534 = vpack.c.b16 %v5266, %v5264
  %v5535 = vpack.c.b16 %v5269, %v5267
  %v5536 = vpack.c.b16 %v5270, %v5268
  %v5537 = vpack.c.b16 %v5273, %v5271
  %v5538 = vpack.c.b16 %v5274, %v5272
  %v5539 = vpack.c.b16 %v5277, %v5275
  %v5540 = vpack.c.b16 %v5278, %v5276
  %v5541 = vpack.c.b16 %v5281, %v5279
  %v5542 = vpack.c.b16 %v5282, %v5280
  %v5543 = vpack.c.b16 %v5285, %v5283
  %v5544 = vpack.c.b16 %v5286, %v5284
  %v5545 = vpack.c.b16 %v5289, %v5287
  %v5546 = vpack.c.b16 %v5290, %v5288
  %v5547 = vpack.c.b16 %v5293, %v5291
  %v5548 = vpack.c.b16 %v5294, %v5292
  %v5549 = vpack.c.b16 %v5297, %v5295
  %v5550 = vpack.c.b16 %v5298, %v5296
  %v5551 = vpack.c.b16 %v5301, %v5299
  %v5552 = vpack.c.b16 %v5302, %v5300
  %v5553 = vpack.c.b16 %v5305, %v5303
  %v5554 = vpack.c.b16 %v5306, %v5304
  %v5555 = vpack.c.b16 %v5309, %v5307
  %v5556 = vpack.c.b16 %v5310, %v5308
  %v5557 = vpack.c.b16 %v5313, %v5311
  %v5558 = vpack.c.b16 %v5314, %v5312
  %v5559 = vpack.c.b16 %v5317, %v5315
  %v5560 = vpack.c.b16 %v5318, %v5316
  %v5561 = vpack.c.b16 %v5321, %v5319
  %v5562 = vpack.c.b16 %v5322, %v5320
  %v5563 = vpack.c.b16 %v5325, %v5323
  %v5564 = vpack.c.b16 %v5326, %v5324
  %v5565 = vpack.c.b16 %v5329, %v5327
  %v5566 = vpack.c.b16 %v5330, %v5328
  %v5567 = vpack.c.b16 %v5333, %v5331
  %v5568 = vpack.c.b16 %v5334, %v5332
  %v5569 = vpack.c.b16 %v5337, %v5335
  %v5570 = vpack.c.b16 %v5338, %v5336
  %v5571 = vpack.c.b16 %v5341, %v5339
  %v5572 = vpack.c.b16 %v5342, %v5340
  %v5573 = vpack.c.b16 %v5345, %v5343
  %v5574 = vpack.c.b16 %v5346, %v5344
  %v5575 = vpack.c.b16 %v5349, %v5347
  %v5576 = vpack.c.b16 %v5350, %v5348
  %v5577 = vpack.c.b16 %v5353, %v5351
  %v5578 = vpack.c.b16 %v5354, %v5352
  %v5579 = vpack.c.b16 %v5357, %v5355
  %v5580 = vpack.c.b16 %v5358, %v5356
  %v5581 = vpack.c.b16 %v5361, %v5359
  %v5582 = vpack.c.b16 %v5362, %v5360
  %v5583 = vpack.c.b16 %v5365, %v5363
  %v5584 = vpack.c.b16 %v5366, %v5364
  %v5585 = vpack.c.b16 %v5369, %v5367
  %v5586 = vpack.c.b16 %v5370, %v5368
  %v5587 = vpack.c.b16 %v5373, %v5371
  %v5588 = vpack.c.b16 %v5374, %v5372
  %v5589 = vpack.c.b16 %v5377, %v5375
  %v5590 = vpack.c.b16 %v5378, %v5376
  %v5591 = vpack.c.b16 %v5381, %v5379
  %v5592 = vpack.c.b16 %v5382, %v5380
  %v5593 = vpack.c.b16 %v5385, %v5383
  %v5594 = vpack.c.b16 %v5386, %v5384
  %v5595 = vpack.c.b16 %v5389, %v5387
  %v5596 = vpack.c.b16 %v5390, %v5388
  %v5597 = vpack.c.b16 %v5393, %v5391
  %v5598 = vpack.c.b16 %v5394, %v5392
  %v5599 = vpack.c.b16 %v5397, %v5395
  %v5600 = vpack.c.b16 %v5398, %v5396
  %v5601 = vpack.c.b16 %v5401, %v5399
  %v5602 = vpack.c.b16 %v5402, %v5400
  %v5603 = vpack.c.b16 %v5405, %v5403
  %v5604 = vpack.c.b16 %v5406, %v5404
  %v5605 = vpack.c.b16 %v5409, %v5407
  %v5606 = vpack.c.b16 %v5410, %v5408
  %v5607 = vpack.c.b16 %v5413, %v5411
  %v5608 = vpack.c.b16 %v5414, %v5412
  %v5609 = vpack.c.b16 %v5417, %v5415
  %v5610 = vpack.c.b16 %v5418, %v5416
  %v5611 = vpack.c.b16 %v5421, %v5419
  %v5612 = vpack.c.b16 %v5422, %v5420
  %v5613 = vpack.c.b16 %v5425, %v5423
  %v5614 = vpack.c.b16 %v5426, %v5424
  %v5615 = vpack.c.b16 %v5429, %v5427
  %v5616 = vpack.c.b16 %v5430, %v5428
  %v5617 = vpack.c.b16 %v5433, %v5431
  %v5618 = vpack.c.b16 %v5434, %v5432
  %v5619 = vpack.c.b16 %v5437, %v5435
  %v5620 = vpack.c.b16 %v5438, %v5436
  %v5621 = vpack.c.b16 %v5441, %v5439
  %v5622 = vpack.c.b16 %v5442, %v5440
  %v5623 = vpack.c.b16 %v5445, %v5443
  %v5624 = vpack.c.b16 %v5446, %v5444
  %v5625 = vpack.c.b16 %v5449, %v5447
  %v5626 = vpack.c.b16 %v5450, %v5448
  %v5627 = vpack.c.b16 %v5453, %v5451
  %v5628 = vpack.c.b16 %v5454, %v5452
  %v5629 = vpack.c.b16 %v5457, %v5455
  %v5630 = vpack.c.b16 %v5458, %v5456
  %v5631 = vpack.c.b16 %v5461, %v5459
  %v5632 = vpack.c.b16 %v5462, %v5460
  %v5633 = vpack.c.b16 %v5465, %v5463
  %v5634 = vpack.c.b16 %v5466, %v5464
  %v5635 = vpack.c.b16 %v5469, %v5467
  %v5636 = vpack.c.b16 %v5470, %v5468
  %v5637 = vpack.c.b16 %v5473, %v5471
  %v5638 = vpack.c.b16 %v5474, %v5472
  %v5639 = vpack.c.b16 %v5477, %v5475
  %v5640 = vpack.c.b16 %v5478, %v5476
  %v5641 = vpack.c.b16 %v5481, %v5479
  %v5642 = vpack.c.b16 %v5482, %v5480
  %5803 = vmatpush.bf16.msra.mxu0 %v5497
  %5804 = vmatpush.bf16.msra.mxu0 %v5495
  %5805 = vmatpush.bf16.msra.mxu0 %v5493
  %5806 = vmatpush.bf16.msra.mxu0 %v5491
  %5807 = vmatpush.bf16.msra.mxu0 %v5489
  %5808 = vmatpush.bf16.msra.mxu0 %v5487
  %5809 = vmatpush.bf16.msra.mxu0 %v5485
  %5810 = vmatpush.bf16.msra.mxu0 %v5483
  %5811 = vmatmul.bf16.gmra.mxu0 %v3382
  %v5812 = vpop.f32.mrf.mxu0
  %v5813 = vadd.f32 0.0, %v5812
  %v5814 = vpop.f32.mrf.mxu0
  %v5815 = vadd.f32 0.0, %v5814
  %5816 = vmatmul.bf16.gmra.mxu0 %v3392
  %v5817 = vpop.f32.mrf.mxu0
  %v5818 = vadd.f32 0.0, %v5817
  %v5819 = vpop.f32.mrf.mxu0
  %v5820 = vadd.f32 0.0, %v5819
  %5821 = vmatmul.bf16.gmra.mxu0 %v3402
  %v5822 = vpop.f32.mrf.mxu0
  %v5823 = vadd.f32 0.0, %v5822
  %v5824 = vpop.f32.mrf.mxu0
  %v5825 = vadd.f32 0.0, %v5824
  %5826 = vmatmul.bf16.gmra.mxu0 %v3412
  %v5827 = vpop.f32.mrf.mxu0
  %v5828 = vadd.f32 0.0, %v5827
  %v5829 = vpop.f32.mrf.mxu0
  %v5830 = vadd.f32 0.0, %v5829
  %5831 = vdwg.mxu0
  %5832 = vmatpush.bf16.msra.mxu0 %v5513
  %5833 = vmatpush.bf16.msra.mxu0 %v5511
  %5834 = vmatpush.bf16.msra.mxu0 %v5509
  %5835 = vmatpush.bf16.msra.mxu0 %v5507
  %5836 = vmatpush.bf16.msra.mxu0 %v5505
  %5837 = vmatpush.bf16.msra.mxu0 %v5503
  %5838 = vmatpush.bf16.msra.mxu0 %v5501
  %5839 = vmatpush.bf16.msra.mxu0 %v5499
  %5840 = vmatmul.bf16.gmra.mxu0 %v3383
  %v5841 = vpop.f32.mrf.mxu0
  %v5842 = vadd.f32 %v5813, %v5841
  %v5843 = vpop.f32.mrf.mxu0
  %v5844 = vadd.f32 %v5815, %v5843
  %5845 = vmatmul.bf16.gmra.mxu0 %v3393
  %v5846 = vpop.f32.mrf.mxu0
  %v5847 = vadd.f32 %v5818, %v5846
  %v5848 = vpop.f32.mrf.mxu0
  %v5849 = vadd.f32 %v5820, %v5848
  %5850 = vmatmul.bf16.gmra.mxu0 %v3403
  %v5851 = vpop.f32.mrf.mxu0
  %v5852 = vadd.f32 %v5823, %v5851
  %v5853 = vpop.f32.mrf.mxu0
  %v5854 = vadd.f32 %v5825, %v5853
  %5855 = vmatmul.bf16.gmra.mxu0 %v3413
  %v5856 = vpop.f32.mrf.mxu0
  %v5857 = vadd.f32 %v5828, %v5856
  %v5858 = vpop.f32.mrf.mxu0
  %v5859 = vadd.f32 %v5830, %v5858
  %5860 = vdwg.mxu0
  %5861 = vmatpush.bf16.msra.mxu0 %v5529
  %5862 = vmatpush.bf16.msra.mxu0 %v5527
  %5863 = vmatpush.bf16.msra.mxu0 %v5525
  %5864 = vmatpush.bf16.msra.mxu0 %v5523
  %5865 = vmatpush.bf16.msra.mxu0 %v5521
  %5866 = vmatpush.bf16.msra.mxu0 %v5519
  %5867 = vmatpush.bf16.msra.mxu0 %v5517
  %5868 = vmatpush.bf16.msra.mxu0 %v5515
  %5869 = vmatmul.bf16.gmra.mxu0 %v3384
  %v5870 = vpop.f32.mrf.mxu0
  %v5871 = vadd.f32 %v5842, %v5870
  %v5872 = vpop.f32.mrf.mxu0
  %v5873 = vadd.f32 %v5844, %v5872
  %5874 = vmatmul.bf16.gmra.mxu0 %v3394
  %v5875 = vpop.f32.mrf.mxu0
  %v5876 = vadd.f32 %v5847, %v5875
  %v5877 = vpop.f32.mrf.mxu0
  %v5878 = vadd.f32 %v5849, %v5877
  %5879 = vmatmul.bf16.gmra.mxu0 %v3404
  %v5880 = vpop.f32.mrf.mxu0
  %v5881 = vadd.f32 %v5852, %v5880
  %v5882 = vpop.f32.mrf.mxu0
  %v5883 = vadd.f32 %v5854, %v5882
  %5884 = vmatmul.bf16.gmra.mxu0 %v3414
  %v5885 = vpop.f32.mrf.mxu0
  %v5886 = vadd.f32 %v5857, %v5885
  %v5887 = vpop.f32.mrf.mxu0
  %v5888 = vadd.f32 %v5859, %v5887
  %5889 = vdwg.mxu0
  %5890 = vmatpush.bf16.msra.mxu0 %v5545
  %5891 = vmatpush.bf16.msra.mxu0 %v5543
  %5892 = vmatpush.bf16.msra.mxu0 %v5541
  %5893 = vmatpush.bf16.msra.mxu0 %v5539
  %5894 = vmatpush.bf16.msra.mxu0 %v5537
  %5895 = vmatpush.bf16.msra.mxu0 %v5535
  %5896 = vmatpush.bf16.msra.mxu0 %v5533
  %5897 = vmatpush.bf16.msra.mxu0 %v5531
  %5898 = vmatmul.bf16.gmra.mxu0 %v3385
  %v5899 = vpop.f32.mrf.mxu0
  %v5900 = vadd.f32 %v5871, %v5899
  %v5901 = vpop.f32.mrf.mxu0
  %v5902 = vadd.f32 %v5873, %v5901
  %5903 = vmatmul.bf16.gmra.mxu0 %v3395
  %v5904 = vpop.f32.mrf.mxu0
  %v5905 = vadd.f32 %v5876, %v5904
  %v5906 = vpop.f32.mrf.mxu0
  %v5907 = vadd.f32 %v5878, %v5906
  %5908 = vmatmul.bf16.gmra.mxu0 %v3405
  %v5909 = vpop.f32.mrf.mxu0
  %v5910 = vadd.f32 %v5881, %v5909
  %v5911 = vpop.f32.mrf.mxu0
  %v5912 = vadd.f32 %v5883, %v5911
  %5913 = vmatmul.bf16.gmra.mxu0 %v3415
  %v5914 = vpop.f32.mrf.mxu0
  %v5915 = vadd.f32 %v5886, %v5914
  %v5916 = vpop.f32.mrf.mxu0
  %v5917 = vadd.f32 %v5888, %v5916
  %5918 = vdwg.mxu0
  %5919 = vmatpush.bf16.msra.mxu0 %v5561
  %5920 = vmatpush.bf16.msra.mxu0 %v5559
  %5921 = vmatpush.bf16.msra.mxu0 %v5557
  %5922 = vmatpush.bf16.msra.mxu0 %v5555
  %5923 = vmatpush.bf16.msra.mxu0 %v5553
  %5924 = vmatpush.bf16.msra.mxu0 %v5551
  %5925 = vmatpush.bf16.msra.mxu0 %v5549
  %5926 = vmatpush.bf16.msra.mxu0 %v5547
  %5927 = vmatmul.bf16.gmra.mxu0 %v3386
  %v5928 = vpop.f32.mrf.mxu0
  %v5929 = vadd.f32 %v5900, %v5928
  %v5930 = vpop.f32.mrf.mxu0
  %v5931 = vadd.f32 %v5902, %v5930
  %5932 = vmatmul.bf16.gmra.mxu0 %v3396
  %v5933 = vpop.f32.mrf.mxu0
  %v5934 = vadd.f32 %v5905, %v5933
  %v5935 = vpop.f32.mrf.mxu0
  %v5936 = vadd.f32 %v5907, %v5935
  %5937 = vmatmul.bf16.gmra.mxu0 %v3406
  %v5938 = vpop.f32.mrf.mxu0
  %v5939 = vadd.f32 %v5910, %v5938
  %v5940 = vpop.f32.mrf.mxu0
  %v5941 = vadd.f32 %v5912, %v5940
  %5942 = vmatmul.bf16.gmra.mxu0 %v3416
  %v5943 = vpop.f32.mrf.mxu0
  %v5944 = vadd.f32 %v5915, %v5943
  %v5945 = vpop.f32.mrf.mxu0
  %v5946 = vadd.f32 %v5917, %v5945
  %5947 = vdwg.mxu0
  %5948 = vmatpush.bf16.msra.mxu0 %v5577
  %5949 = vmatpush.bf16.msra.mxu0 %v5575
  %5950 = vmatpush.bf16.msra.mxu0 %v5573
  %5951 = vmatpush.bf16.msra.mxu0 %v5571
  %5952 = vmatpush.bf16.msra.mxu0 %v5569
  %5953 = vmatpush.bf16.msra.mxu0 %v5567
  %5954 = vmatpush.bf16.msra.mxu0 %v5565
  %5955 = vmatpush.bf16.msra.mxu0 %v5563
  %5956 = vmatmul.bf16.gmra.mxu0 %v3387
  %v5957 = vpop.f32.mrf.mxu0
  %v5958 = vadd.f32 %v5929, %v5957
  %v5959 = vpop.f32.mrf.mxu0
  %v5960 = vadd.f32 %v5931, %v5959
  %5961 = vmatmul.bf16.gmra.mxu0 %v3397
  %v5962 = vpop.f32.mrf.mxu0
  %v5963 = vadd.f32 %v5934, %v5962
  %v5964 = vpop.f32.mrf.mxu0
  %v5965 = vadd.f32 %v5936, %v5964
  %5966 = vmatmul.bf16.gmra.mxu0 %v3407
  %v5967 = vpop.f32.mrf.mxu0
  %v5968 = vadd.f32 %v5939, %v5967
  %v5969 = vpop.f32.mrf.mxu0
  %v5970 = vadd.f32 %v5941, %v5969
  %5971 = vmatmul.bf16.gmra.mxu0 %v3417
  %v5972 = vpop.f32.mrf.mxu0
  %v5973 = vadd.f32 %v5944, %v5972
  %v5974 = vpop.f32.mrf.mxu0
  %v5975 = vadd.f32 %v5946, %v5974
  %5976 = vdwg.mxu0
  %5977 = vmatpush.bf16.msra.mxu0 %v5593
  %5978 = vmatpush.bf16.msra.mxu0 %v5591
  %5979 = vmatpush.bf16.msra.mxu0 %v5589
  %5980 = vmatpush.bf16.msra.mxu0 %v5587
  %5981 = vmatpush.bf16.msra.mxu0 %v5585
  %5982 = vmatpush.bf16.msra.mxu0 %v5583
  %5983 = vmatpush.bf16.msra.mxu0 %v5581
  %5984 = vmatpush.bf16.msra.mxu0 %v5579
  %5985 = vmatmul.bf16.gmra.mxu0 %v3388
  %v5986 = vpop.f32.mrf.mxu0
  %v5987 = vadd.f32 %v5958, %v5986
  %v5988 = vpop.f32.mrf.mxu0
  %v5989 = vadd.f32 %v5960, %v5988
  %5990 = vmatmul.bf16.gmra.mxu0 %v3398
  %v5991 = vpop.f32.mrf.mxu0
  %v5992 = vadd.f32 %v5963, %v5991
  %v5993 = vpop.f32.mrf.mxu0
  %v5994 = vadd.f32 %v5965, %v5993
  %5995 = vmatmul.bf16.gmra.mxu0 %v3408
  %v5996 = vpop.f32.mrf.mxu0
  %v5997 = vadd.f32 %v5968, %v5996
  %v5998 = vpop.f32.mrf.mxu0
  %v5999 = vadd.f32 %v5970, %v5998
  %6000 = vmatmul.bf16.gmra.mxu0 %v3418
  %v6001 = vpop.f32.mrf.mxu0
  %v6002 = vadd.f32 %v5973, %v6001
  %v6003 = vpop.f32.mrf.mxu0
  %v6004 = vadd.f32 %v5975, %v6003
  %6005 = vdwg.mxu0
  %6006 = vmatpush.bf16.msra.mxu0 %v5609
  %6007 = vmatpush.bf16.msra.mxu0 %v5607
  %6008 = vmatpush.bf16.msra.mxu0 %v5605
  %6009 = vmatpush.bf16.msra.mxu0 %v5603
  %6010 = vmatpush.bf16.msra.mxu0 %v5601
  %6011 = vmatpush.bf16.msra.mxu0 %v5599
  %6012 = vmatpush.bf16.msra.mxu0 %v5597
  %6013 = vmatpush.bf16.msra.mxu0 %v5595
  %6014 = vmatmul.bf16.gmra.mxu0 %v3389
  %v6015 = vpop.f32.mrf.mxu0
  %v6016 = vadd.f32 %v5987, %v6015
  %v6017 = vpop.f32.mrf.mxu0
  %v6018 = vadd.f32 %v5989, %v6017
  %6019 = vmatmul.bf16.gmra.mxu0 %v3399
  %v6020 = vpop.f32.mrf.mxu0
  %v6021 = vadd.f32 %v5992, %v6020
  %v6022 = vpop.f32.mrf.mxu0
  %v6023 = vadd.f32 %v5994, %v6022
  %6024 = vmatmul.bf16.gmra.mxu0 %v3409
  %v6025 = vpop.f32.mrf.mxu0
  %v6026 = vadd.f32 %v5997, %v6025
  %v6027 = vpop.f32.mrf.mxu0
  %v6028 = vadd.f32 %v5999, %v6027
  %6029 = vmatmul.bf16.gmra.mxu0 %v3419
  %v6030 = vpop.f32.mrf.mxu0
  %v6031 = vadd.f32 %v6002, %v6030
  %v6032 = vpop.f32.mrf.mxu0
  %v6033 = vadd.f32 %v6004, %v6032
  %6034 = vdwg.mxu0
  %6035 = vmatpush.bf16.msra.mxu0 %v5625
  %6036 = vmatpush.bf16.msra.mxu0 %v5623
  %6037 = vmatpush.bf16.msra.mxu0 %v5621
  %6038 = vmatpush.bf16.msra.mxu0 %v5619
  %6039 = vmatpush.bf16.msra.mxu0 %v5617
  %6040 = vmatpush.bf16.msra.mxu0 %v5615
  %6041 = vmatpush.bf16.msra.mxu0 %v5613
  %6042 = vmatpush.bf16.msra.mxu0 %v5611
  %6043 = vmatmul.bf16.gmra.mxu0 %v3390
  %v6044 = vpop.f32.mrf.mxu0
  %v6045 = vadd.f32 %v6016, %v6044
  %v6046 = vpop.f32.mrf.mxu0
  %v6047 = vadd.f32 %v6018, %v6046
  %6048 = vmatmul.bf16.gmra.mxu0 %v3400
  %v6049 = vpop.f32.mrf.mxu0
  %v6050 = vadd.f32 %v6021, %v6049
  %v6051 = vpop.f32.mrf.mxu0
  %v6052 = vadd.f32 %v6023, %v6051
  %6053 = vmatmul.bf16.gmra.mxu0 %v3410
  %v6054 = vpop.f32.mrf.mxu0
  %v6055 = vadd.f32 %v6026, %v6054
  %v6056 = vpop.f32.mrf.mxu0
  %v6057 = vadd.f32 %v6028, %v6056
  %6058 = vmatmul.bf16.gmra.mxu0 %v3420
  %v6059 = vpop.f32.mrf.mxu0
  %v6060 = vadd.f32 %v6031, %v6059
  %v6061 = vpop.f32.mrf.mxu0
  %v6062 = vadd.f32 %v6033, %v6061
  %6063 = vdwg.mxu0
  %6064 = vmatpush.bf16.msra.mxu0 %v5641
  %6065 = vmatpush.bf16.msra.mxu0 %v5639
  %6066 = vmatpush.bf16.msra.mxu0 %v5637
  %6067 = vmatpush.bf16.msra.mxu0 %v5635
  %6068 = vmatpush.bf16.msra.mxu0 %v5633
  %6069 = vmatpush.bf16.msra.mxu0 %v5631
  %6070 = vmatpush.bf16.msra.mxu0 %v5629
  %6071 = vmatpush.bf16.msra.mxu0 %v5627
  %6072 = vmatmul.bf16.gmra.mxu0 %v3391
  %v6073 = vpop.f32.mrf.mxu0
  %v6074 = vadd.f32 %v6045, %v6073
  %v6075 = vpop.f32.mrf.mxu0
  %v6076 = vadd.f32 %v6047, %v6075
  %6077 = vmatmul.bf16.gmra.mxu0 %v3401
  %v6078 = vpop.f32.mrf.mxu0
  %v6079 = vadd.f32 %v6050, %v6078
  %v6080 = vpop.f32.mrf.mxu0
  %v6081 = vadd.f32 %v6052, %v6080
  %6082 = vmatmul.bf16.gmra.mxu0 %v3411
  %v6083 = vpop.f32.mrf.mxu0
  %v6084 = vadd.f32 %v6055, %v6083
  %v6085 = vpop.f32.mrf.mxu0
  %v6086 = vadd.f32 %v6057, %v6085
  %6087 = vmatmul.bf16.gmra.mxu0 %v3421
  %v6088 = vpop.f32.mrf.mxu0
  %v6089 = vadd.f32 %v6060, %v6088
  %v6090 = vpop.f32.mrf.mxu0
  %v6091 = vadd.f32 %v6062, %v6090
  %6092 = vdwg.mxu0
  %6093 = vmatpush.bf16.msra.mxu0 %v5498
  %6094 = vmatpush.bf16.msra.mxu0 %v5496
  %6095 = vmatpush.bf16.msra.mxu0 %v5494
  %6096 = vmatpush.bf16.msra.mxu0 %v5492
  %6097 = vmatpush.bf16.msra.mxu0 %v5490
  %6098 = vmatpush.bf16.msra.mxu0 %v5488
  %6099 = vmatpush.bf16.msra.mxu0 %v5486
  %6100 = vmatpush.bf16.msra.mxu0 %v5484
  %6101 = vmatmul.bf16.gmra.mxu0 %v3382
  %v6102 = vpop.f32.mrf.mxu0
  %v6103 = vadd.f32 0.0, %v6102
  %v6104 = vpop.f32.mrf.mxu0
  %v6105 = vadd.f32 0.0, %v6104
  %6106 = vmatmul.bf16.gmra.mxu0 %v3392
  %v6107 = vpop.f32.mrf.mxu0
  %v6108 = vadd.f32 0.0, %v6107
  %v6109 = vpop.f32.mrf.mxu0
  %v6110 = vadd.f32 0.0, %v6109
  %6111 = vmatmul.bf16.gmra.mxu0 %v3402
  %v6112 = vpop.f32.mrf.mxu0
  %v6113 = vadd.f32 0.0, %v6112
  %v6114 = vpop.f32.mrf.mxu0
  %v6115 = vadd.f32 0.0, %v6114
  %6116 = vmatmul.bf16.gmra.mxu0 %v3412
  %v6117 = vpop.f32.mrf.mxu0
  %v6118 = vadd.f32 0.0, %v6117
  %v6119 = vpop.f32.mrf.mxu0
  %v6120 = vadd.f32 0.0, %v6119
  %6121 = vdwg.mxu0
  %6122 = vmatpush.bf16.msra.mxu0 %v5514
  %6123 = vmatpush.bf16.msra.mxu0 %v5512
  %6124 = vmatpush.bf16.msra.mxu0 %v5510
  %6125 = vmatpush.bf16.msra.mxu0 %v5508
  %6126 = vmatpush.bf16.msra.mxu0 %v5506
  %6127 = vmatpush.bf16.msra.mxu0 %v5504
  %6128 = vmatpush.bf16.msra.mxu0 %v5502
  %6129 = vmatpush.bf16.msra.mxu0 %v5500
  %6130 = vmatmul.bf16.gmra.mxu0 %v3383
  %v6131 = vpop.f32.mrf.mxu0
  %v6132 = vadd.f32 %v6103, %v6131
  %v6133 = vpop.f32.mrf.mxu0
  %v6134 = vadd.f32 %v6105, %v6133
  %6135 = vmatmul.bf16.gmra.mxu0 %v3393
  %v6136 = vpop.f32.mrf.mxu0
  %v6137 = vadd.f32 %v6108, %v6136
  %v6138 = vpop.f32.mrf.mxu0
  %v6139 = vadd.f32 %v6110, %v6138
  %6140 = vmatmul.bf16.gmra.mxu0 %v3403
  %v6141 = vpop.f32.mrf.mxu0
  %v6142 = vadd.f32 %v6113, %v6141
  %v6143 = vpop.f32.mrf.mxu0
  %v6144 = vadd.f32 %v6115, %v6143
  %6145 = vmatmul.bf16.gmra.mxu0 %v3413
  %v6146 = vpop.f32.mrf.mxu0
  %v6147 = vadd.f32 %v6118, %v6146
  %v6148 = vpop.f32.mrf.mxu0
  %v6149 = vadd.f32 %v6120, %v6148
  %6150 = vdwg.mxu0
  %6151 = vmatpush.bf16.msra.mxu0 %v5530
  %6152 = vmatpush.bf16.msra.mxu0 %v5528
  %6153 = vmatpush.bf16.msra.mxu0 %v5526
  %6154 = vmatpush.bf16.msra.mxu0 %v5524
  %6155 = vmatpush.bf16.msra.mxu0 %v5522
  %6156 = vmatpush.bf16.msra.mxu0 %v5520
  %6157 = vmatpush.bf16.msra.mxu0 %v5518
  %6158 = vmatpush.bf16.msra.mxu0 %v5516
  %6159 = vmatmul.bf16.gmra.mxu0 %v3384
  %v6160 = vpop.f32.mrf.mxu0
  %v6161 = vadd.f32 %v6132, %v6160
  %v6162 = vpop.f32.mrf.mxu0
  %v6163 = vadd.f32 %v6134, %v6162
  %6164 = vmatmul.bf16.gmra.mxu0 %v3394
  %v6165 = vpop.f32.mrf.mxu0
  %v6166 = vadd.f32 %v6137, %v6165
  %v6167 = vpop.f32.mrf.mxu0
  %v6168 = vadd.f32 %v6139, %v6167
  %6169 = vmatmul.bf16.gmra.mxu0 %v3404
  %v6170 = vpop.f32.mrf.mxu0
  %v6171 = vadd.f32 %v6142, %v6170
  %v6172 = vpop.f32.mrf.mxu0
  %v6173 = vadd.f32 %v6144, %v6172
  %6174 = vmatmul.bf16.gmra.mxu0 %v3414
  %v6175 = vpop.f32.mrf.mxu0
  %v6176 = vadd.f32 %v6147, %v6175
  %v6177 = vpop.f32.mrf.mxu0
  %v6178 = vadd.f32 %v6149, %v6177
  %6179 = vdwg.mxu0
  %6180 = vmatpush.bf16.msra.mxu0 %v5546
  %6181 = vmatpush.bf16.msra.mxu0 %v5544
  %6182 = vmatpush.bf16.msra.mxu0 %v5542
  %6183 = vmatpush.bf16.msra.mxu0 %v5540
  %6184 = vmatpush.bf16.msra.mxu0 %v5538
  %6185 = vmatpush.bf16.msra.mxu0 %v5536
  %6186 = vmatpush.bf16.msra.mxu0 %v5534
  %6187 = vmatpush.bf16.msra.mxu0 %v5532
  %6188 = vmatmul.bf16.gmra.mxu0 %v3385
  %v6189 = vpop.f32.mrf.mxu0
  %v6190 = vadd.f32 %v6161, %v6189
  %v6191 = vpop.f32.mrf.mxu0
  %v6192 = vadd.f32 %v6163, %v6191
  %6193 = vmatmul.bf16.gmra.mxu0 %v3395
  %v6194 = vpop.f32.mrf.mxu0
  %v6195 = vadd.f32 %v6166, %v6194
  %v6196 = vpop.f32.mrf.mxu0
  %v6197 = vadd.f32 %v6168, %v6196
  %6198 = vmatmul.bf16.gmra.mxu0 %v3405
  %v6199 = vpop.f32.mrf.mxu0
  %v6200 = vadd.f32 %v6171, %v6199
  %v6201 = vpop.f32.mrf.mxu0
  %v6202 = vadd.f32 %v6173, %v6201
  %6203 = vmatmul.bf16.gmra.mxu0 %v3415
  %v6204 = vpop.f32.mrf.mxu0
  %v6205 = vadd.f32 %v6176, %v6204
  %v6206 = vpop.f32.mrf.mxu0
  %v6207 = vadd.f32 %v6178, %v6206
  %6208 = vdwg.mxu0
  %6209 = vmatpush.bf16.msra.mxu0 %v5562
  %6210 = vmatpush.bf16.msra.mxu0 %v5560
  %6211 = vmatpush.bf16.msra.mxu0 %v5558
  %6212 = vmatpush.bf16.msra.mxu0 %v5556
  %6213 = vmatpush.bf16.msra.mxu0 %v5554
  %6214 = vmatpush.bf16.msra.mxu0 %v5552
  %6215 = vmatpush.bf16.msra.mxu0 %v5550
  %6216 = vmatpush.bf16.msra.mxu0 %v5548
  %6217 = vmatmul.bf16.gmra.mxu0 %v3386
  %v6218 = vpop.f32.mrf.mxu0
  %v6219 = vadd.f32 %v6190, %v6218
  %v6220 = vpop.f32.mrf.mxu0
  %v6221 = vadd.f32 %v6192, %v6220
  %6222 = vmatmul.bf16.gmra.mxu0 %v3396
  %v6223 = vpop.f32.mrf.mxu0
  %v6224 = vadd.f32 %v6195, %v6223
  %v6225 = vpop.f32.mrf.mxu0
  %v6226 = vadd.f32 %v6197, %v6225
  %6227 = vmatmul.bf16.gmra.mxu0 %v3406
  %v6228 = vpop.f32.mrf.mxu0
  %v6229 = vadd.f32 %v6200, %v6228
  %v6230 = vpop.f32.mrf.mxu0
  %v6231 = vadd.f32 %v6202, %v6230
  %6232 = vmatmul.bf16.gmra.mxu0 %v3416
  %v6233 = vpop.f32.mrf.mxu0
  %v6234 = vadd.f32 %v6205, %v6233
  %v6235 = vpop.f32.mrf.mxu0
  %v6236 = vadd.f32 %v6207, %v6235
  %6237 = vdwg.mxu0
  %6238 = vmatpush.bf16.msra.mxu0 %v5578
  %6239 = vmatpush.bf16.msra.mxu0 %v5576
  %6240 = vmatpush.bf16.msra.mxu0 %v5574
  %6241 = vmatpush.bf16.msra.mxu0 %v5572
  %6242 = vmatpush.bf16.msra.mxu0 %v5570
  %6243 = vmatpush.bf16.msra.mxu0 %v5568
  %6244 = vmatpush.bf16.msra.mxu0 %v5566
  %6245 = vmatpush.bf16.msra.mxu0 %v5564
  %6246 = vmatmul.bf16.gmra.mxu0 %v3387
  %v6247 = vpop.f32.mrf.mxu0
  %v6248 = vadd.f32 %v6219, %v6247
  %v6249 = vpop.f32.mrf.mxu0
  %v6250 = vadd.f32 %v6221, %v6249
  %6251 = vmatmul.bf16.gmra.mxu0 %v3397
  %v6252 = vpop.f32.mrf.mxu0
  %v6253 = vadd.f32 %v6224, %v6252
  %v6254 = vpop.f32.mrf.mxu0
  %v6255 = vadd.f32 %v6226, %v6254
  %6256 = vmatmul.bf16.gmra.mxu0 %v3407
  %v6257 = vpop.f32.mrf.mxu0
  %v6258 = vadd.f32 %v6229, %v6257
  %v6259 = vpop.f32.mrf.mxu0
  %v6260 = vadd.f32 %v6231, %v6259
  %6261 = vmatmul.bf16.gmra.mxu0 %v3417
  %v6262 = vpop.f32.mrf.mxu0
  %v6263 = vadd.f32 %v6234, %v6262
  %v6264 = vpop.f32.mrf.mxu0
  %v6265 = vadd.f32 %v6236, %v6264
  %6266 = vdwg.mxu0
  %6267 = vmatpush.bf16.msra.mxu0 %v5594
  %6268 = vmatpush.bf16.msra.mxu0 %v5592
  %6269 = vmatpush.bf16.msra.mxu0 %v5590
  %6270 = vmatpush.bf16.msra.mxu0 %v5588
  %6271 = vmatpush.bf16.msra.mxu0 %v5586
  %6272 = vmatpush.bf16.msra.mxu0 %v5584
  %6273 = vmatpush.bf16.msra.mxu0 %v5582
  %6274 = vmatpush.bf16.msra.mxu0 %v5580
  %6275 = vmatmul.bf16.gmra.mxu0 %v3388
  %v6276 = vpop.f32.mrf.mxu0
  %v6277 = vadd.f32 %v6248, %v6276
  %v6278 = vpop.f32.mrf.mxu0
  %v6279 = vadd.f32 %v6250, %v6278
  %6280 = vmatmul.bf16.gmra.mxu0 %v3398
  %v6281 = vpop.f32.mrf.mxu0
  %v6282 = vadd.f32 %v6253, %v6281
  %v6283 = vpop.f32.mrf.mxu0
  %v6284 = vadd.f32 %v6255, %v6283
  %6285 = vmatmul.bf16.gmra.mxu0 %v3408
  %v6286 = vpop.f32.mrf.mxu0
  %v6287 = vadd.f32 %v6258, %v6286
  %v6288 = vpop.f32.mrf.mxu0
  %v6289 = vadd.f32 %v6260, %v6288
  %6290 = vmatmul.bf16.gmra.mxu0 %v3418
  %v6291 = vpop.f32.mrf.mxu0
  %v6292 = vadd.f32 %v6263, %v6291
  %v6293 = vpop.f32.mrf.mxu0
  %v6294 = vadd.f32 %v6265, %v6293
  %6295 = vdwg.mxu0
  %6296 = vmatpush.bf16.msra.mxu0 %v5610
  %6297 = vmatpush.bf16.msra.mxu0 %v5608
  %6298 = vmatpush.bf16.msra.mxu0 %v5606
  %6299 = vmatpush.bf16.msra.mxu0 %v5604
  %6300 = vmatpush.bf16.msra.mxu0 %v5602
  %6301 = vmatpush.bf16.msra.mxu0 %v5600
  %6302 = vmatpush.bf16.msra.mxu0 %v5598
  %6303 = vmatpush.bf16.msra.mxu0 %v5596
  %6304 = vmatmul.bf16.gmra.mxu0 %v3389
  %v6305 = vpop.f32.mrf.mxu0
  %v6306 = vadd.f32 %v6277, %v6305
  %v6307 = vpop.f32.mrf.mxu0
  %v6308 = vadd.f32 %v6279, %v6307
  %6309 = vmatmul.bf16.gmra.mxu0 %v3399
  %v6310 = vpop.f32.mrf.mxu0
  %v6311 = vadd.f32 %v6282, %v6310
  %v6312 = vpop.f32.mrf.mxu0
  %v6313 = vadd.f32 %v6284, %v6312
  %6314 = vmatmul.bf16.gmra.mxu0 %v3409
  %v6315 = vpop.f32.mrf.mxu0
  %v6316 = vadd.f32 %v6287, %v6315
  %v6317 = vpop.f32.mrf.mxu0
  %v6318 = vadd.f32 %v6289, %v6317
  %6319 = vmatmul.bf16.gmra.mxu0 %v3419
  %v6320 = vpop.f32.mrf.mxu0
  %v6321 = vadd.f32 %v6292, %v6320
  %v6322 = vpop.f32.mrf.mxu0
  %v6323 = vadd.f32 %v6294, %v6322
  %6324 = vdwg.mxu0
  %6325 = vmatpush.bf16.msra.mxu0 %v5626
  %6326 = vmatpush.bf16.msra.mxu0 %v5624
  %6327 = vmatpush.bf16.msra.mxu0 %v5622
  %6328 = vmatpush.bf16.msra.mxu0 %v5620
  %6329 = vmatpush.bf16.msra.mxu0 %v5618
  %6330 = vmatpush.bf16.msra.mxu0 %v5616
  %6331 = vmatpush.bf16.msra.mxu0 %v5614
  %6332 = vmatpush.bf16.msra.mxu0 %v5612
  %6333 = vmatmul.bf16.gmra.mxu0 %v3390
  %v6334 = vpop.f32.mrf.mxu0
  %v6335 = vadd.f32 %v6306, %v6334
  %v6336 = vpop.f32.mrf.mxu0
  %v6337 = vadd.f32 %v6308, %v6336
  %6338 = vmatmul.bf16.gmra.mxu0 %v3400
  %v6339 = vpop.f32.mrf.mxu0
  %v6340 = vadd.f32 %v6311, %v6339
  %v6341 = vpop.f32.mrf.mxu0
  %v6342 = vadd.f32 %v6313, %v6341
  %6343 = vmatmul.bf16.gmra.mxu0 %v3410
  %v6344 = vpop.f32.mrf.mxu0
  %v6345 = vadd.f32 %v6316, %v6344
  %v6346 = vpop.f32.mrf.mxu0
  %v6347 = vadd.f32 %v6318, %v6346
  %6348 = vmatmul.bf16.gmra.mxu0 %v3420
  %v6349 = vpop.f32.mrf.mxu0
  %v6350 = vadd.f32 %v6321, %v6349
  %v6351 = vpop.f32.mrf.mxu0
  %v6352 = vadd.f32 %v6323, %v6351
  %6353 = vdwg.mxu0
  %6354 = vmatpush.bf16.msra.mxu0 %v5642
  %6355 = vmatpush.bf16.msra.mxu0 %v5640
  %6356 = vmatpush.bf16.msra.mxu0 %v5638
  %6357 = vmatpush.bf16.msra.mxu0 %v5636
  %6358 = vmatpush.bf16.msra.mxu0 %v5634
  %6359 = vmatpush.bf16.msra.mxu0 %v5632
  %6360 = vmatpush.bf16.msra.mxu0 %v5630
  %6361 = vmatpush.bf16.msra.mxu0 %v5628
  %6362 = vmatmul.bf16.gmra.mxu0 %v3391
  %v6363 = vpop.f32.mrf.mxu0
  %v6364 = vadd.f32 %v6335, %v6363
  %v6365 = vpop.f32.mrf.mxu0
  %v6366 = vadd.f32 %v6337, %v6365
  %6367 = vmatmul.bf16.gmra.mxu0 %v3401
  %v6368 = vpop.f32.mrf.mxu0
  %v6369 = vadd.f32 %v6340, %v6368
  %v6370 = vpop.f32.mrf.mxu0
  %v6371 = vadd.f32 %v6342, %v6370
  %6372 = vmatmul.bf16.gmra.mxu0 %v3411
  %v6373 = vpop.f32.mrf.mxu0
  %v6374 = vadd.f32 %v6345, %v6373
  %v6375 = vpop.f32.mrf.mxu0
  %v6376 = vadd.f32 %v6347, %v6375
  %6377 = vmatmul.bf16.gmra.mxu0 %v3421
  %v6378 = vpop.f32.mrf.mxu0
  %v6379 = vadd.f32 %v6350, %v6378
  %v6380 = vpop.f32.mrf.mxu0
  %v6381 = vadd.f32 %v6352, %v6380
  %6382 = vdwg.mxu0
  %v6383 = vmax.f32 %v4533, %v6074
  %v6384 = vmax.f32 %v4823, %v6364
  %v6385 = vmax.f32 %v4535, %v6076
  %v6386 = vmax.f32 %v4825, %v6366
  %v6387 = vmax.f32 %v4538, %v6079
  %v6388 = vmax.f32 %v4828, %v6369
  %v6389 = vmax.f32 %v4540, %v6081
  %v6390 = vmax.f32 %v4830, %v6371
  %v6391 = vmax.f32 %v4543, %v6084
  %v6392 = vmax.f32 %v4833, %v6374
  %v6393 = vmax.f32 %v4545, %v6086
  %v6394 = vmax.f32 %v4835, %v6376
  %v6395 = vmax.f32 %v4548, %v6089
  %v6396 = vmax.f32 %v4838, %v6379
  %v6397 = vmax.f32 %v4550, %v6091
  %v6398 = vmax.f32 %v4840, %v6381
  %v6399 = vld [vmem:[%s3021] sm:$0xff]
  %v6400 = vld [vmem:[%s3021 + $0x8] sm:$0xff]
  %v6401 = vld [vmem:[%s3021 + $0x10] sm:$0xff]
  %v6402 = vld [vmem:[%s3021 + $0x18] sm:$0xff]
  %v6403 = vld [vmem:[%s3021 + $0x20] sm:$0xff]
  %v6404 = vld [vmem:[%s3021 + $0x28] sm:$0xff]
  %v6405 = vld [vmem:[%s3021 + $0x30] sm:$0xff]
  %v6406 = vld [vmem:[%s3021 + $0x38] sm:$0xff]
  %v6407 = vld [vmem:[%s3021 + $0x40] sm:$0xff]
  %v6408 = vld [vmem:[%s3021 + $0x48] sm:$0xff]
  %v6409 = vld [vmem:[%s3021 + $0x50] sm:$0xff]
  %v6410 = vld [vmem:[%s3021 + $0x58] sm:$0xff]
  %v6411 = vld [vmem:[%s3021 + $0x60] sm:$0xff]
  %v6412 = vld [vmem:[%s3021 + $0x68] sm:$0xff]
  %v6413 = vld [vmem:[%s3021 + $0x70] sm:$0xff]
  %v6414 = vld [vmem:[%s3021 + $0x78] sm:$0xff]
  %v6415 = vld [vmem:[%s3021 + $0x80] sm:$0xff]
  %v6416 = vld [vmem:[%s3021 + $0x88] sm:$0xff]
  %v6417 = vld [vmem:[%s3021 + $0x90] sm:$0xff]
  %v6418 = vld [vmem:[%s3021 + $0x98] sm:$0xff]
  %v6419 = vld [vmem:[%s3021 + $0xa0] sm:$0xff]
  %v6420 = vld [vmem:[%s3021 + $0xa8] sm:$0xff]
  %v6421 = vld [vmem:[%s3021 + $0xb0] sm:$0xff]
  %v6422 = vld [vmem:[%s3021 + $0xb8] sm:$0xff]
  %v6423 = vld [vmem:[%s3021 + $0xc0] sm:$0xff]
  %v6424 = vld [vmem:[%s3021 + $0xc8] sm:$0xff]
  %v6425 = vld [vmem:[%s3021 + $0xd0] sm:$0xff]
  %v6426 = vld [vmem:[%s3021 + $0xd8] sm:$0xff]
  %v6427 = vld [vmem:[%s3021 + $0xe0] sm:$0xff]
  %v6428 = vld [vmem:[%s3021 + $0xe8] sm:$0xff]
  %v6429 = vld [vmem:[%s3021 + $0xf0] sm:$0xff]
  %v6430 = vld [vmem:[%s3021 + $0xf8] sm:$0xff]
  %v6431 = vld [vmem:[%s3021 + $0x100] sm:$0xff]
  %v6432 = vld [vmem:[%s3021 + $0x108] sm:$0xff]
  %v6433 = vld [vmem:[%s3021 + $0x110] sm:$0xff]
  %v6434 = vld [vmem:[%s3021 + $0x118] sm:$0xff]
  %v6435 = vld [vmem:[%s3021 + $0x120] sm:$0xff]
  %v6436 = vld [vmem:[%s3021 + $0x128] sm:$0xff]
  %v6437 = vld [vmem:[%s3021 + $0x130] sm:$0xff]
  %v6438 = vld [vmem:[%s3021 + $0x138] sm:$0xff]
  %v6479 = vunpack.c.l.b16 %v6399
  %v6480 = vunpack.c.h.b16 %v6399
  %v6481 = vunpack.c.l.b16 %v6400
  %v6482 = vunpack.c.h.b16 %v6400
  %v6483 = vunpack.c.l.b16 %v6401
  %v6484 = vunpack.c.h.b16 %v6401
  %v6485 = vunpack.c.l.b16 %v6402
  %v6486 = vunpack.c.h.b16 %v6402
  %v6487 = vunpack.c.l.b16 %v6403
  %v6488 = vunpack.c.h.b16 %v6403
  %v6489 = vunpack.c.l.b16 %v6404
  %v6490 = vunpack.c.h.b16 %v6404
  %v6491 = vunpack.c.l.b16 %v6405
  %v6492 = vunpack.c.h.b16 %v6405
  %v6493 = vunpack.c.l.b16 %v6406
  %v6494 = vunpack.c.h.b16 %v6406
  %v6495 = vunpack.c.l.b16 %v6407
  %v6496 = vunpack.c.h.b16 %v6407
  %v6497 = vunpack.c.l.b16 %v6408
  %v6498 = vunpack.c.h.b16 %v6408
  %v6499 = vunpack.c.l.b16 %v6409
  %v6500 = vunpack.c.h.b16 %v6409
  %v6501 = vunpack.c.l.b16 %v6410
  %v6502 = vunpack.c.h.b16 %v6410
  %v6503 = vunpack.c.l.b16 %v6411
  %v6504 = vunpack.c.h.b16 %v6411
  %v6505 = vunpack.c.l.b16 %v6412
  %v6506 = vunpack.c.h.b16 %v6412
  %v6507 = vunpack.c.l.b16 %v6413
  %v6508 = vunpack.c.h.b16 %v6413
  %v6509 = vunpack.c.l.b16 %v6414
  %v6510 = vunpack.c.h.b16 %v6414
  %v6511 = vunpack.c.l.b16 %v6415
  %v6512 = vunpack.c.h.b16 %v6415
  %v6513 = vunpack.c.l.b16 %v6416
  %v6514 = vunpack.c.h.b16 %v6416
  %v6515 = vunpack.c.l.b16 %v6417
  %v6516 = vunpack.c.h.b16 %v6417
  %v6517 = vunpack.c.l.b16 %v6418
  %v6518 = vunpack.c.h.b16 %v6418
  %v6519 = vunpack.c.l.b16 %v6419
  %v6520 = vunpack.c.h.b16 %v6419
  %v6521 = vunpack.c.l.b16 %v6420
  %v6522 = vunpack.c.h.b16 %v6420
  %v6523 = vunpack.c.l.b16 %v6421
  %v6524 = vunpack.c.h.b16 %v6421
  %v6525 = vunpack.c.l.b16 %v6422
  %v6526 = vunpack.c.h.b16 %v6422
  %v6527 = vunpack.c.l.b16 %v6423
  %v6528 = vunpack.c.h.b16 %v6423
  %v6529 = vunpack.c.l.b16 %v6424
  %v6530 = vunpack.c.h.b16 %v6424
  %v6531 = vunpack.c.l.b16 %v6425
  %v6532 = vunpack.c.h.b16 %v6425
  %v6533 = vunpack.c.l.b16 %v6426
  %v6534 = vunpack.c.h.b16 %v6426
  %v6535 = vunpack.c.l.b16 %v6427
  %v6536 = vunpack.c.h.b16 %v6427
  %v6537 = vunpack.c.l.b16 %v6428
  %v6538 = vunpack.c.h.b16 %v6428
  %v6539 = vunpack.c.l.b16 %v6429
  %v6540 = vunpack.c.h.b16 %v6429
  %v6541 = vunpack.c.l.b16 %v6430
  %v6542 = vunpack.c.h.b16 %v6430
  %v6543 = vunpack.c.l.b16 %v6431
  %v6544 = vunpack.c.h.b16 %v6431
  %v6545 = vunpack.c.l.b16 %v6432
  %v6546 = vunpack.c.h.b16 %v6432
  %v6547 = vunpack.c.l.b16 %v6433
  %v6548 = vunpack.c.h.b16 %v6433
  %v6549 = vunpack.c.l.b16 %v6434
  %v6550 = vunpack.c.h.b16 %v6434
  %v6551 = vunpack.c.l.b16 %v6435
  %v6552 = vunpack.c.h.b16 %v6435
  %v6553 = vunpack.c.l.b16 %v6436
  %v6554 = vunpack.c.h.b16 %v6436
  %v6555 = vunpack.c.l.b16 %v6437
  %v6556 = vunpack.c.h.b16 %v6437
  %v6557 = vunpack.c.l.b16 %v6438
  %v6558 = vunpack.c.h.b16 %v6438
  %v6559 = vpack.c.b16 %v6489, %v6479
  %v6560 = vpack.c.b16 %v6490, %v6480
  %v6561 = vpack.c.b16 %v6491, %v6481
  %v6562 = vpack.c.b16 %v6492, %v6482
  %v6563 = vpack.c.b16 %v6493, %v6483
  %v6564 = vpack.c.b16 %v6494, %v6484
  %v6565 = vpack.c.b16 %v6495, %v6485
  %v6566 = vpack.c.b16 %v6496, %v6486
  %v6567 = vpack.c.b16 %v6497, %v6487
  %v6568 = vpack.c.b16 %v6498, %v6488
  %v6569 = vpack.c.b16 %v6509, %v6499
  %v6570 = vpack.c.b16 %v6510, %v6500
  %v6571 = vpack.c.b16 %v6511, %v6501
  %v6572 = vpack.c.b16 %v6512, %v6502
  %v6573 = vpack.c.b16 %v6513, %v6503
  %v6574 = vpack.c.b16 %v6514, %v6504
  %v6575 = vpack.c.b16 %v6515, %v6505
  %v6576 = vpack.c.b16 %v6516, %v6506
  %v6577 = vpack.c.b16 %v6517, %v6507
  %v6578 = vpack.c.b16 %v6518, %v6508
  %v6579 = vpack.c.b16 %v6529, %v6519
  %v6580 = vpack.c.b16 %v6530, %v6520
  %v6581 = vpack.c.b16 %v6531, %v6521
  %v6582 = vpack.c.b16 %v6532, %v6522
  %v6583 = vpack.c.b16 %v6533, %v6523
  %v6584 = vpack.c.b16 %v6534, %v6524
  %v6585 = vpack.c.b16 %v6535, %v6525
  %v6586 = vpack.c.b16 %v6536, %v6526
  %v6587 = vpack.c.b16 %v6537, %v6527
  %v6588 = vpack.c.b16 %v6538, %v6528
  %v6589 = vpack.c.b16 %v6549, %v6539
  %v6590 = vpack.c.b16 %v6550, %v6540
  %v6591 = vpack.c.b16 %v6551, %v6541
  %v6592 = vpack.c.b16 %v6552, %v6542
  %v6593 = vpack.c.b16 %v6553, %v6543
  %v6594 = vpack.c.b16 %v6554, %v6544
  %v6595 = vpack.c.b16 %v6555, %v6545
  %v6596 = vpack.c.b16 %v6556, %v6546
  %v6597 = vpack.c.b16 %v6557, %v6547
  %v6598 = vpack.c.b16 %v6558, %v6548
  %6639 = vmatpush.bf16.msra.mxu0 %v3956
  %6640 = vmatpush.bf16.msra.mxu0 %v3954
  %6641 = vmatpush.bf16.msra.mxu0 %v3952
  %6642 = vmatpush.bf16.msra.mxu0 %v3950
  %6643 = vmatpush.bf16.msra.mxu0 %v3948
  %6644 = vmatpush.bf16.msra.mxu0 %v3946
  %6645 = vmatpush.bf16.msra.mxu0 %v3944
  %6646 = vmatpush.bf16.msra.mxu0 %v3942
  %6647 = vmatmul.bf16.gmra.mxu0 %v6559
  %v6648 = vpop.f32.mrf.mxu0
  %v6649 = vadd.f32 0.0, %v6648
  %v6650 = vpop.f32.mrf.mxu0
  %v6651 = vadd.f32 0.0, %v6650
  %6652 = vmatmul.bf16.gmra.mxu0 %v6569
  %v6653 = vpop.f32.mrf.mxu0
  %v6654 = vadd.f32 0.0, %v6653
  %v6655 = vpop.f32.mrf.mxu0
  %v6656 = vadd.f32 0.0, %v6655
  %6657 = vmatmul.bf16.gmra.mxu0 %v6579
  %v6658 = vpop.f32.mrf.mxu0
  %v6659 = vadd.f32 0.0, %v6658
  %v6660 = vpop.f32.mrf.mxu0
  %v6661 = vadd.f32 0.0, %v6660
  %6662 = vmatmul.bf16.gmra.mxu0 %v6589
  %v6663 = vpop.f32.mrf.mxu0
  %v6664 = vadd.f32 0.0, %v6663
  %v6665 = vpop.f32.mrf.mxu0
  %v6666 = vadd.f32 0.0, %v6665
  %6667 = vdwg.mxu0
  %6668 = vmatpush.bf16.msra.mxu0 %v3972
  %6669 = vmatpush.bf16.msra.mxu0 %v3970
  %6670 = vmatpush.bf16.msra.mxu0 %v3968
  %6671 = vmatpush.bf16.msra.mxu0 %v3966
  %6672 = vmatpush.bf16.msra.mxu0 %v3964
  %6673 = vmatpush.bf16.msra.mxu0 %v3962
  %6674 = vmatpush.bf16.msra.mxu0 %v3960
  %6675 = vmatpush.bf16.msra.mxu0 %v3958
  %6676 = vmatmul.bf16.gmra.mxu0 %v6560
  %v6677 = vpop.f32.mrf.mxu0
  %v6678 = vadd.f32 %v6649, %v6677
  %v6679 = vpop.f32.mrf.mxu0
  %v6680 = vadd.f32 %v6651, %v6679
  %6681 = vmatmul.bf16.gmra.mxu0 %v6570
  %v6682 = vpop.f32.mrf.mxu0
  %v6683 = vadd.f32 %v6654, %v6682
  %v6684 = vpop.f32.mrf.mxu0
  %v6685 = vadd.f32 %v6656, %v6684
  %6686 = vmatmul.bf16.gmra.mxu0 %v6580
  %v6687 = vpop.f32.mrf.mxu0
  %v6688 = vadd.f32 %v6659, %v6687
  %v6689 = vpop.f32.mrf.mxu0
  %v6690 = vadd.f32 %v6661, %v6689
  %6691 = vmatmul.bf16.gmra.mxu0 %v6590
  %v6692 = vpop.f32.mrf.mxu0
  %v6693 = vadd.f32 %v6664, %v6692
  %v6694 = vpop.f32.mrf.mxu0
  %v6695 = vadd.f32 %v6666, %v6694
  %6696 = vdwg.mxu0
  %6697 = vmatpush.bf16.msra.mxu0 %v3988
  %6698 = vmatpush.bf16.msra.mxu0 %v3986
  %6699 = vmatpush.bf16.msra.mxu0 %v3984
  %6700 = vmatpush.bf16.msra.mxu0 %v3982
  %6701 = vmatpush.bf16.msra.mxu0 %v3980
  %6702 = vmatpush.bf16.msra.mxu0 %v3978
  %6703 = vmatpush.bf16.msra.mxu0 %v3976
  %6704 = vmatpush.bf16.msra.mxu0 %v3974
  %6705 = vmatmul.bf16.gmra.mxu0 %v6561
  %v6706 = vpop.f32.mrf.mxu0
  %v6707 = vadd.f32 %v6678, %v6706
  %v6708 = vpop.f32.mrf.mxu0
  %v6709 = vadd.f32 %v6680, %v6708
  %6710 = vmatmul.bf16.gmra.mxu0 %v6571
  %v6711 = vpop.f32.mrf.mxu0
  %v6712 = vadd.f32 %v6683, %v6711
  %v6713 = vpop.f32.mrf.mxu0
  %v6714 = vadd.f32 %v6685, %v6713
  %6715 = vmatmul.bf16.gmra.mxu0 %v6581
  %v6716 = vpop.f32.mrf.mxu0
  %v6717 = vadd.f32 %v6688, %v6716
  %v6718 = vpop.f32.mrf.mxu0
  %v6719 = vadd.f32 %v6690, %v6718
  %6720 = vmatmul.bf16.gmra.mxu0 %v6591
  %v6721 = vpop.f32.mrf.mxu0
  %v6722 = vadd.f32 %v6693, %v6721
  %v6723 = vpop.f32.mrf.mxu0
  %v6724 = vadd.f32 %v6695, %v6723
  %6725 = vdwg.mxu0
  %6726 = vmatpush.bf16.msra.mxu0 %v4004
  %6727 = vmatpush.bf16.msra.mxu0 %v4002
  %6728 = vmatpush.bf16.msra.mxu0 %v4000
  %6729 = vmatpush.bf16.msra.mxu0 %v3998
  %6730 = vmatpush.bf16.msra.mxu0 %v3996
  %6731 = vmatpush.bf16.msra.mxu0 %v3994
  %6732 = vmatpush.bf16.msra.mxu0 %v3992
  %6733 = vmatpush.bf16.msra.mxu0 %v3990
  %6734 = vmatmul.bf16.gmra.mxu0 %v6562
  %v6735 = vpop.f32.mrf.mxu0
  %v6736 = vadd.f32 %v6707, %v6735
  %v6737 = vpop.f32.mrf.mxu0
  %v6738 = vadd.f32 %v6709, %v6737
  %6739 = vmatmul.bf16.gmra.mxu0 %v6572
  %v6740 = vpop.f32.mrf.mxu0
  %v6741 = vadd.f32 %v6712, %v6740
  %v6742 = vpop.f32.mrf.mxu0
  %v6743 = vadd.f32 %v6714, %v6742
  %6744 = vmatmul.bf16.gmra.mxu0 %v6582
  %v6745 = vpop.f32.mrf.mxu0
  %v6746 = vadd.f32 %v6717, %v6745
  %v6747 = vpop.f32.mrf.mxu0
  %v6748 = vadd.f32 %v6719, %v6747
  %6749 = vmatmul.bf16.gmra.mxu0 %v6592
  %v6750 = vpop.f32.mrf.mxu0
  %v6751 = vadd.f32 %v6722, %v6750
  %v6752 = vpop.f32.mrf.mxu0
  %v6753 = vadd.f32 %v6724, %v6752
  %6754 = vdwg.mxu0
  %6755 = vmatpush.bf16.msra.mxu0 %v4020
  %6756 = vmatpush.bf16.msra.mxu0 %v4018
  %6757 = vmatpush.bf16.msra.mxu0 %v4016
  %6758 = vmatpush.bf16.msra.mxu0 %v4014
  %6759 = vmatpush.bf16.msra.mxu0 %v4012
  %6760 = vmatpush.bf16.msra.mxu0 %v4010
  %6761 = vmatpush.bf16.msra.mxu0 %v4008
  %6762 = vmatpush.bf16.msra.mxu0 %v4006
  %6763 = vmatmul.bf16.gmra.mxu0 %v6563
  %v6764 = vpop.f32.mrf.mxu0
  %v6765 = vadd.f32 %v6736, %v6764
  %v6766 = vpop.f32.mrf.mxu0
  %v6767 = vadd.f32 %v6738, %v6766
  %6768 = vmatmul.bf16.gmra.mxu0 %v6573
  %v6769 = vpop.f32.mrf.mxu0
  %v6770 = vadd.f32 %v6741, %v6769
  %v6771 = vpop.f32.mrf.mxu0
  %v6772 = vadd.f32 %v6743, %v6771
  %6773 = vmatmul.bf16.gmra.mxu0 %v6583
  %v6774 = vpop.f32.mrf.mxu0
  %v6775 = vadd.f32 %v6746, %v6774
  %v6776 = vpop.f32.mrf.mxu0
  %v6777 = vadd.f32 %v6748, %v6776
  %6778 = vmatmul.bf16.gmra.mxu0 %v6593
  %v6779 = vpop.f32.mrf.mxu0
  %v6780 = vadd.f32 %v6751, %v6779
  %v6781 = vpop.f32.mrf.mxu0
  %v6782 = vadd.f32 %v6753, %v6781
  %6783 = vdwg.mxu0
  %6784 = vmatpush.bf16.msra.mxu0 %v4036
  %6785 = vmatpush.bf16.msra.mxu0 %v4034
  %6786 = vmatpush.bf16.msra.mxu0 %v4032
  %6787 = vmatpush.bf16.msra.mxu0 %v4030
  %6788 = vmatpush.bf16.msra.mxu0 %v4028
  %6789 = vmatpush.bf16.msra.mxu0 %v4026
  %6790 = vmatpush.bf16.msra.mxu0 %v4024
  %6791 = vmatpush.bf16.msra.mxu0 %v4022
  %6792 = vmatmul.bf16.gmra.mxu0 %v6564
  %v6793 = vpop.f32.mrf.mxu0
  %v6794 = vadd.f32 %v6765, %v6793
  %v6795 = vpop.f32.mrf.mxu0
  %v6796 = vadd.f32 %v6767, %v6795
  %6797 = vmatmul.bf16.gmra.mxu0 %v6574
  %v6798 = vpop.f32.mrf.mxu0
  %v6799 = vadd.f32 %v6770, %v6798
  %v6800 = vpop.f32.mrf.mxu0
  %v6801 = vadd.f32 %v6772, %v6800
  %6802 = vmatmul.bf16.gmra.mxu0 %v6584
  %v6803 = vpop.f32.mrf.mxu0
  %v6804 = vadd.f32 %v6775, %v6803
  %v6805 = vpop.f32.mrf.mxu0
  %v6806 = vadd.f32 %v6777, %v6805
  %6807 = vmatmul.bf16.gmra.mxu0 %v6594
  %v6808 = vpop.f32.mrf.mxu0
  %v6809 = vadd.f32 %v6780, %v6808
  %v6810 = vpop.f32.mrf.mxu0
  %v6811 = vadd.f32 %v6782, %v6810
  %6812 = vdwg.mxu0
  %6813 = vmatpush.bf16.msra.mxu0 %v4052
  %6814 = vmatpush.bf16.msra.mxu0 %v4050
  %6815 = vmatpush.bf16.msra.mxu0 %v4048
  %6816 = vmatpush.bf16.msra.mxu0 %v4046
  %6817 = vmatpush.bf16.msra.mxu0 %v4044
  %6818 = vmatpush.bf16.msra.mxu0 %v4042
  %6819 = vmatpush.bf16.msra.mxu0 %v4040
  %6820 = vmatpush.bf16.msra.mxu0 %v4038
  %6821 = vmatmul.bf16.gmra.mxu0 %v6565
  %v6822 = vpop.f32.mrf.mxu0
  %v6823 = vadd.f32 %v6794, %v6822
  %v6824 = vpop.f32.mrf.mxu0
  %v6825 = vadd.f32 %v6796, %v6824
  %6826 = vmatmul.bf16.gmra.mxu0 %v6575
  %v6827 = vpop.f32.mrf.mxu0
  %v6828 = vadd.f32 %v6799, %v6827
  %v6829 = vpop.f32.mrf.mxu0
  %v6830 = vadd.f32 %v6801, %v6829
  %6831 = vmatmul.bf16.gmra.mxu0 %v6585
  %v6832 = vpop.f32.mrf.mxu0
  %v6833 = vadd.f32 %v6804, %v6832
  %v6834 = vpop.f32.mrf.mxu0
  %v6835 = vadd.f32 %v6806, %v6834
  %6836 = vmatmul.bf16.gmra.mxu0 %v6595
  %v6837 = vpop.f32.mrf.mxu0
  %v6838 = vadd.f32 %v6809, %v6837
  %v6839 = vpop.f32.mrf.mxu0
  %v6840 = vadd.f32 %v6811, %v6839
  %6841 = vdwg.mxu0
  %6842 = vmatpush.bf16.msra.mxu0 %v4068
  %6843 = vmatpush.bf16.msra.mxu0 %v4066
  %6844 = vmatpush.bf16.msra.mxu0 %v4064
  %6845 = vmatpush.bf16.msra.mxu0 %v4062
  %6846 = vmatpush.bf16.msra.mxu0 %v4060
  %6847 = vmatpush.bf16.msra.mxu0 %v4058
  %6848 = vmatpush.bf16.msra.mxu0 %v4056
  %6849 = vmatpush.bf16.msra.mxu0 %v4054
  %6850 = vmatmul.bf16.gmra.mxu0 %v6566
  %v6851 = vpop.f32.mrf.mxu0
  %v6852 = vadd.f32 %v6823, %v6851
  %v6853 = vpop.f32.mrf.mxu0
  %v6854 = vadd.f32 %v6825, %v6853
  %6855 = vmatmul.bf16.gmra.mxu0 %v6576
  %v6856 = vpop.f32.mrf.mxu0
  %v6857 = vadd.f32 %v6828, %v6856
  %v6858 = vpop.f32.mrf.mxu0
  %v6859 = vadd.f32 %v6830, %v6858
  %6860 = vmatmul.bf16.gmra.mxu0 %v6586
  %v6861 = vpop.f32.mrf.mxu0
  %v6862 = vadd.f32 %v6833, %v6861
  %v6863 = vpop.f32.mrf.mxu0
  %v6864 = vadd.f32 %v6835, %v6863
  %6865 = vmatmul.bf16.gmra.mxu0 %v6596
  %v6866 = vpop.f32.mrf.mxu0
  %v6867 = vadd.f32 %v6838, %v6866
  %v6868 = vpop.f32.mrf.mxu0
  %v6869 = vadd.f32 %v6840, %v6868
  %6870 = vdwg.mxu0
  %6871 = vmatpush.bf16.msra.mxu0 %v4084
  %6872 = vmatpush.bf16.msra.mxu0 %v4082
  %6873 = vmatpush.bf16.msra.mxu0 %v4080
  %6874 = vmatpush.bf16.msra.mxu0 %v4078
  %6875 = vmatpush.bf16.msra.mxu0 %v4076
  %6876 = vmatpush.bf16.msra.mxu0 %v4074
  %6877 = vmatpush.bf16.msra.mxu0 %v4072
  %6878 = vmatpush.bf16.msra.mxu0 %v4070
  %6879 = vmatmul.bf16.gmra.mxu0 %v6567
  %v6880 = vpop.f32.mrf.mxu0
  %v6881 = vadd.f32 %v6852, %v6880
  %v6882 = vpop.f32.mrf.mxu0
  %v6883 = vadd.f32 %v6854, %v6882
  %6884 = vmatmul.bf16.gmra.mxu0 %v6577
  %v6885 = vpop.f32.mrf.mxu0
  %v6886 = vadd.f32 %v6857, %v6885
  %v6887 = vpop.f32.mrf.mxu0
  %v6888 = vadd.f32 %v6859, %v6887
  %6889 = vmatmul.bf16.gmra.mxu0 %v6587
  %v6890 = vpop.f32.mrf.mxu0
  %v6891 = vadd.f32 %v6862, %v6890
  %v6892 = vpop.f32.mrf.mxu0
  %v6893 = vadd.f32 %v6864, %v6892
  %6894 = vmatmul.bf16.gmra.mxu0 %v6597
  %v6895 = vpop.f32.mrf.mxu0
  %v6896 = vadd.f32 %v6867, %v6895
  %v6897 = vpop.f32.mrf.mxu0
  %v6898 = vadd.f32 %v6869, %v6897
  %6899 = vdwg.mxu0
  %6900 = vmatpush.bf16.msra.mxu0 %v4100
  %6901 = vmatpush.bf16.msra.mxu0 %v4098
  %6902 = vmatpush.bf16.msra.mxu0 %v4096
  %6903 = vmatpush.bf16.msra.mxu0 %v4094
  %6904 = vmatpush.bf16.msra.mxu0 %v4092
  %6905 = vmatpush.bf16.msra.mxu0 %v4090
  %6906 = vmatpush.bf16.msra.mxu0 %v4088
  %6907 = vmatpush.bf16.msra.mxu0 %v4086
  %6908 = vmatmul.bf16.gmra.mxu0 %v6568
  %v6909 = vpop.f32.mrf.mxu0
  %v6910 = vadd.f32 %v6881, %v6909
  %v6911 = vpop.f32.mrf.mxu0
  %v6912 = vadd.f32 %v6883, %v6911
  %6913 = vmatmul.bf16.gmra.mxu0 %v6578
  %v6914 = vpop.f32.mrf.mxu0
  %v6915 = vadd.f32 %v6886, %v6914
  %v6916 = vpop.f32.mrf.mxu0
  %v6917 = vadd.f32 %v6888, %v6916
  %6918 = vmatmul.bf16.gmra.mxu0 %v6588
  %v6919 = vpop.f32.mrf.mxu0
  %v6920 = vadd.f32 %v6891, %v6919
  %v6921 = vpop.f32.mrf.mxu0
  %v6922 = vadd.f32 %v6893, %v6921
  %6923 = vmatmul.bf16.gmra.mxu0 %v6598
  %v6924 = vpop.f32.mrf.mxu0
  %v6925 = vadd.f32 %v6896, %v6924
  %v6926 = vpop.f32.mrf.mxu0
  %v6927 = vadd.f32 %v6898, %v6926
  %6928 = vdwg.mxu0
  %6929 = vmatpush.bf16.msra.mxu0 %v3957
  %6930 = vmatpush.bf16.msra.mxu0 %v3955
  %6931 = vmatpush.bf16.msra.mxu0 %v3953
  %6932 = vmatpush.bf16.msra.mxu0 %v3951
  %6933 = vmatpush.bf16.msra.mxu0 %v3949
  %6934 = vmatpush.bf16.msra.mxu0 %v3947
  %6935 = vmatpush.bf16.msra.mxu0 %v3945
  %6936 = vmatpush.bf16.msra.mxu0 %v3943
  %6937 = vmatmul.bf16.gmra.mxu0 %v6559
  %v6938 = vpop.f32.mrf.mxu0
  %v6939 = vadd.f32 0.0, %v6938
  %v6940 = vpop.f32.mrf.mxu0
  %v6941 = vadd.f32 0.0, %v6940
  %6942 = vmatmul.bf16.gmra.mxu0 %v6569
  %v6943 = vpop.f32.mrf.mxu0
  %v6944 = vadd.f32 0.0, %v6943
  %v6945 = vpop.f32.mrf.mxu0
  %v6946 = vadd.f32 0.0, %v6945
  %6947 = vmatmul.bf16.gmra.mxu0 %v6579
  %v6948 = vpop.f32.mrf.mxu0
  %v6949 = vadd.f32 0.0, %v6948
  %v6950 = vpop.f32.mrf.mxu0
  %v6951 = vadd.f32 0.0, %v6950
  %6952 = vmatmul.bf16.gmra.mxu0 %v6589
  %v6953 = vpop.f32.mrf.mxu0
  %v6954 = vadd.f32 0.0, %v6953
  %v6955 = vpop.f32.mrf.mxu0
  %v6956 = vadd.f32 0.0, %v6955
  %6957 = vdwg.mxu0
  %6958 = vmatpush.bf16.msra.mxu0 %v3973
  %6959 = vmatpush.bf16.msra.mxu0 %v3971
  %6960 = vmatpush.bf16.msra.mxu0 %v3969
  %6961 = vmatpush.bf16.msra.mxu0 %v3967
  %6962 = vmatpush.bf16.msra.mxu0 %v3965
  %6963 = vmatpush.bf16.msra.mxu0 %v3963
  %6964 = vmatpush.bf16.msra.mxu0 %v3961
  %6965 = vmatpush.bf16.msra.mxu0 %v3959
  %6966 = vmatmul.bf16.gmra.mxu0 %v6560
  %v6967 = vpop.f32.mrf.mxu0
  %v6968 = vadd.f32 %v6939, %v6967
  %v6969 = vpop.f32.mrf.mxu0
  %v6970 = vadd.f32 %v6941, %v6969
  %6971 = vmatmul.bf16.gmra.mxu0 %v6570
  %v6972 = vpop.f32.mrf.mxu0
  %v6973 = vadd.f32 %v6944, %v6972
  %v6974 = vpop.f32.mrf.mxu0
  %v6975 = vadd.f32 %v6946, %v6974
  %6976 = vmatmul.bf16.gmra.mxu0 %v6580
  %v6977 = vpop.f32.mrf.mxu0
  %v6978 = vadd.f32 %v6949, %v6977
  %v6979 = vpop.f32.mrf.mxu0
  %v6980 = vadd.f32 %v6951, %v6979
  %6981 = vmatmul.bf16.gmra.mxu0 %v6590
  %v6982 = vpop.f32.mrf.mxu0
  %v6983 = vadd.f32 %v6954, %v6982
  %v6984 = vpop.f32.mrf.mxu0
  %v6985 = vadd.f32 %v6956, %v6984
  %6986 = vdwg.mxu0
  %6987 = vmatpush.bf16.msra.mxu0 %v3989
  %6988 = vmatpush.bf16.msra.mxu0 %v3987
  %6989 = vmatpush.bf16.msra.mxu0 %v3985
  %6990 = vmatpush.bf16.msra.mxu0 %v3983
  %6991 = vmatpush.bf16.msra.mxu0 %v3981
  %6992 = vmatpush.bf16.msra.mxu0 %v3979
  %6993 = vmatpush.bf16.msra.mxu0 %v3977
  %6994 = vmatpush.bf16.msra.mxu0 %v3975
  %6995 = vmatmul.bf16.gmra.mxu0 %v6561
  %v6996 = vpop.f32.mrf.mxu0
  %v6997 = vadd.f32 %v6968, %v6996
  %v6998 = vpop.f32.mrf.mxu0
  %v6999 = vadd.f32 %v6970, %v6998
  %7000 = vmatmul.bf16.gmra.mxu0 %v6571
  %v7001 = vpop.f32.mrf.mxu0
  %v7002 = vadd.f32 %v6973, %v7001
  %v7003 = vpop.f32.mrf.mxu0
  %v7004 = vadd.f32 %v6975, %v7003
  %7005 = vmatmul.bf16.gmra.mxu0 %v6581
  %v7006 = vpop.f32.mrf.mxu0
  %v7007 = vadd.f32 %v6978, %v7006
  %v7008 = vpop.f32.mrf.mxu0
  %v7009 = vadd.f32 %v6980, %v7008
  %7010 = vmatmul.bf16.gmra.mxu0 %v6591
  %v7011 = vpop.f32.mrf.mxu0
  %v7012 = vadd.f32 %v6983, %v7011
  %v7013 = vpop.f32.mrf.mxu0
  %v7014 = vadd.f32 %v6985, %v7013
  %7015 = vdwg.mxu0
  %7016 = vmatpush.bf16.msra.mxu0 %v4005
  %7017 = vmatpush.bf16.msra.mxu0 %v4003
  %7018 = vmatpush.bf16.msra.mxu0 %v4001
  %7019 = vmatpush.bf16.msra.mxu0 %v3999
  %7020 = vmatpush.bf16.msra.mxu0 %v3997
  %7021 = vmatpush.bf16.msra.mxu0 %v3995
  %7022 = vmatpush.bf16.msra.mxu0 %v3993
  %7023 = vmatpush.bf16.msra.mxu0 %v3991
  %7024 = vmatmul.bf16.gmra.mxu0 %v6562
  %v7025 = vpop.f32.mrf.mxu0
  %v7026 = vadd.f32 %v6997, %v7025
  %v7027 = vpop.f32.mrf.mxu0
  %v7028 = vadd.f32 %v6999, %v7027
  %7029 = vmatmul.bf16.gmra.mxu0 %v6572
  %v7030 = vpop.f32.mrf.mxu0
  %v7031 = vadd.f32 %v7002, %v7030
  %v7032 = vpop.f32.mrf.mxu0
  %v7033 = vadd.f32 %v7004, %v7032
  %7034 = vmatmul.bf16.gmra.mxu0 %v6582
  %v7035 = vpop.f32.mrf.mxu0
  %v7036 = vadd.f32 %v7007, %v7035
  %v7037 = vpop.f32.mrf.mxu0
  %v7038 = vadd.f32 %v7009, %v7037
  %7039 = vmatmul.bf16.gmra.mxu0 %v6592
  %v7040 = vpop.f32.mrf.mxu0
  %v7041 = vadd.f32 %v7012, %v7040
  %v7042 = vpop.f32.mrf.mxu0
  %v7043 = vadd.f32 %v7014, %v7042
  %7044 = vdwg.mxu0
  %7045 = vmatpush.bf16.msra.mxu0 %v4021
  %7046 = vmatpush.bf16.msra.mxu0 %v4019
  %7047 = vmatpush.bf16.msra.mxu0 %v4017
  %7048 = vmatpush.bf16.msra.mxu0 %v4015
  %7049 = vmatpush.bf16.msra.mxu0 %v4013
  %7050 = vmatpush.bf16.msra.mxu0 %v4011
  %7051 = vmatpush.bf16.msra.mxu0 %v4009
  %7052 = vmatpush.bf16.msra.mxu0 %v4007
  %7053 = vmatmul.bf16.gmra.mxu0 %v6563
  %v7054 = vpop.f32.mrf.mxu0
  %v7055 = vadd.f32 %v7026, %v7054
  %v7056 = vpop.f32.mrf.mxu0
  %v7057 = vadd.f32 %v7028, %v7056
  %7058 = vmatmul.bf16.gmra.mxu0 %v6573
  %v7059 = vpop.f32.mrf.mxu0
  %v7060 = vadd.f32 %v7031, %v7059
  %v7061 = vpop.f32.mrf.mxu0
  %v7062 = vadd.f32 %v7033, %v7061
  %7063 = vmatmul.bf16.gmra.mxu0 %v6583
  %v7064 = vpop.f32.mrf.mxu0
  %v7065 = vadd.f32 %v7036, %v7064
  %v7066 = vpop.f32.mrf.mxu0
  %v7067 = vadd.f32 %v7038, %v7066
  %7068 = vmatmul.bf16.gmra.mxu0 %v6593
  %v7069 = vpop.f32.mrf.mxu0
  %v7070 = vadd.f32 %v7041, %v7069
  %v7071 = vpop.f32.mrf.mxu0
  %v7072 = vadd.f32 %v7043, %v7071
  %7073 = vdwg.mxu0
  %7074 = vmatpush.bf16.msra.mxu0 %v4037
  %7075 = vmatpush.bf16.msra.mxu0 %v4035
  %7076 = vmatpush.bf16.msra.mxu0 %v4033
  %7077 = vmatpush.bf16.msra.mxu0 %v4031
  %7078 = vmatpush.bf16.msra.mxu0 %v4029
  %7079 = vmatpush.bf16.msra.mxu0 %v4027
  %7080 = vmatpush.bf16.msra.mxu0 %v4025
  %7081 = vmatpush.bf16.msra.mxu0 %v4023
  %7082 = vmatmul.bf16.gmra.mxu0 %v6564
  %v7083 = vpop.f32.mrf.mxu0
  %v7084 = vadd.f32 %v7055, %v7083
  %v7085 = vpop.f32.mrf.mxu0
  %v7086 = vadd.f32 %v7057, %v7085
  %7087 = vmatmul.bf16.gmra.mxu0 %v6574
  %v7088 = vpop.f32.mrf.mxu0
  %v7089 = vadd.f32 %v7060, %v7088
  %v7090 = vpop.f32.mrf.mxu0
  %v7091 = vadd.f32 %v7062, %v7090
  %7092 = vmatmul.bf16.gmra.mxu0 %v6584
  %v7093 = vpop.f32.mrf.mxu0
  %v7094 = vadd.f32 %v7065, %v7093
  %v7095 = vpop.f32.mrf.mxu0
  %v7096 = vadd.f32 %v7067, %v7095
  %7097 = vmatmul.bf16.gmra.mxu0 %v6594
  %v7098 = vpop.f32.mrf.mxu0
  %v7099 = vadd.f32 %v7070, %v7098
  %v7100 = vpop.f32.mrf.mxu0
  %v7101 = vadd.f32 %v7072, %v7100
  %7102 = vdwg.mxu0
  %7103 = vmatpush.bf16.msra.mxu0 %v4053
  %7104 = vmatpush.bf16.msra.mxu0 %v4051
  %7105 = vmatpush.bf16.msra.mxu0 %v4049
  %7106 = vmatpush.bf16.msra.mxu0 %v4047
  %7107 = vmatpush.bf16.msra.mxu0 %v4045
  %7108 = vmatpush.bf16.msra.mxu0 %v4043
  %7109 = vmatpush.bf16.msra.mxu0 %v4041
  %7110 = vmatpush.bf16.msra.mxu0 %v4039
  %7111 = vmatmul.bf16.gmra.mxu0 %v6565
  %v7112 = vpop.f32.mrf.mxu0
  %v7113 = vadd.f32 %v7084, %v7112
  %v7114 = vpop.f32.mrf.mxu0
  %v7115 = vadd.f32 %v7086, %v7114
  %7116 = vmatmul.bf16.gmra.mxu0 %v6575
  %v7117 = vpop.f32.mrf.mxu0
  %v7118 = vadd.f32 %v7089, %v7117
  %v7119 = vpop.f32.mrf.mxu0
  %v7120 = vadd.f32 %v7091, %v7119
  %7121 = vmatmul.bf16.gmra.mxu0 %v6585
  %v7122 = vpop.f32.mrf.mxu0
  %v7123 = vadd.f32 %v7094, %v7122
  %v7124 = vpop.f32.mrf.mxu0
  %v7125 = vadd.f32 %v7096, %v7124
  %7126 = vmatmul.bf16.gmra.mxu0 %v6595
  %v7127 = vpop.f32.mrf.mxu0
  %v7128 = vadd.f32 %v7099, %v7127
  %v7129 = vpop.f32.mrf.mxu0
  %v7130 = vadd.f32 %v7101, %v7129
  %7131 = vdwg.mxu0
  %7132 = vmatpush.bf16.msra.mxu0 %v4069
  %7133 = vmatpush.bf16.msra.mxu0 %v4067
  %7134 = vmatpush.bf16.msra.mxu0 %v4065
  %7135 = vmatpush.bf16.msra.mxu0 %v4063
  %7136 = vmatpush.bf16.msra.mxu0 %v4061
  %7137 = vmatpush.bf16.msra.mxu0 %v4059
  %7138 = vmatpush.bf16.msra.mxu0 %v4057
  %7139 = vmatpush.bf16.msra.mxu0 %v4055
  %7140 = vmatmul.bf16.gmra.mxu0 %v6566
  %v7141 = vpop.f32.mrf.mxu0
  %v7142 = vadd.f32 %v7113, %v7141
  %v7143 = vpop.f32.mrf.mxu0
  %v7144 = vadd.f32 %v7115, %v7143
  %7145 = vmatmul.bf16.gmra.mxu0 %v6576
  %v7146 = vpop.f32.mrf.mxu0
  %v7147 = vadd.f32 %v7118, %v7146
  %v7148 = vpop.f32.mrf.mxu0
  %v7149 = vadd.f32 %v7120, %v7148
  %7150 = vmatmul.bf16.gmra.mxu0 %v6586
  %v7151 = vpop.f32.mrf.mxu0
  %v7152 = vadd.f32 %v7123, %v7151
  %v7153 = vpop.f32.mrf.mxu0
  %v7154 = vadd.f32 %v7125, %v7153
  %7155 = vmatmul.bf16.gmra.mxu0 %v6596
  %v7156 = vpop.f32.mrf.mxu0
  %v7157 = vadd.f32 %v7128, %v7156
  %v7158 = vpop.f32.mrf.mxu0
  %v7159 = vadd.f32 %v7130, %v7158
  %7160 = vdwg.mxu0
  %7161 = vmatpush.bf16.msra.mxu0 %v4085
  %7162 = vmatpush.bf16.msra.mxu0 %v4083
  %7163 = vmatpush.bf16.msra.mxu0 %v4081
  %7164 = vmatpush.bf16.msra.mxu0 %v4079
  %7165 = vmatpush.bf16.msra.mxu0 %v4077
  %7166 = vmatpush.bf16.msra.mxu0 %v4075
  %7167 = vmatpush.bf16.msra.mxu0 %v4073
  %7168 = vmatpush.bf16.msra.mxu0 %v4071
  %7169 = vmatmul.bf16.gmra.mxu0 %v6567
  %v7170 = vpop.f32.mrf.mxu0
  %v7171 = vadd.f32 %v7142, %v7170
  %v7172 = vpop.f32.mrf.mxu0
  %v7173 = vadd.f32 %v7144, %v7172
  %7174 = vmatmul.bf16.gmra.mxu0 %v6577
  %v7175 = vpop.f32.mrf.mxu0
  %v7176 = vadd.f32 %v7147, %v7175
  %v7177 = vpop.f32.mrf.mxu0
  %v7178 = vadd.f32 %v7149, %v7177
  %7179 = vmatmul.bf16.gmra.mxu0 %v6587
  %v7180 = vpop.f32.mrf.mxu0
  %v7181 = vadd.f32 %v7152, %v7180
  %v7182 = vpop.f32.mrf.mxu0
  %v7183 = vadd.f32 %v7154, %v7182
  %7184 = vmatmul.bf16.gmra.mxu0 %v6597
  %v7185 = vpop.f32.mrf.mxu0
  %v7186 = vadd.f32 %v7157, %v7185
  %v7187 = vpop.f32.mrf.mxu0
  %v7188 = vadd.f32 %v7159, %v7187
  %7189 = vdwg.mxu0
  %7190 = vmatpush.bf16.msra.mxu0 %v4101
  %7191 = vmatpush.bf16.msra.mxu0 %v4099
  %7192 = vmatpush.bf16.msra.mxu0 %v4097
  %7193 = vmatpush.bf16.msra.mxu0 %v4095
  %7194 = vmatpush.bf16.msra.mxu0 %v4093
  %7195 = vmatpush.bf16.msra.mxu0 %v4091
  %7196 = vmatpush.bf16.msra.mxu0 %v4089
  %7197 = vmatpush.bf16.msra.mxu0 %v4087
  %7198 = vmatmul.bf16.gmra.mxu0 %v6568
  %v7199 = vpop.f32.mrf.mxu0
  %v7200 = vadd.f32 %v7171, %v7199
  %v7201 = vpop.f32.mrf.mxu0
  %v7202 = vadd.f32 %v7173, %v7201
  %7203 = vmatmul.bf16.gmra.mxu0 %v6578
  %v7204 = vpop.f32.mrf.mxu0
  %v7205 = vadd.f32 %v7176, %v7204
  %v7206 = vpop.f32.mrf.mxu0
  %v7207 = vadd.f32 %v7178, %v7206
  %7208 = vmatmul.bf16.gmra.mxu0 %v6588
  %v7209 = vpop.f32.mrf.mxu0
  %v7210 = vadd.f32 %v7181, %v7209
  %v7211 = vpop.f32.mrf.mxu0
  %v7212 = vadd.f32 %v7183, %v7211
  %7213 = vmatmul.bf16.gmra.mxu0 %v6598
  %v7214 = vpop.f32.mrf.mxu0
  %v7215 = vadd.f32 %v7186, %v7214
  %v7216 = vpop.f32.mrf.mxu0
  %v7217 = vadd.f32 %v7188, %v7216
  %7218 = vdwg.mxu0
  %v7219 = vmax.f32 %v6383, %v6910
  %v7220 = vmax.f32 %v6384, %v7200
  %v7221 = vmax.f32 %v6385, %v6912
  %v7222 = vmax.f32 %v6386, %v7202
  %v7223 = vmax.f32 %v6387, %v6915
  %v7224 = vmax.f32 %v6388, %v7205
  %v7225 = vmax.f32 %v6389, %v6917
  %v7226 = vmax.f32 %v6390, %v7207
  %v7227 = vmax.f32 %v6391, %v6920
  %v7228 = vmax.f32 %v6392, %v7210
  %v7229 = vmax.f32 %v6393, %v6922
  %v7230 = vmax.f32 %v6394, %v7212
  %v7231 = vmax.f32 %v6395, %v6925
  %v7232 = vmax.f32 %v6396, %v7215
  %v7233 = vmax.f32 %v6397, %v6927
  %v7234 = vmax.f32 %v6398, %v7217
  %7235 = vmatpush.bf16.msra.mxu0 %v5497
  %7236 = vmatpush.bf16.msra.mxu0 %v5495
  %7237 = vmatpush.bf16.msra.mxu0 %v5493
  %7238 = vmatpush.bf16.msra.mxu0 %v5491
  %7239 = vmatpush.bf16.msra.mxu0 %v5489
  %7240 = vmatpush.bf16.msra.mxu0 %v5487
  %7241 = vmatpush.bf16.msra.mxu0 %v5485
  %7242 = vmatpush.bf16.msra.mxu0 %v5483
  %7243 = vmatmul.bf16.gmra.mxu0 %v6559
  %v7244 = vpop.f32.mrf.mxu0
  %v7245 = vadd.f32 0.0, %v7244
  %v7246 = vpop.f32.mrf.mxu0
  %v7247 = vadd.f32 0.0, %v7246
  %7248 = vmatmul.bf16.gmra.mxu0 %v6569
  %v7249 = vpop.f32.mrf.mxu0
  %v7250 = vadd.f32 0.0, %v7249
  %v7251 = vpop.f32.mrf.mxu0
  %v7252 = vadd.f32 0.0, %v7251
  %7253 = vmatmul.bf16.gmra.mxu0 %v6579
  %v7254 = vpop.f32.mrf.mxu0
  %v7255 = vadd.f32 0.0, %v7254
  %v7256 = vpop.f32.mrf.mxu0
  %v7257 = vadd.f32 0.0, %v7256
  %7258 = vmatmul.bf16.gmra.mxu0 %v6589
  %v7259 = vpop.f32.mrf.mxu0
  %v7260 = vadd.f32 0.0, %v7259
  %v7261 = vpop.f32.mrf.mxu0
  %v7262 = vadd.f32 0.0, %v7261
  %7263 = vdwg.mxu0
  %7264 = vmatpush.bf16.msra.mxu0 %v5513
  %7265 = vmatpush.bf16.msra.mxu0 %v5511
  %7266 = vmatpush.bf16.msra.mxu0 %v5509
  %7267 = vmatpush.bf16.msra.mxu0 %v5507
  %7268 = vmatpush.bf16.msra.mxu0 %v5505
  %7269 = vmatpush.bf16.msra.mxu0 %v5503
  %7270 = vmatpush.bf16.msra.mxu0 %v5501
  %7271 = vmatpush.bf16.msra.mxu0 %v5499
  %7272 = vmatmul.bf16.gmra.mxu0 %v6560
  %v7273 = vpop.f32.mrf.mxu0
  %v7274 = vadd.f32 %v7245, %v7273
  %v7275 = vpop.f32.mrf.mxu0
  %v7276 = vadd.f32 %v7247, %v7275
  %7277 = vmatmul.bf16.gmra.mxu0 %v6570
  %v7278 = vpop.f32.mrf.mxu0
  %v7279 = vadd.f32 %v7250, %v7278
  %v7280 = vpop.f32.mrf.mxu0
  %v7281 = vadd.f32 %v7252, %v7280
  %7282 = vmatmul.bf16.gmra.mxu0 %v6580
  %v7283 = vpop.f32.mrf.mxu0
  %v7284 = vadd.f32 %v7255, %v7283
  %v7285 = vpop.f32.mrf.mxu0
  %v7286 = vadd.f32 %v7257, %v7285
  %7287 = vmatmul.bf16.gmra.mxu0 %v6590
  %v7288 = vpop.f32.mrf.mxu0
  %v7289 = vadd.f32 %v7260, %v7288
  %v7290 = vpop.f32.mrf.mxu0
  %v7291 = vadd.f32 %v7262, %v7290
  %7292 = vdwg.mxu0
  %7293 = vmatpush.bf16.msra.mxu0 %v5529
  %7294 = vmatpush.bf16.msra.mxu0 %v5527
  %7295 = vmatpush.bf16.msra.mxu0 %v5525
  %7296 = vmatpush.bf16.msra.mxu0 %v5523
  %7297 = vmatpush.bf16.msra.mxu0 %v5521
  %7298 = vmatpush.bf16.msra.mxu0 %v5519
  %7299 = vmatpush.bf16.msra.mxu0 %v5517
  %7300 = vmatpush.bf16.msra.mxu0 %v5515
  %7301 = vmatmul.bf16.gmra.mxu0 %v6561
  %v7302 = vpop.f32.mrf.mxu0
  %v7303 = vadd.f32 %v7274, %v7302
  %v7304 = vpop.f32.mrf.mxu0
  %v7305 = vadd.f32 %v7276, %v7304
  %7306 = vmatmul.bf16.gmra.mxu0 %v6571
  %v7307 = vpop.f32.mrf.mxu0
  %v7308 = vadd.f32 %v7279, %v7307
  %v7309 = vpop.f32.mrf.mxu0
  %v7310 = vadd.f32 %v7281, %v7309
  %7311 = vmatmul.bf16.gmra.mxu0 %v6581
  %v7312 = vpop.f32.mrf.mxu0
  %v7313 = vadd.f32 %v7284, %v7312
  %v7314 = vpop.f32.mrf.mxu0
  %v7315 = vadd.f32 %v7286, %v7314
  %7316 = vmatmul.bf16.gmra.mxu0 %v6591
  %v7317 = vpop.f32.mrf.mxu0
  %v7318 = vadd.f32 %v7289, %v7317
  %v7319 = vpop.f32.mrf.mxu0
  %v7320 = vadd.f32 %v7291, %v7319
  %7321 = vdwg.mxu0
  %7322 = vmatpush.bf16.msra.mxu0 %v5545
  %7323 = vmatpush.bf16.msra.mxu0 %v5543
  %7324 = vmatpush.bf16.msra.mxu0 %v5541
  %7325 = vmatpush.bf16.msra.mxu0 %v5539
  %7326 = vmatpush.bf16.msra.mxu0 %v5537
  %7327 = vmatpush.bf16.msra.mxu0 %v5535
  %7328 = vmatpush.bf16.msra.mxu0 %v5533
  %7329 = vmatpush.bf16.msra.mxu0 %v5531
  %7330 = vmatmul.bf16.gmra.mxu0 %v6562
  %v7331 = vpop.f32.mrf.mxu0
  %v7332 = vadd.f32 %v7303, %v7331
  %v7333 = vpop.f32.mrf.mxu0
  %v7334 = vadd.f32 %v7305, %v7333
  %7335 = vmatmul.bf16.gmra.mxu0 %v6572
  %v7336 = vpop.f32.mrf.mxu0
  %v7337 = vadd.f32 %v7308, %v7336
  %v7338 = vpop.f32.mrf.mxu0
  %v7339 = vadd.f32 %v7310, %v7338
  %7340 = vmatmul.bf16.gmra.mxu0 %v6582
  %v7341 = vpop.f32.mrf.mxu0
  %v7342 = vadd.f32 %v7313, %v7341
  %v7343 = vpop.f32.mrf.mxu0
  %v7344 = vadd.f32 %v7315, %v7343
  %7345 = vmatmul.bf16.gmra.mxu0 %v6592
  %v7346 = vpop.f32.mrf.mxu0
  %v7347 = vadd.f32 %v7318, %v7346
  %v7348 = vpop.f32.mrf.mxu0
  %v7349 = vadd.f32 %v7320, %v7348
  %7350 = vdwg.mxu0
  %7351 = vmatpush.bf16.msra.mxu0 %v5561
  %7352 = vmatpush.bf16.msra.mxu0 %v5559
  %7353 = vmatpush.bf16.msra.mxu0 %v5557
  %7354 = vmatpush.bf16.msra.mxu0 %v5555
  %7355 = vmatpush.bf16.msra.mxu0 %v5553
  %7356 = vmatpush.bf16.msra.mxu0 %v5551
  %7357 = vmatpush.bf16.msra.mxu0 %v5549
  %7358 = vmatpush.bf16.msra.mxu0 %v5547
  %7359 = vmatmul.bf16.gmra.mxu0 %v6563
  %v7360 = vpop.f32.mrf.mxu0
  %v7361 = vadd.f32 %v7332, %v7360
  %v7362 = vpop.f32.mrf.mxu0
  %v7363 = vadd.f32 %v7334, %v7362
  %7364 = vmatmul.bf16.gmra.mxu0 %v6573
  %v7365 = vpop.f32.mrf.mxu0
  %v7366 = vadd.f32 %v7337, %v7365
  %v7367 = vpop.f32.mrf.mxu0
  %v7368 = vadd.f32 %v7339, %v7367
  %7369 = vmatmul.bf16.gmra.mxu0 %v6583
  %v7370 = vpop.f32.mrf.mxu0
  %v7371 = vadd.f32 %v7342, %v7370
  %v7372 = vpop.f32.mrf.mxu0
  %v7373 = vadd.f32 %v7344, %v7372
  %7374 = vmatmul.bf16.gmra.mxu0 %v6593
  %v7375 = vpop.f32.mrf.mxu0
  %v7376 = vadd.f32 %v7347, %v7375
  %v7377 = vpop.f32.mrf.mxu0
  %v7378 = vadd.f32 %v7349, %v7377
  %7379 = vdwg.mxu0
  %7380 = vmatpush.bf16.msra.mxu0 %v5577
  %7381 = vmatpush.bf16.msra.mxu0 %v5575
  %7382 = vmatpush.bf16.msra.mxu0 %v5573
  %7383 = vmatpush.bf16.msra.mxu0 %v5571
  %7384 = vmatpush.bf16.msra.mxu0 %v5569
  %7385 = vmatpush.bf16.msra.mxu0 %v5567
  %7386 = vmatpush.bf16.msra.mxu0 %v5565
  %7387 = vmatpush.bf16.msra.mxu0 %v5563
  %7388 = vmatmul.bf16.gmra.mxu0 %v6564
  %v7389 = vpop.f32.mrf.mxu0
  %v7390 = vadd.f32 %v7361, %v7389
  %v7391 = vpop.f32.mrf.mxu0
  %v7392 = vadd.f32 %v7363, %v7391
  %7393 = vmatmul.bf16.gmra.mxu0 %v6574
  %v7394 = vpop.f32.mrf.mxu0
  %v7395 = vadd.f32 %v7366, %v7394
  %v7396 = vpop.f32.mrf.mxu0
  %v7397 = vadd.f32 %v7368, %v7396
  %7398 = vmatmul.bf16.gmra.mxu0 %v6584
  %v7399 = vpop.f32.mrf.mxu0
  %v7400 = vadd.f32 %v7371, %v7399
  %v7401 = vpop.f32.mrf.mxu0
  %v7402 = vadd.f32 %v7373, %v7401
  %7403 = vmatmul.bf16.gmra.mxu0 %v6594
  %v7404 = vpop.f32.mrf.mxu0
  %v7405 = vadd.f32 %v7376, %v7404
  %v7406 = vpop.f32.mrf.mxu0
  %v7407 = vadd.f32 %v7378, %v7406
  %7408 = vdwg.mxu0
  %7409 = vmatpush.bf16.msra.mxu0 %v5593
  %7410 = vmatpush.bf16.msra.mxu0 %v5591
  %7411 = vmatpush.bf16.msra.mxu0 %v5589
  %7412 = vmatpush.bf16.msra.mxu0 %v5587
  %7413 = vmatpush.bf16.msra.mxu0 %v5585
  %7414 = vmatpush.bf16.msra.mxu0 %v5583
  %7415 = vmatpush.bf16.msra.mxu0 %v5581
  %7416 = vmatpush.bf16.msra.mxu0 %v5579
  %7417 = vmatmul.bf16.gmra.mxu0 %v6565
  %v7418 = vpop.f32.mrf.mxu0
  %v7419 = vadd.f32 %v7390, %v7418
  %v7420 = vpop.f32.mrf.mxu0
  %v7421 = vadd.f32 %v7392, %v7420
  %7422 = vmatmul.bf16.gmra.mxu0 %v6575
  %v7423 = vpop.f32.mrf.mxu0
  %v7424 = vadd.f32 %v7395, %v7423
  %v7425 = vpop.f32.mrf.mxu0
  %v7426 = vadd.f32 %v7397, %v7425
  %7427 = vmatmul.bf16.gmra.mxu0 %v6585
  %v7428 = vpop.f32.mrf.mxu0
  %v7429 = vadd.f32 %v7400, %v7428
  %v7430 = vpop.f32.mrf.mxu0
  %v7431 = vadd.f32 %v7402, %v7430
  %7432 = vmatmul.bf16.gmra.mxu0 %v6595
  %v7433 = vpop.f32.mrf.mxu0
  %v7434 = vadd.f32 %v7405, %v7433
  %v7435 = vpop.f32.mrf.mxu0
  %v7436 = vadd.f32 %v7407, %v7435
  %7437 = vdwg.mxu0
  %7438 = vmatpush.bf16.msra.mxu0 %v5609
  %7439 = vmatpush.bf16.msra.mxu0 %v5607
  %7440 = vmatpush.bf16.msra.mxu0 %v5605
  %7441 = vmatpush.bf16.msra.mxu0 %v5603
  %7442 = vmatpush.bf16.msra.mxu0 %v5601
  %7443 = vmatpush.bf16.msra.mxu0 %v5599
  %7444 = vmatpush.bf16.msra.mxu0 %v5597
  %7445 = vmatpush.bf16.msra.mxu0 %v5595
  %7446 = vmatmul.bf16.gmra.mxu0 %v6566
  %v7447 = vpop.f32.mrf.mxu0
  %v7448 = vadd.f32 %v7419, %v7447
  %v7449 = vpop.f32.mrf.mxu0
  %v7450 = vadd.f32 %v7421, %v7449
  %7451 = vmatmul.bf16.gmra.mxu0 %v6576
  %v7452 = vpop.f32.mrf.mxu0
  %v7453 = vadd.f32 %v7424, %v7452
  %v7454 = vpop.f32.mrf.mxu0
  %v7455 = vadd.f32 %v7426, %v7454
  %7456 = vmatmul.bf16.gmra.mxu0 %v6586
  %v7457 = vpop.f32.mrf.mxu0
  %v7458 = vadd.f32 %v7429, %v7457
  %v7459 = vpop.f32.mrf.mxu0
  %v7460 = vadd.f32 %v7431, %v7459
  %7461 = vmatmul.bf16.gmra.mxu0 %v6596
  %v7462 = vpop.f32.mrf.mxu0
  %v7463 = vadd.f32 %v7434, %v7462
  %v7464 = vpop.f32.mrf.mxu0
  %v7465 = vadd.f32 %v7436, %v7464
  %7466 = vdwg.mxu0
  %7467 = vmatpush.bf16.msra.mxu0 %v5625
  %7468 = vmatpush.bf16.msra.mxu0 %v5623
  %7469 = vmatpush.bf16.msra.mxu0 %v5621
  %7470 = vmatpush.bf16.msra.mxu0 %v5619
  %7471 = vmatpush.bf16.msra.mxu0 %v5617
  %7472 = vmatpush.bf16.msra.mxu0 %v5615
  %7473 = vmatpush.bf16.msra.mxu0 %v5613
  %7474 = vmatpush.bf16.msra.mxu0 %v5611
  %7475 = vmatmul.bf16.gmra.mxu0 %v6567
  %v7476 = vpop.f32.mrf.mxu0
  %v7477 = vadd.f32 %v7448, %v7476
  %v7478 = vpop.f32.mrf.mxu0
  %v7479 = vadd.f32 %v7450, %v7478
  %7480 = vmatmul.bf16.gmra.mxu0 %v6577
  %v7481 = vpop.f32.mrf.mxu0
  %v7482 = vadd.f32 %v7453, %v7481
  %v7483 = vpop.f32.mrf.mxu0
  %v7484 = vadd.f32 %v7455, %v7483
  %7485 = vmatmul.bf16.gmra.mxu0 %v6587
  %v7486 = vpop.f32.mrf.mxu0
  %v7487 = vadd.f32 %v7458, %v7486
  %v7488 = vpop.f32.mrf.mxu0
  %v7489 = vadd.f32 %v7460, %v7488
  %7490 = vmatmul.bf16.gmra.mxu0 %v6597
  %v7491 = vpop.f32.mrf.mxu0
  %v7492 = vadd.f32 %v7463, %v7491
  %v7493 = vpop.f32.mrf.mxu0
  %v7494 = vadd.f32 %v7465, %v7493
  %7495 = vdwg.mxu0
  %7496 = vmatpush.bf16.msra.mxu0 %v5641
  %7497 = vmatpush.bf16.msra.mxu0 %v5639
  %7498 = vmatpush.bf16.msra.mxu0 %v5637
  %7499 = vmatpush.bf16.msra.mxu0 %v5635
  %7500 = vmatpush.bf16.msra.mxu0 %v5633
  %7501 = vmatpush.bf16.msra.mxu0 %v5631
  %7502 = vmatpush.bf16.msra.mxu0 %v5629
  %7503 = vmatpush.bf16.msra.mxu0 %v5627
  %7504 = vmatmul.bf16.gmra.mxu0 %v6568
  %v7505 = vpop.f32.mrf.mxu0
  %v7506 = vadd.f32 %v7477, %v7505
  %v7507 = vpop.f32.mrf.mxu0
  %v7508 = vadd.f32 %v7479, %v7507
  %7509 = vmatmul.bf16.gmra.mxu0 %v6578
  %v7510 = vpop.f32.mrf.mxu0
  %v7511 = vadd.f32 %v7482, %v7510
  %v7512 = vpop.f32.mrf.mxu0
  %v7513 = vadd.f32 %v7484, %v7512
  %7514 = vmatmul.bf16.gmra.mxu0 %v6588
  %v7515 = vpop.f32.mrf.mxu0
  %v7516 = vadd.f32 %v7487, %v7515
  %v7517 = vpop.f32.mrf.mxu0
  %v7518 = vadd.f32 %v7489, %v7517
  %7519 = vmatmul.bf16.gmra.mxu0 %v6598
  %v7520 = vpop.f32.mrf.mxu0
  %v7521 = vadd.f32 %v7492, %v7520
  %v7522 = vpop.f32.mrf.mxu0
  %v7523 = vadd.f32 %v7494, %v7522
  %7524 = vdwg.mxu0
  %7525 = vmatpush.bf16.msra.mxu0 %v5498
  %7526 = vmatpush.bf16.msra.mxu0 %v5496
  %7527 = vmatpush.bf16.msra.mxu0 %v5494
  %7528 = vmatpush.bf16.msra.mxu0 %v5492
  %7529 = vmatpush.bf16.msra.mxu0 %v5490
  %7530 = vmatpush.bf16.msra.mxu0 %v5488
  %7531 = vmatpush.bf16.msra.mxu0 %v5486
  %7532 = vmatpush.bf16.msra.mxu0 %v5484
  %7533 = vmatmul.bf16.gmra.mxu0 %v6559
  %v7534 = vpop.f32.mrf.mxu0
  %v7535 = vadd.f32 0.0, %v7534
  %v7536 = vpop.f32.mrf.mxu0
  %v7537 = vadd.f32 0.0, %v7536
  %7538 = vmatmul.bf16.gmra.mxu0 %v6569
  %v7539 = vpop.f32.mrf.mxu0
  %v7540 = vadd.f32 0.0, %v7539
  %v7541 = vpop.f32.mrf.mxu0
  %v7542 = vadd.f32 0.0, %v7541
  %7543 = vmatmul.bf16.gmra.mxu0 %v6579
  %v7544 = vpop.f32.mrf.mxu0
  %v7545 = vadd.f32 0.0, %v7544
  %v7546 = vpop.f32.mrf.mxu0
  %v7547 = vadd.f32 0.0, %v7546
  %7548 = vmatmul.bf16.gmra.mxu0 %v6589
  %v7549 = vpop.f32.mrf.mxu0
  %v7550 = vadd.f32 0.0, %v7549
  %v7551 = vpop.f32.mrf.mxu0
  %v7552 = vadd.f32 0.0, %v7551
  %7553 = vdwg.mxu0
  %7554 = vmatpush.bf16.msra.mxu0 %v5514
  %7555 = vmatpush.bf16.msra.mxu0 %v5512
  %7556 = vmatpush.bf16.msra.mxu0 %v5510
  %7557 = vmatpush.bf16.msra.mxu0 %v5508
  %7558 = vmatpush.bf16.msra.mxu0 %v5506
  %7559 = vmatpush.bf16.msra.mxu0 %v5504
  %7560 = vmatpush.bf16.msra.mxu0 %v5502
  %7561 = vmatpush.bf16.msra.mxu0 %v5500
  %7562 = vmatmul.bf16.gmra.mxu0 %v6560
  %v7563 = vpop.f32.mrf.mxu0
  %v7564 = vadd.f32 %v7535, %v7563
  %v7565 = vpop.f32.mrf.mxu0
  %v7566 = vadd.f32 %v7537, %v7565
  %7567 = vmatmul.bf16.gmra.mxu0 %v6570
  %v7568 = vpop.f32.mrf.mxu0
  %v7569 = vadd.f32 %v7540, %v7568
  %v7570 = vpop.f32.mrf.mxu0
  %v7571 = vadd.f32 %v7542, %v7570
  %7572 = vmatmul.bf16.gmra.mxu0 %v6580
  %v7573 = vpop.f32.mrf.mxu0
  %v7574 = vadd.f32 %v7545, %v7573
  %v7575 = vpop.f32.mrf.mxu0
  %v7576 = vadd.f32 %v7547, %v7575
  %7577 = vmatmul.bf16.gmra.mxu0 %v6590
  %v7578 = vpop.f32.mrf.mxu0
  %v7579 = vadd.f32 %v7550, %v7578
  %v7580 = vpop.f32.mrf.mxu0
  %v7581 = vadd.f32 %v7552, %v7580
  %7582 = vdwg.mxu0
  %7583 = vmatpush.bf16.msra.mxu0 %v5530
  %7584 = vmatpush.bf16.msra.mxu0 %v5528
  %7585 = vmatpush.bf16.msra.mxu0 %v5526
  %7586 = vmatpush.bf16.msra.mxu0 %v5524
  %7587 = vmatpush.bf16.msra.mxu0 %v5522
  %7588 = vmatpush.bf16.msra.mxu0 %v5520
  %7589 = vmatpush.bf16.msra.mxu0 %v5518
  %7590 = vmatpush.bf16.msra.mxu0 %v5516
  %7591 = vmatmul.bf16.gmra.mxu0 %v6561
  %v7592 = vpop.f32.mrf.mxu0
  %v7593 = vadd.f32 %v7564, %v7592
  %v7594 = vpop.f32.mrf.mxu0
  %v7595 = vadd.f32 %v7566, %v7594
  %7596 = vmatmul.bf16.gmra.mxu0 %v6571
  %v7597 = vpop.f32.mrf.mxu0
  %v7598 = vadd.f32 %v7569, %v7597
  %v7599 = vpop.f32.mrf.mxu0
  %v7600 = vadd.f32 %v7571, %v7599
  %7601 = vmatmul.bf16.gmra.mxu0 %v6581
  %v7602 = vpop.f32.mrf.mxu0
  %v7603 = vadd.f32 %v7574, %v7602
  %v7604 = vpop.f32.mrf.mxu0
  %v7605 = vadd.f32 %v7576, %v7604
  %7606 = vmatmul.bf16.gmra.mxu0 %v6591
  %v7607 = vpop.f32.mrf.mxu0
  %v7608 = vadd.f32 %v7579, %v7607
  %v7609 = vpop.f32.mrf.mxu0
  %v7610 = vadd.f32 %v7581, %v7609
  %7611 = vdwg.mxu0
  %7612 = vmatpush.bf16.msra.mxu0 %v5546
  %7613 = vmatpush.bf16.msra.mxu0 %v5544
  %7614 = vmatpush.bf16.msra.mxu0 %v5542
  %7615 = vmatpush.bf16.msra.mxu0 %v5540
  %7616 = vmatpush.bf16.msra.mxu0 %v5538
  %7617 = vmatpush.bf16.msra.mxu0 %v5536
  %7618 = vmatpush.bf16.msra.mxu0 %v5534
  %7619 = vmatpush.bf16.msra.mxu0 %v5532
  %7620 = vmatmul.bf16.gmra.mxu0 %v6562
  %v7621 = vpop.f32.mrf.mxu0
  %v7622 = vadd.f32 %v7593, %v7621
  %v7623 = vpop.f32.mrf.mxu0
  %v7624 = vadd.f32 %v7595, %v7623
  %7625 = vmatmul.bf16.gmra.mxu0 %v6572
  %v7626 = vpop.f32.mrf.mxu0
  %v7627 = vadd.f32 %v7598, %v7626
  %v7628 = vpop.f32.mrf.mxu0
  %v7629 = vadd.f32 %v7600, %v7628
  %7630 = vmatmul.bf16.gmra.mxu0 %v6582
  %v7631 = vpop.f32.mrf.mxu0
  %v7632 = vadd.f32 %v7603, %v7631
  %v7633 = vpop.f32.mrf.mxu0
  %v7634 = vadd.f32 %v7605, %v7633
  %7635 = vmatmul.bf16.gmra.mxu0 %v6592
  %v7636 = vpop.f32.mrf.mxu0
  %v7637 = vadd.f32 %v7608, %v7636
  %v7638 = vpop.f32.mrf.mxu0
  %v7639 = vadd.f32 %v7610, %v7638
  %7640 = vdwg.mxu0
  %7641 = vmatpush.bf16.msra.mxu0 %v5562
  %7642 = vmatpush.bf16.msra.mxu0 %v5560
  %7643 = vmatpush.bf16.msra.mxu0 %v5558
  %7644 = vmatpush.bf16.msra.mxu0 %v5556
  %7645 = vmatpush.bf16.msra.mxu0 %v5554
  %7646 = vmatpush.bf16.msra.mxu0 %v5552
  %7647 = vmatpush.bf16.msra.mxu0 %v5550
  %7648 = vmatpush.bf16.msra.mxu0 %v5548
  %7649 = vmatmul.bf16.gmra.mxu0 %v6563
  %v7650 = vpop.f32.mrf.mxu0
  %v7651 = vadd.f32 %v7622, %v7650
  %v7652 = vpop.f32.mrf.mxu0
  %v7653 = vadd.f32 %v7624, %v7652
  %7654 = vmatmul.bf16.gmra.mxu0 %v6573
  %v7655 = vpop.f32.mrf.mxu0
  %v7656 = vadd.f32 %v7627, %v7655
  %v7657 = vpop.f32.mrf.mxu0
  %v7658 = vadd.f32 %v7629, %v7657
  %7659 = vmatmul.bf16.gmra.mxu0 %v6583
  %v7660 = vpop.f32.mrf.mxu0
  %v7661 = vadd.f32 %v7632, %v7660
  %v7662 = vpop.f32.mrf.mxu0
  %v7663 = vadd.f32 %v7634, %v7662
  %7664 = vmatmul.bf16.gmra.mxu0 %v6593
  %v7665 = vpop.f32.mrf.mxu0
  %v7666 = vadd.f32 %v7637, %v7665
  %v7667 = vpop.f32.mrf.mxu0
  %v7668 = vadd.f32 %v7639, %v7667
  %7669 = vdwg.mxu0
  %7670 = vmatpush.bf16.msra.mxu0 %v5578
  %7671 = vmatpush.bf16.msra.mxu0 %v5576
  %7672 = vmatpush.bf16.msra.mxu0 %v5574
  %7673 = vmatpush.bf16.msra.mxu0 %v5572
  %7674 = vmatpush.bf16.msra.mxu0 %v5570
  %7675 = vmatpush.bf16.msra.mxu0 %v5568
  %7676 = vmatpush.bf16.msra.mxu0 %v5566
  %7677 = vmatpush.bf16.msra.mxu0 %v5564
  %7678 = vmatmul.bf16.gmra.mxu0 %v6564
  %v7679 = vpop.f32.mrf.mxu0
  %v7680 = vadd.f32 %v7651, %v7679
  %v7681 = vpop.f32.mrf.mxu0
  %v7682 = vadd.f32 %v7653, %v7681
  %7683 = vmatmul.bf16.gmra.mxu0 %v6574
  %v7684 = vpop.f32.mrf.mxu0
  %v7685 = vadd.f32 %v7656, %v7684
  %v7686 = vpop.f32.mrf.mxu0
  %v7687 = vadd.f32 %v7658, %v7686
  %7688 = vmatmul.bf16.gmra.mxu0 %v6584
  %v7689 = vpop.f32.mrf.mxu0
  %v7690 = vadd.f32 %v7661, %v7689
  %v7691 = vpop.f32.mrf.mxu0
  %v7692 = vadd.f32 %v7663, %v7691
  %7693 = vmatmul.bf16.gmra.mxu0 %v6594
  %v7694 = vpop.f32.mrf.mxu0
  %v7695 = vadd.f32 %v7666, %v7694
  %v7696 = vpop.f32.mrf.mxu0
  %v7697 = vadd.f32 %v7668, %v7696
  %7698 = vdwg.mxu0
  %7699 = vmatpush.bf16.msra.mxu0 %v5594
  %7700 = vmatpush.bf16.msra.mxu0 %v5592
  %7701 = vmatpush.bf16.msra.mxu0 %v5590
  %7702 = vmatpush.bf16.msra.mxu0 %v5588
  %7703 = vmatpush.bf16.msra.mxu0 %v5586
  %7704 = vmatpush.bf16.msra.mxu0 %v5584
  %7705 = vmatpush.bf16.msra.mxu0 %v5582
  %7706 = vmatpush.bf16.msra.mxu0 %v5580
  %7707 = vmatmul.bf16.gmra.mxu0 %v6565
  %v7708 = vpop.f32.mrf.mxu0
  %v7709 = vadd.f32 %v7680, %v7708
  %v7710 = vpop.f32.mrf.mxu0
  %v7711 = vadd.f32 %v7682, %v7710
  %7712 = vmatmul.bf16.gmra.mxu0 %v6575
  %v7713 = vpop.f32.mrf.mxu0
  %v7714 = vadd.f32 %v7685, %v7713
  %v7715 = vpop.f32.mrf.mxu0
  %v7716 = vadd.f32 %v7687, %v7715
  %7717 = vmatmul.bf16.gmra.mxu0 %v6585
  %v7718 = vpop.f32.mrf.mxu0
  %v7719 = vadd.f32 %v7690, %v7718
  %v7720 = vpop.f32.mrf.mxu0
  %v7721 = vadd.f32 %v7692, %v7720
  %7722 = vmatmul.bf16.gmra.mxu0 %v6595
  %v7723 = vpop.f32.mrf.mxu0
  %v7724 = vadd.f32 %v7695, %v7723
  %v7725 = vpop.f32.mrf.mxu0
  %v7726 = vadd.f32 %v7697, %v7725
  %7727 = vdwg.mxu0
  %7728 = vmatpush.bf16.msra.mxu0 %v5610
  %7729 = vmatpush.bf16.msra.mxu0 %v5608
  %7730 = vmatpush.bf16.msra.mxu0 %v5606
  %7731 = vmatpush.bf16.msra.mxu0 %v5604
  %7732 = vmatpush.bf16.msra.mxu0 %v5602
  %7733 = vmatpush.bf16.msra.mxu0 %v5600
  %7734 = vmatpush.bf16.msra.mxu0 %v5598
  %7735 = vmatpush.bf16.msra.mxu0 %v5596
  %7736 = vmatmul.bf16.gmra.mxu0 %v6566
  %v7737 = vpop.f32.mrf.mxu0
  %v7738 = vadd.f32 %v7709, %v7737
  %v7739 = vpop.f32.mrf.mxu0
  %v7740 = vadd.f32 %v7711, %v7739
  %7741 = vmatmul.bf16.gmra.mxu0 %v6576
  %v7742 = vpop.f32.mrf.mxu0
  %v7743 = vadd.f32 %v7714, %v7742
  %v7744 = vpop.f32.mrf.mxu0
  %v7745 = vadd.f32 %v7716, %v7744
  %7746 = vmatmul.bf16.gmra.mxu0 %v6586
  %v7747 = vpop.f32.mrf.mxu0
  %v7748 = vadd.f32 %v7719, %v7747
  %v7749 = vpop.f32.mrf.mxu0
  %v7750 = vadd.f32 %v7721, %v7749
  %7751 = vmatmul.bf16.gmra.mxu0 %v6596
  %v7752 = vpop.f32.mrf.mxu0
  %v7753 = vadd.f32 %v7724, %v7752
  %v7754 = vpop.f32.mrf.mxu0
  %v7755 = vadd.f32 %v7726, %v7754
  %7756 = vdwg.mxu0
  %7757 = vmatpush.bf16.msra.mxu0 %v5626
  %7758 = vmatpush.bf16.msra.mxu0 %v5624
  %7759 = vmatpush.bf16.msra.mxu0 %v5622
  %7760 = vmatpush.bf16.msra.mxu0 %v5620
  %7761 = vmatpush.bf16.msra.mxu0 %v5618
  %7762 = vmatpush.bf16.msra.mxu0 %v5616
  %7763 = vmatpush.bf16.msra.mxu0 %v5614
  %7764 = vmatpush.bf16.msra.mxu0 %v5612
  %7765 = vmatmul.bf16.gmra.mxu0 %v6567
  %v7766 = vpop.f32.mrf.mxu0
  %v7767 = vadd.f32 %v7738, %v7766
  %v7768 = vpop.f32.mrf.mxu0
  %v7769 = vadd.f32 %v7740, %v7768
  %7770 = vmatmul.bf16.gmra.mxu0 %v6577
  %v7771 = vpop.f32.mrf.mxu0
  %v7772 = vadd.f32 %v7743, %v7771
  %v7773 = vpop.f32.mrf.mxu0
  %v7774 = vadd.f32 %v7745, %v7773
  %7775 = vmatmul.bf16.gmra.mxu0 %v6587
  %v7776 = vpop.f32.mrf.mxu0
  %v7777 = vadd.f32 %v7748, %v7776
  %v7778 = vpop.f32.mrf.mxu0
  %v7779 = vadd.f32 %v7750, %v7778
  %7780 = vmatmul.bf16.gmra.mxu0 %v6597
  %v7781 = vpop.f32.mrf.mxu0
  %v7782 = vadd.f32 %v7753, %v7781
  %v7783 = vpop.f32.mrf.mxu0
  %v7784 = vadd.f32 %v7755, %v7783
  %7785 = vdwg.mxu0
  %7786 = vmatpush.bf16.msra.mxu0 %v5642
  %7787 = vmatpush.bf16.msra.mxu0 %v5640
  %7788 = vmatpush.bf16.msra.mxu0 %v5638
  %7789 = vmatpush.bf16.msra.mxu0 %v5636
  %7790 = vmatpush.bf16.msra.mxu0 %v5634
  %7791 = vmatpush.bf16.msra.mxu0 %v5632
  %7792 = vmatpush.bf16.msra.mxu0 %v5630
  %7793 = vmatpush.bf16.msra.mxu0 %v5628
  %7794 = vmatmul.bf16.gmra.mxu0 %v6568
  %v7795 = vpop.f32.mrf.mxu0
  %v7796 = vadd.f32 %v7767, %v7795
  %v7797 = vpop.f32.mrf.mxu0
  %v7798 = vadd.f32 %v7769, %v7797
  %7799 = vmatmul.bf16.gmra.mxu0 %v6578
  %v7800 = vpop.f32.mrf.mxu0
  %v7801 = vadd.f32 %v7772, %v7800
  %v7802 = vpop.f32.mrf.mxu0
  %v7803 = vadd.f32 %v7774, %v7802
  %7804 = vmatmul.bf16.gmra.mxu0 %v6588
  %v7805 = vpop.f32.mrf.mxu0
  %v7806 = vadd.f32 %v7777, %v7805
  %v7807 = vpop.f32.mrf.mxu0
  %v7808 = vadd.f32 %v7779, %v7807
  %7809 = vmatmul.bf16.gmra.mxu0 %v6598
  %v7810 = vpop.f32.mrf.mxu0
  %v7811 = vadd.f32 %v7782, %v7810
  %v7812 = vpop.f32.mrf.mxu0
  %v7813 = vadd.f32 %v7784, %v7812
  %7814 = vdwg.mxu0
  %v7815 = vmax.f32 %v7219, %v7506
  %v7816 = vmax.f32 %v7220, %v7796
  %v7817 = vmax.f32 %v7221, %v7508
  %v7818 = vmax.f32 %v7222, %v7798
  %v7819 = vmax.f32 %v7223, %v7511
  %v7820 = vmax.f32 %v7224, %v7801
  %v7821 = vmax.f32 %v7225, %v7513
  %v7822 = vmax.f32 %v7226, %v7803
  %v7823 = vmax.f32 %v7227, %v7516
  %v7824 = vmax.f32 %v7228, %v7806
  %v7825 = vmax.f32 %v7229, %v7518
  %v7826 = vmax.f32 %v7230, %v7808
  %v7827 = vmax.f32 %v7231, %v7521
  %v7828 = vmax.f32 %v7232, %v7811
  %v7829 = vmax.f32 %v7233, %v7523
  %v7830 = vmax.f32 %v7234, %v7813
  %v7831 = vld [vmem:[%s4] sm:$0x3]
  %v7833 = vperm.slane %v7831, 0
  %v7834 = vperm.slane %v7831, 1
  %v7837 = vadd.f32 %v7815, %v7833
  %v7838 = vadd.f32 %v7816, %v7834
  %v7839 = vadd.f32 %v7817, %v7833
  %v7840 = vadd.f32 %v7818, %v7834
  %v7841 = vadd.f32 %v7819, %v7833
  %v7842 = vadd.f32 %v7820, %v7834
  %v7843 = vadd.f32 %v7821, %v7833
  %v7844 = vadd.f32 %v7822, %v7834
  %v7845 = vadd.f32 %v7823, %v7833
  %v7846 = vadd.f32 %v7824, %v7834
  %v7847 = vadd.f32 %v7825, %v7833
  %v7848 = vadd.f32 %v7826, %v7834
  %v7849 = vadd.f32 %v7827, %v7833
  %v7850 = vadd.f32 %v7828, %v7834
  %v7851 = vadd.f32 %v7829, %v7833
  %v7852 = vadd.f32 %v7830, %v7834
  %v7853 = vmax.f32 %v7837, 0.0
  %v7854 = vmax.f32 %v7838, 0.0
  %v7855 = vmax.f32 %v7839, 0.0
  %v7856 = vmax.f32 %v7840, 0.0
  %v7857 = vmax.f32 %v7841, 0.0
  %v7858 = vmax.f32 %v7842, 0.0
  %v7859 = vmax.f32 %v7843, 0.0
  %v7860 = vmax.f32 %v7844, 0.0
  %v7861 = vmax.f32 %v7845, 0.0
  %v7862 = vmax.f32 %v7846, 0.0
  %v7863 = vmax.f32 %v7847, 0.0
  %v7864 = vmax.f32 %v7848, 0.0
  %v7865 = vmax.f32 %v7849, 0.0
  %v7866 = vmax.f32 %v7850, 0.0
  %v7867 = vmax.f32 %v7851, 0.0
  %v7868 = vmax.f32 %v7852, 0.0
  %v7869 = vpack.c.bf16 %v7854, %v7853
  %v7870 = vpack.c.bf16 %v7856, %v7855
  %v7871 = vpack.c.bf16 %v7858, %v7857
  %v7872 = vpack.c.bf16 %v7860, %v7859
  %v7873 = vpack.c.bf16 %v7862, %v7861
  %v7874 = vpack.c.bf16 %v7864, %v7863
  %v7875 = vpack.c.bf16 %v7866, %v7865
  %v7876 = vpack.c.bf16 %v7868, %v7867
  %v7877 = vld [vmem:[%s5] sm:$0xf]
  %v7878 = vld [vmem:[%s5 + $0x4] sm:$0xf]
  %v7879 = vld [vmem:[%s5 + $0x8] sm:$0xf]
  %v7880 = vld [vmem:[%s5 + $0xc] sm:$0xf]
  %v7881 = vld [vmem:[%s5 + $0x10] sm:$0xf]
  %v7882 = vld [vmem:[%s5 + $0x14] sm:$0xf]
  %v7883 = vld [vmem:[%s5 + $0x18] sm:$0xf]
  %v7884 = vld [vmem:[%s5 + $0x1c] sm:$0xf]
  %v7885 = vld [vmem:[%s5 + $0x20] sm:$0xf]
  %v7886 = vld [vmem:[%s5 + $0x24] sm:$0xf]
  %v7887 = vld [vmem:[%s5 + $0x28] sm:$0xf]
  %v7888 = vld [vmem:[%s5 + $0x2c] sm:$0xf]
  %v7889 = vld [vmem:[%s5 + $0x30] sm:$0xf]
  %v7890 = vld [vmem:[%s5 + $0x34] sm:$0xf]
  %v7891 = vld [vmem:[%s5 + $0x38] sm:$0xf]
  %v7892 = vld [vmem:[%s5 + $0x3c] sm:$0xf]
  %v7893 = vld [vmem:[%s5 + $0x40] sm:$0xf]
  %v7894 = vld [vmem:[%s5 + $0x44] sm:$0xf]
  %v7895 = vld [vmem:[%s5 + $0x48] sm:$0xf]
  %v7896 = vld [vmem:[%s5 + $0x4c] sm:$0xf]
  %v7897 = vld [vmem:[%s5 + $0x50] sm:$0xf]
  %v7898 = vld [vmem:[%s5 + $0x54] sm:$0xf]
  %v7899 = vld [vmem:[%s5 + $0x58] sm:$0xf]
  %v7900 = vld [vmem:[%s5 + $0x5c] sm:$0xf]
  %v7901 = vld [vmem:[%s5 + $0x60] sm:$0xf]
  %s7902 = scalar_lea.vmem %s5, 100
  %v7903 = vld [vmem:[%s7902] sm:$0xf]
  %v7904 = vld [vmem:[%s7902 + $0x4] sm:$0xf]
  %v7905 = vld [vmem:[%s7902 + $0x8] sm:$0xf]
  %v7906 = vld [vmem:[%s7902 + $0xc] sm:$0xf]
  %v7907 = vld [vmem:[%s7902 + $0x10] sm:$0xf]
  %v7908 = vld [vmem:[%s7902 + $0x14] sm:$0xf]
  %v7909 = vld [vmem:[%s7902 + $0x18] sm:$0xf]
  %v7910 = vld [vmem:[%s7902 + $0x1c] sm:$0xf]
  %v7911 = vld [vmem:[%s7902 + $0x20] sm:$0xf]
  %v7912 = vld [vmem:[%s7902 + $0x24] sm:$0xf]
  %v7913 = vld [vmem:[%s7902 + $0x28] sm:$0xf]
  %v7914 = vld [vmem:[%s7902 + $0x2c] sm:$0xf]
  %v7915 = vld [vmem:[%s7902 + $0x30] sm:$0xf]
  %v7916 = vld [vmem:[%s7902 + $0x34] sm:$0xf]
  %v7917 = vld [vmem:[%s7902 + $0x38] sm:$0xf]
  %v7918 = vld [vmem:[%s7902 + $0x3c] sm:$0xf]
  %v7919 = vld [vmem:[%s7902 + $0x40] sm:$0xf]
  %v7920 = vld [vmem:[%s7902 + $0x44] sm:$0xf]
  %v7921 = vld [vmem:[%s7902 + $0x48] sm:$0xf]
  %v7922 = vld [vmem:[%s7902 + $0x4c] sm:$0xf]
  %v7923 = vld [vmem:[%s7902 + $0x50] sm:$0xf]
  %v7924 = vld [vmem:[%s7902 + $0x54] sm:$0xf]
  %v7925 = vld [vmem:[%s7902 + $0x58] sm:$0xf]
  %v7926 = vld [vmem:[%s7902 + $0x5c] sm:$0xf]
  %v7927 = vld [vmem:[%s7902 + $0x60] sm:$0xf]
  %v7930 = vunpack.c.l.b16 %v7871
  %v7931 = vunpack.c.h.b16 %v7871
  %v7932 = vunpack.c.l.b16 %v7872
  %v7933 = vunpack.c.h.b16 %v7872
  %v7934 = vpack.c.b16 %v7932, %v7930
  %v7935 = vpack.c.b16 %v7933, %v7931
  %v7962 = vunpack.c.l.b16 %v7903
  %v7963 = vunpack.c.l.b16 %v7904
  %v7964 = vunpack.c.l.b16 %v7905
  %v7965 = vunpack.c.l.b16 %v7906
  %v7966 = vunpack.c.l.b16 %v7907
  %v7967 = vunpack.c.l.b16 %v7908
  %v7968 = vunpack.c.l.b16 %v7909
  %v7969 = vunpack.c.l.b16 %v7910
  %v7970 = vunpack.c.l.b16 %v7911
  %v7971 = vunpack.c.l.b16 %v7912
  %v7972 = vunpack.c.l.b16 %v7913
  %v7973 = vunpack.c.l.b16 %v7914
  %v7974 = vunpack.c.l.b16 %v7915
  %v7975 = vunpack.c.l.b16 %v7916
  %v7976 = vunpack.c.l.b16 %v7917
  %v7977 = vunpack.c.l.b16 %v7918
  %v7978 = vunpack.c.l.b16 %v7919
  %v7979 = vunpack.c.l.b16 %v7920
  %v7980 = vunpack.c.l.b16 %v7921
  %v7981 = vunpack.c.l.b16 %v7922
  %v7982 = vunpack.c.l.b16 %v7923
  %v7983 = vunpack.c.l.b16 %v7924
  %v7984 = vunpack.c.l.b16 %v7925
  %v7985 = vunpack.c.l.b16 %v7926
  %v7986 = vunpack.c.l.b16 %v7927
  %v7987 = vpack.c.b16 %v7963, %v7962
  %v7988 = vpack.c.b16 %v7965, %v7964
  %v7989 = vpack.c.b16 %v7967, %v7966
  %v7990 = vpack.c.b16 %v7969, %v7968
  %v7991 = vpack.c.b16 %v7971, %v7970
  %v7992 = vpack.c.b16 %v7973, %v7972
  %v7993 = vpack.c.b16 %v7975, %v7974
  %v7994 = vpack.c.b16 %v7977, %v7976
  %v7995 = vpack.c.b16 %v7979, %v7978
  %v7996 = vpack.c.b16 %v7981, %v7980
  %v7997 = vpack.c.b16 %v7983, %v7982
  %v7998 = vpack.c.b16 %v7985, %v7984
  %v7999 = vpack.c.b16 %v7986, %v7986
  %vm8012 = vcmask 588800
  %v8014 = vsel %vm8012, %v7935, 0
  %vm8016 = vcmask 1043456
  %v8018 = vsel %vm8016, %v7999, 0
  %8020 = vmatpush.bf16.msra.mxu0 %v7994
  %8021 = vmatpush.bf16.msra.mxu0 %v7993
  %8022 = vmatpush.bf16.msra.mxu0 %v7992
  %8023 = vmatpush.bf16.msra.mxu0 %v7991
  %8024 = vmatpush.bf16.msra.mxu0 %v7990
  %8025 = vmatpush.bf16.msra.mxu0 %v7989
  %8026 = vmatpush.bf16.msra.mxu0 %v7988
  %8027 = vmatpush.bf16.msra.mxu0 %v7987
  %8028 = vmatmul.bf16.gmra.mxu0 %v7934
  %v8029 = vpop.f32.mrf.mxu0
  %v8030 = vadd.f32 0.0, %v8029
  %v8031 = vpop.f32.mrf.mxu0
  %v8032 = vadd.f32 0.0, %v8031
  %8033 = vdwg.mxu0
  %8034 = vmatpush.bf16.msra.mxu0 0
  %8035 = vmatpush.bf16.msra.mxu0 0
  %8036 = vmatpush.bf16.msra.mxu0 0
  %8037 = vmatpush.bf16.msra.mxu0 %v8018
  %8038 = vmatpush.bf16.msra.mxu0 %v7998
  %8039 = vmatpush.bf16.msra.mxu0 %v7997
  %8040 = vmatpush.bf16.msra.mxu0 %v7996
  %8041 = vmatpush.bf16.msra.mxu0 %v7995
  %8042 = vmatmul.bf16.gmra.mxu0 %v8014
  %v8043 = vpop.f32.mrf.mxu0
  %v8044 = vadd.f32 %v8030, %v8043
  %v8045 = vpop.f32.mrf.mxu0
  %v8046 = vadd.f32 %v8032, %v8045
  %8047 = vdwg.mxu0
  %v8050 = vunpack.c.l.b16 %v7869
  %v8051 = vunpack.c.h.b16 %v7869
  %v8052 = vunpack.c.l.b16 %v7870
  %v8053 = vunpack.c.h.b16 %v7870
  %v8054 = vpack.c.b16 %v8052, %v8050
  %v8055 = vpack.c.b16 %v8053, %v8051
  %v8082 = vunpack.c.l.b16 %v7877
  %v8083 = vunpack.c.l.b16 %v7878
  %v8084 = vunpack.c.l.b16 %v7879
  %v8085 = vunpack.c.l.b16 %v7880
  %v8086 = vunpack.c.l.b16 %v7881
  %v8087 = vunpack.c.l.b16 %v7882
  %v8088 = vunpack.c.l.b16 %v7883
  %v8089 = vunpack.c.l.b16 %v7884
  %v8090 = vunpack.c.l.b16 %v7885
  %v8091 = vunpack.c.l.b16 %v7886
  %v8092 = vunpack.c.l.b16 %v7887
  %v8093 = vunpack.c.l.b16 %v7888
  %v8094 = vunpack.c.l.b16 %v7889
  %v8095 = vunpack.c.l.b16 %v7890
  %v8096 = vunpack.c.l.b16 %v7891
  %v8097 = vunpack.c.l.b16 %v7892
  %v8098 = vunpack.c.l.b16 %v7893
  %v8099 = vunpack.c.l.b16 %v7894
  %v8100 = vunpack.c.l.b16 %v7895
  %v8101 = vunpack.c.l.b16 %v7896
  %v8102 = vunpack.c.l.b16 %v7897
  %v8103 = vunpack.c.l.b16 %v7898
  %v8104 = vunpack.c.l.b16 %v7899
  %v8105 = vunpack.c.l.b16 %v7900
  %v8106 = vunpack.c.l.b16 %v7901
  %v8107 = vpack.c.b16 %v8083, %v8082
  %v8108 = vpack.c.b16 %v8085, %v8084
  %v8109 = vpack.c.b16 %v8087, %v8086
  %v8110 = vpack.c.b16 %v8089, %v8088
  %v8111 = vpack.c.b16 %v8091, %v8090
  %v8112 = vpack.c.b16 %v8093, %v8092
  %v8113 = vpack.c.b16 %v8095, %v8094
  %v8114 = vpack.c.b16 %v8097, %v8096
  %v8115 = vpack.c.b16 %v8099, %v8098
  %v8116 = vpack.c.b16 %v8101, %v8100
  %v8117 = vpack.c.b16 %v8103, %v8102
  %v8118 = vpack.c.b16 %v8105, %v8104
  %v8119 = vpack.c.b16 %v8106, %v8106
  %v8133 = vsel %vm8012, %v8055, 0
  %v8136 = vsel %vm8016, %v8119, 0
  %8138 = vmatpush.bf16.msra.mxu0 %v8114
  %8139 = vmatpush.bf16.msra.mxu0 %v8113
  %8140 = vmatpush.bf16.msra.mxu0 %v8112
  %8141 = vmatpush.bf16.msra.mxu0 %v8111
  %8142 = vmatpush.bf16.msra.mxu0 %v8110
  %8143 = vmatpush.bf16.msra.mxu0 %v8109
  %8144 = vmatpush.bf16.msra.mxu0 %v8108
  %8145 = vmatpush.bf16.msra.mxu0 %v8107
  %8146 = vmatmul.bf16.gmra.mxu0 %v8054
  %v8147 = vpop.f32.mrf.mxu0
  %v8148 = vadd.f32 %v8044, %v8147
  %v8149 = vpop.f32.mrf.mxu0
  %v8150 = vadd.f32 %v8046, %v8149
  %8151 = vdwg.mxu0
  %8152 = vmatpush.bf16.msra.mxu0 0
  %8153 = vmatpush.bf16.msra.mxu0 0
  %8154 = vmatpush.bf16.msra.mxu0 0
  %8155 = vmatpush.bf16.msra.mxu0 %v8136
  %8156 = vmatpush.bf16.msra.mxu0 %v8118
  %8157 = vmatpush.bf16.msra.mxu0 %v8117
  %8158 = vmatpush.bf16.msra.mxu0 %v8116
  %8159 = vmatpush.bf16.msra.mxu0 %v8115
  %8160 = vmatmul.bf16.gmra.mxu0 %v8133
  %v8161 = vpop.f32.mrf.mxu0
  %v8162 = vadd.f32 %v8148, %v8161
  %v8163 = vpop.f32.mrf.mxu0
  %v8164 = vadd.f32 %v8150, %v8163
  %8165 = vdwg.mxu0
  %s8166 = scalar_lea.vmem %s5, 200
  %v8167 = vld [vmem:[%s8166] sm:$0xf]
  %v8168 = vld [vmem:[%s8166 + $0x4] sm:$0xf]
  %v8169 = vld [vmem:[%s8166 + $0x8] sm:$0xf]
  %v8170 = vld [vmem:[%s8166 + $0xc] sm:$0xf]
  %v8171 = vld [vmem:[%s8166 + $0x10] sm:$0xf]
  %v8172 = vld [vmem:[%s8166 + $0x14] sm:$0xf]
  %v8173 = vld [vmem:[%s8166 + $0x18] sm:$0xf]
  %v8174 = vld [vmem:[%s8166 + $0x1c] sm:$0xf]
  %v8175 = vld [vmem:[%s8166 + $0x20] sm:$0xf]
  %v8176 = vld [vmem:[%s8166 + $0x24] sm:$0xf]
  %v8177 = vld [vmem:[%s8166 + $0x28] sm:$0xf]
  %v8178 = vld [vmem:[%s8166 + $0x2c] sm:$0xf]
  %v8179 = vld [vmem:[%s8166 + $0x30] sm:$0xf]
  %v8180 = vld [vmem:[%s8166 + $0x34] sm:$0xf]
  %v8181 = vld [vmem:[%s8166 + $0x38] sm:$0xf]
  %v8182 = vld [vmem:[%s8166 + $0x3c] sm:$0xf]
  %v8183 = vld [vmem:[%s8166 + $0x40] sm:$0xf]
  %v8184 = vld [vmem:[%s8166 + $0x44] sm:$0xf]
  %v8185 = vld [vmem:[%s8166 + $0x48] sm:$0xf]
  %v8186 = vld [vmem:[%s8166 + $0x4c] sm:$0xf]
  %v8187 = vld [vmem:[%s8166 + $0x50] sm:$0xf]
  %v8188 = vld [vmem:[%s8166 + $0x54] sm:$0xf]
  %v8189 = vld [vmem:[%s8166 + $0x58] sm:$0xf]
  %v8190 = vld [vmem:[%s8166 + $0x5c] sm:$0xf]
  %v8191 = vld [vmem:[%s8166 + $0x60] sm:$0xf]
  %v8194 = vunpack.c.l.b16 %v7873
  %v8195 = vunpack.c.h.b16 %v7873
  %v8196 = vunpack.c.l.b16 %v7874
  %v8197 = vunpack.c.h.b16 %v7874
  %v8198 = vpack.c.b16 %v8196, %v8194
  %v8199 = vpack.c.b16 %v8197, %v8195
  %v8226 = vunpack.c.l.b16 %v8167
  %v8227 = vunpack.c.l.b16 %v8168
  %v8228 = vunpack.c.l.b16 %v8169
  %v8229 = vunpack.c.l.b16 %v8170
  %v8230 = vunpack.c.l.b16 %v8171
  %v8231 = vunpack.c.l.b16 %v8172
  %v8232 = vunpack.c.l.b16 %v8173
  %v8233 = vunpack.c.l.b16 %v8174
  %v8234 = vunpack.c.l.b16 %v8175
  %v8235 = vunpack.c.l.b16 %v8176
  %v8236 = vunpack.c.l.b16 %v8177
  %v8237 = vunpack.c.l.b16 %v8178
  %v8238 = vunpack.c.l.b16 %v8179
  %v8239 = vunpack.c.l.b16 %v8180
  %v8240 = vunpack.c.l.b16 %v8181
  %v8241 = vunpack.c.l.b16 %v8182
  %v8242 = vunpack.c.l.b16 %v8183
  %v8243 = vunpack.c.l.b16 %v8184
  %v8244 = vunpack.c.l.b16 %v8185
  %v8245 = vunpack.c.l.b16 %v8186
  %v8246 = vunpack.c.l.b16 %v8187
  %v8247 = vunpack.c.l.b16 %v8188
  %v8248 = vunpack.c.l.b16 %v8189
  %v8249 = vunpack.c.l.b16 %v8190
  %v8250 = vunpack.c.l.b16 %v8191
  %v8251 = vpack.c.b16 %v8227, %v8226
  %v8252 = vpack.c.b16 %v8229, %v8228
  %v8253 = vpack.c.b16 %v8231, %v8230
  %v8254 = vpack.c.b16 %v8233, %v8232
  %v8255 = vpack.c.b16 %v8235, %v8234
  %v8256 = vpack.c.b16 %v8237, %v8236
  %v8257 = vpack.c.b16 %v8239, %v8238
  %v8258 = vpack.c.b16 %v8241, %v8240
  %v8259 = vpack.c.b16 %v8243, %v8242
  %v8260 = vpack.c.b16 %v8245, %v8244
  %v8261 = vpack.c.b16 %v8247, %v8246
  %v8262 = vpack.c.b16 %v8249, %v8248
  %v8263 = vpack.c.b16 %v8250, %v8250
  %v8277 = vsel %vm8012, %v8199, 0
  %v8280 = vsel %vm8016, %v8263, 0
  %8282 = vmatpush.bf16.msra.mxu0 %v8258
  %8283 = vmatpush.bf16.msra.mxu0 %v8257
  %8284 = vmatpush.bf16.msra.mxu0 %v8256
  %8285 = vmatpush.bf16.msra.mxu0 %v8255
  %8286 = vmatpush.bf16.msra.mxu0 %v8254
  %8287 = vmatpush.bf16.msra.mxu0 %v8253
  %8288 = vmatpush.bf16.msra.mxu0 %v8252
  %8289 = vmatpush.bf16.msra.mxu0 %v8251
  %8290 = vmatmul.bf16.gmra.mxu0 %v8198
  %v8291 = vpop.f32.mrf.mxu0
  %v8292 = vadd.f32 0.0, %v8291
  %v8293 = vpop.f32.mrf.mxu0
  %v8294 = vadd.f32 0.0, %v8293
  %8295 = vdwg.mxu0
  %8296 = vmatpush.bf16.msra.mxu0 0
  %8297 = vmatpush.bf16.msra.mxu0 0
  %8298 = vmatpush.bf16.msra.mxu0 0
  %8299 = vmatpush.bf16.msra.mxu0 %v8280
  %8300 = vmatpush.bf16.msra.mxu0 %v8262
  %8301 = vmatpush.bf16.msra.mxu0 %v8261
  %8302 = vmatpush.bf16.msra.mxu0 %v8260
  %8303 = vmatpush.bf16.msra.mxu0 %v8259
  %8304 = vmatmul.bf16.gmra.mxu0 %v8277
  %v8305 = vpop.f32.mrf.mxu0
  %v8306 = vadd.f32 %v8292, %v8305
  %v8307 = vpop.f32.mrf.mxu0
  %v8308 = vadd.f32 %v8294, %v8307
  %8309 = vdwg.mxu0
  %v8310 = vadd.f32 %v8162, %v8306
  %v8311 = vadd.f32 %v8164, %v8308
  %s8312 = scalar_lea.vmem %s5, 300
  %v8313 = vld [vmem:[%s8312] sm:$0xf]
  %v8314 = vld [vmem:[%s8312 + $0x4] sm:$0xf]
  %v8315 = vld [vmem:[%s8312 + $0x8] sm:$0xf]
  %v8316 = vld [vmem:[%s8312 + $0xc] sm:$0xf]
  %v8317 = vld [vmem:[%s8312 + $0x10] sm:$0xf]
  %v8318 = vld [vmem:[%s8312 + $0x14] sm:$0xf]
  %v8319 = vld [vmem:[%s8312 + $0x18] sm:$0xf]
  %v8320 = vld [vmem:[%s8312 + $0x1c] sm:$0xf]
  %v8321 = vld [vmem:[%s8312 + $0x20] sm:$0xf]
  %v8322 = vld [vmem:[%s8312 + $0x24] sm:$0xf]
  %v8323 = vld [vmem:[%s8312 + $0x28] sm:$0xf]
  %v8324 = vld [vmem:[%s8312 + $0x2c] sm:$0xf]
  %v8325 = vld [vmem:[%s8312 + $0x30] sm:$0xf]
  %v8326 = vld [vmem:[%s8312 + $0x34] sm:$0xf]
  %v8327 = vld [vmem:[%s8312 + $0x38] sm:$0xf]
  %v8328 = vld [vmem:[%s8312 + $0x3c] sm:$0xf]
  %v8329 = vld [vmem:[%s8312 + $0x40] sm:$0xf]
  %v8330 = vld [vmem:[%s8312 + $0x44] sm:$0xf]
  %v8331 = vld [vmem:[%s8312 + $0x48] sm:$0xf]
  %v8332 = vld [vmem:[%s8312 + $0x4c] sm:$0xf]
  %v8333 = vld [vmem:[%s8312 + $0x50] sm:$0xf]
  %v8334 = vld [vmem:[%s8312 + $0x54] sm:$0xf]
  %v8335 = vld [vmem:[%s8312 + $0x58] sm:$0xf]
  %v8336 = vld [vmem:[%s8312 + $0x5c] sm:$0xf]
  %v8337 = vld [vmem:[%s8312 + $0x60] sm:$0xf]
  %v8340 = vunpack.c.l.b16 %v7875
  %v8341 = vunpack.c.h.b16 %v7875
  %v8342 = vunpack.c.l.b16 %v7876
  %v8343 = vunpack.c.h.b16 %v7876
  %v8344 = vpack.c.b16 %v8342, %v8340
  %v8345 = vpack.c.b16 %v8343, %v8341
  %v8372 = vunpack.c.l.b16 %v8313
  %v8373 = vunpack.c.l.b16 %v8314
  %v8374 = vunpack.c.l.b16 %v8315
  %v8375 = vunpack.c.l.b16 %v8316
  %v8376 = vunpack.c.l.b16 %v8317
  %v8377 = vunpack.c.l.b16 %v8318
  %v8378 = vunpack.c.l.b16 %v8319
  %v8379 = vunpack.c.l.b16 %v8320
  %v8380 = vunpack.c.l.b16 %v8321
  %v8381 = vunpack.c.l.b16 %v8322
  %v8382 = vunpack.c.l.b16 %v8323
  %v8383 = vunpack.c.l.b16 %v8324
  %v8384 = vunpack.c.l.b16 %v8325
  %v8385 = vunpack.c.l.b16 %v8326
  %v8386 = vunpack.c.l.b16 %v8327
  %v8387 = vunpack.c.l.b16 %v8328
  %v8388 = vunpack.c.l.b16 %v8329
  %v8389 = vunpack.c.l.b16 %v8330
  %v8390 = vunpack.c.l.b16 %v8331
  %v8391 = vunpack.c.l.b16 %v8332
  %v8392 = vunpack.c.l.b16 %v8333
  %v8393 = vunpack.c.l.b16 %v8334
  %v8394 = vunpack.c.l.b16 %v8335
  %v8395 = vunpack.c.l.b16 %v8336
  %v8396 = vunpack.c.l.b16 %v8337
  %v8397 = vpack.c.b16 %v8373, %v8372
  %v8398 = vpack.c.b16 %v8375, %v8374
  %v8399 = vpack.c.b16 %v8377, %v8376
  %v8400 = vpack.c.b16 %v8379, %v8378
  %v8401 = vpack.c.b16 %v8381, %v8380
  %v8402 = vpack.c.b16 %v8383, %v8382
  %v8403 = vpack.c.b16 %v8385, %v8384
  %v8404 = vpack.c.b16 %v8387, %v8386
  %v8405 = vpack.c.b16 %v8389, %v8388
  %v8406 = vpack.c.b16 %v8391, %v8390
  %v8407 = vpack.c.b16 %v8393, %v8392
  %v8408 = vpack.c.b16 %v8395, %v8394
  %v8409 = vpack.c.b16 %v8396, %v8396
  %v8423 = vsel %vm8012, %v8345, 0
  %v8426 = vsel %vm8016, %v8409, 0
  %8428 = vmatpush.bf16.msra.mxu0 %v8404
  %8429 = vmatpush.bf16.msra.mxu0 %v8403
  %8430 = vmatpush.bf16.msra.mxu0 %v8402
  %8431 = vmatpush.bf16.msra.mxu0 %v8401
  %8432 = vmatpush.bf16.msra.mxu0 %v8400
  %8433 = vmatpush.bf16.msra.mxu0 %v8399
  %8434 = vmatpush.bf16.msra.mxu0 %v8398
  %8435 = vmatpush.bf16.msra.mxu0 %v8397
  %8436 = vmatmul.bf16.gmra.mxu0 %v8344
  %v8437 = vpop.f32.mrf.mxu0
  %v8438 = vadd.f32 0.0, %v8437
  %v8439 = vpop.f32.mrf.mxu0
  %v8440 = vadd.f32 0.0, %v8439
  %8441 = vdwg.mxu0
  %8442 = vmatpush.bf16.msra.mxu0 0
  %8443 = vmatpush.bf16.msra.mxu0 0
  %8444 = vmatpush.bf16.msra.mxu0 0
  %8445 = vmatpush.bf16.msra.mxu0 %v8426
  %8446 = vmatpush.bf16.msra.mxu0 %v8408
  %8447 = vmatpush.bf16.msra.mxu0 %v8407
  %8448 = vmatpush.bf16.msra.mxu0 %v8406
  %8449 = vmatpush.bf16.msra.mxu0 %v8405
  %8450 = vmatmul.bf16.gmra.mxu0 %v8423
  %v8451 = vpop.f32.mrf.mxu0
  %v8452 = vadd.f32 %v8438, %v8451
  %v8453 = vpop.f32.mrf.mxu0
  %v8454 = vadd.f32 %v8440, %v8453
  %8455 = vdwg.mxu0
  %v8456 = vadd.f32 %v8310, %v8452
  %v8457 = vadd.f32 %v8311, %v8454
  %v8458 = vld [vmem:[%s6] sm:$0x1]
  %v8460 = vperm.slane %v8458, 0
  %v8462 = vadd.f32 %v8456, %v8460
  %v8463 = vadd.f32 %v8457, %v8460
  %8464 = vst [vmem:[%s7] sm:$0xff] %v8462
  %8465 = vst [vmem:[%s7 + $0x8] sm:$0xff] %v8463
  // Predicated region
  $region30: #{_forward_impl.1} parent=0 // pred_check
    _
  $region31: #{_forward_impl.1} parent=0 // pred_check_branch
    %8467 = sbr.rel (0) target = $region33
  $region32: #{_forward_impl.1} parent=0 // pred_region
    _
  $region33: #{_forward_impl.1} parent=0 // pred_fallthru
    _
  // Predicated region
  $region34: #{_forward_impl.1} parent=0 // pred_check
    _
  $region35: #{_forward_impl.1} parent=0 // pred_check_branch
    %8469 = sbr.rel (0) target = $region37
  $region36: #{_forward_impl.1} parent=0 // pred_region
    _
  $region37: #{_forward_impl.1} parent=0 // pred_fallthru
    _

</llo_original>
